<compile_context>
chip_gen: v7x
topology: tpu7x:2x2x1
jax: 0.10.0
libtpu: 0.0.40
codegen_flags: <defaults>
</compile_context>

<pallas_src>
import jax
import jax.numpy as jnp
from jax.experimental import pallas as pl
from jax.experimental.pallas import tpu as pltpu


def _conv_all_folded(inp, w_ref, b_ref, H, W, cin):
    """3x3 'same' conv with ALL 9 taps folded into one matmul (K = 9*cin).

    inp: (H+2, W+2, cin) zero-padded value.  w_ref: (9*cin, cout) ref.
    Returns (H*W, cout) f32 (bias added, no activation).
    """
    patch = jnp.concatenate(
        [inp[dh:dh + H, dw:dw + W, :] for dh in range(3) for dw in range(3)],
        axis=-1).reshape(H * W, 9 * cin)
    return jnp.dot(patch, w_ref[...],
                   preferred_element_type=jnp.float32) + b_ref[...]


def _conv_dw_folded(inp, w_ref, b_ref, H, W, cin):
    """3x3 'same' conv with the dw taps folded into K (3 matmuls, K = 3*cin).

    inp: (H+2, W+2, cin) zero-padded value.  w_ref: (3, 3*cin, cout) ref.
    Returns (H*W, cout) f32 (bias added, no activation).
    """
    cout = w_ref.shape[-1]
    acc = jnp.zeros((H * W, cout), jnp.float32)
    for dh in range(3):
        p = jnp.concatenate(
            [inp[dh:dh + H, dw:dw + W, :] for dw in range(3)],
            axis=-1).reshape(H * W, 3 * cin)
        acc = acc + jnp.dot(p, w_ref[dh], preferred_element_type=jnp.float32)
    return acc + b_ref[...]


def refinement_kernel(x_ref, alpha_ref,
                      w1_ref, b1_ref, w2_ref, b2_ref,
                      w3_ref, b3_ref, wp_ref, bp_ref,
                      out_ref, buf_in, buf_a, buf_b):
    H = x_ref.shape[1]
    W = x_ref.shape[2]
    C = 64

    # Zero only the 1-pixel halo strips; the (H, W) interiors are fully
    # overwritten each step, so no full-buffer sweeps.  Done every step so
    # the "parallel" batch axis stays correct on multi-TC chips.
    def zero_halo(buf):
        cw = buf.shape[2]
        buf[0:1, :, :] = jnp.zeros((1, W + 2, cw), jnp.float32)
        buf[H + 1:H + 2, :, :] = jnp.zeros((1, W + 2, cw), jnp.float32)
        buf[:, 0:1, :] = jnp.zeros((H + 2, 1, cw), jnp.float32)
        buf[:, W + 1:W + 2, :] = jnp.zeros((H + 2, 1, cw), jnp.float32)

    zero_halo(buf_in)
    zero_halo(buf_a)
    zero_halo(buf_b)

    # Fused concat + pad: cat(x, 255*alpha) -> padded 4-channel conv1 input.
    buf_in[1:H + 1, 1:W + 1, :] = jnp.concatenate(
        [x_ref[0], alpha_ref[0] * 255.0], axis=-1)

    # conv1: 4 -> 64, one K=36 matmul, ReLU
    r1 = _conv_all_folded(buf_in[...], w1_ref, b1_ref, H, W, 4)
    buf_a[1:H + 1, 1:W + 1, :] = jnp.maximum(r1, 0.0).reshape(H, W, C)

    # conv2: 64 -> 64, 3 matmuls with K=192, ReLU
    r2 = _conv_dw_folded(buf_a[...], w2_ref, b2_ref, H, W, C)
    buf_b[1:H + 1, 1:W + 1, :] = jnp.maximum(r2, 0.0).reshape(H, W, C)

    # conv3: 64 -> 64, 3 matmuls with K=192, ReLU
    r3 = _conv_dw_folded(buf_b[...], w3_ref, b3_ref, H, W, C)
    buf_a[1:H + 1, 1:W + 1, :] = jnp.maximum(r3, 0.0).reshape(H, W, C)

    # conv_predict: 64 -> 1 on the VPU (per-tap multiply + lane reduce); the
    # result stays in (H, W, 1) layout.  Then sigmoid(pred + raw_alpha).
    inp = buf_a[...]
    wp = wp_ref[...]                                     # (9, 64)
    z = jnp.zeros((H, W, 1), jnp.float32)
    for dh in range(3):
        for dw in range(3):
            w_tap = wp[dh * 3 + dw][None, None, :]       # (1, 1, 64)
            z = z + jnp.sum(inp[dh:dh + H, dw:dw + W, :] * w_tap,
                            axis=-1, keepdims=True)
    z = z + bp_ref[...] + alpha_ref[0]
    out_ref[0] = 1.0 / (1.0 + jnp.exp(-z))


@jax.jit
def refinement_forward(x, raw_alpha_pred, params):
    """x: (N, H, W, 3) f32, raw_alpha_pred: (N, H, W, 1) f32 -> (N, H, W, 1)."""
    w1, b1, w2, b2, w3, b3, wp, bp = params
    N, H, W, _ = x.shape
    C = 64

    # Fold conv taps into the contraction dim (wrapper-side weight reshapes).
    w1f = w1.reshape(9 * 4, C)        # (36, 64)     taps (kh, kw, ci) -> K
    w2f = w2.reshape(3, 3 * C, C)     # (3, 192, 64) per-kh, (kw, ci) -> K
    w3f = w3.reshape(3, 3 * C, C)
    wpf = wp.reshape(9, C)            # (9, 64)      per-tap channel vectors
    bpf = bp.reshape(1, 1, 1)

    def const_spec(shape):
        nd = len(shape)
        return pl.BlockSpec(shape, lambda n, _nd=nd: (0,) * _nd)

    out = pl.pallas_call(
        refinement_kernel,
        out_shape=jax.ShapeDtypeStruct((N, H, W, 1), jnp.float32),
        grid_spec=pltpu.PrefetchScalarGridSpec(
            num_scalar_prefetch=0,
            grid=(N,),
            in_specs=[
                pl.BlockSpec((1, H, W, 3), lambda n: (n, 0, 0, 0)),
                pl.BlockSpec((1, H, W, 1), lambda n: (n, 0, 0, 0)),
                const_spec((9 * 4, C)), const_spec((1, C)),
                const_spec((3, 3 * C, C)), const_spec((1, C)),
                const_spec((3, 3 * C, C)), const_spec((1, C)),
                const_spec((9, C)), const_spec((1, 1, 1)),
            ],
            out_specs=pl.BlockSpec((1, H, W, 1), lambda n: (n, 0, 0, 0)),
            scratch_shapes=[
                pltpu.VMEM((H + 2, W + 2, 4), jnp.float32),   # padded conv1 input
                pltpu.VMEM((H + 2, W + 2, C), jnp.float32),   # feature map A
                pltpu.VMEM((H + 2, W + 2, C), jnp.float32),   # feature map B
            ],
        ),
        compiler_params=pltpu.CompilerParams(
            dimension_semantics=("parallel",)),
    )(x, raw_alpha_pred, w1f, b1, w2f, b2, w3f, b3, wpf, bpf)
    return out


def _init_params(key):
    """Deterministic synthetic parameters (HWIO weights, (1, Cout) biases)."""
    ks = jax.random.split(key, 8)

    def conv_init(kw, kb, cin, cout):
        fan_in = cin * 9
        scale = 1.0 / jnp.sqrt(fan_in)
        w = jax.random.uniform(kw, (3, 3, cin, cout), jnp.float32,
                               -scale, scale)
        b = jax.random.uniform(kb, (1, cout), jnp.float32, -scale, scale)
        return w, b

    w1, b1 = conv_init(ks[0], ks[1], 4, 64)
    w2, b2 = conv_init(ks[2], ks[3], 64, 64)
    w3, b3 = conv_init(ks[4], ks[5], 64, 64)
    wp, bp = conv_init(ks[6], ks[7], 64, 1)
    return (w1, b1, w2, b2, w3, b3, wp, bp)


def _reference_forward(x, raw_alpha_pred, params):
    """Pure-JAX reference (mirrors the PyTorch forward, NHWC/HWIO)."""
    w1, b1, w2, b2, w3, b3, wp, bp = params

    def conv(inp, w, b):
        out = jax.lax.conv_general_dilated(
            inp, w, window_strides=(1, 1), padding="SAME",
            dimension_numbers=("NHWC", "HWIO", "NHWC"))
        return out + b

    h = jnp.concatenate([x, raw_alpha_pred * 255.0], axis=-1)
    h = jax.nn.relu(conv(h, w1, b1))
    h = jax.nn.relu(conv(h, w2, b2))
    h = jax.nn.relu(conv(h, w3, b3))
    h = conv(h, wp, bp)
    return jax.nn.sigmoid(h + raw_alpha_pred)


if __name__ == "__main__":
    key = jax.random.PRNGKey(0)
    k_x, k_a, k_p = jax.random.split(key, 3)

    N, H, W = 2, 16, 16
    # RGB-like image input (3 channels) and a raw alpha prediction (1 channel).
    x = jax.random.normal(k_x, (N, H, W, 3), jnp.float32)
    raw_alpha_pred = jax.random.uniform(k_a, (N, H, W, 1), jnp.float32)

    params = _init_params(k_p)

    out = refinement_forward(x, raw_alpha_pred, params)
    out = jax.block_until_ready(out)

    ref = _reference_forward(x, raw_alpha_pred, params)
    assert out.shape == (N, H, W, 1)
    assert jnp.allclose(out, ref, atol=2e-3, rtol=2e-3), (
        float(jnp.max(jnp.abs(out - ref))))

    print("KERNEL_OK")
</pallas_src>

<mosaic_0001>
module attributes {stable_mosaic.version = 11 : i64} {
  func.func @refinement_kernel(%arg0: i32, %arg1: memref<1x16x16x3xf32, #tpu.memory_space<vmem>>, %arg2: memref<1x16x16x1xf32, #tpu.memory_space<vmem>>, %arg3: memref<36x64xf32, #tpu.memory_space<vmem>>, %arg4: memref<1x64xf32, #tpu.memory_space<vmem>>, %arg5: memref<3x192x64xf32, #tpu.memory_space<vmem>>, %arg6: memref<1x64xf32, #tpu.memory_space<vmem>>, %arg7: memref<3x192x64xf32, #tpu.memory_space<vmem>>, %arg8: memref<1x64xf32, #tpu.memory_space<vmem>>, %arg9: memref<9x64xf32, #tpu.memory_space<vmem>>, %arg10: memref<1x1x1xf32, #tpu.memory_space<vmem>>, %arg11: memref<1x16x16x1xf32, #tpu.memory_space<vmem>>, %arg12: memref<18x18x4xf32, #tpu.memory_space<vmem>>, %arg13: memref<18x18x64xf32, #tpu.memory_space<vmem>>, %arg14: memref<18x18x64xf32, #tpu.memory_space<vmem>>) attributes {dimension_semantics = [#tpu.dimension_semantics<parallel>], iteration_bounds = array<i64: 2>, scalar_prefetch = 0 : i64, scratch_operands = 3 : i64, tpu.core_type = #tpu.core_type<tc>, window_params = [{transform_indices = @transform_0, window_bounds = array<i64: 1, 16, 16, 3>}, {transform_indices = @transform_1, window_bounds = array<i64: 1, 16, 16, 1>}, {pipeline_mode = #tpu.pipeline_mode<synchronous>, transform_indices = @transform_2, window_bounds = array<i64: 36, 64>}, {pipeline_mode = #tpu.pipeline_mode<synchronous>, transform_indices = @transform_3, window_bounds = array<i64: 1, 64>}, {pipeline_mode = #tpu.pipeline_mode<synchronous>, transform_indices = @transform_4, window_bounds = array<i64: 3, 192, 64>}, {pipeline_mode = #tpu.pipeline_mode<synchronous>, transform_indices = @transform_5, window_bounds = array<i64: 1, 64>}, {pipeline_mode = #tpu.pipeline_mode<synchronous>, transform_indices = @transform_6, window_bounds = array<i64: 3, 192, 64>}, {pipeline_mode = #tpu.pipeline_mode<synchronous>, transform_indices = @transform_7, window_bounds = array<i64: 1, 64>}, {pipeline_mode = #tpu.pipeline_mode<synchronous>, transform_indices = @transform_8, window_bounds = array<i64: 9, 64>}, {pipeline_mode = #tpu.pipeline_mode<synchronous>, transform_indices = @transform_9, window_bounds = array<i64: 1, 1, 1>}, {transform_indices = @transform_10, window_bounds = array<i64: 1, 16, 16, 1>}]} {
    %cst = arith.constant 0.000000e+00 : f32
    %0 = vector.broadcast %cst : f32 to vector<1x18x4xf32>
    %c0 = arith.constant 0 : index
    %c0_0 = arith.constant 0 : index
    %c0_1 = arith.constant 0 : index
    %1 = vector.load %arg12[%c0, %c0_0, %c0_1] : memref<18x18x4xf32, #tpu.memory_space<vmem>>, vector<1x18x4xf32>
    tpu.vector_store %arg12[%c0, %c0_0, %c0_1], %0 {strides = array<i32>} : memref<18x18x4xf32, #tpu.memory_space<vmem>>, vector<1x18x4xf32>,
    %cst_2 = arith.constant 0.000000e+00 : f32
    %2 = vector.broadcast %cst_2 : f32 to vector<1x18x4xf32>
    %c17 = arith.constant 17 : index
    %c0_3 = arith.constant 0 : index
    %c0_4 = arith.constant 0 : index
    %3 = vector.load %arg12[%c17, %c0_3, %c0_4] : memref<18x18x4xf32, #tpu.memory_space<vmem>>, vector<1x18x4xf32>
    tpu.vector_store %arg12[%c17, %c0_3, %c0_4], %2 {strides = array<i32>} : memref<18x18x4xf32, #tpu.memory_space<vmem>>, vector<1x18x4xf32>,
    %cst_5 = arith.constant 0.000000e+00 : f32
    %4 = vector.broadcast %cst_5 : f32 to vector<18x1x4xf32>
    %c0_6 = arith.constant 0 : index
    %c0_7 = arith.constant 0 : index
    %c0_8 = arith.constant 0 : index
    %5 = vector.load %arg12[%c0_6, %c0_7, %c0_8] : memref<18x18x4xf32, #tpu.memory_space<vmem>>, vector<18x1x4xf32>
    tpu.vector_store %arg12[%c0_6, %c0_7, %c0_8], %4 {strides = array<i32>} : memref<18x18x4xf32, #tpu.memory_space<vmem>>, vector<18x1x4xf32>,
    %cst_9 = arith.constant 0.000000e+00 : f32
    %6 = vector.broadcast %cst_9 : f32 to vector<18x1x4xf32>
    %c0_10 = arith.constant 0 : index
    %c17_11 = arith.constant 17 : index
    %c0_12 = arith.constant 0 : index
    %7 = vector.load %arg12[%c0_10, %c17_11, %c0_12] : memref<18x18x4xf32, #tpu.memory_space<vmem>>, vector<18x1x4xf32>
    tpu.vector_store %arg12[%c0_10, %c17_11, %c0_12], %6 {strides = array<i32>} : memref<18x18x4xf32, #tpu.memory_space<vmem>>, vector<18x1x4xf32>,
    %cst_13 = arith.constant 0.000000e+00 : f32
    %8 = vector.broadcast %cst_13 : f32 to vector<1x18x64xf32>
    %c0_14 = arith.constant 0 : index
    %c0_15 = arith.constant 0 : index
    %c0_16 = arith.constant 0 : index
    %9 = vector.load %arg13[%c0_14, %c0_15, %c0_16] : memref<18x18x64xf32, #tpu.memory_space<vmem>>, vector<1x18x64xf32>
    tpu.vector_store %arg13[%c0_14, %c0_15, %c0_16], %8 {strides = array<i32>} : memref<18x18x64xf32, #tpu.memory_space<vmem>>, vector<1x18x64xf32>,
    %cst_17 = arith.constant 0.000000e+00 : f32
    %10 = vector.broadcast %cst_17 : f32 to vector<1x18x64xf32>
    %c17_18 = arith.constant 17 : index
    %c0_19 = arith.constant 0 : index
    %c0_20 = arith.constant 0 : index
    %11 = vector.load %arg13[%c17_18, %c0_19, %c0_20] : memref<18x18x64xf32, #tpu.memory_space<vmem>>, vector<1x18x64xf32>
    tpu.vector_store %arg13[%c17_18, %c0_19, %c0_20], %10 {strides = array<i32>} : memref<18x18x64xf32, #tpu.memory_space<vmem>>, vector<1x18x64xf32>,
    %cst_21 = arith.constant 0.000000e+00 : f32
    %12 = vector.broadcast %cst_21 : f32 to vector<18x1x64xf32>
    %c0_22 = arith.constant 0 : index
    %c0_23 = arith.constant 0 : index
    %c0_24 = arith.constant 0 : index
    %13 = vector.load %arg13[%c0_22, %c0_23, %c0_24] : memref<18x18x64xf32, #tpu.memory_space<vmem>>, vector<18x1x64xf32>
    tpu.vector_store %arg13[%c0_22, %c0_23, %c0_24], %12 {strides = array<i32>} : memref<18x18x64xf32, #tpu.memory_space<vmem>>, vector<18x1x64xf32>,
    %cst_25 = arith.constant 0.000000e+00 : f32
    %14 = vector.broadcast %cst_25 : f32 to vector<18x1x64xf32>
    %c0_26 = arith.constant 0 : index
    %c17_27 = arith.constant 17 : index
    %c0_28 = arith.constant 0 : index
    %15 = vector.load %arg13[%c0_26, %c17_27, %c0_28] : memref<18x18x64xf32, #tpu.memory_space<vmem>>, vector<18x1x64xf32>
    tpu.vector_store %arg13[%c0_26, %c17_27, %c0_28], %14 {strides = array<i32>} : memref<18x18x64xf32, #tpu.memory_space<vmem>>, vector<18x1x64xf32>,
    %cst_29 = arith.constant 0.000000e+00 : f32
    %16 = vector.broadcast %cst_29 : f32 to vector<1x18x64xf32>
    %c0_30 = arith.constant 0 : index
    %c0_31 = arith.constant 0 : index
    %c0_32 = arith.constant 0 : index
    %17 = vector.load %arg14[%c0_30, %c0_31, %c0_32] : memref<18x18x64xf32, #tpu.memory_space<vmem>>, vector<1x18x64xf32>
    tpu.vector_store %arg14[%c0_30, %c0_31, %c0_32], %16 {strides = array<i32>} : memref<18x18x64xf32, #tpu.memory_space<vmem>>, vector<1x18x64xf32>,
    %cst_33 = arith.constant 0.000000e+00 : f32
    %18 = vector.broadcast %cst_33 : f32 to vector<1x18x64xf32>
    %c17_34 = arith.constant 17 : index
    %c0_35 = arith.constant 0 : index
    %c0_36 = arith.constant 0 : index
    %19 = vector.load %arg14[%c17_34, %c0_35, %c0_36] : memref<18x18x64xf32, #tpu.memory_space<vmem>>, vector<1x18x64xf32>
    tpu.vector_store %arg14[%c17_34, %c0_35, %c0_36], %18 {strides = array<i32>} : memref<18x18x64xf32, #tpu.memory_space<vmem>>, vector<1x18x64xf32>,
    %cst_37 = arith.constant 0.000000e+00 : f32
    %20 = vector.broadcast %cst_37 : f32 to vector<18x1x64xf32>
    %c0_38 = arith.constant 0 : index
    %c0_39 = arith.constant 0 : index
    %c0_40 = arith.constant 0 : index
    %21 = vector.load %arg14[%c0_38, %c0_39, %c0_40] : memref<18x18x64xf32, #tpu.memory_space<vmem>>, vector<18x1x64xf32>
    tpu.vector_store %arg14[%c0_38, %c0_39, %c0_40], %20 {strides = array<i32>} : memref<18x18x64xf32, #tpu.memory_space<vmem>>, vector<18x1x64xf32>,
    %cst_41 = arith.constant 0.000000e+00 : f32
    %22 = vector.broadcast %cst_41 : f32 to vector<18x1x64xf32>
    %c0_42 = arith.constant 0 : index
    %c17_43 = arith.constant 17 : index
    %c0_44 = arith.constant 0 : index
    %23 = vector.load %arg14[%c0_42, %c17_43, %c0_44] : memref<18x18x64xf32, #tpu.memory_space<vmem>>, vector<18x1x64xf32>
    tpu.vector_store %arg14[%c0_42, %c17_43, %c0_44], %22 {strides = array<i32>} : memref<18x18x64xf32, #tpu.memory_space<vmem>>, vector<18x1x64xf32>,
    %c0_45 = arith.constant 0 : index
    %c0_46 = arith.constant 0 : index
    %c0_47 = arith.constant 0 : index
    %c0_48 = arith.constant 0 : index
    %24 = vector.load %arg1[%c0_45, %c0_46, %c0_47, %c0_48] : memref<1x16x16x3xf32, #tpu.memory_space<vmem>>, vector<1x16x16x3xf32>
    %25 = vector.shape_cast %24 : vector<1x16x16x3xf32> to vector<16x16x3xf32>
    %c0_49 = arith.constant 0 : index
    %c0_50 = arith.constant 0 : index
    %c0_51 = arith.constant 0 : index
    %c0_52 = arith.constant 0 : index
    %26 = vector.load %arg2[%c0_49, %c0_50, %c0_51, %c0_52] : memref<1x16x16x1xf32, #tpu.memory_space<vmem>>, vector<1x16x16x1xf32>
    %27 = vector.shape_cast %26 : vector<1x16x16x1xf32> to vector<16x16x1xf32>
    %cst_53 = arith.constant 2.550000e+02 : f32
    %28 = vector.broadcast %cst_53 : f32 to vector<16x16x1xf32>
    %29 = arith.mulf %27, %28 : vector<16x16x1xf32>
    %30 = tpu.concatenate %25, %29 in 2 : vector<16x16x3xf32>, vector<16x16x1xf32> -> vector<16x16x4xf32>
    %c1 = arith.constant 1 : index
    %c1_54 = arith.constant 1 : index
    %c0_55 = arith.constant 0 : index
    %31 = vector.load %arg12[%c1, %c1_54, %c0_55] : memref<18x18x4xf32, #tpu.memory_space<vmem>>, vector<16x16x4xf32>
    tpu.vector_store %arg12[%c1, %c1_54, %c0_55], %30 {strides = array<i32>} : memref<18x18x4xf32, #tpu.memory_space<vmem>>, vector<16x16x4xf32>,
    %c0_56 = arith.constant 0 : index
    %c0_57 = arith.constant 0 : index
    %c0_58 = arith.constant 0 : index
    %32 = vector.load %arg12[%c0_56, %c0_57, %c0_58] : memref<18x18x4xf32, #tpu.memory_space<vmem>>, vector<18x18x4xf32>
    %33 = vector.extract_strided_slice %32 {offsets = [0, 0, 0], sizes = [16, 16, 4], strides = [1, 1, 1]} : vector<18x18x4xf32> to vector<16x16x4xf32>
    %34 = vector.extract_strided_slice %32 {offsets = [0, 1, 0], sizes = [16, 16, 4], strides = [1, 1, 1]} : vector<18x18x4xf32> to vector<16x16x4xf32>
    %35 = vector.extract_strided_slice %32 {offsets = [0, 2, 0], sizes = [16, 16, 4], strides = [1, 1, 1]} : vector<18x18x4xf32> to vector<16x16x4xf32>
    %36 = vector.extract_strided_slice %32 {offsets = [1, 0, 0], sizes = [16, 16, 4], strides = [1, 1, 1]} : vector<18x18x4xf32> to vector<16x16x4xf32>
    %37 = vector.extract_strided_slice %32 {offsets = [1, 1, 0], sizes = [16, 16, 4], strides = [1, 1, 1]} : vector<18x18x4xf32> to vector<16x16x4xf32>
    %38 = vector.extract_strided_slice %32 {offsets = [1, 2, 0], sizes = [16, 16, 4], strides = [1, 1, 1]} : vector<18x18x4xf32> to vector<16x16x4xf32>
    %39 = vector.extract_strided_slice %32 {offsets = [2, 0, 0], sizes = [16, 16, 4], strides = [1, 1, 1]} : vector<18x18x4xf32> to vector<16x16x4xf32>
    %40 = vector.extract_strided_slice %32 {offsets = [2, 1, 0], sizes = [16, 16, 4], strides = [1, 1, 1]} : vector<18x18x4xf32> to vector<16x16x4xf32>
    %41 = vector.extract_strided_slice %32 {offsets = [2, 2, 0], sizes = [16, 16, 4], strides = [1, 1, 1]} : vector<18x18x4xf32> to vector<16x16x4xf32>
    %42 = tpu.concatenate %33, %34, %35, %36, %37, %38, %39, %40, %41 in 2 : vector<16x16x4xf32>, vector<16x16x4xf32>, vector<16x16x4xf32>, vector<16x16x4xf32>, vector<16x16x4xf32>, vector<16x16x4xf32>, vector<16x16x4xf32>, vector<16x16x4xf32>, vector<16x16x4xf32> -> vector<16x16x36xf32>
    %43 = vector.shape_cast %42 : vector<16x16x36xf32> to vector<256x36xf32>
    %c0_59 = arith.constant 0 : index
    %c0_60 = arith.constant 0 : index
    %44 = vector.load %arg3[%c0_59, %c0_60] : memref<36x64xf32, #tpu.memory_space<vmem>>, vector<36x64xf32>
    %cst_61 = arith.constant dense<0.000000e+00> : vector<256x64xf32>
    %45 = tpu.matmul %43, %44, %cst_61 {dimension_numbers = #tpu.dot_dimension_numbers<[1], [0], [0], [1], [0, 0, 1, 1], [], []>} : vector<256x36xf32>, vector<36x64xf32>, vector<256x64xf32> -> vector<256x64xf32>
    %c0_62 = arith.constant 0 : index
    %c0_63 = arith.constant 0 : index
    %46 = vector.load %arg4[%c0_62, %c0_63] : memref<1x64xf32, #tpu.memory_space<vmem>>, vector<1x64xf32>
    %47 = vector.broadcast %46 : vector<1x64xf32> to vector<256x64xf32>
    %48 = arith.addf %45, %47 : vector<256x64xf32>
    %cst_64 = arith.constant 0.000000e+00 : f32
    %49 = vector.broadcast %cst_64 : f32 to vector<256x64xf32>
    %50 = arith.maximumf %48, %49 : vector<256x64xf32>
    %51 = vector.shape_cast %50 : vector<256x64xf32> to vector<16x16x64xf32>
    %c1_65 = arith.constant 1 : index
    %c1_66 = arith.constant 1 : index
    %c0_67 = arith.constant 0 : index
    %52 = vector.load %arg13[%c1_65, %c1_66, %c0_67] : memref<18x18x64xf32, #tpu.memory_space<vmem>>, vector<16x16x64xf32>
    tpu.vector_store %arg13[%c1_65, %c1_66, %c0_67], %51 {strides = array<i32>} : memref<18x18x64xf32, #tpu.memory_space<vmem>>, vector<16x16x64xf32>,
    %c0_68 = arith.constant 0 : index
    %c0_69 = arith.constant 0 : index
    %c0_70 = arith.constant 0 : index
    %53 = vector.load %arg13[%c0_68, %c0_69, %c0_70] : memref<18x18x64xf32, #tpu.memory_space<vmem>>, vector<18x18x64xf32>
    %cst_71 = arith.constant 0.000000e+00 : f32
    %54 = vector.broadcast %cst_71 : f32 to vector<256x64xf32>
    %55 = vector.extract_strided_slice %53 {offsets = [0, 0, 0], sizes = [16, 16, 64], strides = [1, 1, 1]} : vector<18x18x64xf32> to vector<16x16x64xf32>
    %56 = vector.extract_strided_slice %53 {offsets = [0, 1, 0], sizes = [16, 16, 64], strides = [1, 1, 1]} : vector<18x18x64xf32> to vector<16x16x64xf32>
    %57 = vector.extract_strided_slice %53 {offsets = [0, 2, 0], sizes = [16, 16, 64], strides = [1, 1, 1]} : vector<18x18x64xf32> to vector<16x16x64xf32>
    %58 = tpu.concatenate %55, %56, %57 in 2 : vector<16x16x64xf32>, vector<16x16x64xf32>, vector<16x16x64xf32> -> vector<16x16x192xf32>
    %59 = vector.shape_cast %58 : vector<16x16x192xf32> to vector<256x192xf32>
    %c0_72 = arith.constant 0 : index
    %c0_73 = arith.constant 0 : index
    %c0_74 = arith.constant 0 : index
    %60 = vector.load %arg5[%c0_72, %c0_73, %c0_74] : memref<3x192x64xf32, #tpu.memory_space<vmem>>, vector<1x192x64xf32>
    %61 = vector.shape_cast %60 : vector<1x192x64xf32> to vector<192x64xf32>
    %cst_75 = arith.constant dense<0.000000e+00> : vector<256x64xf32>
    %62 = tpu.matmul %59, %61, %cst_75 {dimension_numbers = #tpu.dot_dimension_numbers<[1], [0], [0], [1], [0, 0, 1, 1], [], []>} : vector<256x192xf32>, vector<192x64xf32>, vector<256x64xf32> -> vector<256x64xf32>
    %63 = arith.addf %54, %62 : vector<256x64xf32>
    %64 = vector.extract_strided_slice %53 {offsets = [1, 0, 0], sizes = [16, 16, 64], strides = [1, 1, 1]} : vector<18x18x64xf32> to vector<16x16x64xf32>
    %65 = vector.extract_strided_slice %53 {offsets = [1, 1, 0], sizes = [16, 16, 64], strides = [1, 1, 1]} : vector<18x18x64xf32> to vector<16x16x64xf32>
    %66 = vector.extract_strided_slice %53 {offsets = [1, 2, 0], sizes = [16, 16, 64], strides = [1, 1, 1]} : vector<18x18x64xf32> to vector<16x16x64xf32>
    %67 = tpu.concatenate %64, %65, %66 in 2 : vector<16x16x64xf32>, vector<16x16x64xf32>, vector<16x16x64xf32> -> vector<16x16x192xf32>
    %68 = vector.shape_cast %67 : vector<16x16x192xf32> to vector<256x192xf32>
    %c1_76 = arith.constant 1 : index
    %c0_77 = arith.constant 0 : index
    %c0_78 = arith.constant 0 : index
    %69 = vector.load %arg5[%c1_76, %c0_77, %c0_78] : memref<3x192x64xf32, #tpu.memory_space<vmem>>, vector<1x192x64xf32>
    %70 = vector.shape_cast %69 : vector<1x192x64xf32> to vector<192x64xf32>
    %cst_79 = arith.constant dense<0.000000e+00> : vector<256x64xf32>
    %71 = tpu.matmul %68, %70, %cst_79 {dimension_numbers = #tpu.dot_dimension_numbers<[1], [0], [0], [1], [0, 0, 1, 1], [], []>} : vector<256x192xf32>, vector<192x64xf32>, vector<256x64xf32> -> vector<256x64xf32>
    %72 = arith.addf %63, %71 : vector<256x64xf32>
    %73 = vector.extract_strided_slice %53 {offsets = [2, 0, 0], sizes = [16, 16, 64], strides = [1, 1, 1]} : vector<18x18x64xf32> to vector<16x16x64xf32>
    %74 = vector.extract_strided_slice %53 {offsets = [2, 1, 0], sizes = [16, 16, 64], strides = [1, 1, 1]} : vector<18x18x64xf32> to vector<16x16x64xf32>
    %75 = vector.extract_strided_slice %53 {offsets = [2, 2, 0], sizes = [16, 16, 64], strides = [1, 1, 1]} : vector<18x18x64xf32> to vector<16x16x64xf32>
    %76 = tpu.concatenate %73, %74, %75 in 2 : vector<16x16x64xf32>, vector<16x16x64xf32>, vector<16x16x64xf32> -> vector<16x16x192xf32>
    %77 = vector.shape_cast %76 : vector<16x16x192xf32> to vector<256x192xf32>
    %c2 = arith.constant 2 : index
    %c0_80 = arith.constant 0 : index
    %c0_81 = arith.constant 0 : index
    %78 = vector.load %arg5[%c2, %c0_80, %c0_81] : memref<3x192x64xf32, #tpu.memory_space<vmem>>, vector<1x192x64xf32>
    %79 = vector.shape_cast %78 : vector<1x192x64xf32> to vector<192x64xf32>
    %cst_82 = arith.constant dense<0.000000e+00> : vector<256x64xf32>
    %80 = tpu.matmul %77, %79, %cst_82 {dimension_numbers = #tpu.dot_dimension_numbers<[1], [0], [0], [1], [0, 0, 1, 1], [], []>} : vector<256x192xf32>, vector<192x64xf32>, vector<256x64xf32> -> vector<256x64xf32>
    %81 = arith.addf %72, %80 : vector<256x64xf32>
    %c0_83 = arith.constant 0 : index
    %c0_84 = arith.constant 0 : index
    %82 = vector.load %arg6[%c0_83, %c0_84] : memref<1x64xf32, #tpu.memory_space<vmem>>, vector<1x64xf32>
    %83 = vector.broadcast %82 : vector<1x64xf32> to vector<256x64xf32>
    %84 = arith.addf %81, %83 : vector<256x64xf32>
    %cst_85 = arith.constant 0.000000e+00 : f32
    %85 = vector.broadcast %cst_85 : f32 to vector<256x64xf32>
    %86 = arith.maximumf %84, %85 : vector<256x64xf32>
    %87 = vector.shape_cast %86 : vector<256x64xf32> to vector<16x16x64xf32>
    %c1_86 = arith.constant 1 : index
    %c1_87 = arith.constant 1 : index
    %c0_88 = arith.constant 0 : index
    %88 = vector.load %arg14[%c1_86, %c1_87, %c0_88] : memref<18x18x64xf32, #tpu.memory_space<vmem>>, vector<16x16x64xf32>
    tpu.vector_store %arg14[%c1_86, %c1_87, %c0_88], %87 {strides = array<i32>} : memref<18x18x64xf32, #tpu.memory_space<vmem>>, vector<16x16x64xf32>,
    %c0_89 = arith.constant 0 : index
    %c0_90 = arith.constant 0 : index
    %c0_91 = arith.constant 0 : index
    %89 = vector.load %arg14[%c0_89, %c0_90, %c0_91] : memref<18x18x64xf32, #tpu.memory_space<vmem>>, vector<18x18x64xf32>
    %cst_92 = arith.constant 0.000000e+00 : f32
    %90 = vector.broadcast %cst_92 : f32 to vector<256x64xf32>
    %91 = vector.extract_strided_slice %89 {offsets = [0, 0, 0], sizes = [16, 16, 64], strides = [1, 1, 1]} : vector<18x18x64xf32> to vector<16x16x64xf32>
    %92 = vector.extract_strided_slice %89 {offsets = [0, 1, 0], sizes = [16, 16, 64], strides = [1, 1, 1]} : vector<18x18x64xf32> to vector<16x16x64xf32>
    %93 = vector.extract_strided_slice %89 {offsets = [0, 2, 0], sizes = [16, 16, 64], strides = [1, 1, 1]} : vector<18x18x64xf32> to vector<16x16x64xf32>
    %94 = tpu.concatenate %91, %92, %93 in 2 : vector<16x16x64xf32>, vector<16x16x64xf32>, vector<16x16x64xf32> -> vector<16x16x192xf32>
    %95 = vector.shape_cast %94 : vector<16x16x192xf32> to vector<256x192xf32>
    %c0_93 = arith.constant 0 : index
    %c0_94 = arith.constant 0 : index
    %c0_95 = arith.constant 0 : index
    %96 = vector.load %arg7[%c0_93, %c0_94, %c0_95] : memref<3x192x64xf32, #tpu.memory_space<vmem>>, vector<1x192x64xf32>
    %97 = vector.shape_cast %96 : vector<1x192x64xf32> to vector<192x64xf32>
    %cst_96 = arith.constant dense<0.000000e+00> : vector<256x64xf32>
    %98 = tpu.matmul %95, %97, %cst_96 {dimension_numbers = #tpu.dot_dimension_numbers<[1], [0], [0], [1], [0, 0, 1, 1], [], []>} : vector<256x192xf32>, vector<192x64xf32>, vector<256x64xf32> -> vector<256x64xf32>
    %99 = arith.addf %90, %98 : vector<256x64xf32>
    %100 = vector.extract_strided_slice %89 {offsets = [1, 0, 0], sizes = [16, 16, 64], strides = [1, 1, 1]} : vector<18x18x64xf32> to vector<16x16x64xf32>
    %101 = vector.extract_strided_slice %89 {offsets = [1, 1, 0], sizes = [16, 16, 64], strides = [1, 1, 1]} : vector<18x18x64xf32> to vector<16x16x64xf32>
    %102 = vector.extract_strided_slice %89 {offsets = [1, 2, 0], sizes = [16, 16, 64], strides = [1, 1, 1]} : vector<18x18x64xf32> to vector<16x16x64xf32>
    %103 = tpu.concatenate %100, %101, %102 in 2 : vector<16x16x64xf32>, vector<16x16x64xf32>, vector<16x16x64xf32> -> vector<16x16x192xf32>
    %104 = vector.shape_cast %103 : vector<16x16x192xf32> to vector<256x192xf32>
    %c1_97 = arith.constant 1 : index
    %c0_98 = arith.constant 0 : index
    %c0_99 = arith.constant 0 : index
    %105 = vector.load %arg7[%c1_97, %c0_98, %c0_99] : memref<3x192x64xf32, #tpu.memory_space<vmem>>, vector<1x192x64xf32>
    %106 = vector.shape_cast %105 : vector<1x192x64xf32> to vector<192x64xf32>
    %cst_100 = arith.constant dense<0.000000e+00> : vector<256x64xf32>
    %107 = tpu.matmul %104, %106, %cst_100 {dimension_numbers = #tpu.dot_dimension_numbers<[1], [0], [0], [1], [0, 0, 1, 1], [], []>} : vector<256x192xf32>, vector<192x64xf32>, vector<256x64xf32> -> vector<256x64xf32>
    %108 = arith.addf %99, %107 : vector<256x64xf32>
    %109 = vector.extract_strided_slice %89 {offsets = [2, 0, 0], sizes = [16, 16, 64], strides = [1, 1, 1]} : vector<18x18x64xf32> to vector<16x16x64xf32>
    %110 = vector.extract_strided_slice %89 {offsets = [2, 1, 0], sizes = [16, 16, 64], strides = [1, 1, 1]} : vector<18x18x64xf32> to vector<16x16x64xf32>
    %111 = vector.extract_strided_slice %89 {offsets = [2, 2, 0], sizes = [16, 16, 64], strides = [1, 1, 1]} : vector<18x18x64xf32> to vector<16x16x64xf32>
    %112 = tpu.concatenate %109, %110, %111 in 2 : vector<16x16x64xf32>, vector<16x16x64xf32>, vector<16x16x64xf32> -> vector<16x16x192xf32>
    %113 = vector.shape_cast %112 : vector<16x16x192xf32> to vector<256x192xf32>
    %c2_101 = arith.constant 2 : index
    %c0_102 = arith.constant 0 : index
    %c0_103 = arith.constant 0 : index
    %114 = vector.load %arg7[%c2_101, %c0_102, %c0_103] : memref<3x192x64xf32, #tpu.memory_space<vmem>>, vector<1x192x64xf32>
    %115 = vector.shape_cast %114 : vector<1x192x64xf32> to vector<192x64xf32>
    %cst_104 = arith.constant dense<0.000000e+00> : vector<256x64xf32>
    %116 = tpu.matmul %113, %115, %cst_104 {dimension_numbers = #tpu.dot_dimension_numbers<[1], [0], [0], [1], [0, 0, 1, 1], [], []>} : vector<256x192xf32>, vector<192x64xf32>, vector<256x64xf32> -> vector<256x64xf32>
    %117 = arith.addf %108, %116 : vector<256x64xf32>
    %c0_105 = arith.constant 0 : index
    %c0_106 = arith.constant 0 : index
    %118 = vector.load %arg8[%c0_105, %c0_106] : memref<1x64xf32, #tpu.memory_space<vmem>>, vector<1x64xf32>
    %119 = vector.broadcast %118 : vector<1x64xf32> to vector<256x64xf32>
    %120 = arith.addf %117, %119 : vector<256x64xf32>
    %cst_107 = arith.constant 0.000000e+00 : f32
    %121 = vector.broadcast %cst_107 : f32 to vector<256x64xf32>
    %122 = arith.maximumf %120, %121 : vector<256x64xf32>
    %123 = vector.shape_cast %122 : vector<256x64xf32> to vector<16x16x64xf32>
    %c1_108 = arith.constant 1 : index
    %c1_109 = arith.constant 1 : index
    %c0_110 = arith.constant 0 : index
    %124 = vector.load %arg13[%c1_108, %c1_109, %c0_110] : memref<18x18x64xf32, #tpu.memory_space<vmem>>, vector<16x16x64xf32>
    tpu.vector_store %arg13[%c1_108, %c1_109, %c0_110], %123 {strides = array<i32>} : memref<18x18x64xf32, #tpu.memory_space<vmem>>, vector<16x16x64xf32>,
    %c0_111 = arith.constant 0 : index
    %c0_112 = arith.constant 0 : index
    %c0_113 = arith.constant 0 : index
    %125 = vector.load %arg13[%c0_111, %c0_112, %c0_113] : memref<18x18x64xf32, #tpu.memory_space<vmem>>, vector<18x18x64xf32>
    %c0_114 = arith.constant 0 : index
    %c0_115 = arith.constant 0 : index
    %126 = vector.load %arg9[%c0_114, %c0_115] : memref<9x64xf32, #tpu.memory_space<vmem>>, vector<9x64xf32>
    %cst_116 = arith.constant 0.000000e+00 : f32
    %127 = vector.broadcast %cst_116 : f32 to vector<16x16x1xf32>
    %128 = vector.extract_strided_slice %126 {offsets = [0, 0], sizes = [1, 64], strides = [1, 1]} : vector<9x64xf32> to vector<1x64xf32>
    %129 = vector.shape_cast %128 : vector<1x64xf32> to vector<64xf32>
    %130 = vector.shape_cast %129 : vector<64xf32> to vector<1x1x64xf32>
    %131 = vector.extract_strided_slice %125 {offsets = [0, 0, 0], sizes = [16, 16, 64], strides = [1, 1, 1]} : vector<18x18x64xf32> to vector<16x16x64xf32>
    %132 = vector.broadcast %130 : vector<1x1x64xf32> to vector<16x16x64xf32>
    %133 = arith.mulf %131, %132 : vector<16x16x64xf32>
    %cst_117 = arith.constant dense<0.000000e+00> : vector<16x16xf32>
    %134 = vector.multi_reduction <add>, %133, %cst_117 [2] : vector<16x16x64xf32> to vector<16x16xf32>
    %135 = vector.shape_cast %134 : vector<16x16xf32> to vector<16x16x1xf32>
    %136 = arith.addf %127, %135 : vector<16x16x1xf32>
    %137 = vector.extract_strided_slice %126 {offsets = [1, 0], sizes = [1, 64], strides = [1, 1]} : vector<9x64xf32> to vector<1x64xf32>
    %138 = vector.shape_cast %137 : vector<1x64xf32> to vector<64xf32>
    %139 = vector.shape_cast %138 : vector<64xf32> to vector<1x1x64xf32>
    %140 = vector.extract_strided_slice %125 {offsets = [0, 1, 0], sizes = [16, 16, 64], strides = [1, 1, 1]} : vector<18x18x64xf32> to vector<16x16x64xf32>
    %141 = vector.broadcast %139 : vector<1x1x64xf32> to vector<16x16x64xf32>
    %142 = arith.mulf %140, %141 : vector<16x16x64xf32>
    %cst_118 = arith.constant dense<0.000000e+00> : vector<16x16xf32>
    %143 = vector.multi_reduction <add>, %142, %cst_118 [2] : vector<16x16x64xf32> to vector<16x16xf32>
    %144 = vector.shape_cast %143 : vector<16x16xf32> to vector<16x16x1xf32>
    %145 = arith.addf %136, %144 : vector<16x16x1xf32>
    %146 = vector.extract_strided_slice %126 {offsets = [2, 0], sizes = [1, 64], strides = [1, 1]} : vector<9x64xf32> to vector<1x64xf32>
    %147 = vector.shape_cast %146 : vector<1x64xf32> to vector<64xf32>
    %148 = vector.shape_cast %147 : vector<64xf32> to vector<1x1x64xf32>
    %149 = vector.extract_strided_slice %125 {offsets = [0, 2, 0], sizes = [16, 16, 64], strides = [1, 1, 1]} : vector<18x18x64xf32> to vector<16x16x64xf32>
    %150 = vector.broadcast %148 : vector<1x1x64xf32> to vector<16x16x64xf32>
    %151 = arith.mulf %149, %150 : vector<16x16x64xf32>
    %cst_119 = arith.constant dense<0.000000e+00> : vector<16x16xf32>
    %152 = vector.multi_reduction <add>, %151, %cst_119 [2] : vector<16x16x64xf32> to vector<16x16xf32>
    %153 = vector.shape_cast %152 : vector<16x16xf32> to vector<16x16x1xf32>
    %154 = arith.addf %145, %153 : vector<16x16x1xf32>
    %155 = vector.extract_strided_slice %126 {offsets = [3, 0], sizes = [1, 64], strides = [1, 1]} : vector<9x64xf32> to vector<1x64xf32>
    %156 = vector.shape_cast %155 : vector<1x64xf32> to vector<64xf32>
    %157 = vector.shape_cast %156 : vector<64xf32> to vector<1x1x64xf32>
    %158 = vector.extract_strided_slice %125 {offsets = [1, 0, 0], sizes = [16, 16, 64], strides = [1, 1, 1]} : vector<18x18x64xf32> to vector<16x16x64xf32>
    %159 = vector.broadcast %157 : vector<1x1x64xf32> to vector<16x16x64xf32>
    %160 = arith.mulf %158, %159 : vector<16x16x64xf32>
    %cst_120 = arith.constant dense<0.000000e+00> : vector<16x16xf32>
    %161 = vector.multi_reduction <add>, %160, %cst_120 [2] : vector<16x16x64xf32> to vector<16x16xf32>
    %162 = vector.shape_cast %161 : vector<16x16xf32> to vector<16x16x1xf32>
    %163 = arith.addf %154, %162 : vector<16x16x1xf32>
    %164 = vector.extract_strided_slice %126 {offsets = [4, 0], sizes = [1, 64], strides = [1, 1]} : vector<9x64xf32> to vector<1x64xf32>
    %165 = vector.shape_cast %164 : vector<1x64xf32> to vector<64xf32>
    %166 = vector.shape_cast %165 : vector<64xf32> to vector<1x1x64xf32>
    %167 = vector.extract_strided_slice %125 {offsets = [1, 1, 0], sizes = [16, 16, 64], strides = [1, 1, 1]} : vector<18x18x64xf32> to vector<16x16x64xf32>
    %168 = vector.broadcast %166 : vector<1x1x64xf32> to vector<16x16x64xf32>
    %169 = arith.mulf %167, %168 : vector<16x16x64xf32>
    %cst_121 = arith.constant dense<0.000000e+00> : vector<16x16xf32>
    %170 = vector.multi_reduction <add>, %169, %cst_121 [2] : vector<16x16x64xf32> to vector<16x16xf32>
    %171 = vector.shape_cast %170 : vector<16x16xf32> to vector<16x16x1xf32>
    %172 = arith.addf %163, %171 : vector<16x16x1xf32>
    %173 = vector.extract_strided_slice %126 {offsets = [5, 0], sizes = [1, 64], strides = [1, 1]} : vector<9x64xf32> to vector<1x64xf32>
    %174 = vector.shape_cast %173 : vector<1x64xf32> to vector<64xf32>
    %175 = vector.shape_cast %174 : vector<64xf32> to vector<1x1x64xf32>
    %176 = vector.extract_strided_slice %125 {offsets = [1, 2, 0], sizes = [16, 16, 64], strides = [1, 1, 1]} : vector<18x18x64xf32> to vector<16x16x64xf32>
    %177 = vector.broadcast %175 : vector<1x1x64xf32> to vector<16x16x64xf32>
    %178 = arith.mulf %176, %177 : vector<16x16x64xf32>
    %cst_122 = arith.constant dense<0.000000e+00> : vector<16x16xf32>
    %179 = vector.multi_reduction <add>, %178, %cst_122 [2] : vector<16x16x64xf32> to vector<16x16xf32>
    %180 = vector.shape_cast %179 : vector<16x16xf32> to vector<16x16x1xf32>
    %181 = arith.addf %172, %180 : vector<16x16x1xf32>
    %182 = vector.extract_strided_slice %126 {offsets = [6, 0], sizes = [1, 64], strides = [1, 1]} : vector<9x64xf32> to vector<1x64xf32>
    %183 = vector.shape_cast %182 : vector<1x64xf32> to vector<64xf32>
    %184 = vector.shape_cast %183 : vector<64xf32> to vector<1x1x64xf32>
    %185 = vector.extract_strided_slice %125 {offsets = [2, 0, 0], sizes = [16, 16, 64], strides = [1, 1, 1]} : vector<18x18x64xf32> to vector<16x16x64xf32>
    %186 = vector.broadcast %184 : vector<1x1x64xf32> to vector<16x16x64xf32>
    %187 = arith.mulf %185, %186 : vector<16x16x64xf32>
    %cst_123 = arith.constant dense<0.000000e+00> : vector<16x16xf32>
    %188 = vector.multi_reduction <add>, %187, %cst_123 [2] : vector<16x16x64xf32> to vector<16x16xf32>
    %189 = vector.shape_cast %188 : vector<16x16xf32> to vector<16x16x1xf32>
    %190 = arith.addf %181, %189 : vector<16x16x1xf32>
    %191 = vector.extract_strided_slice %126 {offsets = [7, 0], sizes = [1, 64], strides = [1, 1]} : vector<9x64xf32> to vector<1x64xf32>
    %192 = vector.shape_cast %191 : vector<1x64xf32> to vector<64xf32>
    %193 = vector.shape_cast %192 : vector<64xf32> to vector<1x1x64xf32>
    %194 = vector.extract_strided_slice %125 {offsets = [2, 1, 0], sizes = [16, 16, 64], strides = [1, 1, 1]} : vector<18x18x64xf32> to vector<16x16x64xf32>
    %195 = vector.broadcast %193 : vector<1x1x64xf32> to vector<16x16x64xf32>
    %196 = arith.mulf %194, %195 : vector<16x16x64xf32>
    %cst_124 = arith.constant dense<0.000000e+00> : vector<16x16xf32>
    %197 = vector.multi_reduction <add>, %196, %cst_124 [2] : vector<16x16x64xf32> to vector<16x16xf32>
    %198 = vector.shape_cast %197 : vector<16x16xf32> to vector<16x16x1xf32>
    %199 = arith.addf %190, %198 : vector<16x16x1xf32>
    %200 = vector.extract_strided_slice %126 {offsets = [8, 0], sizes = [1, 64], strides = [1, 1]} : vector<9x64xf32> to vector<1x64xf32>
    %201 = vector.shape_cast %200 : vector<1x64xf32> to vector<64xf32>
    %202 = vector.shape_cast %201 : vector<64xf32> to vector<1x1x64xf32>
    %203 = vector.extract_strided_slice %125 {offsets = [2, 2, 0], sizes = [16, 16, 64], strides = [1, 1, 1]} : vector<18x18x64xf32> to vector<16x16x64xf32>
    %204 = vector.broadcast %202 : vector<1x1x64xf32> to vector<16x16x64xf32>
    %205 = arith.mulf %203, %204 : vector<16x16x64xf32>
    %cst_125 = arith.constant dense<0.000000e+00> : vector<16x16xf32>
    %206 = vector.multi_reduction <add>, %205, %cst_125 [2] : vector<16x16x64xf32> to vector<16x16xf32>
    %207 = vector.shape_cast %206 : vector<16x16xf32> to vector<16x16x1xf32>
    %208 = arith.addf %199, %207 : vector<16x16x1xf32>
    %c0_126 = arith.constant 0 : index
    %c0_127 = arith.constant 0 : index
    %c0_128 = arith.constant 0 : index
    %209 = vector.load %arg10[%c0_126, %c0_127, %c0_128] : memref<1x1x1xf32, #tpu.memory_space<vmem>>, vector<1x1x1xf32>
    %210 = vector.broadcast %209 : vector<1x1x1xf32> to vector<16x16x1xf32>
    %211 = arith.addf %208, %210 : vector<16x16x1xf32>
    %c0_129 = arith.constant 0 : index
    %c0_130 = arith.constant 0 : index
    %c0_131 = arith.constant 0 : index
    %c0_132 = arith.constant 0 : index
    %212 = vector.load %arg2[%c0_129, %c0_130, %c0_131, %c0_132] : memref<1x16x16x1xf32, #tpu.memory_space<vmem>>, vector<1x16x16x1xf32>
    %213 = vector.shape_cast %212 : vector<1x16x16x1xf32> to vector<16x16x1xf32>
    %214 = arith.addf %211, %213 : vector<16x16x1xf32>
    %cst_133 = arith.constant 0.000000e+00 : f32
    %215 = vector.broadcast %cst_133 : f32 to vector<16x16x1xf32>
    %216 = arith.subf %215, %214 : vector<16x16x1xf32>
    %217 = math.exp %216 : vector<16x16x1xf32>
    %cst_134 = arith.constant 1.000000e+00 : f32
    %218 = vector.broadcast %cst_134 : f32 to vector<16x16x1xf32>
    %219 = arith.addf %218, %217 : vector<16x16x1xf32>
    %cst_135 = arith.constant 1.000000e+00 : f32
    %220 = vector.broadcast %cst_135 : f32 to vector<16x16x1xf32>
    %221 = arith.divf %220, %219 : vector<16x16x1xf32>
    %c0_136 = arith.constant 0 : index
    %c0_137 = arith.constant 0 : index
    %c0_138 = arith.constant 0 : index
    %c0_139 = arith.constant 0 : index
    %222 = vector.load %arg11[%c0_136, %c0_137, %c0_138, %c0_139] : memref<1x16x16x1xf32, #tpu.memory_space<vmem>>, vector<1x16x16x1xf32>
    %223 = vector.shape_cast %222 : vector<1x16x16x1xf32> to vector<16x16x1xf32>
    %224 = vector.shape_cast %221 : vector<16x16x1xf32> to vector<1x16x16x1xf32>
    tpu.vector_store %arg11[%c0_136, %c0_137, %c0_138, %c0_139], %224 {strides = array<i32>} : memref<1x16x16x1xf32, #tpu.memory_space<vmem>>, vector<1x16x16x1xf32>,
    return
  }
  func.func @transform_0(%arg0: i32) -> (i32, i32, i32, i32) {
    %c0_i32 = arith.constant 0 : i32
    %c0_i32_0 = arith.constant 0 : i32
    %c0_i32_1 = arith.constant 0 : i32
    %c0_i32_2 = arith.constant 0 : i32
    return %arg0, %c0_i32, %c0_i32_0, %c0_i32_1 : i32, i32, i32, i32
  }
  func.func @transform_1(%arg0: i32) -> (i32, i32, i32, i32) {
    %c0_i32 = arith.constant 0 : i32
    %c0_i32_0 = arith.constant 0 : i32
    %c0_i32_1 = arith.constant 0 : i32
    %c0_i32_2 = arith.constant 0 : i32
    return %arg0, %c0_i32, %c0_i32_0, %c0_i32_1 : i32, i32, i32, i32
  }
  func.func @transform_2(%arg0: i32) -> (i32, i32) {
    %c0_i32 = arith.constant 0 : i32
    %c0_i32_0 = arith.constant 0 : i32
    %c0_i32_1 = arith.constant 0 : i32
    return %c0_i32, %c0_i32_0 : i32, i32
  }
  func.func @transform_3(%arg0: i32) -> (i32, i32) {
    %c0_i32 = arith.constant 0 : i32
    %c0_i32_0 = arith.constant 0 : i32
    %c0_i32_1 = arith.constant 0 : i32
    return %c0_i32, %c0_i32_0 : i32, i32
  }
  func.func @transform_4(%arg0: i32) -> (i32, i32, i32) {
    %c0_i32 = arith.constant 0 : i32
    %c0_i32_0 = arith.constant 0 : i32
    %c0_i32_1 = arith.constant 0 : i32
    %c0_i32_2 = arith.constant 0 : i32
    return %c0_i32, %c0_i32_0, %c0_i32_1 : i32, i32, i32
  }
  func.func @transform_5(%arg0: i32) -> (i32, i32) {
    %c0_i32 = arith.constant 0 : i32
    %c0_i32_0 = arith.constant 0 : i32
    %c0_i32_1 = arith.constant 0 : i32
    return %c0_i32, %c0_i32_0 : i32, i32
  }
  func.func @transform_6(%arg0: i32) -> (i32, i32, i32) {
    %c0_i32 = arith.constant 0 : i32
    %c0_i32_0 = arith.constant 0 : i32
    %c0_i32_1 = arith.constant 0 : i32
    %c0_i32_2 = arith.constant 0 : i32
    return %c0_i32, %c0_i32_0, %c0_i32_1 : i32, i32, i32
  }
  func.func @transform_7(%arg0: i32) -> (i32, i32) {
    %c0_i32 = arith.constant 0 : i32
    %c0_i32_0 = arith.constant 0 : i32
    %c0_i32_1 = arith.constant 0 : i32
    return %c0_i32, %c0_i32_0 : i32, i32
  }
  func.func @transform_8(%arg0: i32) -> (i32, i32) {
    %c0_i32 = arith.constant 0 : i32
    %c0_i32_0 = arith.constant 0 : i32
    %c0_i32_1 = arith.constant 0 : i32
    return %c0_i32, %c0_i32_0 : i32, i32
  }
  func.func @transform_9(%arg0: i32) -> (i32, i32, i32) {
    %c0_i32 = arith.constant 0 : i32
    %c0_i32_0 = arith.constant 0 : i32
    %c0_i32_1 = arith.constant 0 : i32
    %c0_i32_2 = arith.constant 0 : i32
    return %c0_i32, %c0_i32_0, %c0_i32_1 : i32, i32, i32
  }
  func.func @transform_10(%arg0: i32) -> (i32, i32, i32, i32) {
    %c0_i32 = arith.constant 0 : i32
    %c0_i32_0 = arith.constant 0 : i32
    %c0_i32_1 = arith.constant 0 : i32
    %c0_i32_2 = arith.constant 0 : i32
    return %arg0, %c0_i32, %c0_i32_0, %c0_i32_1 : i32, i32, i32, i32
  }
}

</mosaic_0001>

<llo_original>
// kernel: refinement_forward.1
$region0: #{refinement_forward.1}
  #allocation0 [shape = 'u32[]', space=smem, size = 0x4, offset = 0x4, fixed_abs, tag = 'smem constant byte address 0x4 - core index']
  #allocation1 [shape = 'u32[144,128]{1,0:T(1,128)}', space=vmem, size = 0x12000, scoped, tag = 'internal scratch']
  #allocation2 [shape = 'f32[18,18,4]{2,1,0:T(8,128)}', space=vmem, size = 0x36000, scoped, tag = 'scratch operand']
  #allocation3 [shape = 'f32[18,18,64]{2,1,0:T(8,128)}', space=vmem, size = 0x36000, scoped, tag = 'scratch operand']
  #allocation4 [shape = 'f32[18,18,64]{2,1,0:T(8,128)}', space=vmem, size = 0x36000, scoped, tag = 'scratch operand']
  #allocation5 [shape = 'f32[1,1,1]{2,1,0:T(1,128)S(1)}', space=vmem, size = 0x200, scoped, tag = 'scoped memory for refinement_forward.1']
  %s0 = inlined_call_operand.vmem [shape: f32[2,16,16,3], index: 0, kind: input, shape index: {}]
  %s1 = inlined_call_operand.vmem [shape: f32[2,16,16,1], index: 1, kind: input, shape index: {}]
  %s2 = inlined_call_operand.vmem [shape: f32[36,64], index: 2, kind: input, shape index: {}]
  %s3 = inlined_call_operand.vmem [shape: f32[1,64], index: 3, kind: input, shape index: {}]
  %s4 = inlined_call_operand.vmem [shape: f32[3,192,64], index: 4, kind: input, shape index: {}]
  %s5 = inlined_call_operand.vmem [shape: f32[1,64], index: 5, kind: input, shape index: {}]
  %s6 = inlined_call_operand.vmem [shape: f32[3,192,64], index: 6, kind: input, shape index: {}]
  %s7 = inlined_call_operand.vmem [shape: f32[1,64], index: 7, kind: input, shape index: {}]
  %s8 = inlined_call_operand.vmem [shape: f32[9,64], index: 8, kind: input, shape index: {}]
  %s9 = inlined_call_operand.<no memory space> [shape: f32[1,1,1], index: 9, kind: input, shape index: {}]
  %s10 = inlined_call_operand.vmem [shape: f32[2,16,16,1], index: 10, kind: output, shape index: {}]
  %s11 = sld [smem:[#allocation0]]
  $region73: #{refinement_forward.1} parent=0
    _
  %s13 = ssub.s32 1, %s11
  %s14 = scalar_select 0, %s13, %s11
  %v15 = vstv %s9
  %16 = vst [vmem:[#allocation5] sm:$0x1] %v15
  loop: start=0, step=1, limit=4
  $region2: #{refinement_forward.1} parent=0 // loop_pre_header
    _
  $region3: #{refinement_forward.1} parent=0 // loop_header
    %s18 = sphi 0, %s22
    %p19 = scmp.ge.s32.totalorder %s18, 4
    %s28 = sphi 0, %s30
    %s31 = sphi 0, %s28
    %s32 = sphi 0, %s31
    %s48 = sphi 0, %s32
    %s54 = sphi 0, %s56
    %s57 = sphi 0, %s54
    %s58 = sphi 0, %s57
    %s74 = sphi 0, %s58
    %s78 = sphi 0, %s78
    %s80 = sphi 0, %s78
    %s81 = sphi 0, %s80
    %s95 = sphi 0, %s81
    %s99 = sphi 0, %s99
    %s101 = sphi 0, %s99
    %s102 = sphi 0, %s101
    %s116 = sphi 0, %s102
    %s120 = sphi 0, %s120
    %s122 = sphi 0, %s120
    %s123 = sphi 0, %s122
    %s137 = sphi 0, %s123
    %s141 = sphi 0, %s141
    %s143 = sphi 0, %s141
    %s144 = sphi 0, %s143
    %s158 = sphi 0, %s144
    %s162 = sphi 0, %s162
    %s164 = sphi 0, %s162
    %s165 = sphi 0, %s164
    %s179 = sphi 0, %s165
    %s183 = sphi 0, %s183
    %s185 = sphi 0, %s183
    %s186 = sphi 0, %s185
    %s200 = sphi 0, %s186
    %s204 = sphi 0, %s204
    %s206 = sphi 0, %s204
    %s207 = sphi 0, %s206
    %s221 = sphi 0, %s207
    %s225 = sphi 0, %s225
    %s227 = sphi 0, %s225
    %s228 = sphi 0, %s227
    %s242 = sphi 0, %s228
    %s248 = sphi 0, %s250
    %s251 = sphi 0, %s248
    %s252 = sphi 0, %s251
    %s268 = sphi 0, %s252
  $region4: #{refinement_forward.1} parent=0 // loop_header_branch
    %21 = sbr.rel (%p19) target = $region8
  $region5: #{refinement_forward.1} parent=0 // loop_body
    %s23 = ssub.s32 %s18, 1
    %s24 = ssub.s32 %s18, 2
    %s25 = sadd.s32 %s18, 1
    %s26 = ssub.s32 %s18, %s25
    %p27 = scmp.eq.s32.totalorder %s26, 0
    %s29 = sadd.s32 %s28, 1
    %s30 = scalar_select %p27, %s28, %s29
    %p33 = pneg %p27
    %p34 = scmp.eq.s32.totalorder %s18, 1
    %p35 = por %p33, %p34
    %p36 = scmp.ne.s32.totalorder %s28, %s31
    %p37 = scmp.eq.s32.totalorder %s18, 0
    %p38 = por %p36, %p37
    %p39 = scmp.ne.s32.totalorder %s28, %s31
    %p40 = scmp.eq.s32.totalorder %s23, 1
    %p41 = por %p39, %p40
    %p42 = scmp.ne.s32.totalorder %s31, %s32
    %p43 = scmp.eq.s32.totalorder %s23, 0
    %p44 = por %p42, %p43
    %p45 = scmp.ne.s32.totalorder %s31, %s32
    %p46 = scmp.eq.s32.totalorder %s24, 1
    %p47 = por %p45, %p46
    %p49 = scmp.ne.s32.totalorder %s32, %s48
    %p50 = scmp.eq.s32.totalorder %s24, 0
    %p51 = por %p49, %p50
    %s52 = ssub.s32 %s18, %s25
    %p53 = scmp.eq.s32.totalorder %s52, 0
    %s55 = sadd.s32 %s54, 1
    %s56 = scalar_select %p53, %s54, %s55
    %p59 = pneg %p53
    %p60 = scmp.eq.s32.totalorder %s18, 1
    %p61 = por %p59, %p60
    %p62 = scmp.ne.s32.totalorder %s54, %s57
    %p63 = scmp.eq.s32.totalorder %s18, 0
    %p64 = por %p62, %p63
    %p65 = scmp.ne.s32.totalorder %s54, %s57
    %p66 = scmp.eq.s32.totalorder %s23, 1
    %p67 = por %p65, %p66
    %p68 = scmp.ne.s32.totalorder %s57, %s58
    %p69 = scmp.eq.s32.totalorder %s23, 0
    %p70 = por %p68, %p69
    %p71 = scmp.ne.s32.totalorder %s57, %s58
    %p72 = scmp.eq.s32.totalorder %s24, 1
    %p73 = por %p71, %p72
    %p75 = scmp.ne.s32.totalorder %s58, %s74
    %p76 = scmp.eq.s32.totalorder %s24, 0
    %p77 = por %p75, %p76
    %s79 = sadd.s32 %s78, 1
    %p82 = scmp.eq.s32.totalorder %s18, 1
    %p83 = scmp.ne.s32.totalorder %s78, %s80
    %p84 = scmp.eq.s32.totalorder %s18, 0
    %p85 = por %p83, %p84
    %p86 = scmp.ne.s32.totalorder %s78, %s80
    %p87 = scmp.eq.s32.totalorder %s23, 1
    %p88 = por %p86, %p87
    %p89 = scmp.ne.s32.totalorder %s80, %s81
    %p90 = scmp.eq.s32.totalorder %s23, 0
    %p91 = por %p89, %p90
    %p92 = scmp.ne.s32.totalorder %s80, %s81
    %p93 = scmp.eq.s32.totalorder %s24, 1
    %p94 = por %p92, %p93
    %p96 = scmp.ne.s32.totalorder %s81, %s95
    %p97 = scmp.eq.s32.totalorder %s24, 0
    %p98 = por %p96, %p97
    %s100 = sadd.s32 %s99, 1
    %p103 = scmp.eq.s32.totalorder %s18, 1
    %p104 = scmp.ne.s32.totalorder %s99, %s101
    %p105 = scmp.eq.s32.totalorder %s18, 0
    %p106 = por %p104, %p105
    %p107 = scmp.ne.s32.totalorder %s99, %s101
    %p108 = scmp.eq.s32.totalorder %s23, 1
    %p109 = por %p107, %p108
    %p110 = scmp.ne.s32.totalorder %s101, %s102
    %p111 = scmp.eq.s32.totalorder %s23, 0
    %p112 = por %p110, %p111
    %p113 = scmp.ne.s32.totalorder %s101, %s102
    %p114 = scmp.eq.s32.totalorder %s24, 1
    %p115 = por %p113, %p114
    %p117 = scmp.ne.s32.totalorder %s102, %s116
    %p118 = scmp.eq.s32.totalorder %s24, 0
    %p119 = por %p117, %p118
    %s121 = sadd.s32 %s120, 1
    %p124 = scmp.eq.s32.totalorder %s18, 1
    %p125 = scmp.ne.s32.totalorder %s120, %s122
    %p126 = scmp.eq.s32.totalorder %s18, 0
    %p127 = por %p125, %p126
    %p128 = scmp.ne.s32.totalorder %s120, %s122
    %p129 = scmp.eq.s32.totalorder %s23, 1
    %p130 = por %p128, %p129
    %p131 = scmp.ne.s32.totalorder %s122, %s123
    %p132 = scmp.eq.s32.totalorder %s23, 0
    %p133 = por %p131, %p132
    %p134 = scmp.ne.s32.totalorder %s122, %s123
    %p135 = scmp.eq.s32.totalorder %s24, 1
    %p136 = por %p134, %p135
    %p138 = scmp.ne.s32.totalorder %s123, %s137
    %p139 = scmp.eq.s32.totalorder %s24, 0
    %p140 = por %p138, %p139
    %s142 = sadd.s32 %s141, 1
    %p145 = scmp.eq.s32.totalorder %s18, 1
    %p146 = scmp.ne.s32.totalorder %s141, %s143
    %p147 = scmp.eq.s32.totalorder %s18, 0
    %p148 = por %p146, %p147
    %p149 = scmp.ne.s32.totalorder %s141, %s143
    %p150 = scmp.eq.s32.totalorder %s23, 1
    %p151 = por %p149, %p150
    %p152 = scmp.ne.s32.totalorder %s143, %s144
    %p153 = scmp.eq.s32.totalorder %s23, 0
    %p154 = por %p152, %p153
    %p155 = scmp.ne.s32.totalorder %s143, %s144
    %p156 = scmp.eq.s32.totalorder %s24, 1
    %p157 = por %p155, %p156
    %p159 = scmp.ne.s32.totalorder %s144, %s158
    %p160 = scmp.eq.s32.totalorder %s24, 0
    %p161 = por %p159, %p160
    %s163 = sadd.s32 %s162, 1
    %p166 = scmp.eq.s32.totalorder %s18, 1
    %p167 = scmp.ne.s32.totalorder %s162, %s164
    %p168 = scmp.eq.s32.totalorder %s18, 0
    %p169 = por %p167, %p168
    %p170 = scmp.ne.s32.totalorder %s162, %s164
    %p171 = scmp.eq.s32.totalorder %s23, 1
    %p172 = por %p170, %p171
    %p173 = scmp.ne.s32.totalorder %s164, %s165
    %p174 = scmp.eq.s32.totalorder %s23, 0
    %p175 = por %p173, %p174
    %p176 = scmp.ne.s32.totalorder %s164, %s165
    %p177 = scmp.eq.s32.totalorder %s24, 1
    %p178 = por %p176, %p177
    %p180 = scmp.ne.s32.totalorder %s165, %s179
    %p181 = scmp.eq.s32.totalorder %s24, 0
    %p182 = por %p180, %p181
    %s184 = sadd.s32 %s183, 1
    %p187 = scmp.eq.s32.totalorder %s18, 1
    %p188 = scmp.ne.s32.totalorder %s183, %s185
    %p189 = scmp.eq.s32.totalorder %s18, 0
    %p190 = por %p188, %p189
    %p191 = scmp.ne.s32.totalorder %s183, %s185
    %p192 = scmp.eq.s32.totalorder %s23, 1
    %p193 = por %p191, %p192
    %p194 = scmp.ne.s32.totalorder %s185, %s186
    %p195 = scmp.eq.s32.totalorder %s23, 0
    %p196 = por %p194, %p195
    %p197 = scmp.ne.s32.totalorder %s185, %s186
    %p198 = scmp.eq.s32.totalorder %s24, 1
    %p199 = por %p197, %p198
    %p201 = scmp.ne.s32.totalorder %s186, %s200
    %p202 = scmp.eq.s32.totalorder %s24, 0
    %p203 = por %p201, %p202
    %s205 = sadd.s32 %s204, 1
    %p208 = scmp.eq.s32.totalorder %s18, 1
    %p209 = scmp.ne.s32.totalorder %s204, %s206
    %p210 = scmp.eq.s32.totalorder %s18, 0
    %p211 = por %p209, %p210
    %p212 = scmp.ne.s32.totalorder %s204, %s206
    %p213 = scmp.eq.s32.totalorder %s23, 1
    %p214 = por %p212, %p213
    %p215 = scmp.ne.s32.totalorder %s206, %s207
    %p216 = scmp.eq.s32.totalorder %s23, 0
    %p217 = por %p215, %p216
    %p218 = scmp.ne.s32.totalorder %s206, %s207
    %p219 = scmp.eq.s32.totalorder %s24, 1
    %p220 = por %p218, %p219
    %p222 = scmp.ne.s32.totalorder %s207, %s221
    %p223 = scmp.eq.s32.totalorder %s24, 0
    %p224 = por %p222, %p223
    %s226 = sadd.s32 %s225, 1
    %p229 = scmp.eq.s32.totalorder %s18, 1
    %p230 = scmp.ne.s32.totalorder %s225, %s227
    %p231 = scmp.eq.s32.totalorder %s18, 0
    %p232 = por %p230, %p231
    %p233 = scmp.ne.s32.totalorder %s225, %s227
    %p234 = scmp.eq.s32.totalorder %s23, 1
    %p235 = por %p233, %p234
    %p236 = scmp.ne.s32.totalorder %s227, %s228
    %p237 = scmp.eq.s32.totalorder %s23, 0
    %p238 = por %p236, %p237
    %p239 = scmp.ne.s32.totalorder %s227, %s228
    %p240 = scmp.eq.s32.totalorder %s24, 1
    %p241 = por %p239, %p240
    %p243 = scmp.ne.s32.totalorder %s228, %s242
    %p244 = scmp.eq.s32.totalorder %s24, 0
    %p245 = por %p243, %p244
    %s246 = ssub.s32 %s18, %s25
    %p247 = scmp.eq.s32.totalorder %s246, 0
    %s249 = sadd.s32 %s248, 1
    %s250 = scalar_select %p247, %s248, %s249
    %p253 = pneg %p247
    %p254 = scmp.eq.s32.totalorder %s18, 1
    %p255 = por %p253, %p254
    %p256 = scmp.ne.s32.totalorder %s248, %s251
    %p257 = scmp.eq.s32.totalorder %s18, 0
    %p258 = por %p256, %p257
    %p259 = scmp.ne.s32.totalorder %s248, %s251
    %p260 = scmp.eq.s32.totalorder %s23, 1
    %p261 = por %p259, %p260
    %p262 = scmp.ne.s32.totalorder %s251, %s252
    %p263 = scmp.eq.s32.totalorder %s23, 0
    %p264 = por %p262, %p263
    %p265 = scmp.ne.s32.totalorder %s251, %s252
    %p266 = scmp.eq.s32.totalorder %s24, 1
    %p267 = por %p265, %p266
    %p269 = scmp.ne.s32.totalorder %s252, %s268
    %p270 = scmp.eq.s32.totalorder %s24, 0
    %p271 = por %p269, %p270
    %p272 = scmp.le.s32.totalorder 1, %s18
    %p273 = scmp.lt.s32.totalorder %s18, 3
    %p274 = pnand %p272, %p273
    %p275 = pneg %p274
    // Predicated region
    $region9: #{refinement_forward.1} parent=5 // pred_check
      _
    $region10: #{refinement_forward.1} parent=5 // pred_check_branch
      %277 = sbr.rel (%p274) target = $region12
    $region11: #{refinement_forward.1} parent=5 // pred_region
      %s278 = ssub.s32 %s18, 1
      // Predicated region
      $region13: #{refinement_forward.1} parent=11 // pred_check
        %p279 = pneg %p91
      $region14: #{refinement_forward.1} parent=11 // pred_check_branch
        %281 = sbr.rel (%p279) target = $region16
      $region15: #{refinement_forward.1} parent=11 // pred_region
        _
      $region16: #{refinement_forward.1} parent=11 // pred_fallthru
        _
      // Predicated region
      $region17: #{refinement_forward.1} parent=11 // pred_check
        %p282 = pneg %p112
      $region18: #{refinement_forward.1} parent=11 // pred_check_branch
        %284 = sbr.rel (%p282) target = $region20
      $region19: #{refinement_forward.1} parent=11 // pred_region
        _
      $region20: #{refinement_forward.1} parent=11 // pred_fallthru
        _
      // Predicated region
      $region21: #{refinement_forward.1} parent=11 // pred_check
        %p285 = pneg %p133
      $region22: #{refinement_forward.1} parent=11 // pred_check_branch
        %287 = sbr.rel (%p285) target = $region24
      $region23: #{refinement_forward.1} parent=11 // pred_region
        _
      $region24: #{refinement_forward.1} parent=11 // pred_fallthru
        _
      // Predicated region
      $region25: #{refinement_forward.1} parent=11 // pred_check
        %p288 = pneg %p154
      $region26: #{refinement_forward.1} parent=11 // pred_check_branch
        %290 = sbr.rel (%p288) target = $region28
      $region27: #{refinement_forward.1} parent=11 // pred_region
        _
      $region28: #{refinement_forward.1} parent=11 // pred_fallthru
        _
      // Predicated region
      $region29: #{refinement_forward.1} parent=11 // pred_check
        %p291 = pneg %p175
      $region30: #{refinement_forward.1} parent=11 // pred_check_branch
        %293 = sbr.rel (%p291) target = $region32
      $region31: #{refinement_forward.1} parent=11 // pred_region
        _
      $region32: #{refinement_forward.1} parent=11 // pred_fallthru
        _
      // Predicated region
      $region33: #{refinement_forward.1} parent=11 // pred_check
        %p294 = pneg %p196
      $region34: #{refinement_forward.1} parent=11 // pred_check_branch
        %296 = sbr.rel (%p294) target = $region36
      $region35: #{refinement_forward.1} parent=11 // pred_region
        _
      $region36: #{refinement_forward.1} parent=11 // pred_fallthru
        _
      // Predicated region
      $region37: #{refinement_forward.1} parent=11 // pred_check
        %p297 = pneg %p217
      $region38: #{refinement_forward.1} parent=11 // pred_check_branch
        %299 = sbr.rel (%p297) target = $region40
      $region39: #{refinement_forward.1} parent=11 // pred_region
        _
      $region40: #{refinement_forward.1} parent=11 // pred_fallthru
        _
      // Predicated region
      $region41: #{refinement_forward.1} parent=11 // pred_check
        %p300 = pneg %p238
      $region42: #{refinement_forward.1} parent=11 // pred_check_branch
        %302 = sbr.rel (%p300) target = $region44
      $region43: #{refinement_forward.1} parent=11 // pred_region
        _
      $region44: #{refinement_forward.1} parent=11 // pred_fallthru
        _
    $region12: #{refinement_forward.1} parent=5 // pred_fallthru
      _
    %p303 = scmp.lt.s32.totalorder %s18, 2
    // Predicated region
    $region45: #{refinement_forward.1} parent=5 // pred_check
      %p304 = pneg %p303
    $region46: #{refinement_forward.1} parent=5 // pred_check_branch
      %306 = sbr.rel (%p304) target = $region48
    $region47: #{refinement_forward.1} parent=5 // pred_region
      // Predicated region
      $region49: #{refinement_forward.1} parent=47 // pred_check
        %p307 = pneg %p38
      $region50: #{refinement_forward.1} parent=47 // pred_check_branch
        %309 = sbr.rel (%p307) target = $region52
      $region51: #{refinement_forward.1} parent=47 // pred_region
        %p310 = scmp.lt.s32.totalorder %s18, 1
        %s311 = scalar_select %p310, %s18, 1
        %s312 = smul.addr %s311, 32
        %s313 = smul.addr %s312, 8
        %s314 = scalar_lea.vmem %s0, %s313
      $region52: #{refinement_forward.1} parent=47 // pred_fallthru
        _
      // Predicated region
      $region53: #{refinement_forward.1} parent=47 // pred_check
        %p315 = pneg %p64
      $region54: #{refinement_forward.1} parent=47 // pred_check_branch
        %317 = sbr.rel (%p315) target = $region56
      $region55: #{refinement_forward.1} parent=47 // pred_region
        %p318 = scmp.lt.s32.totalorder %s18, 1
        %s319 = scalar_select %p318, %s18, 1
        %s320 = smul.addr %s319, 32
        %s321 = smul.addr %s320, 8
        %s322 = scalar_lea.vmem %s1, %s321
      $region56: #{refinement_forward.1} parent=47 // pred_fallthru
        _
    $region48: #{refinement_forward.1} parent=5 // pred_fallthru
      _
    %p323 = scmp.le.s32.totalorder 1, %s18
    %p324 = scmp.lt.s32.totalorder %s18, 3
    %p325 = pnand %p323, %p324
    %p326 = pneg %p325
    // Predicated region
    $region57: #{refinement_forward.1} parent=5 // pred_check
      _
    $region58: #{refinement_forward.1} parent=5 // pred_check_branch
      %328 = sbr.rel (%p325) target = $region60
    $region59: #{refinement_forward.1} parent=5 // pred_region
      %s329 = ssub.s32 %s18, 1
      %p330 = scmp.lt.s32.totalorder %s23, 1
      %s331 = scalar_select %p330, %s23, 1
      %s332 = smul.addr %s331, 32
      %s333 = smul.addr %s332, 8
      %s334 = scalar_lea.vmem %s0, %s333
      %p335 = pneg %p44
      %p336 = pneg %p41
      %p337 = scmp.lt.s32.totalorder %s23, 1
      %s338 = scalar_select %p337, %s23, 1
      %s339 = smul.addr %s338, 32
      %s340 = smul.addr %s339, 8
      %s341 = scalar_lea.vmem %s1, %s340
      %p342 = pneg %p70
      %p343 = pneg %p67
      %p344 = pneg %p91
      %p345 = pneg %p88
      %p346 = pneg %p112
      %p347 = pneg %p109
      %p348 = pneg %p133
      %p349 = pneg %p130
      %p350 = pneg %p154
      %p351 = pneg %p151
      %p352 = pneg %p175
      %p353 = pneg %p172
      %p354 = pneg %p196
      %p355 = pneg %p193
      %p356 = pneg %p217
      %p357 = pneg %p214
      %p358 = pneg %p238
      %p359 = pneg %p235
      %p360 = pneg %p264
      %p361 = pneg %p261
      %p362 = scmp.lt.s32.totalorder %s23, 1
      %s363 = scalar_select %p362, %s23, 1
      %s364 = smul.addr %s363, 32
      %s365 = smul.addr %s364, 8
      %s366 = scalar_lea.vmem %s10, %s365
      %p367 = scmp.lt.s32.totalorder %s23, 1
      %s368 = scalar_select %p367, %s23, 1
      %s369 = smul.addr %s368, 32
      %s370 = smul.addr %s369, 8
      %s371 = scalar_lea.vmem %s0, %s370
      %p372 = scmp.lt.s32.totalorder %s23, 1
      %s373 = scalar_select %p372, %s23, 1
      %s374 = smul.addr %s373, 32
      %s375 = smul.addr %s374, 8
      %s376 = scalar_lea.vmem %s1, %s375
      %p377 = scmp.lt.s32.totalorder %s23, 1
      %s378 = scalar_select %p377, %s23, 1
      %s379 = smul.addr %s378, 32
      %s380 = smul.addr %s379, 8
      %s381 = scalar_lea.vmem %s10, %s380
      %vm382 = vcmask 31744
      %383 = vst.msk [vmem:[#allocation2] sm:$0xff] %vm382, 0.0
      %384 = vst.msk [vmem:[#allocation2 + $0x8] sm:$0xff] %vm382, 0.0
      %vm385 = vcmask 25600
      %386 = vst.msk [vmem:[#allocation2 + $0x10] sm:$0x3] %vm385, 0.0
      %s387 = scalar_lea.vmem [#allocation2], 408
      %388 = vst.msk [vmem:[%s387] sm:$0xff] %vm382, 0.0
      %389 = vst.msk [vmem:[%s387 + $0x8] sm:$0xff] %vm382, 0.0
      %390 = vst.msk [vmem:[%s387 + $0x10] sm:$0x3] %vm385, 0.0
      %vm391 = vcmask 24576
      %392 = vst.msk [vmem:[#allocation2] sm:$0x1] %vm391, 0.0
      %393 = vst.msk [vmem:[#allocation2 + $0x18] sm:$0x1] %vm391, 0.0
      %394 = vst.msk [vmem:[#allocation2 + $0x30] sm:$0x1] %vm391, 0.0
      %395 = vst.msk [vmem:[#allocation2 + $0x48] sm:$0x1] %vm391, 0.0
      %396 = vst.msk [vmem:[#allocation2 + $0x60] sm:$0x1] %vm391, 0.0
      %397 = vst.msk [vmem:[#allocation2 + $0x78] sm:$0x1] %vm391, 0.0
      %398 = vst.msk [vmem:[#allocation2 + $0x90] sm:$0x1] %vm391, 0.0
      %399 = vst.msk [vmem:[#allocation2 + $0xa8] sm:$0x1] %vm391, 0.0
      %400 = vst.msk [vmem:[#allocation2 + $0xc0] sm:$0x1] %vm391, 0.0
      %401 = vst.msk [vmem:[#allocation2 + $0xd8] sm:$0x1] %vm391, 0.0
      %402 = vst.msk [vmem:[#allocation2 + $0xf0] sm:$0x1] %vm391, 0.0
      %403 = vst.msk [vmem:[#allocation2 + $0x108] sm:$0x1] %vm391, 0.0
      %404 = vst.msk [vmem:[#allocation2 + $0x120] sm:$0x1] %vm391, 0.0
      %405 = vst.msk [vmem:[#allocation2 + $0x138] sm:$0x1] %vm391, 0.0
      %406 = vst.msk [vmem:[#allocation2 + $0x150] sm:$0x1] %vm391, 0.0
      %407 = vst.msk [vmem:[#allocation2 + $0x168] sm:$0x1] %vm391, 0.0
      %408 = vst.msk [vmem:[#allocation2 + $0x180] sm:$0x1] %vm391, 0.0
      %409 = vst.msk [vmem:[#allocation2 + $0x198] sm:$0x1] %vm391, 0.0
      %410 = vst.msk [vmem:[#allocation2 + $0x11] sm:$0x1] %vm391, 0.0
      %411 = vst.msk [vmem:[#allocation2 + $0x29] sm:$0x1] %vm391, 0.0
      %412 = vst.msk [vmem:[#allocation2 + $0x41] sm:$0x1] %vm391, 0.0
      %413 = vst.msk [vmem:[#allocation2 + $0x59] sm:$0x1] %vm391, 0.0
      %414 = vst.msk [vmem:[#allocation2 + $0x71] sm:$0x1] %vm391, 0.0
      %415 = vst.msk [vmem:[#allocation2 + $0x89] sm:$0x1] %vm391, 0.0
      %416 = vst.msk [vmem:[#allocation2 + $0xa1] sm:$0x1] %vm391, 0.0
      %417 = vst.msk [vmem:[#allocation2 + $0xb9] sm:$0x1] %vm391, 0.0
      %418 = vst.msk [vmem:[#allocation2 + $0xd1] sm:$0x1] %vm391, 0.0
      %419 = vst.msk [vmem:[#allocation2 + $0xe9] sm:$0x1] %vm391, 0.0
      %420 = vst.msk [vmem:[#allocation2 + $0x101] sm:$0x1] %vm391, 0.0
      %421 = vst.msk [vmem:[#allocation2 + $0x119] sm:$0x1] %vm391, 0.0
      %422 = vst.msk [vmem:[#allocation2 + $0x131] sm:$0x1] %vm391, 0.0
      %423 = vst.msk [vmem:[#allocation2 + $0x149] sm:$0x1] %vm391, 0.0
      %424 = vst.msk [vmem:[#allocation2 + $0x161] sm:$0x1] %vm391, 0.0
      %425 = vst.msk [vmem:[#allocation2 + $0x179] sm:$0x1] %vm391, 0.0
      %426 = vst.msk [vmem:[#allocation2 + $0x191] sm:$0x1] %vm391, 0.0
      %427 = vst.msk [vmem:[#allocation2 + $0x1a9] sm:$0x1] %vm391, 0.0
      %vm428 = vcmask 523264
      %429 = vst.msk [vmem:[#allocation3] sm:$0xff] %vm428, 0.0
      %430 = vst.msk [vmem:[#allocation3 + $0x8] sm:$0xff] %vm428, 0.0
      %vm431 = vcmask 517120
      %432 = vst.msk [vmem:[#allocation3 + $0x10] sm:$0x3] %vm431, 0.0
      %s433 = scalar_lea.vmem [#allocation3], 408
      %434 = vst.msk [vmem:[%s433] sm:$0xff] %vm428, 0.0
      %435 = vst.msk [vmem:[%s433 + $0x8] sm:$0xff] %vm428, 0.0
      %436 = vst.msk [vmem:[%s433 + $0x10] sm:$0x3] %vm431, 0.0
      %vm437 = vcmask 516096
      %438 = vst.msk [vmem:[#allocation3] sm:$0x1] %vm437, 0.0
      %439 = vst.msk [vmem:[#allocation3 + $0x18] sm:$0x1] %vm437, 0.0
      %440 = vst.msk [vmem:[#allocation3 + $0x30] sm:$0x1] %vm437, 0.0
      %441 = vst.msk [vmem:[#allocation3 + $0x48] sm:$0x1] %vm437, 0.0
      %442 = vst.msk [vmem:[#allocation3 + $0x60] sm:$0x1] %vm437, 0.0
      %443 = vst.msk [vmem:[#allocation3 + $0x78] sm:$0x1] %vm437, 0.0
      %444 = vst.msk [vmem:[#allocation3 + $0x90] sm:$0x1] %vm437, 0.0
      %445 = vst.msk [vmem:[#allocation3 + $0xa8] sm:$0x1] %vm437, 0.0
      %446 = vst.msk [vmem:[#allocation3 + $0xc0] sm:$0x1] %vm437, 0.0
      %447 = vst.msk [vmem:[#allocation3 + $0xd8] sm:$0x1] %vm437, 0.0
      %448 = vst.msk [vmem:[#allocation3 + $0xf0] sm:$0x1] %vm437, 0.0
      %449 = vst.msk [vmem:[#allocation3 + $0x108] sm:$0x1] %vm437, 0.0
      %450 = vst.msk [vmem:[#allocation3 + $0x120] sm:$0x1] %vm437, 0.0
      %451 = vst.msk [vmem:[#allocation3 + $0x138] sm:$0x1] %vm437, 0.0
      %452 = vst.msk [vmem:[#allocation3 + $0x150] sm:$0x1] %vm437, 0.0
      %453 = vst.msk [vmem:[#allocation3 + $0x168] sm:$0x1] %vm437, 0.0
      %454 = vst.msk [vmem:[#allocation3 + $0x180] sm:$0x1] %vm437, 0.0
      %455 = vst.msk [vmem:[#allocation3 + $0x198] sm:$0x1] %vm437, 0.0
      %456 = vst.msk [vmem:[#allocation3 + $0x11] sm:$0x1] %vm437, 0.0
      %457 = vst.msk [vmem:[#allocation3 + $0x29] sm:$0x1] %vm437, 0.0
      %458 = vst.msk [vmem:[#allocation3 + $0x41] sm:$0x1] %vm437, 0.0
      %459 = vst.msk [vmem:[#allocation3 + $0x59] sm:$0x1] %vm437, 0.0
      %460 = vst.msk [vmem:[#allocation3 + $0x71] sm:$0x1] %vm437, 0.0
      %461 = vst.msk [vmem:[#allocation3 + $0x89] sm:$0x1] %vm437, 0.0
      %462 = vst.msk [vmem:[#allocation3 + $0xa1] sm:$0x1] %vm437, 0.0
      %463 = vst.msk [vmem:[#allocation3 + $0xb9] sm:$0x1] %vm437, 0.0
      %464 = vst.msk [vmem:[#allocation3 + $0xd1] sm:$0x1] %vm437, 0.0
      %465 = vst.msk [vmem:[#allocation3 + $0xe9] sm:$0x1] %vm437, 0.0
      %466 = vst.msk [vmem:[#allocation3 + $0x101] sm:$0x1] %vm437, 0.0
      %467 = vst.msk [vmem:[#allocation3 + $0x119] sm:$0x1] %vm437, 0.0
      %468 = vst.msk [vmem:[#allocation3 + $0x131] sm:$0x1] %vm437, 0.0
      %469 = vst.msk [vmem:[#allocation3 + $0x149] sm:$0x1] %vm437, 0.0
      %470 = vst.msk [vmem:[#allocation3 + $0x161] sm:$0x1] %vm437, 0.0
      %471 = vst.msk [vmem:[#allocation3 + $0x179] sm:$0x1] %vm437, 0.0
      %472 = vst.msk [vmem:[#allocation3 + $0x191] sm:$0x1] %vm437, 0.0
      %473 = vst.msk [vmem:[#allocation3 + $0x1a9] sm:$0x1] %vm437, 0.0
      %474 = vst.msk [vmem:[#allocation4] sm:$0xff] %vm428, 0.0
      %475 = vst.msk [vmem:[#allocation4 + $0x8] sm:$0xff] %vm428, 0.0
      %476 = vst.msk [vmem:[#allocation4 + $0x10] sm:$0x3] %vm431, 0.0
      %s477 = scalar_lea.vmem [#allocation4], 408
      %478 = vst.msk [vmem:[%s477] sm:$0xff] %vm428, 0.0
      %479 = vst.msk [vmem:[%s477 + $0x8] sm:$0xff] %vm428, 0.0
      %480 = vst.msk [vmem:[%s477 + $0x10] sm:$0x3] %vm431, 0.0
      %481 = vst.msk [vmem:[#allocation4] sm:$0x1] %vm437, 0.0
      %482 = vst.msk [vmem:[#allocation4 + $0x18] sm:$0x1] %vm437, 0.0
      %483 = vst.msk [vmem:[#allocation4 + $0x30] sm:$0x1] %vm437, 0.0
      %484 = vst.msk [vmem:[#allocation4 + $0x48] sm:$0x1] %vm437, 0.0
      %485 = vst.msk [vmem:[#allocation4 + $0x60] sm:$0x1] %vm437, 0.0
      %486 = vst.msk [vmem:[#allocation4 + $0x78] sm:$0x1] %vm437, 0.0
      %487 = vst.msk [vmem:[#allocation4 + $0x90] sm:$0x1] %vm437, 0.0
      %488 = vst.msk [vmem:[#allocation4 + $0xa8] sm:$0x1] %vm437, 0.0
      %489 = vst.msk [vmem:[#allocation4 + $0xc0] sm:$0x1] %vm437, 0.0
      %490 = vst.msk [vmem:[#allocation4 + $0xd8] sm:$0x1] %vm437, 0.0
      %491 = vst.msk [vmem:[#allocation4 + $0xf0] sm:$0x1] %vm437, 0.0
      %492 = vst.msk [vmem:[#allocation4 + $0x108] sm:$0x1] %vm437, 0.0
      %493 = vst.msk [vmem:[#allocation4 + $0x120] sm:$0x1] %vm437, 0.0
      %494 = vst.msk [vmem:[#allocation4 + $0x138] sm:$0x1] %vm437, 0.0
      %495 = vst.msk [vmem:[#allocation4 + $0x150] sm:$0x1] %vm437, 0.0
      %496 = vst.msk [vmem:[#allocation4 + $0x168] sm:$0x1] %vm437, 0.0
      %497 = vst.msk [vmem:[#allocation4 + $0x180] sm:$0x1] %vm437, 0.0
      %498 = vst.msk [vmem:[#allocation4 + $0x198] sm:$0x1] %vm437, 0.0
      %499 = vst.msk [vmem:[#allocation4 + $0x11] sm:$0x1] %vm437, 0.0
      %500 = vst.msk [vmem:[#allocation4 + $0x29] sm:$0x1] %vm437, 0.0
      %501 = vst.msk [vmem:[#allocation4 + $0x41] sm:$0x1] %vm437, 0.0
      %502 = vst.msk [vmem:[#allocation4 + $0x59] sm:$0x1] %vm437, 0.0
      %503 = vst.msk [vmem:[#allocation4 + $0x71] sm:$0x1] %vm437, 0.0
      %504 = vst.msk [vmem:[#allocation4 + $0x89] sm:$0x1] %vm437, 0.0
      %505 = vst.msk [vmem:[#allocation4 + $0xa1] sm:$0x1] %vm437, 0.0
      %506 = vst.msk [vmem:[#allocation4 + $0xb9] sm:$0x1] %vm437, 0.0
      %507 = vst.msk [vmem:[#allocation4 + $0xd1] sm:$0x1] %vm437, 0.0
      %508 = vst.msk [vmem:[#allocation4 + $0xe9] sm:$0x1] %vm437, 0.0
      %509 = vst.msk [vmem:[#allocation4 + $0x101] sm:$0x1] %vm437, 0.0
      %510 = vst.msk [vmem:[#allocation4 + $0x119] sm:$0x1] %vm437, 0.0
      %511 = vst.msk [vmem:[#allocation4 + $0x131] sm:$0x1] %vm437, 0.0
      %512 = vst.msk [vmem:[#allocation4 + $0x149] sm:$0x1] %vm437, 0.0
      %513 = vst.msk [vmem:[#allocation4 + $0x161] sm:$0x1] %vm437, 0.0
      %514 = vst.msk [vmem:[#allocation4 + $0x179] sm:$0x1] %vm437, 0.0
      %515 = vst.msk [vmem:[#allocation4 + $0x191] sm:$0x1] %vm437, 0.0
      %516 = vst.msk [vmem:[#allocation4 + $0x1a9] sm:$0x1] %vm437, 0.0
      %v517 = vld [vmem:[%s371] sm:$0xff]
      %v518 = vld [vmem:[%s371 + $0x8] sm:$0xff]
      %v519 = vld [vmem:[%s371 + $0x10] sm:$0xff]
      %v520 = vld [vmem:[%s371 + $0x18] sm:$0xff]
      %v521 = vld [vmem:[%s371 + $0x20] sm:$0xff]
      %v522 = vld [vmem:[%s371 + $0x28] sm:$0xff]
      %v523 = vld [vmem:[%s371 + $0x30] sm:$0xff]
      %v524 = vld [vmem:[%s371 + $0x38] sm:$0xff]
      %v525 = vld [vmem:[%s371 + $0x40] sm:$0xff]
      %v526 = vld [vmem:[%s371 + $0x48] sm:$0xff]
      %v527 = vld [vmem:[%s371 + $0x50] sm:$0xff]
      %v528 = vld [vmem:[%s371 + $0x58] sm:$0xff]
      %v529 = vld [vmem:[%s371 + $0x60] sm:$0xff]
      %v530 = vld [vmem:[%s371 + $0x68] sm:$0xff]
      %v531 = vld [vmem:[%s371 + $0x70] sm:$0xff]
      %v532 = vld [vmem:[%s371 + $0x78] sm:$0xff]
      %v533 = vld [vmem:[%s371 + $0x80] sm:$0xff]
      %v534 = vld [vmem:[%s371 + $0x88] sm:$0xff]
      %v535 = vld [vmem:[%s371 + $0x90] sm:$0xff]
      %v536 = vld [vmem:[%s371 + $0x98] sm:$0xff]
      %v537 = vld [vmem:[%s371 + $0xa0] sm:$0xff]
      %v538 = vld [vmem:[%s371 + $0xa8] sm:$0xff]
      %v539 = vld [vmem:[%s371 + $0xb0] sm:$0xff]
      %v540 = vld [vmem:[%s371 + $0xb8] sm:$0xff]
      %v541 = vld [vmem:[%s371 + $0xc0] sm:$0xff]
      %v542 = vld [vmem:[%s371 + $0xc8] sm:$0xff]
      %v543 = vld [vmem:[%s371 + $0xd0] sm:$0xff]
      %v544 = vld [vmem:[%s371 + $0xd8] sm:$0xff]
      %v545 = vld [vmem:[%s371 + $0xe0] sm:$0xff]
      %v546 = vld [vmem:[%s371 + $0xe8] sm:$0xff]
      %v547 = vld [vmem:[%s371 + $0xf0] sm:$0xff]
      %v548 = vld [vmem:[%s371 + $0xf8] sm:$0xff]
      %v549 = vld [vmem:[%s376] sm:$0xff]
      %v550 = vld [vmem:[%s376 + $0x8] sm:$0xff]
      %v551 = vld [vmem:[%s376 + $0x10] sm:$0xff]
      %v552 = vld [vmem:[%s376 + $0x18] sm:$0xff]
      %v553 = vld [vmem:[%s376 + $0x20] sm:$0xff]
      %v554 = vld [vmem:[%s376 + $0x28] sm:$0xff]
      %v555 = vld [vmem:[%s376 + $0x30] sm:$0xff]
      %v556 = vld [vmem:[%s376 + $0x38] sm:$0xff]
      %v557 = vld [vmem:[%s376 + $0x40] sm:$0xff]
      %v558 = vld [vmem:[%s376 + $0x48] sm:$0xff]
      %v559 = vld [vmem:[%s376 + $0x50] sm:$0xff]
      %v560 = vld [vmem:[%s376 + $0x58] sm:$0xff]
      %v561 = vld [vmem:[%s376 + $0x60] sm:$0xff]
      %v562 = vld [vmem:[%s376 + $0x68] sm:$0xff]
      %v563 = vld [vmem:[%s376 + $0x70] sm:$0xff]
      %v564 = vld [vmem:[%s376 + $0x78] sm:$0xff]
      %v565 = vld [vmem:[%s376 + $0x80] sm:$0xff]
      %v566 = vld [vmem:[%s376 + $0x88] sm:$0xff]
      %v567 = vld [vmem:[%s376 + $0x90] sm:$0xff]
      %v568 = vld [vmem:[%s376 + $0x98] sm:$0xff]
      %v569 = vld [vmem:[%s376 + $0xa0] sm:$0xff]
      %v570 = vld [vmem:[%s376 + $0xa8] sm:$0xff]
      %v571 = vld [vmem:[%s376 + $0xb0] sm:$0xff]
      %v572 = vld [vmem:[%s376 + $0xb8] sm:$0xff]
      %v573 = vld [vmem:[%s376 + $0xc0] sm:$0xff]
      %v574 = vld [vmem:[%s376 + $0xc8] sm:$0xff]
      %v575 = vld [vmem:[%s376 + $0xd0] sm:$0xff]
      %v576 = vld [vmem:[%s376 + $0xd8] sm:$0xff]
      %v577 = vld [vmem:[%s376 + $0xe0] sm:$0xff]
      %v578 = vld [vmem:[%s376 + $0xe8] sm:$0xff]
      %v579 = vld [vmem:[%s376 + $0xf0] sm:$0xff]
      %v580 = vld [vmem:[%s376 + $0xf8] sm:$0xff]
      %v581 = vmul.f32 %v549, 255.0
      %v582 = vmul.f32 %v550, 255.0
      %v583 = vmul.f32 %v551, 255.0
      %v584 = vmul.f32 %v552, 255.0
      %v585 = vmul.f32 %v553, 255.0
      %v586 = vmul.f32 %v554, 255.0
      %v587 = vmul.f32 %v555, 255.0
      %v588 = vmul.f32 %v556, 255.0
      %v589 = vmul.f32 %v557, 255.0
      %v590 = vmul.f32 %v558, 255.0
      %v591 = vmul.f32 %v559, 255.0
      %v592 = vmul.f32 %v560, 255.0
      %v593 = vmul.f32 %v561, 255.0
      %v594 = vmul.f32 %v562, 255.0
      %v595 = vmul.f32 %v563, 255.0
      %v596 = vmul.f32 %v564, 255.0
      %v597 = vmul.f32 %v565, 255.0
      %v598 = vmul.f32 %v566, 255.0
      %v599 = vmul.f32 %v567, 255.0
      %v600 = vmul.f32 %v568, 255.0
      %v601 = vmul.f32 %v569, 255.0
      %v602 = vmul.f32 %v570, 255.0
      %v603 = vmul.f32 %v571, 255.0
      %v604 = vmul.f32 %v572, 255.0
      %v605 = vmul.f32 %v573, 255.0
      %v606 = vmul.f32 %v574, 255.0
      %v607 = vmul.f32 %v575, 255.0
      %v608 = vmul.f32 %v576, 255.0
      %v609 = vmul.f32 %v577, 255.0
      %v610 = vmul.f32 %v578, 255.0
      %v611 = vmul.f32 %v579, 255.0
      %v612 = vmul.f32 %v580, 255.0
      %645 = vrot.lane.b32.xlu0 %v581, 3
      %v646 = vpop.permute.xlu0 %645
      %647 = vrot.lane.b32.xlu0 %v582, 3
      %v648 = vpop.permute.xlu0 %647
      %649 = vrot.lane.b32.xlu0 %v583, 3
      %v650 = vpop.permute.xlu0 %649
      %651 = vrot.lane.b32.xlu0 %v584, 3
      %v652 = vpop.permute.xlu0 %651
      %653 = vrot.lane.b32.xlu0 %v585, 3
      %v654 = vpop.permute.xlu0 %653
      %655 = vrot.lane.b32.xlu0 %v586, 3
      %v656 = vpop.permute.xlu0 %655
      %657 = vrot.lane.b32.xlu0 %v587, 3
      %v658 = vpop.permute.xlu0 %657
      %659 = vrot.lane.b32.xlu0 %v588, 3
      %v660 = vpop.permute.xlu0 %659
      %661 = vrot.lane.b32.xlu0 %v589, 3
      %v662 = vpop.permute.xlu0 %661
      %663 = vrot.lane.b32.xlu0 %v590, 3
      %v664 = vpop.permute.xlu0 %663
      %665 = vrot.lane.b32.xlu0 %v591, 3
      %v666 = vpop.permute.xlu0 %665
      %667 = vrot.lane.b32.xlu0 %v592, 3
      %v668 = vpop.permute.xlu0 %667
      %669 = vrot.lane.b32.xlu0 %v593, 3
      %v670 = vpop.permute.xlu0 %669
      %671 = vrot.lane.b32.xlu0 %v594, 3
      %v672 = vpop.permute.xlu0 %671
      %673 = vrot.lane.b32.xlu0 %v595, 3
      %v674 = vpop.permute.xlu0 %673
      %675 = vrot.lane.b32.xlu0 %v596, 3
      %v676 = vpop.permute.xlu0 %675
      %677 = vrot.lane.b32.xlu0 %v597, 3
      %v678 = vpop.permute.xlu0 %677
      %679 = vrot.lane.b32.xlu0 %v598, 3
      %v680 = vpop.permute.xlu0 %679
      %681 = vrot.lane.b32.xlu0 %v599, 3
      %v682 = vpop.permute.xlu0 %681
      %683 = vrot.lane.b32.xlu0 %v600, 3
      %v684 = vpop.permute.xlu0 %683
      %685 = vrot.lane.b32.xlu0 %v601, 3
      %v686 = vpop.permute.xlu0 %685
      %687 = vrot.lane.b32.xlu0 %v602, 3
      %v688 = vpop.permute.xlu0 %687
      %689 = vrot.lane.b32.xlu0 %v603, 3
      %v690 = vpop.permute.xlu0 %689
      %691 = vrot.lane.b32.xlu0 %v604, 3
      %v692 = vpop.permute.xlu0 %691
      %693 = vrot.lane.b32.xlu0 %v605, 3
      %v694 = vpop.permute.xlu0 %693
      %695 = vrot.lane.b32.xlu0 %v606, 3
      %v696 = vpop.permute.xlu0 %695
      %697 = vrot.lane.b32.xlu0 %v607, 3
      %v698 = vpop.permute.xlu0 %697
      %699 = vrot.lane.b32.xlu0 %v608, 3
      %v700 = vpop.permute.xlu0 %699
      %701 = vrot.lane.b32.xlu0 %v609, 3
      %v702 = vpop.permute.xlu0 %701
      %703 = vrot.lane.b32.xlu0 %v610, 3
      %v704 = vpop.permute.xlu0 %703
      %705 = vrot.lane.b32.xlu0 %v611, 3
      %v706 = vpop.permute.xlu0 %705
      %707 = vrot.lane.b32.xlu0 %v612, 3
      %v708 = vpop.permute.xlu0 %707
      %vm741 = vcmask 23552
      %v742 = vsel %vm741, %v517, %v646
      %v743 = vsel %vm741, %v518, %v648
      %v744 = vsel %vm741, %v519, %v650
      %v745 = vsel %vm741, %v520, %v652
      %v746 = vsel %vm741, %v521, %v654
      %v747 = vsel %vm741, %v522, %v656
      %v748 = vsel %vm741, %v523, %v658
      %v749 = vsel %vm741, %v524, %v660
      %v750 = vsel %vm741, %v525, %v662
      %v751 = vsel %vm741, %v526, %v664
      %v752 = vsel %vm741, %v527, %v666
      %v753 = vsel %vm741, %v528, %v668
      %v754 = vsel %vm741, %v529, %v670
      %v755 = vsel %vm741, %v530, %v672
      %v756 = vsel %vm741, %v531, %v674
      %v757 = vsel %vm741, %v532, %v676
      %v758 = vsel %vm741, %v533, %v678
      %v759 = vsel %vm741, %v534, %v680
      %v760 = vsel %vm741, %v535, %v682
      %v761 = vsel %vm741, %v536, %v684
      %v762 = vsel %vm741, %v537, %v686
      %v763 = vsel %vm741, %v538, %v688
      %v764 = vsel %vm741, %v539, %v690
      %v765 = vsel %vm741, %v540, %v692
      %v766 = vsel %vm741, %v541, %v694
      %v767 = vsel %vm741, %v542, %v696
      %v768 = vsel %vm741, %v543, %v698
      %v769 = vsel %vm741, %v544, %v700
      %v770 = vsel %vm741, %v545, %v702
      %v771 = vsel %vm741, %v546, %v704
      %v772 = vsel %vm741, %v547, %v706
      %v773 = vsel %vm741, %v548, %v708
      %s774 = scalar_lea.vmem [#allocation2], 24
      %775 = vst.msk [vmem:[%s774 + $0x1] sm:$0xff] %vm382, %v742
      %776 = vst.msk [vmem:[%s774 + $0x9] sm:$0xff] %vm382, %v743
      %777 = vst.msk [vmem:[%s774 + $0x19] sm:$0xff] %vm382, %v744
      %778 = vst.msk [vmem:[%s774 + $0x21] sm:$0xff] %vm382, %v745
      %779 = vst.msk [vmem:[%s774 + $0x31] sm:$0xff] %vm382, %v746
      %780 = vst.msk [vmem:[%s774 + $0x39] sm:$0xff] %vm382, %v747
      %781 = vst.msk [vmem:[%s774 + $0x49] sm:$0xff] %vm382, %v748
      %782 = vst.msk [vmem:[%s774 + $0x51] sm:$0xff] %vm382, %v749
      %783 = vst.msk [vmem:[%s774 + $0x61] sm:$0xff] %vm382, %v750
      %784 = vst.msk [vmem:[%s774 + $0x69] sm:$0xff] %vm382, %v751
      %785 = vst.msk [vmem:[%s774 + $0x79] sm:$0xff] %vm382, %v752
      %786 = vst.msk [vmem:[%s774 + $0x81] sm:$0xff] %vm382, %v753
      %787 = vst.msk [vmem:[%s774 + $0x91] sm:$0xff] %vm382, %v754
      %788 = vst.msk [vmem:[%s774 + $0x99] sm:$0xff] %vm382, %v755
      %789 = vst.msk [vmem:[%s774 + $0xa9] sm:$0xff] %vm382, %v756
      %790 = vst.msk [vmem:[%s774 + $0xb1] sm:$0xff] %vm382, %v757
      %791 = vst.msk [vmem:[%s774 + $0xc1] sm:$0xff] %vm382, %v758
      %792 = vst.msk [vmem:[%s774 + $0xc9] sm:$0xff] %vm382, %v759
      %793 = vst.msk [vmem:[%s774 + $0xd9] sm:$0xff] %vm382, %v760
      %794 = vst.msk [vmem:[%s774 + $0xe1] sm:$0xff] %vm382, %v761
      %795 = vst.msk [vmem:[%s774 + $0xf1] sm:$0xff] %vm382, %v762
      %796 = vst.msk [vmem:[%s774 + $0xf9] sm:$0xff] %vm382, %v763
      %797 = vst.msk [vmem:[%s774 + $0x109] sm:$0xff] %vm382, %v764
      %798 = vst.msk [vmem:[%s774 + $0x111] sm:$0xff] %vm382, %v765
      %799 = vst.msk [vmem:[%s774 + $0x121] sm:$0xff] %vm382, %v766
      %800 = vst.msk [vmem:[%s774 + $0x129] sm:$0xff] %vm382, %v767
      %801 = vst.msk [vmem:[%s774 + $0x139] sm:$0xff] %vm382, %v768
      %802 = vst.msk [vmem:[%s774 + $0x141] sm:$0xff] %vm382, %v769
      %803 = vst.msk [vmem:[%s774 + $0x151] sm:$0xff] %vm382, %v770
      %804 = vst.msk [vmem:[%s774 + $0x159] sm:$0xff] %vm382, %v771
      %805 = vst.msk [vmem:[%s774 + $0x169] sm:$0xff] %vm382, %v772
      %806 = vst.msk [vmem:[%s774 + $0x171] sm:$0xff] %vm382, %v773
      %v807 = vld [vmem:[#allocation2] sm:$0xff]
      %v808 = vld [vmem:[#allocation2 + $0x8] sm:$0xff]
      %v809 = vld [vmem:[#allocation2 + $0x10] sm:$0x3]
      %v810 = vld [vmem:[#allocation2 + $0x18] sm:$0xff]
      %v811 = vld [vmem:[#allocation2 + $0x20] sm:$0xff]
      %v812 = vld [vmem:[#allocation2 + $0x28] sm:$0x3]
      %v813 = vld [vmem:[#allocation2 + $0x30] sm:$0xff]
      %v814 = vld [vmem:[#allocation2 + $0x38] sm:$0xff]
      %v815 = vld [vmem:[#allocation2 + $0x40] sm:$0x3]
      %v816 = vld [vmem:[#allocation2 + $0x48] sm:$0xff]
      %v817 = vld [vmem:[#allocation2 + $0x50] sm:$0xff]
      %v818 = vld [vmem:[#allocation2 + $0x58] sm:$0x3]
      %v819 = vld [vmem:[#allocation2 + $0x60] sm:$0xff]
      %v820 = vld [vmem:[#allocation2 + $0x68] sm:$0xff]
      %v821 = vld [vmem:[#allocation2 + $0x70] sm:$0x3]
      %v822 = vld [vmem:[#allocation2 + $0x78] sm:$0xff]
      %v823 = vld [vmem:[#allocation2 + $0x80] sm:$0xff]
      %v824 = vld [vmem:[#allocation2 + $0x88] sm:$0x3]
      %v825 = vld [vmem:[#allocation2 + $0x90] sm:$0xff]
      %v826 = vld [vmem:[#allocation2 + $0x98] sm:$0xff]
      %v827 = vld [vmem:[#allocation2 + $0xa0] sm:$0x3]
      %v828 = vld [vmem:[#allocation2 + $0xa8] sm:$0xff]
      %v829 = vld [vmem:[#allocation2 + $0xb0] sm:$0xff]
      %v830 = vld [vmem:[#allocation2 + $0xb8] sm:$0x3]
      %v831 = vld [vmem:[#allocation2 + $0xc0] sm:$0xff]
      %v832 = vld [vmem:[#allocation2 + $0xc8] sm:$0xff]
      %v833 = vld [vmem:[#allocation2 + $0xd0] sm:$0x3]
      %v834 = vld [vmem:[#allocation2 + $0xd8] sm:$0xff]
      %v835 = vld [vmem:[#allocation2 + $0xe0] sm:$0xff]
      %v836 = vld [vmem:[#allocation2 + $0xe8] sm:$0x3]
      %v837 = vld [vmem:[#allocation2 + $0xf0] sm:$0xff]
      %v838 = vld [vmem:[#allocation2 + $0xf8] sm:$0xff]
      %v839 = vld [vmem:[#allocation2 + $0x100] sm:$0x3]
      %v840 = vld [vmem:[#allocation2 + $0x108] sm:$0xff]
      %v841 = vld [vmem:[#allocation2 + $0x110] sm:$0xff]
      %v842 = vld [vmem:[#allocation2 + $0x118] sm:$0x3]
      %v843 = vld [vmem:[#allocation2 + $0x120] sm:$0xff]
      %v844 = vld [vmem:[#allocation2 + $0x128] sm:$0xff]
      %v845 = vld [vmem:[#allocation2 + $0x130] sm:$0x3]
      %v846 = vld [vmem:[#allocation2 + $0x138] sm:$0xff]
      %v847 = vld [vmem:[#allocation2 + $0x140] sm:$0xff]
      %v848 = vld [vmem:[#allocation2 + $0x148] sm:$0x3]
      %v849 = vld [vmem:[#allocation2 + $0x150] sm:$0xff]
      %v850 = vld [vmem:[#allocation2 + $0x158] sm:$0xff]
      %v851 = vld [vmem:[#allocation2 + $0x160] sm:$0x3]
      %v852 = vld [vmem:[#allocation2 + $0x168] sm:$0xff]
      %v853 = vld [vmem:[#allocation2 + $0x170] sm:$0xff]
      %v854 = vld [vmem:[#allocation2 + $0x178] sm:$0x3]
      %v855 = vld [vmem:[#allocation2 + $0x180] sm:$0xff]
      %v856 = vld [vmem:[#allocation2 + $0x188] sm:$0xff]
      %v857 = vld [vmem:[#allocation2 + $0x190] sm:$0x3]
      %v858 = vld [vmem:[#allocation2 + $0x198] sm:$0xff]
      %v859 = vld [vmem:[#allocation2 + $0x1a0] sm:$0xff]
      %v860 = vld [vmem:[#allocation2 + $0x1a8] sm:$0x3]
      %vm909 = vcmask 1046528
      %v910 = vrot.slane %v807, 1
      %v911 = vrot.slane %v808, 1
      %v912 = vsel %vm909, %v910, %v911
      %v913 = vrot.slane %v809, 1
      %v914 = vsel %vm909, %v911, %v913
      %v915 = vrot.slane %v810, 1
      %v916 = vrot.slane %v811, 1
      %v917 = vsel %vm909, %v915, %v916
      %v918 = vrot.slane %v812, 1
      %v919 = vsel %vm909, %v916, %v918
      %v920 = vrot.slane %v813, 1
      %v921 = vrot.slane %v814, 1
      %v922 = vsel %vm909, %v920, %v921
      %v923 = vrot.slane %v815, 1
      %v924 = vsel %vm909, %v921, %v923
      %v925 = vrot.slane %v816, 1
      %v926 = vrot.slane %v817, 1
      %v927 = vsel %vm909, %v925, %v926
      %v928 = vrot.slane %v818, 1
      %v929 = vsel %vm909, %v926, %v928
      %v930 = vrot.slane %v819, 1
      %v931 = vrot.slane %v820, 1
      %v932 = vsel %vm909, %v930, %v931
      %v933 = vrot.slane %v821, 1
      %v934 = vsel %vm909, %v931, %v933
      %v935 = vrot.slane %v822, 1
      %v936 = vrot.slane %v823, 1
      %v937 = vsel %vm909, %v935, %v936
      %v938 = vrot.slane %v824, 1
      %v939 = vsel %vm909, %v936, %v938
      %v940 = vrot.slane %v825, 1
      %v941 = vrot.slane %v826, 1
      %v942 = vsel %vm909, %v940, %v941
      %v943 = vrot.slane %v827, 1
      %v944 = vsel %vm909, %v941, %v943
      %v945 = vrot.slane %v828, 1
      %v946 = vrot.slane %v829, 1
      %v947 = vsel %vm909, %v945, %v946
      %v948 = vrot.slane %v830, 1
      %v949 = vsel %vm909, %v946, %v948
      %v950 = vrot.slane %v831, 1
      %v951 = vrot.slane %v832, 1
      %v952 = vsel %vm909, %v950, %v951
      %v953 = vrot.slane %v833, 1
      %v954 = vsel %vm909, %v951, %v953
      %v955 = vrot.slane %v834, 1
      %v956 = vrot.slane %v835, 1
      %v957 = vsel %vm909, %v955, %v956
      %v958 = vrot.slane %v836, 1
      %v959 = vsel %vm909, %v956, %v958
      %v960 = vrot.slane %v837, 1
      %v961 = vrot.slane %v838, 1
      %v962 = vsel %vm909, %v960, %v961
      %v963 = vrot.slane %v839, 1
      %v964 = vsel %vm909, %v961, %v963
      %v965 = vrot.slane %v840, 1
      %v966 = vrot.slane %v841, 1
      %v967 = vsel %vm909, %v965, %v966
      %v968 = vrot.slane %v842, 1
      %v969 = vsel %vm909, %v966, %v968
      %v970 = vrot.slane %v843, 1
      %v971 = vrot.slane %v844, 1
      %v972 = vsel %vm909, %v970, %v971
      %v973 = vrot.slane %v845, 1
      %v974 = vsel %vm909, %v971, %v973
      %v975 = vrot.slane %v846, 1
      %v976 = vrot.slane %v847, 1
      %v977 = vsel %vm909, %v975, %v976
      %v978 = vrot.slane %v848, 1
      %v979 = vsel %vm909, %v976, %v978
      %v980 = vrot.slane %v849, 1
      %v981 = vrot.slane %v850, 1
      %v982 = vsel %vm909, %v980, %v981
      %v983 = vrot.slane %v851, 1
      %v984 = vsel %vm909, %v981, %v983
      %v985 = vrot.slane %v852, 1
      %v986 = vrot.slane %v853, 1
      %v987 = vsel %vm909, %v985, %v986
      %v988 = vrot.slane %v854, 1
      %v989 = vsel %vm909, %v986, %v988
      %990 = vrot.lane.b32.xlu0 %v912, 4
      %v991 = vpop.permute.xlu0 %990
      %992 = vrot.lane.b32.xlu0 %v914, 4
      %v993 = vpop.permute.xlu0 %992
      %994 = vrot.lane.b32.xlu0 %v917, 4
      %v995 = vpop.permute.xlu0 %994
      %996 = vrot.lane.b32.xlu0 %v919, 4
      %v997 = vpop.permute.xlu0 %996
      %998 = vrot.lane.b32.xlu0 %v922, 4
      %v999 = vpop.permute.xlu0 %998
      %1000 = vrot.lane.b32.xlu0 %v924, 4
      %v1001 = vpop.permute.xlu0 %1000
      %1002 = vrot.lane.b32.xlu0 %v927, 4
      %v1003 = vpop.permute.xlu0 %1002
      %1004 = vrot.lane.b32.xlu0 %v929, 4
      %v1005 = vpop.permute.xlu0 %1004
      %1006 = vrot.lane.b32.xlu0 %v932, 4
      %v1007 = vpop.permute.xlu0 %1006
      %1008 = vrot.lane.b32.xlu0 %v934, 4
      %v1009 = vpop.permute.xlu0 %1008
      %1010 = vrot.lane.b32.xlu0 %v937, 4
      %v1011 = vpop.permute.xlu0 %1010
      %1012 = vrot.lane.b32.xlu0 %v939, 4
      %v1013 = vpop.permute.xlu0 %1012
      %1014 = vrot.lane.b32.xlu0 %v942, 4
      %v1015 = vpop.permute.xlu0 %1014
      %1016 = vrot.lane.b32.xlu0 %v944, 4
      %v1017 = vpop.permute.xlu0 %1016
      %1018 = vrot.lane.b32.xlu0 %v947, 4
      %v1019 = vpop.permute.xlu0 %1018
      %1020 = vrot.lane.b32.xlu0 %v949, 4
      %v1021 = vpop.permute.xlu0 %1020
      %1022 = vrot.lane.b32.xlu0 %v952, 4
      %v1023 = vpop.permute.xlu0 %1022
      %1024 = vrot.lane.b32.xlu0 %v954, 4
      %v1025 = vpop.permute.xlu0 %1024
      %1026 = vrot.lane.b32.xlu0 %v957, 4
      %v1027 = vpop.permute.xlu0 %1026
      %1028 = vrot.lane.b32.xlu0 %v959, 4
      %v1029 = vpop.permute.xlu0 %1028
      %1030 = vrot.lane.b32.xlu0 %v962, 4
      %v1031 = vpop.permute.xlu0 %1030
      %1032 = vrot.lane.b32.xlu0 %v964, 4
      %v1033 = vpop.permute.xlu0 %1032
      %1034 = vrot.lane.b32.xlu0 %v967, 4
      %v1035 = vpop.permute.xlu0 %1034
      %1036 = vrot.lane.b32.xlu0 %v969, 4
      %v1037 = vpop.permute.xlu0 %1036
      %1038 = vrot.lane.b32.xlu0 %v972, 4
      %v1039 = vpop.permute.xlu0 %1038
      %1040 = vrot.lane.b32.xlu0 %v974, 4
      %v1041 = vpop.permute.xlu0 %1040
      %1042 = vrot.lane.b32.xlu0 %v977, 4
      %v1043 = vpop.permute.xlu0 %1042
      %1044 = vrot.lane.b32.xlu0 %v979, 4
      %v1045 = vpop.permute.xlu0 %1044
      %1046 = vrot.lane.b32.xlu0 %v982, 4
      %v1047 = vpop.permute.xlu0 %1046
      %1048 = vrot.lane.b32.xlu0 %v984, 4
      %v1049 = vpop.permute.xlu0 %1048
      %1050 = vrot.lane.b32.xlu0 %v987, 4
      %v1051 = vpop.permute.xlu0 %1050
      %1052 = vrot.lane.b32.xlu0 %v989, 4
      %v1053 = vpop.permute.xlu0 %1052
      %vm1086 = vcmask 1045504
      %v1087 = vrot.slane %v807, 2
      %v1088 = vrot.slane %v808, 2
      %v1089 = vsel %vm1086, %v1087, %v1088
      %v1090 = vrot.slane %v809, 2
      %v1091 = vsel %vm1086, %v1088, %v1090
      %v1092 = vrot.slane %v810, 2
      %v1093 = vrot.slane %v811, 2
      %v1094 = vsel %vm1086, %v1092, %v1093
      %v1095 = vrot.slane %v812, 2
      %v1096 = vsel %vm1086, %v1093, %v1095
      %v1097 = vrot.slane %v813, 2
      %v1098 = vrot.slane %v814, 2
      %v1099 = vsel %vm1086, %v1097, %v1098
      %v1100 = vrot.slane %v815, 2
      %v1101 = vsel %vm1086, %v1098, %v1100
      %v1102 = vrot.slane %v816, 2
      %v1103 = vrot.slane %v817, 2
      %v1104 = vsel %vm1086, %v1102, %v1103
      %v1105 = vrot.slane %v818, 2
      %v1106 = vsel %vm1086, %v1103, %v1105
      %v1107 = vrot.slane %v819, 2
      %v1108 = vrot.slane %v820, 2
      %v1109 = vsel %vm1086, %v1107, %v1108
      %v1110 = vrot.slane %v821, 2
      %v1111 = vsel %vm1086, %v1108, %v1110
      %v1112 = vrot.slane %v822, 2
      %v1113 = vrot.slane %v823, 2
      %v1114 = vsel %vm1086, %v1112, %v1113
      %v1115 = vrot.slane %v824, 2
      %v1116 = vsel %vm1086, %v1113, %v1115
      %v1117 = vrot.slane %v825, 2
      %v1118 = vrot.slane %v826, 2
      %v1119 = vsel %vm1086, %v1117, %v1118
      %v1120 = vrot.slane %v827, 2
      %v1121 = vsel %vm1086, %v1118, %v1120
      %v1122 = vrot.slane %v828, 2
      %v1123 = vrot.slane %v829, 2
      %v1124 = vsel %vm1086, %v1122, %v1123
      %v1125 = vrot.slane %v830, 2
      %v1126 = vsel %vm1086, %v1123, %v1125
      %v1127 = vrot.slane %v831, 2
      %v1128 = vrot.slane %v832, 2
      %v1129 = vsel %vm1086, %v1127, %v1128
      %v1130 = vrot.slane %v833, 2
      %v1131 = vsel %vm1086, %v1128, %v1130
      %v1132 = vrot.slane %v834, 2
      %v1133 = vrot.slane %v835, 2
      %v1134 = vsel %vm1086, %v1132, %v1133
      %v1135 = vrot.slane %v836, 2
      %v1136 = vsel %vm1086, %v1133, %v1135
      %v1137 = vrot.slane %v837, 2
      %v1138 = vrot.slane %v838, 2
      %v1139 = vsel %vm1086, %v1137, %v1138
      %v1140 = vrot.slane %v839, 2
      %v1141 = vsel %vm1086, %v1138, %v1140
      %v1142 = vrot.slane %v840, 2
      %v1143 = vrot.slane %v841, 2
      %v1144 = vsel %vm1086, %v1142, %v1143
      %v1145 = vrot.slane %v842, 2
      %v1146 = vsel %vm1086, %v1143, %v1145
      %v1147 = vrot.slane %v843, 2
      %v1148 = vrot.slane %v844, 2
      %v1149 = vsel %vm1086, %v1147, %v1148
      %v1150 = vrot.slane %v845, 2
      %v1151 = vsel %vm1086, %v1148, %v1150
      %v1152 = vrot.slane %v846, 2
      %v1153 = vrot.slane %v847, 2
      %v1154 = vsel %vm1086, %v1152, %v1153
      %v1155 = vrot.slane %v848, 2
      %v1156 = vsel %vm1086, %v1153, %v1155
      %v1157 = vrot.slane %v849, 2
      %v1158 = vrot.slane %v850, 2
      %v1159 = vsel %vm1086, %v1157, %v1158
      %v1160 = vrot.slane %v851, 2
      %v1161 = vsel %vm1086, %v1158, %v1160
      %v1162 = vrot.slane %v852, 2
      %v1163 = vrot.slane %v853, 2
      %v1164 = vsel %vm1086, %v1162, %v1163
      %v1165 = vrot.slane %v854, 2
      %v1166 = vsel %vm1086, %v1163, %v1165
      %1167 = vrot.lane.b32.xlu0 %v1089, 8
      %v1168 = vpop.permute.xlu0 %1167
      %1169 = vrot.lane.b32.xlu0 %v1091, 8
      %v1170 = vpop.permute.xlu0 %1169
      %1171 = vrot.lane.b32.xlu0 %v1094, 8
      %v1172 = vpop.permute.xlu0 %1171
      %1173 = vrot.lane.b32.xlu0 %v1096, 8
      %v1174 = vpop.permute.xlu0 %1173
      %1175 = vrot.lane.b32.xlu0 %v1099, 8
      %v1176 = vpop.permute.xlu0 %1175
      %1177 = vrot.lane.b32.xlu0 %v1101, 8
      %v1178 = vpop.permute.xlu0 %1177
      %1179 = vrot.lane.b32.xlu0 %v1104, 8
      %v1180 = vpop.permute.xlu0 %1179
      %1181 = vrot.lane.b32.xlu0 %v1106, 8
      %v1182 = vpop.permute.xlu0 %1181
      %1183 = vrot.lane.b32.xlu0 %v1109, 8
      %v1184 = vpop.permute.xlu0 %1183
      %1185 = vrot.lane.b32.xlu0 %v1111, 8
      %v1186 = vpop.permute.xlu0 %1185
      %1187 = vrot.lane.b32.xlu0 %v1114, 8
      %v1188 = vpop.permute.xlu0 %1187
      %1189 = vrot.lane.b32.xlu0 %v1116, 8
      %v1190 = vpop.permute.xlu0 %1189
      %1191 = vrot.lane.b32.xlu0 %v1119, 8
      %v1192 = vpop.permute.xlu0 %1191
      %1193 = vrot.lane.b32.xlu0 %v1121, 8
      %v1194 = vpop.permute.xlu0 %1193
      %1195 = vrot.lane.b32.xlu0 %v1124, 8
      %v1196 = vpop.permute.xlu0 %1195
      %1197 = vrot.lane.b32.xlu0 %v1126, 8
      %v1198 = vpop.permute.xlu0 %1197
      %1199 = vrot.lane.b32.xlu0 %v1129, 8
      %v1200 = vpop.permute.xlu0 %1199
      %1201 = vrot.lane.b32.xlu0 %v1131, 8
      %v1202 = vpop.permute.xlu0 %1201
      %1203 = vrot.lane.b32.xlu0 %v1134, 8
      %v1204 = vpop.permute.xlu0 %1203
      %1205 = vrot.lane.b32.xlu0 %v1136, 8
      %v1206 = vpop.permute.xlu0 %1205
      %1207 = vrot.lane.b32.xlu0 %v1139, 8
      %v1208 = vpop.permute.xlu0 %1207
      %1209 = vrot.lane.b32.xlu0 %v1141, 8
      %v1210 = vpop.permute.xlu0 %1209
      %1211 = vrot.lane.b32.xlu0 %v1144, 8
      %v1212 = vpop.permute.xlu0 %1211
      %1213 = vrot.lane.b32.xlu0 %v1146, 8
      %v1214 = vpop.permute.xlu0 %1213
      %1215 = vrot.lane.b32.xlu0 %v1149, 8
      %v1216 = vpop.permute.xlu0 %1215
      %1217 = vrot.lane.b32.xlu0 %v1151, 8
      %v1218 = vpop.permute.xlu0 %1217
      %1219 = vrot.lane.b32.xlu0 %v1154, 8
      %v1220 = vpop.permute.xlu0 %1219
      %1221 = vrot.lane.b32.xlu0 %v1156, 8
      %v1222 = vpop.permute.xlu0 %1221
      %1223 = vrot.lane.b32.xlu0 %v1159, 8
      %v1224 = vpop.permute.xlu0 %1223
      %1225 = vrot.lane.b32.xlu0 %v1161, 8
      %v1226 = vpop.permute.xlu0 %1225
      %1227 = vrot.lane.b32.xlu0 %v1164, 8
      %v1228 = vpop.permute.xlu0 %1227
      %1229 = vrot.lane.b32.xlu0 %v1166, 8
      %v1230 = vpop.permute.xlu0 %1229
      %1265 = vrot.lane.b32.xlu0 %v810, 12
      %v1266 = vpop.permute.xlu0 %1265
      %1267 = vrot.lane.b32.xlu0 %v811, 12
      %v1268 = vpop.permute.xlu0 %1267
      %1269 = vrot.lane.b32.xlu0 %v813, 12
      %v1270 = vpop.permute.xlu0 %1269
      %1271 = vrot.lane.b32.xlu0 %v814, 12
      %v1272 = vpop.permute.xlu0 %1271
      %1273 = vrot.lane.b32.xlu0 %v816, 12
      %v1274 = vpop.permute.xlu0 %1273
      %1275 = vrot.lane.b32.xlu0 %v817, 12
      %v1276 = vpop.permute.xlu0 %1275
      %1277 = vrot.lane.b32.xlu0 %v819, 12
      %v1278 = vpop.permute.xlu0 %1277
      %1279 = vrot.lane.b32.xlu0 %v820, 12
      %v1280 = vpop.permute.xlu0 %1279
      %1281 = vrot.lane.b32.xlu0 %v822, 12
      %v1282 = vpop.permute.xlu0 %1281
      %1283 = vrot.lane.b32.xlu0 %v823, 12
      %v1284 = vpop.permute.xlu0 %1283
      %1285 = vrot.lane.b32.xlu0 %v825, 12
      %v1286 = vpop.permute.xlu0 %1285
      %1287 = vrot.lane.b32.xlu0 %v826, 12
      %v1288 = vpop.permute.xlu0 %1287
      %1289 = vrot.lane.b32.xlu0 %v828, 12
      %v1290 = vpop.permute.xlu0 %1289
      %1291 = vrot.lane.b32.xlu0 %v829, 12
      %v1292 = vpop.permute.xlu0 %1291
      %1293 = vrot.lane.b32.xlu0 %v831, 12
      %v1294 = vpop.permute.xlu0 %1293
      %1295 = vrot.lane.b32.xlu0 %v832, 12
      %v1296 = vpop.permute.xlu0 %1295
      %1297 = vrot.lane.b32.xlu0 %v834, 12
      %v1298 = vpop.permute.xlu0 %1297
      %1299 = vrot.lane.b32.xlu0 %v835, 12
      %v1300 = vpop.permute.xlu0 %1299
      %1301 = vrot.lane.b32.xlu0 %v837, 12
      %v1302 = vpop.permute.xlu0 %1301
      %1303 = vrot.lane.b32.xlu0 %v838, 12
      %v1304 = vpop.permute.xlu0 %1303
      %1305 = vrot.lane.b32.xlu0 %v840, 12
      %v1306 = vpop.permute.xlu0 %1305
      %1307 = vrot.lane.b32.xlu0 %v841, 12
      %v1308 = vpop.permute.xlu0 %1307
      %1309 = vrot.lane.b32.xlu0 %v843, 12
      %v1310 = vpop.permute.xlu0 %1309
      %1311 = vrot.lane.b32.xlu0 %v844, 12
      %v1312 = vpop.permute.xlu0 %1311
      %1313 = vrot.lane.b32.xlu0 %v846, 12
      %v1314 = vpop.permute.xlu0 %1313
      %1315 = vrot.lane.b32.xlu0 %v847, 12
      %v1316 = vpop.permute.xlu0 %1315
      %1317 = vrot.lane.b32.xlu0 %v849, 12
      %v1318 = vpop.permute.xlu0 %1317
      %1319 = vrot.lane.b32.xlu0 %v850, 12
      %v1320 = vpop.permute.xlu0 %1319
      %1321 = vrot.lane.b32.xlu0 %v852, 12
      %v1322 = vpop.permute.xlu0 %1321
      %1323 = vrot.lane.b32.xlu0 %v853, 12
      %v1324 = vpop.permute.xlu0 %1323
      %1325 = vrot.lane.b32.xlu0 %v855, 12
      %v1326 = vpop.permute.xlu0 %1325
      %1327 = vrot.lane.b32.xlu0 %v856, 12
      %v1328 = vpop.permute.xlu0 %1327
      %v1362 = vrot.slane %v855, 1
      %v1363 = vrot.slane %v856, 1
      %v1364 = vsel %vm909, %v1362, %v1363
      %v1365 = vrot.slane %v857, 1
      %v1366 = vsel %vm909, %v1363, %v1365
      %1367 = vrot.lane.b32.xlu0 %v917, 16
      %v1368 = vpop.permute.xlu0 %1367
      %1369 = vrot.lane.b32.xlu0 %v919, 16
      %v1370 = vpop.permute.xlu0 %1369
      %1371 = vrot.lane.b32.xlu0 %v922, 16
      %v1372 = vpop.permute.xlu0 %1371
      %1373 = vrot.lane.b32.xlu0 %v924, 16
      %v1374 = vpop.permute.xlu0 %1373
      %1375 = vrot.lane.b32.xlu0 %v927, 16
      %v1376 = vpop.permute.xlu0 %1375
      %1377 = vrot.lane.b32.xlu0 %v929, 16
      %v1378 = vpop.permute.xlu0 %1377
      %1379 = vrot.lane.b32.xlu0 %v932, 16
      %v1380 = vpop.permute.xlu0 %1379
      %1381 = vrot.lane.b32.xlu0 %v934, 16
      %v1382 = vpop.permute.xlu0 %1381
      %1383 = vrot.lane.b32.xlu0 %v937, 16
      %v1384 = vpop.permute.xlu0 %1383
      %1385 = vrot.lane.b32.xlu0 %v939, 16
      %v1386 = vpop.permute.xlu0 %1385
      %1387 = vrot.lane.b32.xlu0 %v942, 16
      %v1388 = vpop.permute.xlu0 %1387
      %1389 = vrot.lane.b32.xlu0 %v944, 16
      %v1390 = vpop.permute.xlu0 %1389
      %1391 = vrot.lane.b32.xlu0 %v947, 16
      %v1392 = vpop.permute.xlu0 %1391
      %1393 = vrot.lane.b32.xlu0 %v949, 16
      %v1394 = vpop.permute.xlu0 %1393
      %1395 = vrot.lane.b32.xlu0 %v952, 16
      %v1396 = vpop.permute.xlu0 %1395
      %1397 = vrot.lane.b32.xlu0 %v954, 16
      %v1398 = vpop.permute.xlu0 %1397
      %1399 = vrot.lane.b32.xlu0 %v957, 16
      %v1400 = vpop.permute.xlu0 %1399
      %1401 = vrot.lane.b32.xlu0 %v959, 16
      %v1402 = vpop.permute.xlu0 %1401
      %1403 = vrot.lane.b32.xlu0 %v962, 16
      %v1404 = vpop.permute.xlu0 %1403
      %1405 = vrot.lane.b32.xlu0 %v964, 16
      %v1406 = vpop.permute.xlu0 %1405
      %1407 = vrot.lane.b32.xlu0 %v967, 16
      %v1408 = vpop.permute.xlu0 %1407
      %1409 = vrot.lane.b32.xlu0 %v969, 16
      %v1410 = vpop.permute.xlu0 %1409
      %1411 = vrot.lane.b32.xlu0 %v972, 16
      %v1412 = vpop.permute.xlu0 %1411
      %1413 = vrot.lane.b32.xlu0 %v974, 16
      %v1414 = vpop.permute.xlu0 %1413
      %1415 = vrot.lane.b32.xlu0 %v977, 16
      %v1416 = vpop.permute.xlu0 %1415
      %1417 = vrot.lane.b32.xlu0 %v979, 16
      %v1418 = vpop.permute.xlu0 %1417
      %1419 = vrot.lane.b32.xlu0 %v982, 16
      %v1420 = vpop.permute.xlu0 %1419
      %1421 = vrot.lane.b32.xlu0 %v984, 16
      %v1422 = vpop.permute.xlu0 %1421
      %1423 = vrot.lane.b32.xlu0 %v987, 16
      %v1424 = vpop.permute.xlu0 %1423
      %1425 = vrot.lane.b32.xlu0 %v989, 16
      %v1426 = vpop.permute.xlu0 %1425
      %1427 = vrot.lane.b32.xlu0 %v1364, 16
      %v1428 = vpop.permute.xlu0 %1427
      %1429 = vrot.lane.b32.xlu0 %v1366, 16
      %v1430 = vpop.permute.xlu0 %1429
      %v1463 = vrot.slane %v855, 2
      %v1464 = vrot.slane %v856, 2
      %v1465 = vsel %vm1086, %v1463, %v1464
      %v1466 = vrot.slane %v857, 2
      %v1467 = vsel %vm1086, %v1464, %v1466
      %1468 = vrot.lane.b32.xlu0 %v1094, 20
      %v1469 = vpop.permute.xlu0 %1468
      %1470 = vrot.lane.b32.xlu0 %v1096, 20
      %v1471 = vpop.permute.xlu0 %1470
      %1472 = vrot.lane.b32.xlu0 %v1099, 20
      %v1473 = vpop.permute.xlu0 %1472
      %1474 = vrot.lane.b32.xlu0 %v1101, 20
      %v1475 = vpop.permute.xlu0 %1474
      %1476 = vrot.lane.b32.xlu0 %v1104, 20
      %v1477 = vpop.permute.xlu0 %1476
      %1478 = vrot.lane.b32.xlu0 %v1106, 20
      %v1479 = vpop.permute.xlu0 %1478
      %1480 = vrot.lane.b32.xlu0 %v1109, 20
      %v1481 = vpop.permute.xlu0 %1480
      %1482 = vrot.lane.b32.xlu0 %v1111, 20
      %v1483 = vpop.permute.xlu0 %1482
      %1484 = vrot.lane.b32.xlu0 %v1114, 20
      %v1485 = vpop.permute.xlu0 %1484
      %1486 = vrot.lane.b32.xlu0 %v1116, 20
      %v1487 = vpop.permute.xlu0 %1486
      %1488 = vrot.lane.b32.xlu0 %v1119, 20
      %v1489 = vpop.permute.xlu0 %1488
      %1490 = vrot.lane.b32.xlu0 %v1121, 20
      %v1491 = vpop.permute.xlu0 %1490
      %1492 = vrot.lane.b32.xlu0 %v1124, 20
      %v1493 = vpop.permute.xlu0 %1492
      %1494 = vrot.lane.b32.xlu0 %v1126, 20
      %v1495 = vpop.permute.xlu0 %1494
      %1496 = vrot.lane.b32.xlu0 %v1129, 20
      %v1497 = vpop.permute.xlu0 %1496
      %1498 = vrot.lane.b32.xlu0 %v1131, 20
      %v1499 = vpop.permute.xlu0 %1498
      %1500 = vrot.lane.b32.xlu0 %v1134, 20
      %v1501 = vpop.permute.xlu0 %1500
      %1502 = vrot.lane.b32.xlu0 %v1136, 20
      %v1503 = vpop.permute.xlu0 %1502
      %1504 = vrot.lane.b32.xlu0 %v1139, 20
      %v1505 = vpop.permute.xlu0 %1504
      %1506 = vrot.lane.b32.xlu0 %v1141, 20
      %v1507 = vpop.permute.xlu0 %1506
      %1508 = vrot.lane.b32.xlu0 %v1144, 20
      %v1509 = vpop.permute.xlu0 %1508
      %1510 = vrot.lane.b32.xlu0 %v1146, 20
      %v1511 = vpop.permute.xlu0 %1510
      %1512 = vrot.lane.b32.xlu0 %v1149, 20
      %v1513 = vpop.permute.xlu0 %1512
      %1514 = vrot.lane.b32.xlu0 %v1151, 20
      %v1515 = vpop.permute.xlu0 %1514
      %1516 = vrot.lane.b32.xlu0 %v1154, 20
      %v1517 = vpop.permute.xlu0 %1516
      %1518 = vrot.lane.b32.xlu0 %v1156, 20
      %v1519 = vpop.permute.xlu0 %1518
      %1520 = vrot.lane.b32.xlu0 %v1159, 20
      %v1521 = vpop.permute.xlu0 %1520
      %1522 = vrot.lane.b32.xlu0 %v1161, 20
      %v1523 = vpop.permute.xlu0 %1522
      %1524 = vrot.lane.b32.xlu0 %v1164, 20
      %v1525 = vpop.permute.xlu0 %1524
      %1526 = vrot.lane.b32.xlu0 %v1166, 20
      %v1527 = vpop.permute.xlu0 %1526
      %1528 = vrot.lane.b32.xlu0 %v1465, 20
      %v1529 = vpop.permute.xlu0 %1528
      %1530 = vrot.lane.b32.xlu0 %v1467, 20
      %v1531 = vpop.permute.xlu0 %1530
      %1566 = vrot.lane.b32.xlu0 %v813, 24
      %v1567 = vpop.permute.xlu0 %1566
      %1568 = vrot.lane.b32.xlu0 %v814, 24
      %v1569 = vpop.permute.xlu0 %1568
      %1570 = vrot.lane.b32.xlu0 %v816, 24
      %v1571 = vpop.permute.xlu0 %1570
      %1572 = vrot.lane.b32.xlu0 %v817, 24
      %v1573 = vpop.permute.xlu0 %1572
      %1574 = vrot.lane.b32.xlu0 %v819, 24
      %v1575 = vpop.permute.xlu0 %1574
      %1576 = vrot.lane.b32.xlu0 %v820, 24
      %v1577 = vpop.permute.xlu0 %1576
      %1578 = vrot.lane.b32.xlu0 %v822, 24
      %v1579 = vpop.permute.xlu0 %1578
      %1580 = vrot.lane.b32.xlu0 %v823, 24
      %v1581 = vpop.permute.xlu0 %1580
      %1582 = vrot.lane.b32.xlu0 %v825, 24
      %v1583 = vpop.permute.xlu0 %1582
      %1584 = vrot.lane.b32.xlu0 %v826, 24
      %v1585 = vpop.permute.xlu0 %1584
      %1586 = vrot.lane.b32.xlu0 %v828, 24
      %v1587 = vpop.permute.xlu0 %1586
      %1588 = vrot.lane.b32.xlu0 %v829, 24
      %v1589 = vpop.permute.xlu0 %1588
      %1590 = vrot.lane.b32.xlu0 %v831, 24
      %v1591 = vpop.permute.xlu0 %1590
      %1592 = vrot.lane.b32.xlu0 %v832, 24
      %v1593 = vpop.permute.xlu0 %1592
      %1594 = vrot.lane.b32.xlu0 %v834, 24
      %v1595 = vpop.permute.xlu0 %1594
      %1596 = vrot.lane.b32.xlu0 %v835, 24
      %v1597 = vpop.permute.xlu0 %1596
      %1598 = vrot.lane.b32.xlu0 %v837, 24
      %v1599 = vpop.permute.xlu0 %1598
      %1600 = vrot.lane.b32.xlu0 %v838, 24
      %v1601 = vpop.permute.xlu0 %1600
      %1602 = vrot.lane.b32.xlu0 %v840, 24
      %v1603 = vpop.permute.xlu0 %1602
      %1604 = vrot.lane.b32.xlu0 %v841, 24
      %v1605 = vpop.permute.xlu0 %1604
      %1606 = vrot.lane.b32.xlu0 %v843, 24
      %v1607 = vpop.permute.xlu0 %1606
      %1608 = vrot.lane.b32.xlu0 %v844, 24
      %v1609 = vpop.permute.xlu0 %1608
      %1610 = vrot.lane.b32.xlu0 %v846, 24
      %v1611 = vpop.permute.xlu0 %1610
      %1612 = vrot.lane.b32.xlu0 %v847, 24
      %v1613 = vpop.permute.xlu0 %1612
      %1614 = vrot.lane.b32.xlu0 %v849, 24
      %v1615 = vpop.permute.xlu0 %1614
      %1616 = vrot.lane.b32.xlu0 %v850, 24
      %v1617 = vpop.permute.xlu0 %1616
      %1618 = vrot.lane.b32.xlu0 %v852, 24
      %v1619 = vpop.permute.xlu0 %1618
      %1620 = vrot.lane.b32.xlu0 %v853, 24
      %v1621 = vpop.permute.xlu0 %1620
      %1622 = vrot.lane.b32.xlu0 %v855, 24
      %v1623 = vpop.permute.xlu0 %1622
      %1624 = vrot.lane.b32.xlu0 %v856, 24
      %v1625 = vpop.permute.xlu0 %1624
      %1626 = vrot.lane.b32.xlu0 %v858, 24
      %v1627 = vpop.permute.xlu0 %1626
      %1628 = vrot.lane.b32.xlu0 %v859, 24
      %v1629 = vpop.permute.xlu0 %1628
      %v1663 = vrot.slane %v858, 1
      %v1664 = vrot.slane %v859, 1
      %v1665 = vsel %vm909, %v1663, %v1664
      %v1666 = vrot.slane %v860, 1
      %v1667 = vsel %vm909, %v1664, %v1666
      %1668 = vrot.lane.b32.xlu0 %v922, 28
      %v1669 = vpop.permute.xlu0 %1668
      %1670 = vrot.lane.b32.xlu0 %v924, 28
      %v1671 = vpop.permute.xlu0 %1670
      %1672 = vrot.lane.b32.xlu0 %v927, 28
      %v1673 = vpop.permute.xlu0 %1672
      %1674 = vrot.lane.b32.xlu0 %v929, 28
      %v1675 = vpop.permute.xlu0 %1674
      %1676 = vrot.lane.b32.xlu0 %v932, 28
      %v1677 = vpop.permute.xlu0 %1676
      %1678 = vrot.lane.b32.xlu0 %v934, 28
      %v1679 = vpop.permute.xlu0 %1678
      %1680 = vrot.lane.b32.xlu0 %v937, 28
      %v1681 = vpop.permute.xlu0 %1680
      %1682 = vrot.lane.b32.xlu0 %v939, 28
      %v1683 = vpop.permute.xlu0 %1682
      %1684 = vrot.lane.b32.xlu0 %v942, 28
      %v1685 = vpop.permute.xlu0 %1684
      %1686 = vrot.lane.b32.xlu0 %v944, 28
      %v1687 = vpop.permute.xlu0 %1686
      %1688 = vrot.lane.b32.xlu0 %v947, 28
      %v1689 = vpop.permute.xlu0 %1688
      %1690 = vrot.lane.b32.xlu0 %v949, 28
      %v1691 = vpop.permute.xlu0 %1690
      %1692 = vrot.lane.b32.xlu0 %v952, 28
      %v1693 = vpop.permute.xlu0 %1692
      %1694 = vrot.lane.b32.xlu0 %v954, 28
      %v1695 = vpop.permute.xlu0 %1694
      %1696 = vrot.lane.b32.xlu0 %v957, 28
      %v1697 = vpop.permute.xlu0 %1696
      %1698 = vrot.lane.b32.xlu0 %v959, 28
      %v1699 = vpop.permute.xlu0 %1698
      %1700 = vrot.lane.b32.xlu0 %v962, 28
      %v1701 = vpop.permute.xlu0 %1700
      %1702 = vrot.lane.b32.xlu0 %v964, 28
      %v1703 = vpop.permute.xlu0 %1702
      %1704 = vrot.lane.b32.xlu0 %v967, 28
      %v1705 = vpop.permute.xlu0 %1704
      %1706 = vrot.lane.b32.xlu0 %v969, 28
      %v1707 = vpop.permute.xlu0 %1706
      %1708 = vrot.lane.b32.xlu0 %v972, 28
      %v1709 = vpop.permute.xlu0 %1708
      %1710 = vrot.lane.b32.xlu0 %v974, 28
      %v1711 = vpop.permute.xlu0 %1710
      %1712 = vrot.lane.b32.xlu0 %v977, 28
      %v1713 = vpop.permute.xlu0 %1712
      %1714 = vrot.lane.b32.xlu0 %v979, 28
      %v1715 = vpop.permute.xlu0 %1714
      %1716 = vrot.lane.b32.xlu0 %v982, 28
      %v1717 = vpop.permute.xlu0 %1716
      %1718 = vrot.lane.b32.xlu0 %v984, 28
      %v1719 = vpop.permute.xlu0 %1718
      %1720 = vrot.lane.b32.xlu0 %v987, 28
      %v1721 = vpop.permute.xlu0 %1720
      %1722 = vrot.lane.b32.xlu0 %v989, 28
      %v1723 = vpop.permute.xlu0 %1722
      %1724 = vrot.lane.b32.xlu0 %v1364, 28
      %v1725 = vpop.permute.xlu0 %1724
      %1726 = vrot.lane.b32.xlu0 %v1366, 28
      %v1727 = vpop.permute.xlu0 %1726
      %1728 = vrot.lane.b32.xlu0 %v1665, 28
      %v1729 = vpop.permute.xlu0 %1728
      %1730 = vrot.lane.b32.xlu0 %v1667, 28
      %v1731 = vpop.permute.xlu0 %1730
      %v1764 = vrot.slane %v858, 2
      %v1765 = vrot.slane %v859, 2
      %v1766 = vsel %vm1086, %v1764, %v1765
      %v1767 = vrot.slane %v860, 2
      %v1768 = vsel %vm1086, %v1765, %v1767
      %1769 = vrot.lane.b32.xlu0 %v1099, 32
      %v1770 = vpop.permute.xlu0 %1769
      %1771 = vrot.lane.b32.xlu0 %v1101, 32
      %v1772 = vpop.permute.xlu0 %1771
      %1773 = vrot.lane.b32.xlu0 %v1104, 32
      %v1774 = vpop.permute.xlu0 %1773
      %1775 = vrot.lane.b32.xlu0 %v1106, 32
      %v1776 = vpop.permute.xlu0 %1775
      %1777 = vrot.lane.b32.xlu0 %v1109, 32
      %v1778 = vpop.permute.xlu0 %1777
      %1779 = vrot.lane.b32.xlu0 %v1111, 32
      %v1780 = vpop.permute.xlu0 %1779
      %1781 = vrot.lane.b32.xlu0 %v1114, 32
      %v1782 = vpop.permute.xlu0 %1781
      %1783 = vrot.lane.b32.xlu0 %v1116, 32
      %v1784 = vpop.permute.xlu0 %1783
      %1785 = vrot.lane.b32.xlu0 %v1119, 32
      %v1786 = vpop.permute.xlu0 %1785
      %1787 = vrot.lane.b32.xlu0 %v1121, 32
      %v1788 = vpop.permute.xlu0 %1787
      %1789 = vrot.lane.b32.xlu0 %v1124, 32
      %v1790 = vpop.permute.xlu0 %1789
      %1791 = vrot.lane.b32.xlu0 %v1126, 32
      %v1792 = vpop.permute.xlu0 %1791
      %1793 = vrot.lane.b32.xlu0 %v1129, 32
      %v1794 = vpop.permute.xlu0 %1793
      %1795 = vrot.lane.b32.xlu0 %v1131, 32
      %v1796 = vpop.permute.xlu0 %1795
      %1797 = vrot.lane.b32.xlu0 %v1134, 32
      %v1798 = vpop.permute.xlu0 %1797
      %1799 = vrot.lane.b32.xlu0 %v1136, 32
      %v1800 = vpop.permute.xlu0 %1799
      %1801 = vrot.lane.b32.xlu0 %v1139, 32
      %v1802 = vpop.permute.xlu0 %1801
      %1803 = vrot.lane.b32.xlu0 %v1141, 32
      %v1804 = vpop.permute.xlu0 %1803
      %1805 = vrot.lane.b32.xlu0 %v1144, 32
      %v1806 = vpop.permute.xlu0 %1805
      %1807 = vrot.lane.b32.xlu0 %v1146, 32
      %v1808 = vpop.permute.xlu0 %1807
      %1809 = vrot.lane.b32.xlu0 %v1149, 32
      %v1810 = vpop.permute.xlu0 %1809
      %1811 = vrot.lane.b32.xlu0 %v1151, 32
      %v1812 = vpop.permute.xlu0 %1811
      %1813 = vrot.lane.b32.xlu0 %v1154, 32
      %v1814 = vpop.permute.xlu0 %1813
      %1815 = vrot.lane.b32.xlu0 %v1156, 32
      %v1816 = vpop.permute.xlu0 %1815
      %1817 = vrot.lane.b32.xlu0 %v1159, 32
      %v1818 = vpop.permute.xlu0 %1817
      %1819 = vrot.lane.b32.xlu0 %v1161, 32
      %v1820 = vpop.permute.xlu0 %1819
      %1821 = vrot.lane.b32.xlu0 %v1164, 32
      %v1822 = vpop.permute.xlu0 %1821
      %1823 = vrot.lane.b32.xlu0 %v1166, 32
      %v1824 = vpop.permute.xlu0 %1823
      %1825 = vrot.lane.b32.xlu0 %v1465, 32
      %v1826 = vpop.permute.xlu0 %1825
      %1827 = vrot.lane.b32.xlu0 %v1467, 32
      %v1828 = vpop.permute.xlu0 %1827
      %1829 = vrot.lane.b32.xlu0 %v1766, 32
      %v1830 = vpop.permute.xlu0 %1829
      %1831 = vrot.lane.b32.xlu0 %v1768, 32
      %v1832 = vpop.permute.xlu0 %1831
      %v1865 = vsel %vm382, %v807, %v991
      %v1866 = vsel %vm382, %v808, %v993
      %v1867 = vsel %vm382, %v810, %v995
      %v1868 = vsel %vm382, %v811, %v997
      %v1869 = vsel %vm382, %v813, %v999
      %v1870 = vsel %vm382, %v814, %v1001
      %v1871 = vsel %vm382, %v816, %v1003
      %v1872 = vsel %vm382, %v817, %v1005
      %v1873 = vsel %vm382, %v819, %v1007
      %v1874 = vsel %vm382, %v820, %v1009
      %v1875 = vsel %vm382, %v822, %v1011
      %v1876 = vsel %vm382, %v823, %v1013
      %v1877 = vsel %vm382, %v825, %v1015
      %v1878 = vsel %vm382, %v826, %v1017
      %v1879 = vsel %vm382, %v828, %v1019
      %v1880 = vsel %vm382, %v829, %v1021
      %v1881 = vsel %vm382, %v831, %v1023
      %v1882 = vsel %vm382, %v832, %v1025
      %v1883 = vsel %vm382, %v834, %v1027
      %v1884 = vsel %vm382, %v835, %v1029
      %v1885 = vsel %vm382, %v837, %v1031
      %v1886 = vsel %vm382, %v838, %v1033
      %v1887 = vsel %vm382, %v840, %v1035
      %v1888 = vsel %vm382, %v841, %v1037
      %v1889 = vsel %vm382, %v843, %v1039
      %v1890 = vsel %vm382, %v844, %v1041
      %v1891 = vsel %vm382, %v846, %v1043
      %v1892 = vsel %vm382, %v847, %v1045
      %v1893 = vsel %vm382, %v849, %v1047
      %v1894 = vsel %vm382, %v850, %v1049
      %v1895 = vsel %vm382, %v852, %v1051
      %v1896 = vsel %vm382, %v853, %v1053
      %vm1897 = vcmask 64512
      %v1898 = vsel %vm1897, %v1865, %v1168
      %v1899 = vsel %vm1897, %v1866, %v1170
      %v1900 = vsel %vm1897, %v1867, %v1172
      %v1901 = vsel %vm1897, %v1868, %v1174
      %v1902 = vsel %vm1897, %v1869, %v1176
      %v1903 = vsel %vm1897, %v1870, %v1178
      %v1904 = vsel %vm1897, %v1871, %v1180
      %v1905 = vsel %vm1897, %v1872, %v1182
      %v1906 = vsel %vm1897, %v1873, %v1184
      %v1907 = vsel %vm1897, %v1874, %v1186
      %v1908 = vsel %vm1897, %v1875, %v1188
      %v1909 = vsel %vm1897, %v1876, %v1190
      %v1910 = vsel %vm1897, %v1877, %v1192
      %v1911 = vsel %vm1897, %v1878, %v1194
      %v1912 = vsel %vm1897, %v1879, %v1196
      %v1913 = vsel %vm1897, %v1880, %v1198
      %v1914 = vsel %vm1897, %v1881, %v1200
      %v1915 = vsel %vm1897, %v1882, %v1202
      %v1916 = vsel %vm1897, %v1883, %v1204
      %v1917 = vsel %vm1897, %v1884, %v1206
      %v1918 = vsel %vm1897, %v1885, %v1208
      %v1919 = vsel %vm1897, %v1886, %v1210
      %v1920 = vsel %vm1897, %v1887, %v1212
      %v1921 = vsel %vm1897, %v1888, %v1214
      %v1922 = vsel %vm1897, %v1889, %v1216
      %v1923 = vsel %vm1897, %v1890, %v1218
      %v1924 = vsel %vm1897, %v1891, %v1220
      %v1925 = vsel %vm1897, %v1892, %v1222
      %v1926 = vsel %vm1897, %v1893, %v1224
      %v1927 = vsel %vm1897, %v1894, %v1226
      %v1928 = vsel %vm1897, %v1895, %v1228
      %v1929 = vsel %vm1897, %v1896, %v1230
      %vm1930 = vcmask 97280
      %v1931 = vsel %vm1930, %v1898, %v1266
      %v1932 = vsel %vm1930, %v1899, %v1268
      %v1933 = vsel %vm1930, %v1900, %v1270
      %v1934 = vsel %vm1930, %v1901, %v1272
      %v1935 = vsel %vm1930, %v1902, %v1274
      %v1936 = vsel %vm1930, %v1903, %v1276
      %v1937 = vsel %vm1930, %v1904, %v1278
      %v1938 = vsel %vm1930, %v1905, %v1280
      %v1939 = vsel %vm1930, %v1906, %v1282
      %v1940 = vsel %vm1930, %v1907, %v1284
      %v1941 = vsel %vm1930, %v1908, %v1286
      %v1942 = vsel %vm1930, %v1909, %v1288
      %v1943 = vsel %vm1930, %v1910, %v1290
      %v1944 = vsel %vm1930, %v1911, %v1292
      %v1945 = vsel %vm1930, %v1912, %v1294
      %v1946 = vsel %vm1930, %v1913, %v1296
      %v1947 = vsel %vm1930, %v1914, %v1298
      %v1948 = vsel %vm1930, %v1915, %v1300
      %v1949 = vsel %vm1930, %v1916, %v1302
      %v1950 = vsel %vm1930, %v1917, %v1304
      %v1951 = vsel %vm1930, %v1918, %v1306
      %v1952 = vsel %vm1930, %v1919, %v1308
      %v1953 = vsel %vm1930, %v1920, %v1310
      %v1954 = vsel %vm1930, %v1921, %v1312
      %v1955 = vsel %vm1930, %v1922, %v1314
      %v1956 = vsel %vm1930, %v1923, %v1316
      %v1957 = vsel %vm1930, %v1924, %v1318
      %v1958 = vsel %vm1930, %v1925, %v1320
      %v1959 = vsel %vm1930, %v1926, %v1322
      %v1960 = vsel %vm1930, %v1927, %v1324
      %v1961 = vsel %vm1930, %v1928, %v1326
      %v1962 = vsel %vm1930, %v1929, %v1328
      %vm1963 = vcmask 130048
      %v1964 = vsel %vm1963, %v1931, %v1368
      %v1965 = vsel %vm1963, %v1932, %v1370
      %v1966 = vsel %vm1963, %v1933, %v1372
      %v1967 = vsel %vm1963, %v1934, %v1374
      %v1968 = vsel %vm1963, %v1935, %v1376
      %v1969 = vsel %vm1963, %v1936, %v1378
      %v1970 = vsel %vm1963, %v1937, %v1380
      %v1971 = vsel %vm1963, %v1938, %v1382
      %v1972 = vsel %vm1963, %v1939, %v1384
      %v1973 = vsel %vm1963, %v1940, %v1386
      %v1974 = vsel %vm1963, %v1941, %v1388
      %v1975 = vsel %vm1963, %v1942, %v1390
      %v1976 = vsel %vm1963, %v1943, %v1392
      %v1977 = vsel %vm1963, %v1944, %v1394
      %v1978 = vsel %vm1963, %v1945, %v1396
      %v1979 = vsel %vm1963, %v1946, %v1398
      %v1980 = vsel %vm1963, %v1947, %v1400
      %v1981 = vsel %vm1963, %v1948, %v1402
      %v1982 = vsel %vm1963, %v1949, %v1404
      %v1983 = vsel %vm1963, %v1950, %v1406
      %v1984 = vsel %vm1963, %v1951, %v1408
      %v1985 = vsel %vm1963, %v1952, %v1410
      %v1986 = vsel %vm1963, %v1953, %v1412
      %v1987 = vsel %vm1963, %v1954, %v1414
      %v1988 = vsel %vm1963, %v1955, %v1416
      %v1989 = vsel %vm1963, %v1956, %v1418
      %v1990 = vsel %vm1963, %v1957, %v1420
      %v1991 = vsel %vm1963, %v1958, %v1422
      %v1992 = vsel %vm1963, %v1959, %v1424
      %v1993 = vsel %vm1963, %v1960, %v1426
      %v1994 = vsel %vm1963, %v1961, %v1428
      %v1995 = vsel %vm1963, %v1962, %v1430
      %vm1996 = vcmask 162816
      %v1997 = vsel %vm1996, %v1964, %v1469
      %v1998 = vsel %vm1996, %v1965, %v1471
      %v1999 = vsel %vm1996, %v1966, %v1473
      %v2000 = vsel %vm1996, %v1967, %v1475
      %v2001 = vsel %vm1996, %v1968, %v1477
      %v2002 = vsel %vm1996, %v1969, %v1479
      %v2003 = vsel %vm1996, %v1970, %v1481
      %v2004 = vsel %vm1996, %v1971, %v1483
      %v2005 = vsel %vm1996, %v1972, %v1485
      %v2006 = vsel %vm1996, %v1973, %v1487
      %v2007 = vsel %vm1996, %v1974, %v1489
      %v2008 = vsel %vm1996, %v1975, %v1491
      %v2009 = vsel %vm1996, %v1976, %v1493
      %v2010 = vsel %vm1996, %v1977, %v1495
      %v2011 = vsel %vm1996, %v1978, %v1497
      %v2012 = vsel %vm1996, %v1979, %v1499
      %v2013 = vsel %vm1996, %v1980, %v1501
      %v2014 = vsel %vm1996, %v1981, %v1503
      %v2015 = vsel %vm1996, %v1982, %v1505
      %v2016 = vsel %vm1996, %v1983, %v1507
      %v2017 = vsel %vm1996, %v1984, %v1509
      %v2018 = vsel %vm1996, %v1985, %v1511
      %v2019 = vsel %vm1996, %v1986, %v1513
      %v2020 = vsel %vm1996, %v1987, %v1515
      %v2021 = vsel %vm1996, %v1988, %v1517
      %v2022 = vsel %vm1996, %v1989, %v1519
      %v2023 = vsel %vm1996, %v1990, %v1521
      %v2024 = vsel %vm1996, %v1991, %v1523
      %v2025 = vsel %vm1996, %v1992, %v1525
      %v2026 = vsel %vm1996, %v1993, %v1527
      %v2027 = vsel %vm1996, %v1994, %v1529
      %v2028 = vsel %vm1996, %v1995, %v1531
      %vm2029 = vcmask 195584
      %v2030 = vsel %vm2029, %v1997, %v1567
      %v2031 = vsel %vm2029, %v1998, %v1569
      %v2032 = vsel %vm2029, %v1999, %v1571
      %v2033 = vsel %vm2029, %v2000, %v1573
      %v2034 = vsel %vm2029, %v2001, %v1575
      %v2035 = vsel %vm2029, %v2002, %v1577
      %v2036 = vsel %vm2029, %v2003, %v1579
      %v2037 = vsel %vm2029, %v2004, %v1581
      %v2038 = vsel %vm2029, %v2005, %v1583
      %v2039 = vsel %vm2029, %v2006, %v1585
      %v2040 = vsel %vm2029, %v2007, %v1587
      %v2041 = vsel %vm2029, %v2008, %v1589
      %v2042 = vsel %vm2029, %v2009, %v1591
      %v2043 = vsel %vm2029, %v2010, %v1593
      %v2044 = vsel %vm2029, %v2011, %v1595
      %v2045 = vsel %vm2029, %v2012, %v1597
      %v2046 = vsel %vm2029, %v2013, %v1599
      %v2047 = vsel %vm2029, %v2014, %v1601
      %v2048 = vsel %vm2029, %v2015, %v1603
      %v2049 = vsel %vm2029, %v2016, %v1605
      %v2050 = vsel %vm2029, %v2017, %v1607
      %v2051 = vsel %vm2029, %v2018, %v1609
      %v2052 = vsel %vm2029, %v2019, %v1611
      %v2053 = vsel %vm2029, %v2020, %v1613
      %v2054 = vsel %vm2029, %v2021, %v1615
      %v2055 = vsel %vm2029, %v2022, %v1617
      %v2056 = vsel %vm2029, %v2023, %v1619
      %v2057 = vsel %vm2029, %v2024, %v1621
      %v2058 = vsel %vm2029, %v2025, %v1623
      %v2059 = vsel %vm2029, %v2026, %v1625
      %v2060 = vsel %vm2029, %v2027, %v1627
      %v2061 = vsel %vm2029, %v2028, %v1629
      %vm2062 = vcmask 228352
      %v2063 = vsel %vm2062, %v2030, %v1669
      %v2064 = vsel %vm2062, %v2031, %v1671
      %v2065 = vsel %vm2062, %v2032, %v1673
      %v2066 = vsel %vm2062, %v2033, %v1675
      %v2067 = vsel %vm2062, %v2034, %v1677
      %v2068 = vsel %vm2062, %v2035, %v1679
      %v2069 = vsel %vm2062, %v2036, %v1681
      %v2070 = vsel %vm2062, %v2037, %v1683
      %v2071 = vsel %vm2062, %v2038, %v1685
      %v2072 = vsel %vm2062, %v2039, %v1687
      %v2073 = vsel %vm2062, %v2040, %v1689
      %v2074 = vsel %vm2062, %v2041, %v1691
      %v2075 = vsel %vm2062, %v2042, %v1693
      %v2076 = vsel %vm2062, %v2043, %v1695
      %v2077 = vsel %vm2062, %v2044, %v1697
      %v2078 = vsel %vm2062, %v2045, %v1699
      %v2079 = vsel %vm2062, %v2046, %v1701
      %v2080 = vsel %vm2062, %v2047, %v1703
      %v2081 = vsel %vm2062, %v2048, %v1705
      %v2082 = vsel %vm2062, %v2049, %v1707
      %v2083 = vsel %vm2062, %v2050, %v1709
      %v2084 = vsel %vm2062, %v2051, %v1711
      %v2085 = vsel %vm2062, %v2052, %v1713
      %v2086 = vsel %vm2062, %v2053, %v1715
      %v2087 = vsel %vm2062, %v2054, %v1717
      %v2088 = vsel %vm2062, %v2055, %v1719
      %v2089 = vsel %vm2062, %v2056, %v1721
      %v2090 = vsel %vm2062, %v2057, %v1723
      %v2091 = vsel %vm2062, %v2058, %v1725
      %v2092 = vsel %vm2062, %v2059, %v1727
      %v2093 = vsel %vm2062, %v2060, %v1729
      %v2094 = vsel %vm2062, %v2061, %v1731
      %vm2095 = vcmask 261120
      %v2096 = vsel %vm2095, %v2063, %v1770
      %v2097 = vsel %vm2095, %v2064, %v1772
      %v2098 = vsel %vm2095, %v2065, %v1774
      %v2099 = vsel %vm2095, %v2066, %v1776
      %v2100 = vsel %vm2095, %v2067, %v1778
      %v2101 = vsel %vm2095, %v2068, %v1780
      %v2102 = vsel %vm2095, %v2069, %v1782
      %v2103 = vsel %vm2095, %v2070, %v1784
      %v2104 = vsel %vm2095, %v2071, %v1786
      %v2105 = vsel %vm2095, %v2072, %v1788
      %v2106 = vsel %vm2095, %v2073, %v1790
      %v2107 = vsel %vm2095, %v2074, %v1792
      %v2108 = vsel %vm2095, %v2075, %v1794
      %v2109 = vsel %vm2095, %v2076, %v1796
      %v2110 = vsel %vm2095, %v2077, %v1798
      %v2111 = vsel %vm2095, %v2078, %v1800
      %v2112 = vsel %vm2095, %v2079, %v1802
      %v2113 = vsel %vm2095, %v2080, %v1804
      %v2114 = vsel %vm2095, %v2081, %v1806
      %v2115 = vsel %vm2095, %v2082, %v1808
      %v2116 = vsel %vm2095, %v2083, %v1810
      %v2117 = vsel %vm2095, %v2084, %v1812
      %v2118 = vsel %vm2095, %v2085, %v1814
      %v2119 = vsel %vm2095, %v2086, %v1816
      %v2120 = vsel %vm2095, %v2087, %v1818
      %v2121 = vsel %vm2095, %v2088, %v1820
      %v2122 = vsel %vm2095, %v2089, %v1822
      %v2123 = vsel %vm2095, %v2090, %v1824
      %v2124 = vsel %vm2095, %v2091, %v1826
      %v2125 = vsel %vm2095, %v2092, %v1828
      %v2126 = vsel %vm2095, %v2093, %v1830
      %v2127 = vsel %vm2095, %v2094, %v1832
      %v2128 = vld [vmem:[%s2] sm:$0xff]
      %v2129 = vld [vmem:[%s2 + $0x8] sm:$0xff]
      %v2130 = vld [vmem:[%s2 + $0x10] sm:$0xff]
      %v2131 = vld [vmem:[%s2 + $0x18] sm:$0xff]
      %v2132 = vld [vmem:[%s2 + $0x20] sm:$0xf]
      %v2133 = vld [vmem:[%s3] sm:$0x1]
      %v2135 = vlaneseq
      %v2136 = vshrl.u32 %v2135, 7
      %v2137 = vsub.s32 0, %v2136
      %v2138 = vrot.slane %v2133, %v2137
      %vm2140 = vcmask 293888
      %v2142 = vsel %vm2140, %v2096, 0
      %v2145 = vsel %vm2140, %v2097, 0
      %v2148 = vsel %vm2140, %v2098, 0
      %v2151 = vsel %vm2140, %v2099, 0
      %v2154 = vsel %vm2140, %v2100, 0
      %v2157 = vsel %vm2140, %v2101, 0
      %v2160 = vsel %vm2140, %v2102, 0
      %v2163 = vsel %vm2140, %v2103, 0
      %v2166 = vsel %vm2140, %v2104, 0
      %v2169 = vsel %vm2140, %v2105, 0
      %v2172 = vsel %vm2140, %v2106, 0
      %v2175 = vsel %vm2140, %v2107, 0
      %v2178 = vsel %vm2140, %v2108, 0
      %v2181 = vsel %vm2140, %v2109, 0
      %v2184 = vsel %vm2140, %v2110, 0
      %v2187 = vsel %vm2140, %v2111, 0
      %v2190 = vsel %vm2140, %v2112, 0
      %v2193 = vsel %vm2140, %v2113, 0
      %v2196 = vsel %vm2140, %v2114, 0
      %v2199 = vsel %vm2140, %v2115, 0
      %v2202 = vsel %vm2140, %v2116, 0
      %v2205 = vsel %vm2140, %v2117, 0
      %v2208 = vsel %vm2140, %v2118, 0
      %v2211 = vsel %vm2140, %v2119, 0
      %v2214 = vsel %vm2140, %v2120, 0
      %v2217 = vsel %vm2140, %v2121, 0
      %v2220 = vsel %vm2140, %v2122, 0
      %v2223 = vsel %vm2140, %v2123, 0
      %v2226 = vsel %vm2140, %v2124, 0
      %v2229 = vsel %vm2140, %v2125, 0
      %v2232 = vsel %vm2140, %v2126, 0
      %v2235 = vsel %vm2140, %v2127, 0
      %vm2237 = vcmask 1043456
      %v2239 = vsel %vm2237, %v2132, 0
      %2241 = vmatprep.subr.mxu0 0.0
      %2242 = vmatpush1.msra.mxu0 %v2128
      %2243 = vmatprep.subr.mxu0 0.0
      %2244 = vmatpush1.msra.mxu0 %v2129
      %2245 = vmatprep.subr.mxu0 0.0
      %2246 = vmatpush1.msra.mxu0 %v2130
      %2247 = vmatprep.subr.mxu0 0.0
      %2248 = vmatpush1.msra.mxu0 %v2131
      %2249 = vmatprep.subr.mxu0 0.0
      %2250 = vmatpush1.msra.mxu0 %v2239
      %2251 = vmatprep.subr.mxu0 0.0
      %2252 = vmatpush1.msra.mxu0 0.0
      %2253 = vmatprep.subr.mxu0 0.0
      %2254 = vmatpush1.msra.mxu0 0.0
      %2255 = vmatprep.subr.mxu0 0.0
      %2256 = vmatpush1.msra.mxu0 0.0
      %2257 = vmatprep.subr.mxu0 0.0
      %2258 = vmatpush1.msra.mxu0 0.0
      %2259 = vmatprep.subr.mxu0 0.0
      %2260 = vmatpush1.msra.mxu0 0.0
      %2261 = vmatprep.subr.mxu0 0.0
      %2262 = vmatpush1.msra.mxu0 0.0
      %2263 = vmatprep.subr.mxu0 0.0
      %2264 = vmatpush1.msra.mxu0 0.0
      %2265 = vmatprep.subr.mxu0 0.0
      %2266 = vmatpush1.msra.mxu0 0.0
      %2267 = vmatprep.subr.mxu0 0.0
      %2268 = vmatpush1.msra.mxu0 0.0
      %2269 = vmatprep.subr.mxu0 0.0
      %2270 = vmatpush1.msra.mxu0 0.0
      %2271 = vmatprep.subr.mxu0 0.0
      %2272 = vmatpush1.msra.mxu0 0.0
      %2273 = vmatprep.subr.mxu0 0.0
      %2274 = vmatpush1.msra.mxu0 0.0
      %2275 = vmatprep.subr.mxu0 0.0
      %2276 = vmatpush1.msra.mxu0 0.0
      %2277 = vmatprep.subr.mxu0 0.0
      %2278 = vmatpush1.msra.mxu0 0.0
      %2279 = vmatprep.subr.mxu0 0.0
      %2280 = vmatpush1.msra.mxu0 0.0
      %2281 = vmatprep.subr.mxu0 0.0
      %2282 = vmatpush1.msra.mxu0 0.0
      %2283 = vmatprep.subr.mxu0 0.0
      %2284 = vmatpush1.msra.mxu0 0.0
      %2285 = vmatprep.subr.mxu0 0.0
      %2286 = vmatpush1.msra.mxu0 0.0
      %2287 = vmatprep.subr.mxu0 0.0
      %2288 = vmatpush1.msra.mxu0 0.0
      %2289 = vmatprep.subr.mxu0 0.0
      %2290 = vmatpush1.msra.mxu0 0.0
      %2291 = vmatprep.subr.mxu0 0.0
      %2292 = vmatpush1.msra.mxu0 0.0
      %2293 = vmatprep.subr.mxu0 0.0
      %2294 = vmatpush1.msra.mxu0 0.0
      %2295 = vmatprep.subr.mxu0 0.0
      %2296 = vmatpush1.msra.mxu0 0.0
      %2297 = vmatprep.subr.mxu0 0.0
      %2298 = vmatpush1.msra.mxu0 0.0
      %2299 = vmatprep.subr.mxu0 0.0
      %2300 = vmatpush1.msra.mxu0 0.0
      %2301 = vmatprep.subr.mxu0 0.0
      %2302 = vmatpush1.msra.mxu0 0.0
      %2303 = vmatprep.subr.mxu0 0.0
      %2304 = vmatpush1.msra.mxu0 0.0
      %2305 = vmatprep.mubr.f32.mxu0 0.0
      %2306 = vmatmul.mubr.f32.gmra.mrb[0].mxu0 %v2142
      %v2307 = vpop.f32.mrb[0].mxu0
      %v2308 = vadd.f32 %v2138, %v2307
      %v2309 = vpop.f32.mrb[0].mxu0
      %2310 = vmatprep.mubr.f32.mxu0 0.0
      %2311 = vmatmul.mubr.f32.gmra.mrb[0].mxu0 %v2145
      %v2312 = vpop.f32.mrb[0].mxu0
      %v2313 = vadd.f32 %v2138, %v2312
      %v2314 = vpop.f32.mrb[0].mxu0
      %2315 = vmatprep.mubr.f32.mxu0 0.0
      %2316 = vmatmul.mubr.f32.gmra.mrb[0].mxu0 %v2148
      %v2317 = vpop.f32.mrb[0].mxu0
      %v2318 = vadd.f32 %v2138, %v2317
      %v2319 = vpop.f32.mrb[0].mxu0
      %2320 = vmatprep.mubr.f32.mxu0 0.0
      %2321 = vmatmul.mubr.f32.gmra.mrb[0].mxu0 %v2151
      %v2322 = vpop.f32.mrb[0].mxu0
      %v2323 = vadd.f32 %v2138, %v2322
      %v2324 = vpop.f32.mrb[0].mxu0
      %2325 = vmatprep.mubr.f32.mxu0 0.0
      %2326 = vmatmul.mubr.f32.gmra.mrb[0].mxu0 %v2154
      %v2327 = vpop.f32.mrb[0].mxu0
      %v2328 = vadd.f32 %v2138, %v2327
      %v2329 = vpop.f32.mrb[0].mxu0
      %2330 = vmatprep.mubr.f32.mxu0 0.0
      %2331 = vmatmul.mubr.f32.gmra.mrb[0].mxu0 %v2157
      %v2332 = vpop.f32.mrb[0].mxu0
      %v2333 = vadd.f32 %v2138, %v2332
      %v2334 = vpop.f32.mrb[0].mxu0
      %2335 = vmatprep.mubr.f32.mxu0 0.0
      %2336 = vmatmul.mubr.f32.gmra.mrb[0].mxu0 %v2160
      %v2337 = vpop.f32.mrb[0].mxu0
      %v2338 = vadd.f32 %v2138, %v2337
      %v2339 = vpop.f32.mrb[0].mxu0
      %2340 = vmatprep.mubr.f32.mxu0 0.0
      %2341 = vmatmul.mubr.f32.gmra.mrb[0].mxu0 %v2163
      %v2342 = vpop.f32.mrb[0].mxu0
      %v2343 = vadd.f32 %v2138, %v2342
      %v2344 = vpop.f32.mrb[0].mxu0
      %2345 = vmatprep.mubr.f32.mxu0 0.0
      %2346 = vmatmul.mubr.f32.gmra.mrb[0].mxu0 %v2166
      %v2347 = vpop.f32.mrb[0].mxu0
      %v2348 = vadd.f32 %v2138, %v2347
      %v2349 = vpop.f32.mrb[0].mxu0
      %2350 = vmatprep.mubr.f32.mxu0 0.0
      %2351 = vmatmul.mubr.f32.gmra.mrb[0].mxu0 %v2169
      %v2352 = vpop.f32.mrb[0].mxu0
      %v2353 = vadd.f32 %v2138, %v2352
      %v2354 = vpop.f32.mrb[0].mxu0
      %2355 = vmatprep.mubr.f32.mxu0 0.0
      %2356 = vmatmul.mubr.f32.gmra.mrb[0].mxu0 %v2172
      %v2357 = vpop.f32.mrb[0].mxu0
      %v2358 = vadd.f32 %v2138, %v2357
      %v2359 = vpop.f32.mrb[0].mxu0
      %2360 = vmatprep.mubr.f32.mxu0 0.0
      %2361 = vmatmul.mubr.f32.gmra.mrb[0].mxu0 %v2175
      %v2362 = vpop.f32.mrb[0].mxu0
      %v2363 = vadd.f32 %v2138, %v2362
      %v2364 = vpop.f32.mrb[0].mxu0
      %2365 = vmatprep.mubr.f32.mxu0 0.0
      %2366 = vmatmul.mubr.f32.gmra.mrb[0].mxu0 %v2178
      %v2367 = vpop.f32.mrb[0].mxu0
      %v2368 = vadd.f32 %v2138, %v2367
      %v2369 = vpop.f32.mrb[0].mxu0
      %2370 = vmatprep.mubr.f32.mxu0 0.0
      %2371 = vmatmul.mubr.f32.gmra.mrb[0].mxu0 %v2181
      %v2372 = vpop.f32.mrb[0].mxu0
      %v2373 = vadd.f32 %v2138, %v2372
      %v2374 = vpop.f32.mrb[0].mxu0
      %2375 = vmatprep.mubr.f32.mxu0 0.0
      %2376 = vmatmul.mubr.f32.gmra.mrb[0].mxu0 %v2184
      %v2377 = vpop.f32.mrb[0].mxu0
      %v2378 = vadd.f32 %v2138, %v2377
      %v2379 = vpop.f32.mrb[0].mxu0
      %2380 = vmatprep.mubr.f32.mxu0 0.0
      %2381 = vmatmul.mubr.f32.gmra.mrb[0].mxu0 %v2187
      %v2382 = vpop.f32.mrb[0].mxu0
      %v2383 = vadd.f32 %v2138, %v2382
      %v2384 = vpop.f32.mrb[0].mxu0
      %2385 = vmatprep.mubr.f32.mxu0 0.0
      %2386 = vmatmul.mubr.f32.gmra.mrb[0].mxu0 %v2190
      %v2387 = vpop.f32.mrb[0].mxu0
      %v2388 = vadd.f32 %v2138, %v2387
      %v2389 = vpop.f32.mrb[0].mxu0
      %2390 = vmatprep.mubr.f32.mxu0 0.0
      %2391 = vmatmul.mubr.f32.gmra.mrb[0].mxu0 %v2193
      %v2392 = vpop.f32.mrb[0].mxu0
      %v2393 = vadd.f32 %v2138, %v2392
      %v2394 = vpop.f32.mrb[0].mxu0
      %2395 = vmatprep.mubr.f32.mxu0 0.0
      %2396 = vmatmul.mubr.f32.gmra.mrb[0].mxu0 %v2196
      %v2397 = vpop.f32.mrb[0].mxu0
      %v2398 = vadd.f32 %v2138, %v2397
      %v2399 = vpop.f32.mrb[0].mxu0
      %2400 = vmatprep.mubr.f32.mxu0 0.0
      %2401 = vmatmul.mubr.f32.gmra.mrb[0].mxu0 %v2199
      %v2402 = vpop.f32.mrb[0].mxu0
      %v2403 = vadd.f32 %v2138, %v2402
      %v2404 = vpop.f32.mrb[0].mxu0
      %2405 = vmatprep.mubr.f32.mxu0 0.0
      %2406 = vmatmul.mubr.f32.gmra.mrb[0].mxu0 %v2202
      %v2407 = vpop.f32.mrb[0].mxu0
      %v2408 = vadd.f32 %v2138, %v2407
      %v2409 = vpop.f32.mrb[0].mxu0
      %2410 = vmatprep.mubr.f32.mxu0 0.0
      %2411 = vmatmul.mubr.f32.gmra.mrb[0].mxu0 %v2205
      %v2412 = vpop.f32.mrb[0].mxu0
      %v2413 = vadd.f32 %v2138, %v2412
      %v2414 = vpop.f32.mrb[0].mxu0
      %2415 = vmatprep.mubr.f32.mxu0 0.0
      %2416 = vmatmul.mubr.f32.gmra.mrb[0].mxu0 %v2208
      %v2417 = vpop.f32.mrb[0].mxu0
      %v2418 = vadd.f32 %v2138, %v2417
      %v2419 = vpop.f32.mrb[0].mxu0
      %2420 = vmatprep.mubr.f32.mxu0 0.0
      %2421 = vmatmul.mubr.f32.gmra.mrb[0].mxu0 %v2211
      %v2422 = vpop.f32.mrb[0].mxu0
      %v2423 = vadd.f32 %v2138, %v2422
      %v2424 = vpop.f32.mrb[0].mxu0
      %2425 = vmatprep.mubr.f32.mxu0 0.0
      %2426 = vmatmul.mubr.f32.gmra.mrb[0].mxu0 %v2214
      %v2427 = vpop.f32.mrb[0].mxu0
      %v2428 = vadd.f32 %v2138, %v2427
      %v2429 = vpop.f32.mrb[0].mxu0
      %2430 = vmatprep.mubr.f32.mxu0 0.0
      %2431 = vmatmul.mubr.f32.gmra.mrb[0].mxu0 %v2217
      %v2432 = vpop.f32.mrb[0].mxu0
      %v2433 = vadd.f32 %v2138, %v2432
      %v2434 = vpop.f32.mrb[0].mxu0
      %2435 = vmatprep.mubr.f32.mxu0 0.0
      %2436 = vmatmul.mubr.f32.gmra.mrb[0].mxu0 %v2220
      %v2437 = vpop.f32.mrb[0].mxu0
      %v2438 = vadd.f32 %v2138, %v2437
      %v2439 = vpop.f32.mrb[0].mxu0
      %2440 = vmatprep.mubr.f32.mxu0 0.0
      %2441 = vmatmul.mubr.f32.gmra.mrb[0].mxu0 %v2223
      %v2442 = vpop.f32.mrb[0].mxu0
      %v2443 = vadd.f32 %v2138, %v2442
      %v2444 = vpop.f32.mrb[0].mxu0
      %2445 = vmatprep.mubr.f32.mxu0 0.0
      %2446 = vmatmul.mubr.f32.gmra.mrb[0].mxu0 %v2226
      %v2447 = vpop.f32.mrb[0].mxu0
      %v2448 = vadd.f32 %v2138, %v2447
      %v2449 = vpop.f32.mrb[0].mxu0
      %2450 = vmatprep.mubr.f32.mxu0 0.0
      %2451 = vmatmul.mubr.f32.gmra.mrb[0].mxu0 %v2229
      %v2452 = vpop.f32.mrb[0].mxu0
      %v2453 = vadd.f32 %v2138, %v2452
      %v2454 = vpop.f32.mrb[0].mxu0
      %2455 = vmatprep.mubr.f32.mxu0 0.0
      %2456 = vmatmul.mubr.f32.gmra.mrb[0].mxu0 %v2232
      %v2457 = vpop.f32.mrb[0].mxu0
      %v2458 = vadd.f32 %v2138, %v2457
      %v2459 = vpop.f32.mrb[0].mxu0
      %2460 = vmatprep.mubr.f32.mxu0 0.0
      %2461 = vmatmul.mubr.f32.gmra.mrb[0].mxu0 %v2235
      %v2462 = vpop.f32.mrb[0].mxu0
      %v2463 = vadd.f32 %v2138, %v2462
      %v2464 = vpop.f32.mrb[0].mxu0
      %2465 = vdwg.mxu0
      %v2466 = vmax.f32 %v2308, 0.0
      %v2467 = vmax.f32 %v2313, 0.0
      %v2468 = vmax.f32 %v2318, 0.0
      %v2469 = vmax.f32 %v2323, 0.0
      %v2470 = vmax.f32 %v2328, 0.0
      %v2471 = vmax.f32 %v2333, 0.0
      %v2472 = vmax.f32 %v2338, 0.0
      %v2473 = vmax.f32 %v2343, 0.0
      %v2474 = vmax.f32 %v2348, 0.0
      %v2475 = vmax.f32 %v2353, 0.0
      %v2476 = vmax.f32 %v2358, 0.0
      %v2477 = vmax.f32 %v2363, 0.0
      %v2478 = vmax.f32 %v2368, 0.0
      %v2479 = vmax.f32 %v2373, 0.0
      %v2480 = vmax.f32 %v2378, 0.0
      %v2481 = vmax.f32 %v2383, 0.0
      %v2482 = vmax.f32 %v2388, 0.0
      %v2483 = vmax.f32 %v2393, 0.0
      %v2484 = vmax.f32 %v2398, 0.0
      %v2485 = vmax.f32 %v2403, 0.0
      %v2486 = vmax.f32 %v2408, 0.0
      %v2487 = vmax.f32 %v2413, 0.0
      %v2488 = vmax.f32 %v2418, 0.0
      %v2489 = vmax.f32 %v2423, 0.0
      %v2490 = vmax.f32 %v2428, 0.0
      %v2491 = vmax.f32 %v2433, 0.0
      %v2492 = vmax.f32 %v2438, 0.0
      %v2493 = vmax.f32 %v2443, 0.0
      %v2494 = vmax.f32 %v2448, 0.0
      %v2495 = vmax.f32 %v2453, 0.0
      %v2496 = vmax.f32 %v2458, 0.0
      %v2497 = vmax.f32 %v2463, 0.0
      %s2498 = scalar_lea.vmem [#allocation3], 24
      %2499 = vst.msk [vmem:[%s2498 + $0x1] sm:$0xff] %vm428, %v2466
      %2500 = vst.msk [vmem:[%s2498 + $0x9] sm:$0xff] %vm428, %v2467
      %2501 = vst.msk [vmem:[%s2498 + $0x19] sm:$0xff] %vm428, %v2468
      %2502 = vst.msk [vmem:[%s2498 + $0x21] sm:$0xff] %vm428, %v2469
      %2503 = vst.msk [vmem:[%s2498 + $0x31] sm:$0xff] %vm428, %v2470
      %2504 = vst.msk [vmem:[%s2498 + $0x39] sm:$0xff] %vm428, %v2471
      %2505 = vst.msk [vmem:[%s2498 + $0x49] sm:$0xff] %vm428, %v2472
      %2506 = vst.msk [vmem:[%s2498 + $0x51] sm:$0xff] %vm428, %v2473
      %2507 = vst.msk [vmem:[%s2498 + $0x61] sm:$0xff] %vm428, %v2474
      %2508 = vst.msk [vmem:[%s2498 + $0x69] sm:$0xff] %vm428, %v2475
      %2509 = vst.msk [vmem:[%s2498 + $0x79] sm:$0xff] %vm428, %v2476
      %2510 = vst.msk [vmem:[%s2498 + $0x81] sm:$0xff] %vm428, %v2477
      %2511 = vst.msk [vmem:[%s2498 + $0x91] sm:$0xff] %vm428, %v2478
      %2512 = vst.msk [vmem:[%s2498 + $0x99] sm:$0xff] %vm428, %v2479
      %2513 = vst.msk [vmem:[%s2498 + $0xa9] sm:$0xff] %vm428, %v2480
      %2514 = vst.msk [vmem:[%s2498 + $0xb1] sm:$0xff] %vm428, %v2481
      %2515 = vst.msk [vmem:[%s2498 + $0xc1] sm:$0xff] %vm428, %v2482
      %2516 = vst.msk [vmem:[%s2498 + $0xc9] sm:$0xff] %vm428, %v2483
      %2517 = vst.msk [vmem:[%s2498 + $0xd9] sm:$0xff] %vm428, %v2484
      %2518 = vst.msk [vmem:[%s2498 + $0xe1] sm:$0xff] %vm428, %v2485
      %2519 = vst.msk [vmem:[%s2498 + $0xf1] sm:$0xff] %vm428, %v2486
      %2520 = vst.msk [vmem:[%s2498 + $0xf9] sm:$0xff] %vm428, %v2487
      %2521 = vst.msk [vmem:[%s2498 + $0x109] sm:$0xff] %vm428, %v2488
      %2522 = vst.msk [vmem:[%s2498 + $0x111] sm:$0xff] %vm428, %v2489
      %2523 = vst.msk [vmem:[%s2498 + $0x121] sm:$0xff] %vm428, %v2490
      %2524 = vst.msk [vmem:[%s2498 + $0x129] sm:$0xff] %vm428, %v2491
      %2525 = vst.msk [vmem:[%s2498 + $0x139] sm:$0xff] %vm428, %v2492
      %2526 = vst.msk [vmem:[%s2498 + $0x141] sm:$0xff] %vm428, %v2493
      %2527 = vst.msk [vmem:[%s2498 + $0x151] sm:$0xff] %vm428, %v2494
      %2528 = vst.msk [vmem:[%s2498 + $0x159] sm:$0xff] %vm428, %v2495
      %2529 = vst.msk [vmem:[%s2498 + $0x169] sm:$0xff] %vm428, %v2496
      %2530 = vst.msk [vmem:[%s2498 + $0x171] sm:$0xff] %vm428, %v2497
      %v2531 = vld [vmem:[#allocation3] sm:$0xff]
      %v2532 = vld [vmem:[#allocation3 + $0x8] sm:$0xff]
      %v2533 = vld [vmem:[#allocation3 + $0x10] sm:$0x3]
      %v2534 = vld [vmem:[#allocation3 + $0x18] sm:$0xff]
      %v2535 = vld [vmem:[#allocation3 + $0x20] sm:$0xff]
      %v2536 = vld [vmem:[#allocation3 + $0x28] sm:$0x3]
      %v2537 = vld [vmem:[#allocation3 + $0x30] sm:$0xff]
      %v2538 = vld [vmem:[#allocation3 + $0x38] sm:$0xff]
      %v2539 = vld [vmem:[#allocation3 + $0x40] sm:$0x3]
      %v2540 = vld [vmem:[#allocation3 + $0x48] sm:$0xff]
      %v2541 = vld [vmem:[#allocation3 + $0x50] sm:$0xff]
      %v2542 = vld [vmem:[#allocation3 + $0x58] sm:$0x3]
      %v2543 = vld [vmem:[#allocation3 + $0x60] sm:$0xff]
      %v2544 = vld [vmem:[#allocation3 + $0x68] sm:$0xff]
      %v2545 = vld [vmem:[#allocation3 + $0x70] sm:$0x3]
      %v2546 = vld [vmem:[#allocation3 + $0x78] sm:$0xff]
      %v2547 = vld [vmem:[#allocation3 + $0x80] sm:$0xff]
      %v2548 = vld [vmem:[#allocation3 + $0x88] sm:$0x3]
      %v2549 = vld [vmem:[#allocation3 + $0x90] sm:$0xff]
      %v2550 = vld [vmem:[#allocation3 + $0x98] sm:$0xff]
      %v2551 = vld [vmem:[#allocation3 + $0xa0] sm:$0x3]
      %v2552 = vld [vmem:[#allocation3 + $0xa8] sm:$0xff]
      %v2553 = vld [vmem:[#allocation3 + $0xb0] sm:$0xff]
      %v2554 = vld [vmem:[#allocation3 + $0xb8] sm:$0x3]
      %v2555 = vld [vmem:[#allocation3 + $0xc0] sm:$0xff]
      %v2556 = vld [vmem:[#allocation3 + $0xc8] sm:$0xff]
      %v2557 = vld [vmem:[#allocation3 + $0xd0] sm:$0x3]
      %v2558 = vld [vmem:[#allocation3 + $0xd8] sm:$0xff]
      %v2559 = vld [vmem:[#allocation3 + $0xe0] sm:$0xff]
      %v2560 = vld [vmem:[#allocation3 + $0xe8] sm:$0x3]
      %v2561 = vld [vmem:[#allocation3 + $0xf0] sm:$0xff]
      %v2562 = vld [vmem:[#allocation3 + $0xf8] sm:$0xff]
      %v2563 = vld [vmem:[#allocation3 + $0x100] sm:$0x3]
      %v2564 = vld [vmem:[#allocation3 + $0x108] sm:$0xff]
      %v2565 = vld [vmem:[#allocation3 + $0x110] sm:$0xff]
      %v2566 = vld [vmem:[#allocation3 + $0x118] sm:$0x3]
      %v2567 = vld [vmem:[#allocation3 + $0x120] sm:$0xff]
      %v2568 = vld [vmem:[#allocation3 + $0x128] sm:$0xff]
      %v2569 = vld [vmem:[#allocation3 + $0x130] sm:$0x3]
      %v2570 = vld [vmem:[#allocation3 + $0x138] sm:$0xff]
      %v2571 = vld [vmem:[#allocation3 + $0x140] sm:$0xff]
      %v2572 = vld [vmem:[#allocation3 + $0x148] sm:$0x3]
      %v2573 = vld [vmem:[#allocation3 + $0x150] sm:$0xff]
      %v2574 = vld [vmem:[#allocation3 + $0x158] sm:$0xff]
      %v2575 = vld [vmem:[#allocation3 + $0x160] sm:$0x3]
      %v2576 = vld [vmem:[#allocation3 + $0x168] sm:$0xff]
      %v2577 = vld [vmem:[#allocation3 + $0x170] sm:$0xff]
      %v2578 = vld [vmem:[#allocation3 + $0x178] sm:$0x3]
      %v2579 = vld [vmem:[#allocation3 + $0x180] sm:$0xff]
      %v2580 = vld [vmem:[#allocation3 + $0x188] sm:$0xff]
      %v2581 = vld [vmem:[#allocation3 + $0x190] sm:$0x3]
      %v2582 = vld [vmem:[#allocation3 + $0x198] sm:$0xff]
      %v2583 = vld [vmem:[#allocation3 + $0x1a0] sm:$0xff]
      %v2584 = vld [vmem:[#allocation3 + $0x1a8] sm:$0x3]
      %v2633 = vrot.slane %v2531, 1
      %v2634 = vrot.slane %v2532, 1
      %v2635 = vsel %vm909, %v2633, %v2634
      %v2636 = vrot.slane %v2533, 1
      %v2637 = vsel %vm909, %v2634, %v2636
      %v2638 = vrot.slane %v2534, 1
      %v2639 = vrot.slane %v2535, 1
      %v2640 = vsel %vm909, %v2638, %v2639
      %v2641 = vrot.slane %v2536, 1
      %v2642 = vsel %vm909, %v2639, %v2641
      %v2643 = vrot.slane %v2537, 1
      %v2644 = vrot.slane %v2538, 1
      %v2645 = vsel %vm909, %v2643, %v2644
      %v2646 = vrot.slane %v2539, 1
      %v2647 = vsel %vm909, %v2644, %v2646
      %v2648 = vrot.slane %v2540, 1
      %v2649 = vrot.slane %v2541, 1
      %v2650 = vsel %vm909, %v2648, %v2649
      %v2651 = vrot.slane %v2542, 1
      %v2652 = vsel %vm909, %v2649, %v2651
      %v2653 = vrot.slane %v2543, 1
      %v2654 = vrot.slane %v2544, 1
      %v2655 = vsel %vm909, %v2653, %v2654
      %v2656 = vrot.slane %v2545, 1
      %v2657 = vsel %vm909, %v2654, %v2656
      %v2658 = vrot.slane %v2546, 1
      %v2659 = vrot.slane %v2547, 1
      %v2660 = vsel %vm909, %v2658, %v2659
      %v2661 = vrot.slane %v2548, 1
      %v2662 = vsel %vm909, %v2659, %v2661
      %v2663 = vrot.slane %v2549, 1
      %v2664 = vrot.slane %v2550, 1
      %v2665 = vsel %vm909, %v2663, %v2664
      %v2666 = vrot.slane %v2551, 1
      %v2667 = vsel %vm909, %v2664, %v2666
      %v2668 = vrot.slane %v2552, 1
      %v2669 = vrot.slane %v2553, 1
      %v2670 = vsel %vm909, %v2668, %v2669
      %v2671 = vrot.slane %v2554, 1
      %v2672 = vsel %vm909, %v2669, %v2671
      %v2673 = vrot.slane %v2555, 1
      %v2674 = vrot.slane %v2556, 1
      %v2675 = vsel %vm909, %v2673, %v2674
      %v2676 = vrot.slane %v2557, 1
      %v2677 = vsel %vm909, %v2674, %v2676
      %v2678 = vrot.slane %v2558, 1
      %v2679 = vrot.slane %v2559, 1
      %v2680 = vsel %vm909, %v2678, %v2679
      %v2681 = vrot.slane %v2560, 1
      %v2682 = vsel %vm909, %v2679, %v2681
      %v2683 = vrot.slane %v2561, 1
      %v2684 = vrot.slane %v2562, 1
      %v2685 = vsel %vm909, %v2683, %v2684
      %v2686 = vrot.slane %v2563, 1
      %v2687 = vsel %vm909, %v2684, %v2686
      %v2688 = vrot.slane %v2564, 1
      %v2689 = vrot.slane %v2565, 1
      %v2690 = vsel %vm909, %v2688, %v2689
      %v2691 = vrot.slane %v2566, 1
      %v2692 = vsel %vm909, %v2689, %v2691
      %v2693 = vrot.slane %v2567, 1
      %v2694 = vrot.slane %v2568, 1
      %v2695 = vsel %vm909, %v2693, %v2694
      %v2696 = vrot.slane %v2569, 1
      %v2697 = vsel %vm909, %v2694, %v2696
      %v2698 = vrot.slane %v2570, 1
      %v2699 = vrot.slane %v2571, 1
      %v2700 = vsel %vm909, %v2698, %v2699
      %v2701 = vrot.slane %v2572, 1
      %v2702 = vsel %vm909, %v2699, %v2701
      %v2703 = vrot.slane %v2573, 1
      %v2704 = vrot.slane %v2574, 1
      %v2705 = vsel %vm909, %v2703, %v2704
      %v2706 = vrot.slane %v2575, 1
      %v2707 = vsel %vm909, %v2704, %v2706
      %v2708 = vrot.slane %v2576, 1
      %v2709 = vrot.slane %v2577, 1
      %v2710 = vsel %vm909, %v2708, %v2709
      %v2711 = vrot.slane %v2578, 1
      %v2712 = vsel %vm909, %v2709, %v2711
      %2713 = vrot.lane.b32.xlu0 %v2635, 64
      %v2714 = vpop.permute.xlu0 %2713
      %2715 = vrot.lane.b32.xlu0 %v2637, 64
      %v2716 = vpop.permute.xlu0 %2715
      %2717 = vrot.lane.b32.xlu0 %v2640, 64
      %v2718 = vpop.permute.xlu0 %2717
      %2719 = vrot.lane.b32.xlu0 %v2642, 64
      %v2720 = vpop.permute.xlu0 %2719
      %2721 = vrot.lane.b32.xlu0 %v2645, 64
      %v2722 = vpop.permute.xlu0 %2721
      %2723 = vrot.lane.b32.xlu0 %v2647, 64
      %v2724 = vpop.permute.xlu0 %2723
      %2725 = vrot.lane.b32.xlu0 %v2650, 64
      %v2726 = vpop.permute.xlu0 %2725
      %2727 = vrot.lane.b32.xlu0 %v2652, 64
      %v2728 = vpop.permute.xlu0 %2727
      %2729 = vrot.lane.b32.xlu0 %v2655, 64
      %v2730 = vpop.permute.xlu0 %2729
      %2731 = vrot.lane.b32.xlu0 %v2657, 64
      %v2732 = vpop.permute.xlu0 %2731
      %2733 = vrot.lane.b32.xlu0 %v2660, 64
      %v2734 = vpop.permute.xlu0 %2733
      %2735 = vrot.lane.b32.xlu0 %v2662, 64
      %v2736 = vpop.permute.xlu0 %2735
      %2737 = vrot.lane.b32.xlu0 %v2665, 64
      %v2738 = vpop.permute.xlu0 %2737
      %2739 = vrot.lane.b32.xlu0 %v2667, 64
      %v2740 = vpop.permute.xlu0 %2739
      %2741 = vrot.lane.b32.xlu0 %v2670, 64
      %v2742 = vpop.permute.xlu0 %2741
      %2743 = vrot.lane.b32.xlu0 %v2672, 64
      %v2744 = vpop.permute.xlu0 %2743
      %2745 = vrot.lane.b32.xlu0 %v2675, 64
      %v2746 = vpop.permute.xlu0 %2745
      %2747 = vrot.lane.b32.xlu0 %v2677, 64
      %v2748 = vpop.permute.xlu0 %2747
      %2749 = vrot.lane.b32.xlu0 %v2680, 64
      %v2750 = vpop.permute.xlu0 %2749
      %2751 = vrot.lane.b32.xlu0 %v2682, 64
      %v2752 = vpop.permute.xlu0 %2751
      %2753 = vrot.lane.b32.xlu0 %v2685, 64
      %v2754 = vpop.permute.xlu0 %2753
      %2755 = vrot.lane.b32.xlu0 %v2687, 64
      %v2756 = vpop.permute.xlu0 %2755
      %2757 = vrot.lane.b32.xlu0 %v2690, 64
      %v2758 = vpop.permute.xlu0 %2757
      %2759 = vrot.lane.b32.xlu0 %v2692, 64
      %v2760 = vpop.permute.xlu0 %2759
      %2761 = vrot.lane.b32.xlu0 %v2695, 64
      %v2762 = vpop.permute.xlu0 %2761
      %2763 = vrot.lane.b32.xlu0 %v2697, 64
      %v2764 = vpop.permute.xlu0 %2763
      %2765 = vrot.lane.b32.xlu0 %v2700, 64
      %v2766 = vpop.permute.xlu0 %2765
      %2767 = vrot.lane.b32.xlu0 %v2702, 64
      %v2768 = vpop.permute.xlu0 %2767
      %2769 = vrot.lane.b32.xlu0 %v2705, 64
      %v2770 = vpop.permute.xlu0 %2769
      %2771 = vrot.lane.b32.xlu0 %v2707, 64
      %v2772 = vpop.permute.xlu0 %2771
      %2773 = vrot.lane.b32.xlu0 %v2710, 64
      %v2774 = vpop.permute.xlu0 %2773
      %2775 = vrot.lane.b32.xlu0 %v2712, 64
      %v2776 = vpop.permute.xlu0 %2775
      %v2809 = vrot.slane %v2531, 2
      %v2810 = vrot.slane %v2532, 2
      %v2811 = vsel %vm1086, %v2809, %v2810
      %v2812 = vrot.slane %v2533, 2
      %v2813 = vsel %vm1086, %v2810, %v2812
      %v2814 = vrot.slane %v2534, 2
      %v2815 = vrot.slane %v2535, 2
      %v2816 = vsel %vm1086, %v2814, %v2815
      %v2817 = vrot.slane %v2536, 2
      %v2818 = vsel %vm1086, %v2815, %v2817
      %v2819 = vrot.slane %v2537, 2
      %v2820 = vrot.slane %v2538, 2
      %v2821 = vsel %vm1086, %v2819, %v2820
      %v2822 = vrot.slane %v2539, 2
      %v2823 = vsel %vm1086, %v2820, %v2822
      %v2824 = vrot.slane %v2540, 2
      %v2825 = vrot.slane %v2541, 2
      %v2826 = vsel %vm1086, %v2824, %v2825
      %v2827 = vrot.slane %v2542, 2
      %v2828 = vsel %vm1086, %v2825, %v2827
      %v2829 = vrot.slane %v2543, 2
      %v2830 = vrot.slane %v2544, 2
      %v2831 = vsel %vm1086, %v2829, %v2830
      %v2832 = vrot.slane %v2545, 2
      %v2833 = vsel %vm1086, %v2830, %v2832
      %v2834 = vrot.slane %v2546, 2
      %v2835 = vrot.slane %v2547, 2
      %v2836 = vsel %vm1086, %v2834, %v2835
      %v2837 = vrot.slane %v2548, 2
      %v2838 = vsel %vm1086, %v2835, %v2837
      %v2839 = vrot.slane %v2549, 2
      %v2840 = vrot.slane %v2550, 2
      %v2841 = vsel %vm1086, %v2839, %v2840
      %v2842 = vrot.slane %v2551, 2
      %v2843 = vsel %vm1086, %v2840, %v2842
      %v2844 = vrot.slane %v2552, 2
      %v2845 = vrot.slane %v2553, 2
      %v2846 = vsel %vm1086, %v2844, %v2845
      %v2847 = vrot.slane %v2554, 2
      %v2848 = vsel %vm1086, %v2845, %v2847
      %v2849 = vrot.slane %v2555, 2
      %v2850 = vrot.slane %v2556, 2
      %v2851 = vsel %vm1086, %v2849, %v2850
      %v2852 = vrot.slane %v2557, 2
      %v2853 = vsel %vm1086, %v2850, %v2852
      %v2854 = vrot.slane %v2558, 2
      %v2855 = vrot.slane %v2559, 2
      %v2856 = vsel %vm1086, %v2854, %v2855
      %v2857 = vrot.slane %v2560, 2
      %v2858 = vsel %vm1086, %v2855, %v2857
      %v2859 = vrot.slane %v2561, 2
      %v2860 = vrot.slane %v2562, 2
      %v2861 = vsel %vm1086, %v2859, %v2860
      %v2862 = vrot.slane %v2563, 2
      %v2863 = vsel %vm1086, %v2860, %v2862
      %v2864 = vrot.slane %v2564, 2
      %v2865 = vrot.slane %v2565, 2
      %v2866 = vsel %vm1086, %v2864, %v2865
      %v2867 = vrot.slane %v2566, 2
      %v2868 = vsel %vm1086, %v2865, %v2867
      %v2869 = vrot.slane %v2567, 2
      %v2870 = vrot.slane %v2568, 2
      %v2871 = vsel %vm1086, %v2869, %v2870
      %v2872 = vrot.slane %v2569, 2
      %v2873 = vsel %vm1086, %v2870, %v2872
      %v2874 = vrot.slane %v2570, 2
      %v2875 = vrot.slane %v2571, 2
      %v2876 = vsel %vm1086, %v2874, %v2875
      %v2877 = vrot.slane %v2572, 2
      %v2878 = vsel %vm1086, %v2875, %v2877
      %v2879 = vrot.slane %v2573, 2
      %v2880 = vrot.slane %v2574, 2
      %v2881 = vsel %vm1086, %v2879, %v2880
      %v2882 = vrot.slane %v2575, 2
      %v2883 = vsel %vm1086, %v2880, %v2882
      %v2884 = vrot.slane %v2576, 2
      %v2885 = vrot.slane %v2577, 2
      %v2886 = vsel %vm1086, %v2884, %v2885
      %v2887 = vrot.slane %v2578, 2
      %v2888 = vsel %vm1086, %v2885, %v2887
      %v2889 = vsel %vm428, %v2531, %v2714
      %v2890 = vsel %vm428, %v2532, %v2716
      %v2891 = vsel %vm428, %v2534, %v2718
      %v2892 = vsel %vm428, %v2535, %v2720
      %v2893 = vsel %vm428, %v2537, %v2722
      %v2894 = vsel %vm428, %v2538, %v2724
      %v2895 = vsel %vm428, %v2540, %v2726
      %v2896 = vsel %vm428, %v2541, %v2728
      %v2897 = vsel %vm428, %v2543, %v2730
      %v2898 = vsel %vm428, %v2544, %v2732
      %v2899 = vsel %vm428, %v2546, %v2734
      %v2900 = vsel %vm428, %v2547, %v2736
      %v2901 = vsel %vm428, %v2549, %v2738
      %v2902 = vsel %vm428, %v2550, %v2740
      %v2903 = vsel %vm428, %v2552, %v2742
      %v2904 = vsel %vm428, %v2553, %v2744
      %v2905 = vsel %vm428, %v2555, %v2746
      %v2906 = vsel %vm428, %v2556, %v2748
      %v2907 = vsel %vm428, %v2558, %v2750
      %v2908 = vsel %vm428, %v2559, %v2752
      %v2909 = vsel %vm428, %v2561, %v2754
      %v2910 = vsel %vm428, %v2562, %v2756
      %v2911 = vsel %vm428, %v2564, %v2758
      %v2912 = vsel %vm428, %v2565, %v2760
      %v2913 = vsel %vm428, %v2567, %v2762
      %v2914 = vsel %vm428, %v2568, %v2764
      %v2915 = vsel %vm428, %v2570, %v2766
      %v2916 = vsel %vm428, %v2571, %v2768
      %v2917 = vsel %vm428, %v2573, %v2770
      %v2918 = vsel %vm428, %v2574, %v2772
      %v2919 = vsel %vm428, %v2576, %v2774
      %v2920 = vsel %vm428, %v2577, %v2776
      %v2921 = vld [vmem:[%s4] sm:$0xff]
      %v2922 = vld [vmem:[%s4 + $0x8] sm:$0xff]
      %v2923 = vld [vmem:[%s4 + $0x10] sm:$0xff]
      %v2924 = vld [vmem:[%s4 + $0x18] sm:$0xff]
      %v2925 = vld [vmem:[%s4 + $0x20] sm:$0xff]
      %v2926 = vld [vmem:[%s4 + $0x28] sm:$0xff]
      %v2927 = vld [vmem:[%s4 + $0x30] sm:$0xff]
      %v2928 = vld [vmem:[%s4 + $0x38] sm:$0xff]
      %v2929 = vld [vmem:[%s4 + $0x40] sm:$0xff]
      %v2930 = vld [vmem:[%s4 + $0x48] sm:$0xff]
      %v2931 = vld [vmem:[%s4 + $0x50] sm:$0xff]
      %v2932 = vld [vmem:[%s4 + $0x58] sm:$0xff]
      %v2933 = vld [vmem:[%s4 + $0x60] sm:$0xff]
      %v2934 = vld [vmem:[%s4 + $0x68] sm:$0xff]
      %v2935 = vld [vmem:[%s4 + $0x70] sm:$0xff]
      %v2936 = vld [vmem:[%s4 + $0x78] sm:$0xff]
      %v2937 = vld [vmem:[%s4 + $0x80] sm:$0xff]
      %v2938 = vld [vmem:[%s4 + $0x88] sm:$0xff]
      %v2939 = vld [vmem:[%s4 + $0x90] sm:$0xff]
      %v2940 = vld [vmem:[%s4 + $0x98] sm:$0xff]
      %v2941 = vld [vmem:[%s4 + $0xa0] sm:$0xff]
      %v2942 = vld [vmem:[%s4 + $0xa8] sm:$0xff]
      %v2943 = vld [vmem:[%s4 + $0xb0] sm:$0xff]
      %v2944 = vld [vmem:[%s4 + $0xb8] sm:$0xff]
      %v2948 = vrot.slane %v2579, 1
      %v2949 = vrot.slane %v2580, 1
      %v2950 = vsel %vm909, %v2948, %v2949
      %v2951 = vrot.slane %v2581, 1
      %v2952 = vsel %vm909, %v2949, %v2951
      %2953 = vrot.lane.b32.xlu0 %v2950, 64
      %v2954 = vpop.permute.xlu0 %2953
      %2955 = vrot.lane.b32.xlu0 %v2952, 64
      %v2956 = vpop.permute.xlu0 %2955
      %v2959 = vrot.slane %v2579, 2
      %v2960 = vrot.slane %v2580, 2
      %v2961 = vsel %vm1086, %v2959, %v2960
      %v2962 = vrot.slane %v2581, 2
      %v2963 = vsel %vm1086, %v2960, %v2962
      %v2964 = vsel %vm428, %v2579, %v2954
      %v2965 = vsel %vm428, %v2580, %v2956
      %s2966 = scalar_lea.vmem %s4, 192
      %v2967 = vld [vmem:[%s2966] sm:$0xff]
      %v2968 = vld [vmem:[%s2966 + $0x8] sm:$0xff]
      %v2969 = vld [vmem:[%s2966 + $0x10] sm:$0xff]
      %v2970 = vld [vmem:[%s2966 + $0x18] sm:$0xff]
      %v2971 = vld [vmem:[%s2966 + $0x20] sm:$0xff]
      %v2972 = vld [vmem:[%s2966 + $0x28] sm:$0xff]
      %v2973 = vld [vmem:[%s2966 + $0x30] sm:$0xff]
      %v2974 = vld [vmem:[%s2966 + $0x38] sm:$0xff]
      %v2975 = vld [vmem:[%s2966 + $0x40] sm:$0xff]
      %v2976 = vld [vmem:[%s2966 + $0x48] sm:$0xff]
      %v2977 = vld [vmem:[%s2966 + $0x50] sm:$0xff]
      %v2978 = vld [vmem:[%s2966 + $0x58] sm:$0xff]
      %v2979 = vld [vmem:[%s2966 + $0x60] sm:$0xff]
      %v2980 = vld [vmem:[%s2966 + $0x68] sm:$0xff]
      %v2981 = vld [vmem:[%s2966 + $0x70] sm:$0xff]
      %v2982 = vld [vmem:[%s2966 + $0x78] sm:$0xff]
      %v2983 = vld [vmem:[%s2966 + $0x80] sm:$0xff]
      %v2984 = vld [vmem:[%s2966 + $0x88] sm:$0xff]
      %v2985 = vld [vmem:[%s2966 + $0x90] sm:$0xff]
      %v2986 = vld [vmem:[%s2966 + $0x98] sm:$0xff]
      %v2987 = vld [vmem:[%s2966 + $0xa0] sm:$0xff]
      %v2988 = vld [vmem:[%s2966 + $0xa8] sm:$0xff]
      %v2989 = vld [vmem:[%s2966 + $0xb0] sm:$0xff]
      %v2990 = vld [vmem:[%s2966 + $0xb8] sm:$0xff]
      %v2991 = vsel %vm428, %v2816, 0
      %v2993 = vsel %vm428, %v2818, 0
      %v2995 = vsel %vm428, %v2821, 0
      %v2997 = vsel %vm428, %v2823, 0
      %v2999 = vsel %vm428, %v2826, 0
      %v3001 = vsel %vm428, %v2828, 0
      %v3003 = vsel %vm428, %v2831, 0
      %v3005 = vsel %vm428, %v2833, 0
      %v3007 = vsel %vm428, %v2836, 0
      %v3009 = vsel %vm428, %v2838, 0
      %v3011 = vsel %vm428, %v2841, 0
      %v3013 = vsel %vm428, %v2843, 0
      %v3015 = vsel %vm428, %v2846, 0
      %v3017 = vsel %vm428, %v2848, 0
      %v3019 = vsel %vm428, %v2851, 0
      %v3021 = vsel %vm428, %v2853, 0
      %v3023 = vsel %vm428, %v2856, 0
      %v3025 = vsel %vm428, %v2858, 0
      %v3027 = vsel %vm428, %v2861, 0
      %v3029 = vsel %vm428, %v2863, 0
      %v3031 = vsel %vm428, %v2866, 0
      %v3033 = vsel %vm428, %v2868, 0
      %v3035 = vsel %vm428, %v2871, 0
      %v3037 = vsel %vm428, %v2873, 0
      %v3039 = vsel %vm428, %v2876, 0
      %v3041 = vsel %vm428, %v2878, 0
      %v3043 = vsel %vm428, %v2881, 0
      %v3045 = vsel %vm428, %v2883, 0
      %v3047 = vsel %vm428, %v2886, 0
      %v3049 = vsel %vm428, %v2888, 0
      %v3051 = vsel %vm428, %v2961, 0
      %v3053 = vsel %vm428, %v2963, 0
      %3055 = vmatprep.subr.mxu0 0.0
      %3056 = vmatpush1.msra.mxu0 %v2967
      %3057 = vmatprep.subr.mxu0 0.0
      %3058 = vmatpush1.msra.mxu0 %v2968
      %3059 = vmatprep.subr.mxu0 0.0
      %3060 = vmatpush1.msra.mxu0 %v2969
      %3061 = vmatprep.subr.mxu0 0.0
      %3062 = vmatpush1.msra.mxu0 %v2970
      %3063 = vmatprep.subr.mxu0 0.0
      %3064 = vmatpush1.msra.mxu0 %v2971
      %3065 = vmatprep.subr.mxu0 0.0
      %3066 = vmatpush1.msra.mxu0 %v2972
      %3067 = vmatprep.subr.mxu0 0.0
      %3068 = vmatpush1.msra.mxu0 %v2973
      %3069 = vmatprep.subr.mxu0 0.0
      %3070 = vmatpush1.msra.mxu0 %v2974
      %3071 = vmatprep.subr.mxu0 0.0
      %3072 = vmatpush1.msra.mxu0 %v2975
      %3073 = vmatprep.subr.mxu0 0.0
      %3074 = vmatpush1.msra.mxu0 %v2976
      %3075 = vmatprep.subr.mxu0 0.0
      %3076 = vmatpush1.msra.mxu0 %v2977
      %3077 = vmatprep.subr.mxu0 0.0
      %3078 = vmatpush1.msra.mxu0 %v2978
      %3079 = vmatprep.subr.mxu0 0.0
      %3080 = vmatpush1.msra.mxu0 %v2979
      %3081 = vmatprep.subr.mxu0 0.0
      %3082 = vmatpush1.msra.mxu0 %v2980
      %3083 = vmatprep.subr.mxu0 0.0
      %3084 = vmatpush1.msra.mxu0 %v2981
      %3085 = vmatprep.subr.mxu0 0.0
      %3086 = vmatpush1.msra.mxu0 %v2982
      %3087 = vmatprep.subr.mxu0 0.0
      %3088 = vmatpush1.msra.mxu0 %v2983
      %3089 = vmatprep.subr.mxu0 0.0
      %3090 = vmatpush1.msra.mxu0 %v2984
      %3091 = vmatprep.subr.mxu0 0.0
      %3092 = vmatpush1.msra.mxu0 %v2985
      %3093 = vmatprep.subr.mxu0 0.0
      %3094 = vmatpush1.msra.mxu0 %v2986
      %3095 = vmatprep.subr.mxu0 0.0
      %3096 = vmatpush1.msra.mxu0 %v2987
      %3097 = vmatprep.subr.mxu0 0.0
      %3098 = vmatpush1.msra.mxu0 %v2988
      %3099 = vmatprep.subr.mxu0 0.0
      %3100 = vmatpush1.msra.mxu0 %v2989
      %3101 = vmatprep.subr.mxu0 0.0
      %3102 = vmatpush1.msra.mxu0 %v2990
      %3103 = vmatprep.subr.mxu0 0.0
      %3104 = vmatpush1.msra.mxu0 0.0
      %3105 = vmatprep.subr.mxu0 0.0
      %3106 = vmatpush1.msra.mxu0 0.0
      %3107 = vmatprep.subr.mxu0 0.0
      %3108 = vmatpush1.msra.mxu0 0.0
      %3109 = vmatprep.subr.mxu0 0.0
      %3110 = vmatpush1.msra.mxu0 0.0
      %3111 = vmatprep.subr.mxu0 0.0
      %3112 = vmatpush1.msra.mxu0 0.0
      %3113 = vmatprep.subr.mxu0 0.0
      %3114 = vmatpush1.msra.mxu0 0.0
      %3115 = vmatprep.subr.mxu0 0.0
      %3116 = vmatpush1.msra.mxu0 0.0
      %3117 = vmatprep.subr.mxu0 0.0
      %3118 = vmatpush1.msra.mxu0 0.0
      %3119 = vmatprep.mubr.f32.mxu0 %v2991
      %3120 = vmatmul.mubr.f32.gmra.mrb[0].mxu0 %v2891
      %v3121 = vpop.f32.mrb[0].mxu0
      %v3122 = vadd.f32 0.0, %v3121
      %v3123 = vpop.f32.mrb[0].mxu0
      %3124 = vmatprep.mubr.f32.mxu0 %v2993
      %3125 = vmatmul.mubr.f32.gmra.mrb[0].mxu0 %v2892
      %v3126 = vpop.f32.mrb[0].mxu0
      %v3127 = vadd.f32 0.0, %v3126
      %v3128 = vpop.f32.mrb[0].mxu0
      %3129 = vmatprep.mubr.f32.mxu0 %v2995
      %3130 = vmatmul.mubr.f32.gmra.mrb[0].mxu0 %v2893
      %v3131 = vpop.f32.mrb[0].mxu0
      %v3132 = vadd.f32 0.0, %v3131
      %v3133 = vpop.f32.mrb[0].mxu0
      %3134 = vmatprep.mubr.f32.mxu0 %v2997
      %3135 = vmatmul.mubr.f32.gmra.mrb[0].mxu0 %v2894
      %v3136 = vpop.f32.mrb[0].mxu0
      %v3137 = vadd.f32 0.0, %v3136
      %v3138 = vpop.f32.mrb[0].mxu0
      %3139 = vmatprep.mubr.f32.mxu0 %v2999
      %3140 = vmatmul.mubr.f32.gmra.mrb[0].mxu0 %v2895
      %v3141 = vpop.f32.mrb[0].mxu0
      %v3142 = vadd.f32 0.0, %v3141
      %v3143 = vpop.f32.mrb[0].mxu0
      %3144 = vmatprep.mubr.f32.mxu0 %v3001
      %3145 = vmatmul.mubr.f32.gmra.mrb[0].mxu0 %v2896
      %v3146 = vpop.f32.mrb[0].mxu0
      %v3147 = vadd.f32 0.0, %v3146
      %v3148 = vpop.f32.mrb[0].mxu0
      %3149 = vmatprep.mubr.f32.mxu0 %v3003
      %3150 = vmatmul.mubr.f32.gmra.mrb[0].mxu0 %v2897
      %v3151 = vpop.f32.mrb[0].mxu0
      %v3152 = vadd.f32 0.0, %v3151
      %v3153 = vpop.f32.mrb[0].mxu0
      %3154 = vmatprep.mubr.f32.mxu0 %v3005
      %3155 = vmatmul.mubr.f32.gmra.mrb[0].mxu0 %v2898
      %v3156 = vpop.f32.mrb[0].mxu0
      %v3157 = vadd.f32 0.0, %v3156
      %v3158 = vpop.f32.mrb[0].mxu0
      %3159 = vmatprep.mubr.f32.mxu0 %v3007
      %3160 = vmatmul.mubr.f32.gmra.mrb[0].mxu0 %v2899
      %v3161 = vpop.f32.mrb[0].mxu0
      %v3162 = vadd.f32 0.0, %v3161
      %v3163 = vpop.f32.mrb[0].mxu0
      %3164 = vmatprep.mubr.f32.mxu0 %v3009
      %3165 = vmatmul.mubr.f32.gmra.mrb[0].mxu0 %v2900
      %v3166 = vpop.f32.mrb[0].mxu0
      %v3167 = vadd.f32 0.0, %v3166
      %v3168 = vpop.f32.mrb[0].mxu0
      %3169 = vmatprep.mubr.f32.mxu0 %v3011
      %3170 = vmatmul.mubr.f32.gmra.mrb[0].mxu0 %v2901
      %v3171 = vpop.f32.mrb[0].mxu0
      %v3172 = vadd.f32 0.0, %v3171
      %v3173 = vpop.f32.mrb[0].mxu0
      %3174 = vmatprep.mubr.f32.mxu0 %v3013
      %3175 = vmatmul.mubr.f32.gmra.mrb[0].mxu0 %v2902
      %v3176 = vpop.f32.mrb[0].mxu0
      %v3177 = vadd.f32 0.0, %v3176
      %v3178 = vpop.f32.mrb[0].mxu0
      %3179 = vmatprep.mubr.f32.mxu0 %v3015
      %3180 = vmatmul.mubr.f32.gmra.mrb[0].mxu0 %v2903
      %v3181 = vpop.f32.mrb[0].mxu0
      %v3182 = vadd.f32 0.0, %v3181
      %v3183 = vpop.f32.mrb[0].mxu0
      %3184 = vmatprep.mubr.f32.mxu0 %v3017
      %3185 = vmatmul.mubr.f32.gmra.mrb[0].mxu0 %v2904
      %v3186 = vpop.f32.mrb[0].mxu0
      %v3187 = vadd.f32 0.0, %v3186
      %v3188 = vpop.f32.mrb[0].mxu0
      %3189 = vmatprep.mubr.f32.mxu0 %v3019
      %3190 = vmatmul.mubr.f32.gmra.mrb[0].mxu0 %v2905
      %v3191 = vpop.f32.mrb[0].mxu0
      %v3192 = vadd.f32 0.0, %v3191
      %v3193 = vpop.f32.mrb[0].mxu0
      %3194 = vmatprep.mubr.f32.mxu0 %v3021
      %3195 = vmatmul.mubr.f32.gmra.mrb[0].mxu0 %v2906
      %v3196 = vpop.f32.mrb[0].mxu0
      %v3197 = vadd.f32 0.0, %v3196
      %v3198 = vpop.f32.mrb[0].mxu0
      %3199 = vmatprep.mubr.f32.mxu0 %v3023
      %3200 = vmatmul.mubr.f32.gmra.mrb[0].mxu0 %v2907
      %v3201 = vpop.f32.mrb[0].mxu0
      %v3202 = vadd.f32 0.0, %v3201
      %v3203 = vpop.f32.mrb[0].mxu0
      %3204 = vmatprep.mubr.f32.mxu0 %v3025
      %3205 = vmatmul.mubr.f32.gmra.mrb[0].mxu0 %v2908
      %v3206 = vpop.f32.mrb[0].mxu0
      %v3207 = vadd.f32 0.0, %v3206
      %v3208 = vpop.f32.mrb[0].mxu0
      %3209 = vmatprep.mubr.f32.mxu0 %v3027
      %3210 = vmatmul.mubr.f32.gmra.mrb[0].mxu0 %v2909
      %v3211 = vpop.f32.mrb[0].mxu0
      %v3212 = vadd.f32 0.0, %v3211
      %v3213 = vpop.f32.mrb[0].mxu0
      %3214 = vmatprep.mubr.f32.mxu0 %v3029
      %3215 = vmatmul.mubr.f32.gmra.mrb[0].mxu0 %v2910
      %v3216 = vpop.f32.mrb[0].mxu0
      %v3217 = vadd.f32 0.0, %v3216
      %v3218 = vpop.f32.mrb[0].mxu0
      %3219 = vmatprep.mubr.f32.mxu0 %v3031
      %3220 = vmatmul.mubr.f32.gmra.mrb[0].mxu0 %v2911
      %v3221 = vpop.f32.mrb[0].mxu0
      %v3222 = vadd.f32 0.0, %v3221
      %v3223 = vpop.f32.mrb[0].mxu0
      %3224 = vmatprep.mubr.f32.mxu0 %v3033
      %3225 = vmatmul.mubr.f32.gmra.mrb[0].mxu0 %v2912
      %v3226 = vpop.f32.mrb[0].mxu0
      %v3227 = vadd.f32 0.0, %v3226
      %v3228 = vpop.f32.mrb[0].mxu0
      %3229 = vmatprep.mubr.f32.mxu0 %v3035
      %3230 = vmatmul.mubr.f32.gmra.mrb[0].mxu0 %v2913
      %v3231 = vpop.f32.mrb[0].mxu0
      %v3232 = vadd.f32 0.0, %v3231
      %v3233 = vpop.f32.mrb[0].mxu0
      %3234 = vmatprep.mubr.f32.mxu0 %v3037
      %3235 = vmatmul.mubr.f32.gmra.mrb[0].mxu0 %v2914
      %v3236 = vpop.f32.mrb[0].mxu0
      %v3237 = vadd.f32 0.0, %v3236
      %v3238 = vpop.f32.mrb[0].mxu0
      %3239 = vmatprep.mubr.f32.mxu0 %v3039
      %3240 = vmatmul.mubr.f32.gmra.mrb[0].mxu0 %v2915
      %v3241 = vpop.f32.mrb[0].mxu0
      %v3242 = vadd.f32 0.0, %v3241
      %v3243 = vpop.f32.mrb[0].mxu0
      %3244 = vmatprep.mubr.f32.mxu0 %v3041
      %3245 = vmatmul.mubr.f32.gmra.mrb[0].mxu0 %v2916
      %v3246 = vpop.f32.mrb[0].mxu0
      %v3247 = vadd.f32 0.0, %v3246
      %v3248 = vpop.f32.mrb[0].mxu0
      %3249 = vmatprep.mubr.f32.mxu0 %v3043
      %3250 = vmatmul.mubr.f32.gmra.mrb[0].mxu0 %v2917
      %v3251 = vpop.f32.mrb[0].mxu0
      %v3252 = vadd.f32 0.0, %v3251
      %v3253 = vpop.f32.mrb[0].mxu0
      %3254 = vmatprep.mubr.f32.mxu0 %v3045
      %3255 = vmatmul.mubr.f32.gmra.mrb[0].mxu0 %v2918
      %v3256 = vpop.f32.mrb[0].mxu0
      %v3257 = vadd.f32 0.0, %v3256
      %v3258 = vpop.f32.mrb[0].mxu0
      %3259 = vmatprep.mubr.f32.mxu0 %v3047
      %3260 = vmatmul.mubr.f32.gmra.mrb[0].mxu0 %v2919
      %v3261 = vpop.f32.mrb[0].mxu0
      %v3262 = vadd.f32 0.0, %v3261
      %v3263 = vpop.f32.mrb[0].mxu0
      %3264 = vmatprep.mubr.f32.mxu0 %v3049
      %3265 = vmatmul.mubr.f32.gmra.mrb[0].mxu0 %v2920
      %v3266 = vpop.f32.mrb[0].mxu0
      %v3267 = vadd.f32 0.0, %v3266
      %v3268 = vpop.f32.mrb[0].mxu0
      %3269 = vmatprep.mubr.f32.mxu0 %v3051
      %3270 = vmatmul.mubr.f32.gmra.mrb[0].mxu0 %v2964
      %v3271 = vpop.f32.mrb[0].mxu0
      %v3272 = vadd.f32 0.0, %v3271
      %v3273 = vpop.f32.mrb[0].mxu0
      %3274 = vmatprep.mubr.f32.mxu0 %v3053
      %3275 = vmatmul.mubr.f32.gmra.mrb[0].mxu0 %v2965
      %v3276 = vpop.f32.mrb[0].mxu0
      %v3277 = vadd.f32 0.0, %v3276
      %v3278 = vpop.f32.mrb[0].mxu0
      %3279 = vdwg.mxu0
      %v3280 = vsel %vm428, %v2811, 0
      %v3282 = vsel %vm428, %v2813, 0
      %3284 = vmatprep.subr.mxu0 0.0
      %3285 = vmatpush1.msra.mxu0 %v2921
      %3286 = vmatprep.subr.mxu0 0.0
      %3287 = vmatpush1.msra.mxu0 %v2922
      %3288 = vmatprep.subr.mxu0 0.0
      %3289 = vmatpush1.msra.mxu0 %v2923
      %3290 = vmatprep.subr.mxu0 0.0
      %3291 = vmatpush1.msra.mxu0 %v2924
      %3292 = vmatprep.subr.mxu0 0.0
      %3293 = vmatpush1.msra.mxu0 %v2925
      %3294 = vmatprep.subr.mxu0 0.0
      %3295 = vmatpush1.msra.mxu0 %v2926
      %3296 = vmatprep.subr.mxu0 0.0
      %3297 = vmatpush1.msra.mxu0 %v2927
      %3298 = vmatprep.subr.mxu0 0.0
      %3299 = vmatpush1.msra.mxu0 %v2928
      %3300 = vmatprep.subr.mxu0 0.0
      %3301 = vmatpush1.msra.mxu0 %v2929
      %3302 = vmatprep.subr.mxu0 0.0
      %3303 = vmatpush1.msra.mxu0 %v2930
      %3304 = vmatprep.subr.mxu0 0.0
      %3305 = vmatpush1.msra.mxu0 %v2931
      %3306 = vmatprep.subr.mxu0 0.0
      %3307 = vmatpush1.msra.mxu0 %v2932
      %3308 = vmatprep.subr.mxu0 0.0
      %3309 = vmatpush1.msra.mxu0 %v2933
      %3310 = vmatprep.subr.mxu0 0.0
      %3311 = vmatpush1.msra.mxu0 %v2934
      %3312 = vmatprep.subr.mxu0 0.0
      %3313 = vmatpush1.msra.mxu0 %v2935
      %3314 = vmatprep.subr.mxu0 0.0
      %3315 = vmatpush1.msra.mxu0 %v2936
      %3316 = vmatprep.subr.mxu0 0.0
      %3317 = vmatpush1.msra.mxu0 %v2937
      %3318 = vmatprep.subr.mxu0 0.0
      %3319 = vmatpush1.msra.mxu0 %v2938
      %3320 = vmatprep.subr.mxu0 0.0
      %3321 = vmatpush1.msra.mxu0 %v2939
      %3322 = vmatprep.subr.mxu0 0.0
      %3323 = vmatpush1.msra.mxu0 %v2940
      %3324 = vmatprep.subr.mxu0 0.0
      %3325 = vmatpush1.msra.mxu0 %v2941
      %3326 = vmatprep.subr.mxu0 0.0
      %3327 = vmatpush1.msra.mxu0 %v2942
      %3328 = vmatprep.subr.mxu0 0.0
      %3329 = vmatpush1.msra.mxu0 %v2943
      %3330 = vmatprep.subr.mxu0 0.0
      %3331 = vmatpush1.msra.mxu0 %v2944
      %3332 = vmatprep.subr.mxu0 0.0
      %3333 = vmatpush1.msra.mxu0 0.0
      %3334 = vmatprep.subr.mxu0 0.0
      %3335 = vmatpush1.msra.mxu0 0.0
      %3336 = vmatprep.subr.mxu0 0.0
      %3337 = vmatpush1.msra.mxu0 0.0
      %3338 = vmatprep.subr.mxu0 0.0
      %3339 = vmatpush1.msra.mxu0 0.0
      %3340 = vmatprep.subr.mxu0 0.0
      %3341 = vmatpush1.msra.mxu0 0.0
      %3342 = vmatprep.subr.mxu0 0.0
      %3343 = vmatpush1.msra.mxu0 0.0
      %3344 = vmatprep.subr.mxu0 0.0
      %3345 = vmatpush1.msra.mxu0 0.0
      %3346 = vmatprep.subr.mxu0 0.0
      %3347 = vmatpush1.msra.mxu0 0.0
      %3348 = vmatprep.mubr.f32.mxu0 %v3280
      %3349 = vmatmul.mubr.f32.gmra.mrb[0].mxu0 %v2889
      %v3350 = vpop.f32.mrb[0].mxu0
      %v3351 = vadd.f32 %v3122, %v3350
      %v3352 = vpop.f32.mrb[0].mxu0
      %3353 = vmatprep.mubr.f32.mxu0 %v3282
      %3354 = vmatmul.mubr.f32.gmra.mrb[0].mxu0 %v2890
      %v3355 = vpop.f32.mrb[0].mxu0
      %v3356 = vadd.f32 %v3127, %v3355
      %v3357 = vpop.f32.mrb[0].mxu0
      %3358 = vmatprep.mubr.f32.mxu0 %v2991
      %3359 = vmatmul.mubr.f32.gmra.mrb[0].mxu0 %v2891
      %v3360 = vpop.f32.mrb[0].mxu0
      %v3361 = vadd.f32 %v3132, %v3360
      %v3362 = vpop.f32.mrb[0].mxu0
      %3363 = vmatprep.mubr.f32.mxu0 %v2993
      %3364 = vmatmul.mubr.f32.gmra.mrb[0].mxu0 %v2892
      %v3365 = vpop.f32.mrb[0].mxu0
      %v3366 = vadd.f32 %v3137, %v3365
      %v3367 = vpop.f32.mrb[0].mxu0
      %3368 = vmatprep.mubr.f32.mxu0 %v2995
      %3369 = vmatmul.mubr.f32.gmra.mrb[0].mxu0 %v2893
      %v3370 = vpop.f32.mrb[0].mxu0
      %v3371 = vadd.f32 %v3142, %v3370
      %v3372 = vpop.f32.mrb[0].mxu0
      %3373 = vmatprep.mubr.f32.mxu0 %v2997
      %3374 = vmatmul.mubr.f32.gmra.mrb[0].mxu0 %v2894
      %v3375 = vpop.f32.mrb[0].mxu0
      %v3376 = vadd.f32 %v3147, %v3375
      %v3377 = vpop.f32.mrb[0].mxu0
      %3378 = vmatprep.mubr.f32.mxu0 %v2999
      %3379 = vmatmul.mubr.f32.gmra.mrb[0].mxu0 %v2895
      %v3380 = vpop.f32.mrb[0].mxu0
      %v3381 = vadd.f32 %v3152, %v3380
      %v3382 = vpop.f32.mrb[0].mxu0
      %3383 = vmatprep.mubr.f32.mxu0 %v3001
      %3384 = vmatmul.mubr.f32.gmra.mrb[0].mxu0 %v2896
      %v3385 = vpop.f32.mrb[0].mxu0
      %v3386 = vadd.f32 %v3157, %v3385
      %v3387 = vpop.f32.mrb[0].mxu0
      %3388 = vmatprep.mubr.f32.mxu0 %v3003
      %3389 = vmatmul.mubr.f32.gmra.mrb[0].mxu0 %v2897
      %v3390 = vpop.f32.mrb[0].mxu0
      %v3391 = vadd.f32 %v3162, %v3390
      %v3392 = vpop.f32.mrb[0].mxu0
      %3393 = vmatprep.mubr.f32.mxu0 %v3005
      %3394 = vmatmul.mubr.f32.gmra.mrb[0].mxu0 %v2898
      %v3395 = vpop.f32.mrb[0].mxu0
      %v3396 = vadd.f32 %v3167, %v3395
      %v3397 = vpop.f32.mrb[0].mxu0
      %3398 = vmatprep.mubr.f32.mxu0 %v3007
      %3399 = vmatmul.mubr.f32.gmra.mrb[0].mxu0 %v2899
      %v3400 = vpop.f32.mrb[0].mxu0
      %v3401 = vadd.f32 %v3172, %v3400
      %v3402 = vpop.f32.mrb[0].mxu0
      %3403 = vmatprep.mubr.f32.mxu0 %v3009
      %3404 = vmatmul.mubr.f32.gmra.mrb[0].mxu0 %v2900
      %v3405 = vpop.f32.mrb[0].mxu0
      %v3406 = vadd.f32 %v3177, %v3405
      %v3407 = vpop.f32.mrb[0].mxu0
      %3408 = vmatprep.mubr.f32.mxu0 %v3011
      %3409 = vmatmul.mubr.f32.gmra.mrb[0].mxu0 %v2901
      %v3410 = vpop.f32.mrb[0].mxu0
      %v3411 = vadd.f32 %v3182, %v3410
      %v3412 = vpop.f32.mrb[0].mxu0
      %3413 = vmatprep.mubr.f32.mxu0 %v3013
      %3414 = vmatmul.mubr.f32.gmra.mrb[0].mxu0 %v2902
      %v3415 = vpop.f32.mrb[0].mxu0
      %v3416 = vadd.f32 %v3187, %v3415
      %v3417 = vpop.f32.mrb[0].mxu0
      %3418 = vmatprep.mubr.f32.mxu0 %v3015
      %3419 = vmatmul.mubr.f32.gmra.mrb[0].mxu0 %v2903
      %v3420 = vpop.f32.mrb[0].mxu0
      %v3421 = vadd.f32 %v3192, %v3420
      %v3422 = vpop.f32.mrb[0].mxu0
      %3423 = vmatprep.mubr.f32.mxu0 %v3017
      %3424 = vmatmul.mubr.f32.gmra.mrb[0].mxu0 %v2904
      %v3425 = vpop.f32.mrb[0].mxu0
      %v3426 = vadd.f32 %v3197, %v3425
      %v3427 = vpop.f32.mrb[0].mxu0
      %3428 = vmatprep.mubr.f32.mxu0 %v3019
      %3429 = vmatmul.mubr.f32.gmra.mrb[0].mxu0 %v2905
      %v3430 = vpop.f32.mrb[0].mxu0
      %v3431 = vadd.f32 %v3202, %v3430
      %v3432 = vpop.f32.mrb[0].mxu0
      %3433 = vmatprep.mubr.f32.mxu0 %v3021
      %3434 = vmatmul.mubr.f32.gmra.mrb[0].mxu0 %v2906
      %v3435 = vpop.f32.mrb[0].mxu0
      %v3436 = vadd.f32 %v3207, %v3435
      %v3437 = vpop.f32.mrb[0].mxu0
      %3438 = vmatprep.mubr.f32.mxu0 %v3023
      %3439 = vmatmul.mubr.f32.gmra.mrb[0].mxu0 %v2907
      %v3440 = vpop.f32.mrb[0].mxu0
      %v3441 = vadd.f32 %v3212, %v3440
      %v3442 = vpop.f32.mrb[0].mxu0
      %3443 = vmatprep.mubr.f32.mxu0 %v3025
      %3444 = vmatmul.mubr.f32.gmra.mrb[0].mxu0 %v2908
      %v3445 = vpop.f32.mrb[0].mxu0
      %v3446 = vadd.f32 %v3217, %v3445
      %v3447 = vpop.f32.mrb[0].mxu0
      %3448 = vmatprep.mubr.f32.mxu0 %v3027
      %3449 = vmatmul.mubr.f32.gmra.mrb[0].mxu0 %v2909
      %v3450 = vpop.f32.mrb[0].mxu0
      %v3451 = vadd.f32 %v3222, %v3450
      %v3452 = vpop.f32.mrb[0].mxu0
      %3453 = vmatprep.mubr.f32.mxu0 %v3029
      %3454 = vmatmul.mubr.f32.gmra.mrb[0].mxu0 %v2910
      %v3455 = vpop.f32.mrb[0].mxu0
      %v3456 = vadd.f32 %v3227, %v3455
      %v3457 = vpop.f32.mrb[0].mxu0
      %3458 = vmatprep.mubr.f32.mxu0 %v3031
      %3459 = vmatmul.mubr.f32.gmra.mrb[0].mxu0 %v2911
      %v3460 = vpop.f32.mrb[0].mxu0
      %v3461 = vadd.f32 %v3232, %v3460
      %v3462 = vpop.f32.mrb[0].mxu0
      %3463 = vmatprep.mubr.f32.mxu0 %v3033
      %3464 = vmatmul.mubr.f32.gmra.mrb[0].mxu0 %v2912
      %v3465 = vpop.f32.mrb[0].mxu0
      %v3466 = vadd.f32 %v3237, %v3465
      %v3467 = vpop.f32.mrb[0].mxu0
      %3468 = vmatprep.mubr.f32.mxu0 %v3035
      %3469 = vmatmul.mubr.f32.gmra.mrb[0].mxu0 %v2913
      %v3470 = vpop.f32.mrb[0].mxu0
      %v3471 = vadd.f32 %v3242, %v3470
      %v3472 = vpop.f32.mrb[0].mxu0
      %3473 = vmatprep.mubr.f32.mxu0 %v3037
      %3474 = vmatmul.mubr.f32.gmra.mrb[0].mxu0 %v2914
      %v3475 = vpop.f32.mrb[0].mxu0
      %v3476 = vadd.f32 %v3247, %v3475
      %v3477 = vpop.f32.mrb[0].mxu0
      %3478 = vmatprep.mubr.f32.mxu0 %v3039
      %3479 = vmatmul.mubr.f32.gmra.mrb[0].mxu0 %v2915
      %v3480 = vpop.f32.mrb[0].mxu0
      %v3481 = vadd.f32 %v3252, %v3480
      %v3482 = vpop.f32.mrb[0].mxu0
      %3483 = vmatprep.mubr.f32.mxu0 %v3041
      %3484 = vmatmul.mubr.f32.gmra.mrb[0].mxu0 %v2916
      %v3485 = vpop.f32.mrb[0].mxu0
      %v3486 = vadd.f32 %v3257, %v3485
      %v3487 = vpop.f32.mrb[0].mxu0
      %3488 = vmatprep.mubr.f32.mxu0 %v3043
      %3489 = vmatmul.mubr.f32.gmra.mrb[0].mxu0 %v2917
      %v3490 = vpop.f32.mrb[0].mxu0
      %v3491 = vadd.f32 %v3262, %v3490
      %v3492 = vpop.f32.mrb[0].mxu0
      %3493 = vmatprep.mubr.f32.mxu0 %v3045
      %3494 = vmatmul.mubr.f32.gmra.mrb[0].mxu0 %v2918
      %v3495 = vpop.f32.mrb[0].mxu0
      %v3496 = vadd.f32 %v3267, %v3495
      %v3497 = vpop.f32.mrb[0].mxu0
      %3498 = vmatprep.mubr.f32.mxu0 %v3047
      %3499 = vmatmul.mubr.f32.gmra.mrb[0].mxu0 %v2919
      %v3500 = vpop.f32.mrb[0].mxu0
      %v3501 = vadd.f32 %v3272, %v3500
      %v3502 = vpop.f32.mrb[0].mxu0
      %3503 = vmatprep.mubr.f32.mxu0 %v3049
      %3504 = vmatmul.mubr.f32.gmra.mrb[0].mxu0 %v2920
      %v3505 = vpop.f32.mrb[0].mxu0
      %v3506 = vadd.f32 %v3277, %v3505
      %v3507 = vpop.f32.mrb[0].mxu0
      %3508 = vdwg.mxu0
      %v3512 = vrot.slane %v2582, 1
      %v3513 = vrot.slane %v2583, 1
      %v3514 = vsel %vm909, %v3512, %v3513
      %v3515 = vrot.slane %v2584, 1
      %v3516 = vsel %vm909, %v3513, %v3515
      %3517 = vrot.lane.b32.xlu0 %v3514, 64
      %v3518 = vpop.permute.xlu0 %3517
      %3519 = vrot.lane.b32.xlu0 %v3516, 64
      %v3520 = vpop.permute.xlu0 %3519
      %v3523 = vrot.slane %v2582, 2
      %v3524 = vrot.slane %v2583, 2
      %v3525 = vsel %vm1086, %v3523, %v3524
      %v3526 = vrot.slane %v2584, 2
      %v3527 = vsel %vm1086, %v3524, %v3526
      %v3528 = vsel %vm428, %v2582, %v3518
      %v3529 = vsel %vm428, %v2583, %v3520
      %s3530 = scalar_lea.vmem %s4, 384
      %v3531 = vld [vmem:[%s3530] sm:$0xff]
      %v3532 = vld [vmem:[%s3530 + $0x8] sm:$0xff]
      %v3533 = vld [vmem:[%s3530 + $0x10] sm:$0xff]
      %v3534 = vld [vmem:[%s3530 + $0x18] sm:$0xff]
      %v3535 = vld [vmem:[%s3530 + $0x20] sm:$0xff]
      %v3536 = vld [vmem:[%s3530 + $0x28] sm:$0xff]
      %v3537 = vld [vmem:[%s3530 + $0x30] sm:$0xff]
      %v3538 = vld [vmem:[%s3530 + $0x38] sm:$0xff]
      %v3539 = vld [vmem:[%s3530 + $0x40] sm:$0xff]
      %v3540 = vld [vmem:[%s3530 + $0x48] sm:$0xff]
      %v3541 = vld [vmem:[%s3530 + $0x50] sm:$0xff]
      %v3542 = vld [vmem:[%s3530 + $0x58] sm:$0xff]
      %v3543 = vld [vmem:[%s3530 + $0x60] sm:$0xff]
      %v3544 = vld [vmem:[%s3530 + $0x68] sm:$0xff]
      %v3545 = vld [vmem:[%s3530 + $0x70] sm:$0xff]
      %v3546 = vld [vmem:[%s3530 + $0x78] sm:$0xff]
      %v3547 = vld [vmem:[%s3530 + $0x80] sm:$0xff]
      %v3548 = vld [vmem:[%s3530 + $0x88] sm:$0xff]
      %v3549 = vld [vmem:[%s3530 + $0x90] sm:$0xff]
      %v3550 = vld [vmem:[%s3530 + $0x98] sm:$0xff]
      %v3551 = vld [vmem:[%s3530 + $0xa0] sm:$0xff]
      %v3552 = vld [vmem:[%s3530 + $0xa8] sm:$0xff]
      %v3553 = vld [vmem:[%s3530 + $0xb0] sm:$0xff]
      %v3554 = vld [vmem:[%s3530 + $0xb8] sm:$0xff]
      %v3555 = vsel %vm428, %v3525, 0
      %v3557 = vsel %vm428, %v3527, 0
      %3559 = vmatprep.subr.mxu0 0.0
      %3560 = vmatpush1.msra.mxu0 %v3531
      %3561 = vmatprep.subr.mxu0 0.0
      %3562 = vmatpush1.msra.mxu0 %v3532
      %3563 = vmatprep.subr.mxu0 0.0
      %3564 = vmatpush1.msra.mxu0 %v3533
      %3565 = vmatprep.subr.mxu0 0.0
      %3566 = vmatpush1.msra.mxu0 %v3534
      %3567 = vmatprep.subr.mxu0 0.0
      %3568 = vmatpush1.msra.mxu0 %v3535
      %3569 = vmatprep.subr.mxu0 0.0
      %3570 = vmatpush1.msra.mxu0 %v3536
      %3571 = vmatprep.subr.mxu0 0.0
      %3572 = vmatpush1.msra.mxu0 %v3537
      %3573 = vmatprep.subr.mxu0 0.0
      %3574 = vmatpush1.msra.mxu0 %v3538
      %3575 = vmatprep.subr.mxu0 0.0
      %3576 = vmatpush1.msra.mxu0 %v3539
      %3577 = vmatprep.subr.mxu0 0.0
      %3578 = vmatpush1.msra.mxu0 %v3540
      %3579 = vmatprep.subr.mxu0 0.0
      %3580 = vmatpush1.msra.mxu0 %v3541
      %3581 = vmatprep.subr.mxu0 0.0
      %3582 = vmatpush1.msra.mxu0 %v3542
      %3583 = vmatprep.subr.mxu0 0.0
      %3584 = vmatpush1.msra.mxu0 %v3543
      %3585 = vmatprep.subr.mxu0 0.0
      %3586 = vmatpush1.msra.mxu0 %v3544
      %3587 = vmatprep.subr.mxu0 0.0
      %3588 = vmatpush1.msra.mxu0 %v3545
      %3589 = vmatprep.subr.mxu0 0.0
      %3590 = vmatpush1.msra.mxu0 %v3546
      %3591 = vmatprep.subr.mxu0 0.0
      %3592 = vmatpush1.msra.mxu0 %v3547
      %3593 = vmatprep.subr.mxu0 0.0
      %3594 = vmatpush1.msra.mxu0 %v3548
      %3595 = vmatprep.subr.mxu0 0.0
      %3596 = vmatpush1.msra.mxu0 %v3549
      %3597 = vmatprep.subr.mxu0 0.0
      %3598 = vmatpush1.msra.mxu0 %v3550
      %3599 = vmatprep.subr.mxu0 0.0
      %3600 = vmatpush1.msra.mxu0 %v3551
      %3601 = vmatprep.subr.mxu0 0.0
      %3602 = vmatpush1.msra.mxu0 %v3552
      %3603 = vmatprep.subr.mxu0 0.0
      %3604 = vmatpush1.msra.mxu0 %v3553
      %3605 = vmatprep.subr.mxu0 0.0
      %3606 = vmatpush1.msra.mxu0 %v3554
      %3607 = vmatprep.subr.mxu0 0.0
      %3608 = vmatpush1.msra.mxu0 0.0
      %3609 = vmatprep.subr.mxu0 0.0
      %3610 = vmatpush1.msra.mxu0 0.0
      %3611 = vmatprep.subr.mxu0 0.0
      %3612 = vmatpush1.msra.mxu0 0.0
      %3613 = vmatprep.subr.mxu0 0.0
      %3614 = vmatpush1.msra.mxu0 0.0
      %3615 = vmatprep.subr.mxu0 0.0
      %3616 = vmatpush1.msra.mxu0 0.0
      %3617 = vmatprep.subr.mxu0 0.0
      %3618 = vmatpush1.msra.mxu0 0.0
      %3619 = vmatprep.subr.mxu0 0.0
      %3620 = vmatpush1.msra.mxu0 0.0
      %3621 = vmatprep.subr.mxu0 0.0
      %3622 = vmatpush1.msra.mxu0 0.0
      %3623 = vmatprep.mubr.f32.mxu0 %v2995
      %3624 = vmatmul.mubr.f32.gmra.mrb[0].mxu0 %v2893
      %v3625 = vpop.f32.mrb[0].mxu0
      %v3626 = vadd.f32 0.0, %v3625
      %v3627 = vpop.f32.mrb[0].mxu0
      %3628 = vmatprep.mubr.f32.mxu0 %v2997
      %3629 = vmatmul.mubr.f32.gmra.mrb[0].mxu0 %v2894
      %v3630 = vpop.f32.mrb[0].mxu0
      %v3631 = vadd.f32 0.0, %v3630
      %v3632 = vpop.f32.mrb[0].mxu0
      %3633 = vmatprep.mubr.f32.mxu0 %v2999
      %3634 = vmatmul.mubr.f32.gmra.mrb[0].mxu0 %v2895
      %v3635 = vpop.f32.mrb[0].mxu0
      %v3636 = vadd.f32 0.0, %v3635
      %v3637 = vpop.f32.mrb[0].mxu0
      %3638 = vmatprep.mubr.f32.mxu0 %v3001
      %3639 = vmatmul.mubr.f32.gmra.mrb[0].mxu0 %v2896
      %v3640 = vpop.f32.mrb[0].mxu0
      %v3641 = vadd.f32 0.0, %v3640
      %v3642 = vpop.f32.mrb[0].mxu0
      %3643 = vmatprep.mubr.f32.mxu0 %v3003
      %3644 = vmatmul.mubr.f32.gmra.mrb[0].mxu0 %v2897
      %v3645 = vpop.f32.mrb[0].mxu0
      %v3646 = vadd.f32 0.0, %v3645
      %v3647 = vpop.f32.mrb[0].mxu0
      %3648 = vmatprep.mubr.f32.mxu0 %v3005
      %3649 = vmatmul.mubr.f32.gmra.mrb[0].mxu0 %v2898
      %v3650 = vpop.f32.mrb[0].mxu0
      %v3651 = vadd.f32 0.0, %v3650
      %v3652 = vpop.f32.mrb[0].mxu0
      %3653 = vmatprep.mubr.f32.mxu0 %v3007
      %3654 = vmatmul.mubr.f32.gmra.mrb[0].mxu0 %v2899
      %v3655 = vpop.f32.mrb[0].mxu0
      %v3656 = vadd.f32 0.0, %v3655
      %v3657 = vpop.f32.mrb[0].mxu0
      %3658 = vmatprep.mubr.f32.mxu0 %v3009
      %3659 = vmatmul.mubr.f32.gmra.mrb[0].mxu0 %v2900
      %v3660 = vpop.f32.mrb[0].mxu0
      %v3661 = vadd.f32 0.0, %v3660
      %v3662 = vpop.f32.mrb[0].mxu0
      %3663 = vmatprep.mubr.f32.mxu0 %v3011
      %3664 = vmatmul.mubr.f32.gmra.mrb[0].mxu0 %v2901
      %v3665 = vpop.f32.mrb[0].mxu0
      %v3666 = vadd.f32 0.0, %v3665
      %v3667 = vpop.f32.mrb[0].mxu0
      %3668 = vmatprep.mubr.f32.mxu0 %v3013
      %3669 = vmatmul.mubr.f32.gmra.mrb[0].mxu0 %v2902
      %v3670 = vpop.f32.mrb[0].mxu0
      %v3671 = vadd.f32 0.0, %v3670
      %v3672 = vpop.f32.mrb[0].mxu0
      %3673 = vmatprep.mubr.f32.mxu0 %v3015
      %3674 = vmatmul.mubr.f32.gmra.mrb[0].mxu0 %v2903
      %v3675 = vpop.f32.mrb[0].mxu0
      %v3676 = vadd.f32 0.0, %v3675
      %v3677 = vpop.f32.mrb[0].mxu0
      %3678 = vmatprep.mubr.f32.mxu0 %v3017
      %3679 = vmatmul.mubr.f32.gmra.mrb[0].mxu0 %v2904
      %v3680 = vpop.f32.mrb[0].mxu0
      %v3681 = vadd.f32 0.0, %v3680
      %v3682 = vpop.f32.mrb[0].mxu0
      %3683 = vmatprep.mubr.f32.mxu0 %v3019
      %3684 = vmatmul.mubr.f32.gmra.mrb[0].mxu0 %v2905
      %v3685 = vpop.f32.mrb[0].mxu0
      %v3686 = vadd.f32 0.0, %v3685
      %v3687 = vpop.f32.mrb[0].mxu0
      %3688 = vmatprep.mubr.f32.mxu0 %v3021
      %3689 = vmatmul.mubr.f32.gmra.mrb[0].mxu0 %v2906
      %v3690 = vpop.f32.mrb[0].mxu0
      %v3691 = vadd.f32 0.0, %v3690
      %v3692 = vpop.f32.mrb[0].mxu0
      %3693 = vmatprep.mubr.f32.mxu0 %v3023
      %3694 = vmatmul.mubr.f32.gmra.mrb[0].mxu0 %v2907
      %v3695 = vpop.f32.mrb[0].mxu0
      %v3696 = vadd.f32 0.0, %v3695
      %v3697 = vpop.f32.mrb[0].mxu0
      %3698 = vmatprep.mubr.f32.mxu0 %v3025
      %3699 = vmatmul.mubr.f32.gmra.mrb[0].mxu0 %v2908
      %v3700 = vpop.f32.mrb[0].mxu0
      %v3701 = vadd.f32 0.0, %v3700
      %v3702 = vpop.f32.mrb[0].mxu0
      %3703 = vmatprep.mubr.f32.mxu0 %v3027
      %3704 = vmatmul.mubr.f32.gmra.mrb[0].mxu0 %v2909
      %v3705 = vpop.f32.mrb[0].mxu0
      %v3706 = vadd.f32 0.0, %v3705
      %v3707 = vpop.f32.mrb[0].mxu0
      %3708 = vmatprep.mubr.f32.mxu0 %v3029
      %3709 = vmatmul.mubr.f32.gmra.mrb[0].mxu0 %v2910
      %v3710 = vpop.f32.mrb[0].mxu0
      %v3711 = vadd.f32 0.0, %v3710
      %v3712 = vpop.f32.mrb[0].mxu0
      %3713 = vmatprep.mubr.f32.mxu0 %v3031
      %3714 = vmatmul.mubr.f32.gmra.mrb[0].mxu0 %v2911
      %v3715 = vpop.f32.mrb[0].mxu0
      %v3716 = vadd.f32 0.0, %v3715
      %v3717 = vpop.f32.mrb[0].mxu0
      %3718 = vmatprep.mubr.f32.mxu0 %v3033
      %3719 = vmatmul.mubr.f32.gmra.mrb[0].mxu0 %v2912
      %v3720 = vpop.f32.mrb[0].mxu0
      %v3721 = vadd.f32 0.0, %v3720
      %v3722 = vpop.f32.mrb[0].mxu0
      %3723 = vmatprep.mubr.f32.mxu0 %v3035
      %3724 = vmatmul.mubr.f32.gmra.mrb[0].mxu0 %v2913
      %v3725 = vpop.f32.mrb[0].mxu0
      %v3726 = vadd.f32 0.0, %v3725
      %v3727 = vpop.f32.mrb[0].mxu0
      %3728 = vmatprep.mubr.f32.mxu0 %v3037
      %3729 = vmatmul.mubr.f32.gmra.mrb[0].mxu0 %v2914
      %v3730 = vpop.f32.mrb[0].mxu0
      %v3731 = vadd.f32 0.0, %v3730
      %v3732 = vpop.f32.mrb[0].mxu0
      %3733 = vmatprep.mubr.f32.mxu0 %v3039
      %3734 = vmatmul.mubr.f32.gmra.mrb[0].mxu0 %v2915
      %v3735 = vpop.f32.mrb[0].mxu0
      %v3736 = vadd.f32 0.0, %v3735
      %v3737 = vpop.f32.mrb[0].mxu0
      %3738 = vmatprep.mubr.f32.mxu0 %v3041
      %3739 = vmatmul.mubr.f32.gmra.mrb[0].mxu0 %v2916
      %v3740 = vpop.f32.mrb[0].mxu0
      %v3741 = vadd.f32 0.0, %v3740
      %v3742 = vpop.f32.mrb[0].mxu0
      %3743 = vmatprep.mubr.f32.mxu0 %v3043
      %3744 = vmatmul.mubr.f32.gmra.mrb[0].mxu0 %v2917
      %v3745 = vpop.f32.mrb[0].mxu0
      %v3746 = vadd.f32 0.0, %v3745
      %v3747 = vpop.f32.mrb[0].mxu0
      %3748 = vmatprep.mubr.f32.mxu0 %v3045
      %3749 = vmatmul.mubr.f32.gmra.mrb[0].mxu0 %v2918
      %v3750 = vpop.f32.mrb[0].mxu0
      %v3751 = vadd.f32 0.0, %v3750
      %v3752 = vpop.f32.mrb[0].mxu0
      %3753 = vmatprep.mubr.f32.mxu0 %v3047
      %3754 = vmatmul.mubr.f32.gmra.mrb[0].mxu0 %v2919
      %v3755 = vpop.f32.mrb[0].mxu0
      %v3756 = vadd.f32 0.0, %v3755
      %v3757 = vpop.f32.mrb[0].mxu0
      %3758 = vmatprep.mubr.f32.mxu0 %v3049
      %3759 = vmatmul.mubr.f32.gmra.mrb[0].mxu0 %v2920
      %v3760 = vpop.f32.mrb[0].mxu0
      %v3761 = vadd.f32 0.0, %v3760
      %v3762 = vpop.f32.mrb[0].mxu0
      %3763 = vmatprep.mubr.f32.mxu0 %v3051
      %3764 = vmatmul.mubr.f32.gmra.mrb[0].mxu0 %v2964
      %v3765 = vpop.f32.mrb[0].mxu0
      %v3766 = vadd.f32 0.0, %v3765
      %v3767 = vpop.f32.mrb[0].mxu0
      %3768 = vmatprep.mubr.f32.mxu0 %v3053
      %3769 = vmatmul.mubr.f32.gmra.mrb[0].mxu0 %v2965
      %v3770 = vpop.f32.mrb[0].mxu0
      %v3771 = vadd.f32 0.0, %v3770
      %v3772 = vpop.f32.mrb[0].mxu0
      %3773 = vmatprep.mubr.f32.mxu0 %v3555
      %3774 = vmatmul.mubr.f32.gmra.mrb[0].mxu0 %v3528
      %v3775 = vpop.f32.mrb[0].mxu0
      %v3776 = vadd.f32 0.0, %v3775
      %v3777 = vpop.f32.mrb[0].mxu0
      %3778 = vmatprep.mubr.f32.mxu0 %v3557
      %3779 = vmatmul.mubr.f32.gmra.mrb[0].mxu0 %v3529
      %v3780 = vpop.f32.mrb[0].mxu0
      %v3781 = vadd.f32 0.0, %v3780
      %v3782 = vpop.f32.mrb[0].mxu0
      %3783 = vdwg.mxu0
      %v3784 = vadd.f32 %v3351, %v3626
      %v3785 = vadd.f32 %v3356, %v3631
      %v3786 = vadd.f32 %v3361, %v3636
      %v3787 = vadd.f32 %v3366, %v3641
      %v3788 = vadd.f32 %v3371, %v3646
      %v3789 = vadd.f32 %v3376, %v3651
      %v3790 = vadd.f32 %v3381, %v3656
      %v3791 = vadd.f32 %v3386, %v3661
      %v3792 = vadd.f32 %v3391, %v3666
      %v3793 = vadd.f32 %v3396, %v3671
      %v3794 = vadd.f32 %v3401, %v3676
      %v3795 = vadd.f32 %v3406, %v3681
      %v3796 = vadd.f32 %v3411, %v3686
      %v3797 = vadd.f32 %v3416, %v3691
      %v3798 = vadd.f32 %v3421, %v3696
      %v3799 = vadd.f32 %v3426, %v3701
      %v3800 = vadd.f32 %v3431, %v3706
      %v3801 = vadd.f32 %v3436, %v3711
      %v3802 = vadd.f32 %v3441, %v3716
      %v3803 = vadd.f32 %v3446, %v3721
      %v3804 = vadd.f32 %v3451, %v3726
      %v3805 = vadd.f32 %v3456, %v3731
      %v3806 = vadd.f32 %v3461, %v3736
      %v3807 = vadd.f32 %v3466, %v3741
      %v3808 = vadd.f32 %v3471, %v3746
      %v3809 = vadd.f32 %v3476, %v3751
      %v3810 = vadd.f32 %v3481, %v3756
      %v3811 = vadd.f32 %v3486, %v3761
      %v3812 = vadd.f32 %v3491, %v3766
      %v3813 = vadd.f32 %v3496, %v3771
      %v3814 = vadd.f32 %v3501, %v3776
      %v3815 = vadd.f32 %v3506, %v3781
      %v3816 = vld [vmem:[%s5] sm:$0x1]
      %v3818 = vlaneseq
      %v3819 = vshrl.u32 %v3818, 7
      %v3820 = vsub.s32 0, %v3819
      %v3821 = vrot.slane %v3816, %v3820
      %v3823 = vadd.f32 %v3784, %v3821
      %v3824 = vadd.f32 %v3785, %v3821
      %v3825 = vadd.f32 %v3786, %v3821
      %v3826 = vadd.f32 %v3787, %v3821
      %v3827 = vadd.f32 %v3788, %v3821
      %v3828 = vadd.f32 %v3789, %v3821
      %v3829 = vadd.f32 %v3790, %v3821
      %v3830 = vadd.f32 %v3791, %v3821
      %v3831 = vadd.f32 %v3792, %v3821
      %v3832 = vadd.f32 %v3793, %v3821
      %v3833 = vadd.f32 %v3794, %v3821
      %v3834 = vadd.f32 %v3795, %v3821
      %v3835 = vadd.f32 %v3796, %v3821
      %v3836 = vadd.f32 %v3797, %v3821
      %v3837 = vadd.f32 %v3798, %v3821
      %v3838 = vadd.f32 %v3799, %v3821
      %v3839 = vadd.f32 %v3800, %v3821
      %v3840 = vadd.f32 %v3801, %v3821
      %v3841 = vadd.f32 %v3802, %v3821
      %v3842 = vadd.f32 %v3803, %v3821
      %v3843 = vadd.f32 %v3804, %v3821
      %v3844 = vadd.f32 %v3805, %v3821
      %v3845 = vadd.f32 %v3806, %v3821
      %v3846 = vadd.f32 %v3807, %v3821
      %v3847 = vadd.f32 %v3808, %v3821
      %v3848 = vadd.f32 %v3809, %v3821
      %v3849 = vadd.f32 %v3810, %v3821
      %v3850 = vadd.f32 %v3811, %v3821
      %v3851 = vadd.f32 %v3812, %v3821
      %v3852 = vadd.f32 %v3813, %v3821
      %v3853 = vadd.f32 %v3814, %v3821
      %v3854 = vadd.f32 %v3815, %v3821
      %v3855 = vmax.f32 %v3823, 0.0
      %v3856 = vmax.f32 %v3824, 0.0
      %v3857 = vmax.f32 %v3825, 0.0
      %v3858 = vmax.f32 %v3826, 0.0
      %v3859 = vmax.f32 %v3827, 0.0
      %v3860 = vmax.f32 %v3828, 0.0
      %v3861 = vmax.f32 %v3829, 0.0
      %v3862 = vmax.f32 %v3830, 0.0
      %v3863 = vmax.f32 %v3831, 0.0
      %v3864 = vmax.f32 %v3832, 0.0
      %v3865 = vmax.f32 %v3833, 0.0
      %v3866 = vmax.f32 %v3834, 0.0
      %v3867 = vmax.f32 %v3835, 0.0
      %v3868 = vmax.f32 %v3836, 0.0
      %v3869 = vmax.f32 %v3837, 0.0
      %v3870 = vmax.f32 %v3838, 0.0
      %v3871 = vmax.f32 %v3839, 0.0
      %v3872 = vmax.f32 %v3840, 0.0
      %v3873 = vmax.f32 %v3841, 0.0
      %v3874 = vmax.f32 %v3842, 0.0
      %v3875 = vmax.f32 %v3843, 0.0
      %v3876 = vmax.f32 %v3844, 0.0
      %v3877 = vmax.f32 %v3845, 0.0
      %v3878 = vmax.f32 %v3846, 0.0
      %v3879 = vmax.f32 %v3847, 0.0
      %v3880 = vmax.f32 %v3848, 0.0
      %v3881 = vmax.f32 %v3849, 0.0
      %v3882 = vmax.f32 %v3850, 0.0
      %v3883 = vmax.f32 %v3851, 0.0
      %v3884 = vmax.f32 %v3852, 0.0
      %v3885 = vmax.f32 %v3853, 0.0
      %v3886 = vmax.f32 %v3854, 0.0
      %s3887 = scalar_lea.vmem [#allocation4], 24
      %3888 = vst.msk [vmem:[%s3887 + $0x1] sm:$0xff] %vm428, %v3855
      %3889 = vst.msk [vmem:[%s3887 + $0x9] sm:$0xff] %vm428, %v3856
      %3890 = vst.msk [vmem:[%s3887 + $0x19] sm:$0xff] %vm428, %v3857
      %3891 = vst.msk [vmem:[%s3887 + $0x21] sm:$0xff] %vm428, %v3858
      %3892 = vst.msk [vmem:[%s3887 + $0x31] sm:$0xff] %vm428, %v3859
      %3893 = vst.msk [vmem:[%s3887 + $0x39] sm:$0xff] %vm428, %v3860
      %3894 = vst.msk [vmem:[%s3887 + $0x49] sm:$0xff] %vm428, %v3861
      %3895 = vst.msk [vmem:[%s3887 + $0x51] sm:$0xff] %vm428, %v3862
      %3896 = vst.msk [vmem:[%s3887 + $0x61] sm:$0xff] %vm428, %v3863
      %3897 = vst.msk [vmem:[%s3887 + $0x69] sm:$0xff] %vm428, %v3864
      %3898 = vst.msk [vmem:[%s3887 + $0x79] sm:$0xff] %vm428, %v3865
      %3899 = vst.msk [vmem:[%s3887 + $0x81] sm:$0xff] %vm428, %v3866
      %3900 = vst.msk [vmem:[%s3887 + $0x91] sm:$0xff] %vm428, %v3867
      %3901 = vst.msk [vmem:[%s3887 + $0x99] sm:$0xff] %vm428, %v3868
      %3902 = vst.msk [vmem:[%s3887 + $0xa9] sm:$0xff] %vm428, %v3869
      %3903 = vst.msk [vmem:[%s3887 + $0xb1] sm:$0xff] %vm428, %v3870
      %3904 = vst.msk [vmem:[%s3887 + $0xc1] sm:$0xff] %vm428, %v3871
      %3905 = vst.msk [vmem:[%s3887 + $0xc9] sm:$0xff] %vm428, %v3872
      %3906 = vst.msk [vmem:[%s3887 + $0xd9] sm:$0xff] %vm428, %v3873
      %3907 = vst.msk [vmem:[%s3887 + $0xe1] sm:$0xff] %vm428, %v3874
      %3908 = vst.msk [vmem:[%s3887 + $0xf1] sm:$0xff] %vm428, %v3875
      %3909 = vst.msk [vmem:[%s3887 + $0xf9] sm:$0xff] %vm428, %v3876
      %3910 = vst.msk [vmem:[%s3887 + $0x109] sm:$0xff] %vm428, %v3877
      %3911 = vst.msk [vmem:[%s3887 + $0x111] sm:$0xff] %vm428, %v3878
      %3912 = vst.msk [vmem:[%s3887 + $0x121] sm:$0xff] %vm428, %v3879
      %3913 = vst.msk [vmem:[%s3887 + $0x129] sm:$0xff] %vm428, %v3880
      %3914 = vst.msk [vmem:[%s3887 + $0x139] sm:$0xff] %vm428, %v3881
      %3915 = vst.msk [vmem:[%s3887 + $0x141] sm:$0xff] %vm428, %v3882
      %3916 = vst.msk [vmem:[%s3887 + $0x151] sm:$0xff] %vm428, %v3883
      %3917 = vst.msk [vmem:[%s3887 + $0x159] sm:$0xff] %vm428, %v3884
      %3918 = vst.msk [vmem:[%s3887 + $0x169] sm:$0xff] %vm428, %v3885
      %3919 = vst.msk [vmem:[%s3887 + $0x171] sm:$0xff] %vm428, %v3886
      %v3920 = vld [vmem:[#allocation4] sm:$0xff]
      %v3921 = vld [vmem:[#allocation4 + $0x8] sm:$0xff]
      %v3922 = vld [vmem:[#allocation4 + $0x10] sm:$0x3]
      %v3923 = vld [vmem:[#allocation4 + $0x18] sm:$0xff]
      %v3924 = vld [vmem:[#allocation4 + $0x20] sm:$0xff]
      %v3925 = vld [vmem:[#allocation4 + $0x28] sm:$0x3]
      %v3926 = vld [vmem:[#allocation4 + $0x30] sm:$0xff]
      %v3927 = vld [vmem:[#allocation4 + $0x38] sm:$0xff]
      %v3928 = vld [vmem:[#allocation4 + $0x40] sm:$0x3]
      %v3929 = vld [vmem:[#allocation4 + $0x48] sm:$0xff]
      %v3930 = vld [vmem:[#allocation4 + $0x50] sm:$0xff]
      %v3931 = vld [vmem:[#allocation4 + $0x58] sm:$0x3]
      %v3932 = vld [vmem:[#allocation4 + $0x60] sm:$0xff]
      %v3933 = vld [vmem:[#allocation4 + $0x68] sm:$0xff]
      %v3934 = vld [vmem:[#allocation4 + $0x70] sm:$0x3]
      %v3935 = vld [vmem:[#allocation4 + $0x78] sm:$0xff]
      %v3936 = vld [vmem:[#allocation4 + $0x80] sm:$0xff]
      %v3937 = vld [vmem:[#allocation4 + $0x88] sm:$0x3]
      %v3938 = vld [vmem:[#allocation4 + $0x90] sm:$0xff]
      %v3939 = vld [vmem:[#allocation4 + $0x98] sm:$0xff]
      %v3940 = vld [vmem:[#allocation4 + $0xa0] sm:$0x3]
      %v3941 = vld [vmem:[#allocation4 + $0xa8] sm:$0xff]
      %v3942 = vld [vmem:[#allocation4 + $0xb0] sm:$0xff]
      %v3943 = vld [vmem:[#allocation4 + $0xb8] sm:$0x3]
      %v3944 = vld [vmem:[#allocation4 + $0xc0] sm:$0xff]
      %v3945 = vld [vmem:[#allocation4 + $0xc8] sm:$0xff]
      %v3946 = vld [vmem:[#allocation4 + $0xd0] sm:$0x3]
      %v3947 = vld [vmem:[#allocation4 + $0xd8] sm:$0xff]
      %v3948 = vld [vmem:[#allocation4 + $0xe0] sm:$0xff]
      %v3949 = vld [vmem:[#allocation4 + $0xe8] sm:$0x3]
      %v3950 = vld [vmem:[#allocation4 + $0xf0] sm:$0xff]
      %v3951 = vld [vmem:[#allocation4 + $0xf8] sm:$0xff]
      %v3952 = vld [vmem:[#allocation4 + $0x100] sm:$0x3]
      %v3953 = vld [vmem:[#allocation4 + $0x108] sm:$0xff]
      %v3954 = vld [vmem:[#allocation4 + $0x110] sm:$0xff]
      %v3955 = vld [vmem:[#allocation4 + $0x118] sm:$0x3]
      %v3956 = vld [vmem:[#allocation4 + $0x120] sm:$0xff]
      %v3957 = vld [vmem:[#allocation4 + $0x128] sm:$0xff]
      %v3958 = vld [vmem:[#allocation4 + $0x130] sm:$0x3]
      %v3959 = vld [vmem:[#allocation4 + $0x138] sm:$0xff]
      %v3960 = vld [vmem:[#allocation4 + $0x140] sm:$0xff]
      %v3961 = vld [vmem:[#allocation4 + $0x148] sm:$0x3]
      %v3962 = vld [vmem:[#allocation4 + $0x150] sm:$0xff]
      %v3963 = vld [vmem:[#allocation4 + $0x158] sm:$0xff]
      %v3964 = vld [vmem:[#allocation4 + $0x160] sm:$0x3]
      %v3965 = vld [vmem:[#allocation4 + $0x168] sm:$0xff]
      %v3966 = vld [vmem:[#allocation4 + $0x170] sm:$0xff]
      %v3967 = vld [vmem:[#allocation4 + $0x178] sm:$0x3]
      %v3968 = vld [vmem:[#allocation4 + $0x180] sm:$0xff]
      %v3969 = vld [vmem:[#allocation4 + $0x188] sm:$0xff]
      %v3970 = vld [vmem:[#allocation4 + $0x190] sm:$0x3]
      %v3971 = vld [vmem:[#allocation4 + $0x198] sm:$0xff]
      %v3972 = vld [vmem:[#allocation4 + $0x1a0] sm:$0xff]
      %v3973 = vld [vmem:[#allocation4 + $0x1a8] sm:$0x3]
      %v4022 = vrot.slane %v3920, 1
      %v4023 = vrot.slane %v3921, 1
      %v4024 = vsel %vm909, %v4022, %v4023
      %v4025 = vrot.slane %v3922, 1
      %v4026 = vsel %vm909, %v4023, %v4025
      %v4027 = vrot.slane %v3923, 1
      %v4028 = vrot.slane %v3924, 1
      %v4029 = vsel %vm909, %v4027, %v4028
      %v4030 = vrot.slane %v3925, 1
      %v4031 = vsel %vm909, %v4028, %v4030
      %v4032 = vrot.slane %v3926, 1
      %v4033 = vrot.slane %v3927, 1
      %v4034 = vsel %vm909, %v4032, %v4033
      %v4035 = vrot.slane %v3928, 1
      %v4036 = vsel %vm909, %v4033, %v4035
      %v4037 = vrot.slane %v3929, 1
      %v4038 = vrot.slane %v3930, 1
      %v4039 = vsel %vm909, %v4037, %v4038
      %v4040 = vrot.slane %v3931, 1
      %v4041 = vsel %vm909, %v4038, %v4040
      %v4042 = vrot.slane %v3932, 1
      %v4043 = vrot.slane %v3933, 1
      %v4044 = vsel %vm909, %v4042, %v4043
      %v4045 = vrot.slane %v3934, 1
      %v4046 = vsel %vm909, %v4043, %v4045
      %v4047 = vrot.slane %v3935, 1
      %v4048 = vrot.slane %v3936, 1
      %v4049 = vsel %vm909, %v4047, %v4048
      %v4050 = vrot.slane %v3937, 1
      %v4051 = vsel %vm909, %v4048, %v4050
      %v4052 = vrot.slane %v3938, 1
      %v4053 = vrot.slane %v3939, 1
      %v4054 = vsel %vm909, %v4052, %v4053
      %v4055 = vrot.slane %v3940, 1
      %v4056 = vsel %vm909, %v4053, %v4055
      %v4057 = vrot.slane %v3941, 1
      %v4058 = vrot.slane %v3942, 1
      %v4059 = vsel %vm909, %v4057, %v4058
      %v4060 = vrot.slane %v3943, 1
      %v4061 = vsel %vm909, %v4058, %v4060
      %v4062 = vrot.slane %v3944, 1
      %v4063 = vrot.slane %v3945, 1
      %v4064 = vsel %vm909, %v4062, %v4063
      %v4065 = vrot.slane %v3946, 1
      %v4066 = vsel %vm909, %v4063, %v4065
      %v4067 = vrot.slane %v3947, 1
      %v4068 = vrot.slane %v3948, 1
      %v4069 = vsel %vm909, %v4067, %v4068
      %v4070 = vrot.slane %v3949, 1
      %v4071 = vsel %vm909, %v4068, %v4070
      %v4072 = vrot.slane %v3950, 1
      %v4073 = vrot.slane %v3951, 1
      %v4074 = vsel %vm909, %v4072, %v4073
      %v4075 = vrot.slane %v3952, 1
      %v4076 = vsel %vm909, %v4073, %v4075
      %v4077 = vrot.slane %v3953, 1
      %v4078 = vrot.slane %v3954, 1
      %v4079 = vsel %vm909, %v4077, %v4078
      %v4080 = vrot.slane %v3955, 1
      %v4081 = vsel %vm909, %v4078, %v4080
      %v4082 = vrot.slane %v3956, 1
      %v4083 = vrot.slane %v3957, 1
      %v4084 = vsel %vm909, %v4082, %v4083
      %v4085 = vrot.slane %v3958, 1
      %v4086 = vsel %vm909, %v4083, %v4085
      %v4087 = vrot.slane %v3959, 1
      %v4088 = vrot.slane %v3960, 1
      %v4089 = vsel %vm909, %v4087, %v4088
      %v4090 = vrot.slane %v3961, 1
      %v4091 = vsel %vm909, %v4088, %v4090
      %v4092 = vrot.slane %v3962, 1
      %v4093 = vrot.slane %v3963, 1
      %v4094 = vsel %vm909, %v4092, %v4093
      %v4095 = vrot.slane %v3964, 1
      %v4096 = vsel %vm909, %v4093, %v4095
      %v4097 = vrot.slane %v3965, 1
      %v4098 = vrot.slane %v3966, 1
      %v4099 = vsel %vm909, %v4097, %v4098
      %v4100 = vrot.slane %v3967, 1
      %v4101 = vsel %vm909, %v4098, %v4100
      %4102 = vrot.lane.b32.xlu0 %v4024, 64
      %v4103 = vpop.permute.xlu0 %4102
      %4104 = vrot.lane.b32.xlu0 %v4026, 64
      %v4105 = vpop.permute.xlu0 %4104
      %4106 = vrot.lane.b32.xlu0 %v4029, 64
      %v4107 = vpop.permute.xlu0 %4106
      %4108 = vrot.lane.b32.xlu0 %v4031, 64
      %v4109 = vpop.permute.xlu0 %4108
      %4110 = vrot.lane.b32.xlu0 %v4034, 64
      %v4111 = vpop.permute.xlu0 %4110
      %4112 = vrot.lane.b32.xlu0 %v4036, 64
      %v4113 = vpop.permute.xlu0 %4112
      %4114 = vrot.lane.b32.xlu0 %v4039, 64
      %v4115 = vpop.permute.xlu0 %4114
      %4116 = vrot.lane.b32.xlu0 %v4041, 64
      %v4117 = vpop.permute.xlu0 %4116
      %4118 = vrot.lane.b32.xlu0 %v4044, 64
      %v4119 = vpop.permute.xlu0 %4118
      %4120 = vrot.lane.b32.xlu0 %v4046, 64
      %v4121 = vpop.permute.xlu0 %4120
      %4122 = vrot.lane.b32.xlu0 %v4049, 64
      %v4123 = vpop.permute.xlu0 %4122
      %4124 = vrot.lane.b32.xlu0 %v4051, 64
      %v4125 = vpop.permute.xlu0 %4124
      %4126 = vrot.lane.b32.xlu0 %v4054, 64
      %v4127 = vpop.permute.xlu0 %4126
      %4128 = vrot.lane.b32.xlu0 %v4056, 64
      %v4129 = vpop.permute.xlu0 %4128
      %4130 = vrot.lane.b32.xlu0 %v4059, 64
      %v4131 = vpop.permute.xlu0 %4130
      %4132 = vrot.lane.b32.xlu0 %v4061, 64
      %v4133 = vpop.permute.xlu0 %4132
      %4134 = vrot.lane.b32.xlu0 %v4064, 64
      %v4135 = vpop.permute.xlu0 %4134
      %4136 = vrot.lane.b32.xlu0 %v4066, 64
      %v4137 = vpop.permute.xlu0 %4136
      %4138 = vrot.lane.b32.xlu0 %v4069, 64
      %v4139 = vpop.permute.xlu0 %4138
      %4140 = vrot.lane.b32.xlu0 %v4071, 64
      %v4141 = vpop.permute.xlu0 %4140
      %4142 = vrot.lane.b32.xlu0 %v4074, 64
      %v4143 = vpop.permute.xlu0 %4142
      %4144 = vrot.lane.b32.xlu0 %v4076, 64
      %v4145 = vpop.permute.xlu0 %4144
      %4146 = vrot.lane.b32.xlu0 %v4079, 64
      %v4147 = vpop.permute.xlu0 %4146
      %4148 = vrot.lane.b32.xlu0 %v4081, 64
      %v4149 = vpop.permute.xlu0 %4148
      %4150 = vrot.lane.b32.xlu0 %v4084, 64
      %v4151 = vpop.permute.xlu0 %4150
      %4152 = vrot.lane.b32.xlu0 %v4086, 64
      %v4153 = vpop.permute.xlu0 %4152
      %4154 = vrot.lane.b32.xlu0 %v4089, 64
      %v4155 = vpop.permute.xlu0 %4154
      %4156 = vrot.lane.b32.xlu0 %v4091, 64
      %v4157 = vpop.permute.xlu0 %4156
      %4158 = vrot.lane.b32.xlu0 %v4094, 64
      %v4159 = vpop.permute.xlu0 %4158
      %4160 = vrot.lane.b32.xlu0 %v4096, 64
      %v4161 = vpop.permute.xlu0 %4160
      %4162 = vrot.lane.b32.xlu0 %v4099, 64
      %v4163 = vpop.permute.xlu0 %4162
      %4164 = vrot.lane.b32.xlu0 %v4101, 64
      %v4165 = vpop.permute.xlu0 %4164
      %v4198 = vrot.slane %v3920, 2
      %v4199 = vrot.slane %v3921, 2
      %v4200 = vsel %vm1086, %v4198, %v4199
      %v4201 = vrot.slane %v3922, 2
      %v4202 = vsel %vm1086, %v4199, %v4201
      %v4203 = vrot.slane %v3923, 2
      %v4204 = vrot.slane %v3924, 2
      %v4205 = vsel %vm1086, %v4203, %v4204
      %v4206 = vrot.slane %v3925, 2
      %v4207 = vsel %vm1086, %v4204, %v4206
      %v4208 = vrot.slane %v3926, 2
      %v4209 = vrot.slane %v3927, 2
      %v4210 = vsel %vm1086, %v4208, %v4209
      %v4211 = vrot.slane %v3928, 2
      %v4212 = vsel %vm1086, %v4209, %v4211
      %v4213 = vrot.slane %v3929, 2
      %v4214 = vrot.slane %v3930, 2
      %v4215 = vsel %vm1086, %v4213, %v4214
      %v4216 = vrot.slane %v3931, 2
      %v4217 = vsel %vm1086, %v4214, %v4216
      %v4218 = vrot.slane %v3932, 2
      %v4219 = vrot.slane %v3933, 2
      %v4220 = vsel %vm1086, %v4218, %v4219
      %v4221 = vrot.slane %v3934, 2
      %v4222 = vsel %vm1086, %v4219, %v4221
      %v4223 = vrot.slane %v3935, 2
      %v4224 = vrot.slane %v3936, 2
      %v4225 = vsel %vm1086, %v4223, %v4224
      %v4226 = vrot.slane %v3937, 2
      %v4227 = vsel %vm1086, %v4224, %v4226
      %v4228 = vrot.slane %v3938, 2
      %v4229 = vrot.slane %v3939, 2
      %v4230 = vsel %vm1086, %v4228, %v4229
      %v4231 = vrot.slane %v3940, 2
      %v4232 = vsel %vm1086, %v4229, %v4231
      %v4233 = vrot.slane %v3941, 2
      %v4234 = vrot.slane %v3942, 2
      %v4235 = vsel %vm1086, %v4233, %v4234
      %v4236 = vrot.slane %v3943, 2
      %v4237 = vsel %vm1086, %v4234, %v4236
      %v4238 = vrot.slane %v3944, 2
      %v4239 = vrot.slane %v3945, 2
      %v4240 = vsel %vm1086, %v4238, %v4239
      %v4241 = vrot.slane %v3946, 2
      %v4242 = vsel %vm1086, %v4239, %v4241
      %v4243 = vrot.slane %v3947, 2
      %v4244 = vrot.slane %v3948, 2
      %v4245 = vsel %vm1086, %v4243, %v4244
      %v4246 = vrot.slane %v3949, 2
      %v4247 = vsel %vm1086, %v4244, %v4246
      %v4248 = vrot.slane %v3950, 2
      %v4249 = vrot.slane %v3951, 2
      %v4250 = vsel %vm1086, %v4248, %v4249
      %v4251 = vrot.slane %v3952, 2
      %v4252 = vsel %vm1086, %v4249, %v4251
      %v4253 = vrot.slane %v3953, 2
      %v4254 = vrot.slane %v3954, 2
      %v4255 = vsel %vm1086, %v4253, %v4254
      %v4256 = vrot.slane %v3955, 2
      %v4257 = vsel %vm1086, %v4254, %v4256
      %v4258 = vrot.slane %v3956, 2
      %v4259 = vrot.slane %v3957, 2
      %v4260 = vsel %vm1086, %v4258, %v4259
      %v4261 = vrot.slane %v3958, 2
      %v4262 = vsel %vm1086, %v4259, %v4261
      %v4263 = vrot.slane %v3959, 2
      %v4264 = vrot.slane %v3960, 2
      %v4265 = vsel %vm1086, %v4263, %v4264
      %v4266 = vrot.slane %v3961, 2
      %v4267 = vsel %vm1086, %v4264, %v4266
      %v4268 = vrot.slane %v3962, 2
      %v4269 = vrot.slane %v3963, 2
      %v4270 = vsel %vm1086, %v4268, %v4269
      %v4271 = vrot.slane %v3964, 2
      %v4272 = vsel %vm1086, %v4269, %v4271
      %v4273 = vrot.slane %v3965, 2
      %v4274 = vrot.slane %v3966, 2
      %v4275 = vsel %vm1086, %v4273, %v4274
      %v4276 = vrot.slane %v3967, 2
      %v4277 = vsel %vm1086, %v4274, %v4276
      %v4278 = vsel %vm428, %v3920, %v4103
      %v4279 = vsel %vm428, %v3921, %v4105
      %v4280 = vsel %vm428, %v3923, %v4107
      %v4281 = vsel %vm428, %v3924, %v4109
      %v4282 = vsel %vm428, %v3926, %v4111
      %v4283 = vsel %vm428, %v3927, %v4113
      %v4284 = vsel %vm428, %v3929, %v4115
      %v4285 = vsel %vm428, %v3930, %v4117
      %v4286 = vsel %vm428, %v3932, %v4119
      %v4287 = vsel %vm428, %v3933, %v4121
      %v4288 = vsel %vm428, %v3935, %v4123
      %v4289 = vsel %vm428, %v3936, %v4125
      %v4290 = vsel %vm428, %v3938, %v4127
      %v4291 = vsel %vm428, %v3939, %v4129
      %v4292 = vsel %vm428, %v3941, %v4131
      %v4293 = vsel %vm428, %v3942, %v4133
      %v4294 = vsel %vm428, %v3944, %v4135
      %v4295 = vsel %vm428, %v3945, %v4137
      %v4296 = vsel %vm428, %v3947, %v4139
      %v4297 = vsel %vm428, %v3948, %v4141
      %v4298 = vsel %vm428, %v3950, %v4143
      %v4299 = vsel %vm428, %v3951, %v4145
      %v4300 = vsel %vm428, %v3953, %v4147
      %v4301 = vsel %vm428, %v3954, %v4149
      %v4302 = vsel %vm428, %v3956, %v4151
      %v4303 = vsel %vm428, %v3957, %v4153
      %v4304 = vsel %vm428, %v3959, %v4155
      %v4305 = vsel %vm428, %v3960, %v4157
      %v4306 = vsel %vm428, %v3962, %v4159
      %v4307 = vsel %vm428, %v3963, %v4161
      %v4308 = vsel %vm428, %v3965, %v4163
      %v4309 = vsel %vm428, %v3966, %v4165
      %v4310 = vld [vmem:[%s6] sm:$0xff]
      %v4311 = vld [vmem:[%s6 + $0x8] sm:$0xff]
      %v4312 = vld [vmem:[%s6 + $0x10] sm:$0xff]
      %v4313 = vld [vmem:[%s6 + $0x18] sm:$0xff]
      %v4314 = vld [vmem:[%s6 + $0x20] sm:$0xff]
      %v4315 = vld [vmem:[%s6 + $0x28] sm:$0xff]
      %v4316 = vld [vmem:[%s6 + $0x30] sm:$0xff]
      %v4317 = vld [vmem:[%s6 + $0x38] sm:$0xff]
      %v4318 = vld [vmem:[%s6 + $0x40] sm:$0xff]
      %v4319 = vld [vmem:[%s6 + $0x48] sm:$0xff]
      %v4320 = vld [vmem:[%s6 + $0x50] sm:$0xff]
      %v4321 = vld [vmem:[%s6 + $0x58] sm:$0xff]
      %v4322 = vld [vmem:[%s6 + $0x60] sm:$0xff]
      %v4323 = vld [vmem:[%s6 + $0x68] sm:$0xff]
      %v4324 = vld [vmem:[%s6 + $0x70] sm:$0xff]
      %v4325 = vld [vmem:[%s6 + $0x78] sm:$0xff]
      %v4326 = vld [vmem:[%s6 + $0x80] sm:$0xff]
      %v4327 = vld [vmem:[%s6 + $0x88] sm:$0xff]
      %v4328 = vld [vmem:[%s6 + $0x90] sm:$0xff]
      %v4329 = vld [vmem:[%s6 + $0x98] sm:$0xff]
      %v4330 = vld [vmem:[%s6 + $0xa0] sm:$0xff]
      %v4331 = vld [vmem:[%s6 + $0xa8] sm:$0xff]
      %v4332 = vld [vmem:[%s6 + $0xb0] sm:$0xff]
      %v4333 = vld [vmem:[%s6 + $0xb8] sm:$0xff]
      %v4337 = vrot.slane %v3968, 1
      %v4338 = vrot.slane %v3969, 1
      %v4339 = vsel %vm909, %v4337, %v4338
      %v4340 = vrot.slane %v3970, 1
      %v4341 = vsel %vm909, %v4338, %v4340
      %4342 = vrot.lane.b32.xlu0 %v4339, 64
      %v4343 = vpop.permute.xlu0 %4342
      %4344 = vrot.lane.b32.xlu0 %v4341, 64
      %v4345 = vpop.permute.xlu0 %4344
      %v4348 = vrot.slane %v3968, 2
      %v4349 = vrot.slane %v3969, 2
      %v4350 = vsel %vm1086, %v4348, %v4349
      %v4351 = vrot.slane %v3970, 2
      %v4352 = vsel %vm1086, %v4349, %v4351
      %v4353 = vsel %vm428, %v3968, %v4343
      %v4354 = vsel %vm428, %v3969, %v4345
      %s4355 = scalar_lea.vmem %s6, 192
      %v4356 = vld [vmem:[%s4355] sm:$0xff]
      %v4357 = vld [vmem:[%s4355 + $0x8] sm:$0xff]
      %v4358 = vld [vmem:[%s4355 + $0x10] sm:$0xff]
      %v4359 = vld [vmem:[%s4355 + $0x18] sm:$0xff]
      %v4360 = vld [vmem:[%s4355 + $0x20] sm:$0xff]
      %v4361 = vld [vmem:[%s4355 + $0x28] sm:$0xff]
      %v4362 = vld [vmem:[%s4355 + $0x30] sm:$0xff]
      %v4363 = vld [vmem:[%s4355 + $0x38] sm:$0xff]
      %v4364 = vld [vmem:[%s4355 + $0x40] sm:$0xff]
      %v4365 = vld [vmem:[%s4355 + $0x48] sm:$0xff]
      %v4366 = vld [vmem:[%s4355 + $0x50] sm:$0xff]
      %v4367 = vld [vmem:[%s4355 + $0x58] sm:$0xff]
      %v4368 = vld [vmem:[%s4355 + $0x60] sm:$0xff]
      %v4369 = vld [vmem:[%s4355 + $0x68] sm:$0xff]
      %v4370 = vld [vmem:[%s4355 + $0x70] sm:$0xff]
      %v4371 = vld [vmem:[%s4355 + $0x78] sm:$0xff]
      %v4372 = vld [vmem:[%s4355 + $0x80] sm:$0xff]
      %v4373 = vld [vmem:[%s4355 + $0x88] sm:$0xff]
      %v4374 = vld [vmem:[%s4355 + $0x90] sm:$0xff]
      %v4375 = vld [vmem:[%s4355 + $0x98] sm:$0xff]
      %v4376 = vld [vmem:[%s4355 + $0xa0] sm:$0xff]
      %v4377 = vld [vmem:[%s4355 + $0xa8] sm:$0xff]
      %v4378 = vld [vmem:[%s4355 + $0xb0] sm:$0xff]
      %v4379 = vld [vmem:[%s4355 + $0xb8] sm:$0xff]
      %v4380 = vsel %vm428, %v4205, 0
      %v4382 = vsel %vm428, %v4207, 0
      %v4384 = vsel %vm428, %v4210, 0
      %v4386 = vsel %vm428, %v4212, 0
      %v4388 = vsel %vm428, %v4215, 0
      %v4390 = vsel %vm428, %v4217, 0
      %v4392 = vsel %vm428, %v4220, 0
      %v4394 = vsel %vm428, %v4222, 0
      %v4396 = vsel %vm428, %v4225, 0
      %v4398 = vsel %vm428, %v4227, 0
      %v4400 = vsel %vm428, %v4230, 0
      %v4402 = vsel %vm428, %v4232, 0
      %v4404 = vsel %vm428, %v4235, 0
      %v4406 = vsel %vm428, %v4237, 0
      %v4408 = vsel %vm428, %v4240, 0
      %v4410 = vsel %vm428, %v4242, 0
      %v4412 = vsel %vm428, %v4245, 0
      %v4414 = vsel %vm428, %v4247, 0
      %v4416 = vsel %vm428, %v4250, 0
      %v4418 = vsel %vm428, %v4252, 0
      %v4420 = vsel %vm428, %v4255, 0
      %v4422 = vsel %vm428, %v4257, 0
      %v4424 = vsel %vm428, %v4260, 0
      %v4426 = vsel %vm428, %v4262, 0
      %v4428 = vsel %vm428, %v4265, 0
      %v4430 = vsel %vm428, %v4267, 0
      %v4432 = vsel %vm428, %v4270, 0
      %v4434 = vsel %vm428, %v4272, 0
      %v4436 = vsel %vm428, %v4275, 0
      %v4438 = vsel %vm428, %v4277, 0
      %v4440 = vsel %vm428, %v4350, 0
      %v4442 = vsel %vm428, %v4352, 0
      %4444 = vmatprep.subr.mxu0 0.0
      %4445 = vmatpush1.msra.mxu0 %v4356
      %4446 = vmatprep.subr.mxu0 0.0
      %4447 = vmatpush1.msra.mxu0 %v4357
      %4448 = vmatprep.subr.mxu0 0.0
      %4449 = vmatpush1.msra.mxu0 %v4358
      %4450 = vmatprep.subr.mxu0 0.0
      %4451 = vmatpush1.msra.mxu0 %v4359
      %4452 = vmatprep.subr.mxu0 0.0
      %4453 = vmatpush1.msra.mxu0 %v4360
      %4454 = vmatprep.subr.mxu0 0.0
      %4455 = vmatpush1.msra.mxu0 %v4361
      %4456 = vmatprep.subr.mxu0 0.0
      %4457 = vmatpush1.msra.mxu0 %v4362
      %4458 = vmatprep.subr.mxu0 0.0
      %4459 = vmatpush1.msra.mxu0 %v4363
      %4460 = vmatprep.subr.mxu0 0.0
      %4461 = vmatpush1.msra.mxu0 %v4364
      %4462 = vmatprep.subr.mxu0 0.0
      %4463 = vmatpush1.msra.mxu0 %v4365
      %4464 = vmatprep.subr.mxu0 0.0
      %4465 = vmatpush1.msra.mxu0 %v4366
      %4466 = vmatprep.subr.mxu0 0.0
      %4467 = vmatpush1.msra.mxu0 %v4367
      %4468 = vmatprep.subr.mxu0 0.0
      %4469 = vmatpush1.msra.mxu0 %v4368
      %4470 = vmatprep.subr.mxu0 0.0
      %4471 = vmatpush1.msra.mxu0 %v4369
      %4472 = vmatprep.subr.mxu0 0.0
      %4473 = vmatpush1.msra.mxu0 %v4370
      %4474 = vmatprep.subr.mxu0 0.0
      %4475 = vmatpush1.msra.mxu0 %v4371
      %4476 = vmatprep.subr.mxu0 0.0
      %4477 = vmatpush1.msra.mxu0 %v4372
      %4478 = vmatprep.subr.mxu0 0.0
      %4479 = vmatpush1.msra.mxu0 %v4373
      %4480 = vmatprep.subr.mxu0 0.0
      %4481 = vmatpush1.msra.mxu0 %v4374
      %4482 = vmatprep.subr.mxu0 0.0
      %4483 = vmatpush1.msra.mxu0 %v4375
      %4484 = vmatprep.subr.mxu0 0.0
      %4485 = vmatpush1.msra.mxu0 %v4376
      %4486 = vmatprep.subr.mxu0 0.0
      %4487 = vmatpush1.msra.mxu0 %v4377
      %4488 = vmatprep.subr.mxu0 0.0
      %4489 = vmatpush1.msra.mxu0 %v4378
      %4490 = vmatprep.subr.mxu0 0.0
      %4491 = vmatpush1.msra.mxu0 %v4379
      %4492 = vmatprep.subr.mxu0 0.0
      %4493 = vmatpush1.msra.mxu0 0.0
      %4494 = vmatprep.subr.mxu0 0.0
      %4495 = vmatpush1.msra.mxu0 0.0
      %4496 = vmatprep.subr.mxu0 0.0
      %4497 = vmatpush1.msra.mxu0 0.0
      %4498 = vmatprep.subr.mxu0 0.0
      %4499 = vmatpush1.msra.mxu0 0.0
      %4500 = vmatprep.subr.mxu0 0.0
      %4501 = vmatpush1.msra.mxu0 0.0
      %4502 = vmatprep.subr.mxu0 0.0
      %4503 = vmatpush1.msra.mxu0 0.0
      %4504 = vmatprep.subr.mxu0 0.0
      %4505 = vmatpush1.msra.mxu0 0.0
      %4506 = vmatprep.subr.mxu0 0.0
      %4507 = vmatpush1.msra.mxu0 0.0
      %4508 = vmatprep.mubr.f32.mxu0 %v4380
      %4509 = vmatmul.mubr.f32.gmra.mrb[0].mxu0 %v4280
      %v4510 = vpop.f32.mrb[0].mxu0
      %v4511 = vadd.f32 0.0, %v4510
      %v4512 = vpop.f32.mrb[0].mxu0
      %4513 = vmatprep.mubr.f32.mxu0 %v4382
      %4514 = vmatmul.mubr.f32.gmra.mrb[0].mxu0 %v4281
      %v4515 = vpop.f32.mrb[0].mxu0
      %v4516 = vadd.f32 0.0, %v4515
      %v4517 = vpop.f32.mrb[0].mxu0
      %4518 = vmatprep.mubr.f32.mxu0 %v4384
      %4519 = vmatmul.mubr.f32.gmra.mrb[0].mxu0 %v4282
      %v4520 = vpop.f32.mrb[0].mxu0
      %v4521 = vadd.f32 0.0, %v4520
      %v4522 = vpop.f32.mrb[0].mxu0
      %4523 = vmatprep.mubr.f32.mxu0 %v4386
      %4524 = vmatmul.mubr.f32.gmra.mrb[0].mxu0 %v4283
      %v4525 = vpop.f32.mrb[0].mxu0
      %v4526 = vadd.f32 0.0, %v4525
      %v4527 = vpop.f32.mrb[0].mxu0
      %4528 = vmatprep.mubr.f32.mxu0 %v4388
      %4529 = vmatmul.mubr.f32.gmra.mrb[0].mxu0 %v4284
      %v4530 = vpop.f32.mrb[0].mxu0
      %v4531 = vadd.f32 0.0, %v4530
      %v4532 = vpop.f32.mrb[0].mxu0
      %4533 = vmatprep.mubr.f32.mxu0 %v4390
      %4534 = vmatmul.mubr.f32.gmra.mrb[0].mxu0 %v4285
      %v4535 = vpop.f32.mrb[0].mxu0
      %v4536 = vadd.f32 0.0, %v4535
      %v4537 = vpop.f32.mrb[0].mxu0
      %4538 = vmatprep.mubr.f32.mxu0 %v4392
      %4539 = vmatmul.mubr.f32.gmra.mrb[0].mxu0 %v4286
      %v4540 = vpop.f32.mrb[0].mxu0
      %v4541 = vadd.f32 0.0, %v4540
      %v4542 = vpop.f32.mrb[0].mxu0
      %4543 = vmatprep.mubr.f32.mxu0 %v4394
      %4544 = vmatmul.mubr.f32.gmra.mrb[0].mxu0 %v4287
      %v4545 = vpop.f32.mrb[0].mxu0
      %v4546 = vadd.f32 0.0, %v4545
      %v4547 = vpop.f32.mrb[0].mxu0
      %4548 = vmatprep.mubr.f32.mxu0 %v4396
      %4549 = vmatmul.mubr.f32.gmra.mrb[0].mxu0 %v4288
      %v4550 = vpop.f32.mrb[0].mxu0
      %v4551 = vadd.f32 0.0, %v4550
      %v4552 = vpop.f32.mrb[0].mxu0
      %4553 = vmatprep.mubr.f32.mxu0 %v4398
      %4554 = vmatmul.mubr.f32.gmra.mrb[0].mxu0 %v4289
      %v4555 = vpop.f32.mrb[0].mxu0
      %v4556 = vadd.f32 0.0, %v4555
      %v4557 = vpop.f32.mrb[0].mxu0
      %4558 = vmatprep.mubr.f32.mxu0 %v4400
      %4559 = vmatmul.mubr.f32.gmra.mrb[0].mxu0 %v4290
      %v4560 = vpop.f32.mrb[0].mxu0
      %v4561 = vadd.f32 0.0, %v4560
      %v4562 = vpop.f32.mrb[0].mxu0
      %4563 = vmatprep.mubr.f32.mxu0 %v4402
      %4564 = vmatmul.mubr.f32.gmra.mrb[0].mxu0 %v4291
      %v4565 = vpop.f32.mrb[0].mxu0
      %v4566 = vadd.f32 0.0, %v4565
      %v4567 = vpop.f32.mrb[0].mxu0
      %4568 = vmatprep.mubr.f32.mxu0 %v4404
      %4569 = vmatmul.mubr.f32.gmra.mrb[0].mxu0 %v4292
      %v4570 = vpop.f32.mrb[0].mxu0
      %v4571 = vadd.f32 0.0, %v4570
      %v4572 = vpop.f32.mrb[0].mxu0
      %4573 = vmatprep.mubr.f32.mxu0 %v4406
      %4574 = vmatmul.mubr.f32.gmra.mrb[0].mxu0 %v4293
      %v4575 = vpop.f32.mrb[0].mxu0
      %v4576 = vadd.f32 0.0, %v4575
      %v4577 = vpop.f32.mrb[0].mxu0
      %4578 = vmatprep.mubr.f32.mxu0 %v4408
      %4579 = vmatmul.mubr.f32.gmra.mrb[0].mxu0 %v4294
      %v4580 = vpop.f32.mrb[0].mxu0
      %v4581 = vadd.f32 0.0, %v4580
      %v4582 = vpop.f32.mrb[0].mxu0
      %4583 = vmatprep.mubr.f32.mxu0 %v4410
      %4584 = vmatmul.mubr.f32.gmra.mrb[0].mxu0 %v4295
      %v4585 = vpop.f32.mrb[0].mxu0
      %v4586 = vadd.f32 0.0, %v4585
      %v4587 = vpop.f32.mrb[0].mxu0
      %4588 = vmatprep.mubr.f32.mxu0 %v4412
      %4589 = vmatmul.mubr.f32.gmra.mrb[0].mxu0 %v4296
      %v4590 = vpop.f32.mrb[0].mxu0
      %v4591 = vadd.f32 0.0, %v4590
      %v4592 = vpop.f32.mrb[0].mxu0
      %4593 = vmatprep.mubr.f32.mxu0 %v4414
      %4594 = vmatmul.mubr.f32.gmra.mrb[0].mxu0 %v4297
      %v4595 = vpop.f32.mrb[0].mxu0
      %v4596 = vadd.f32 0.0, %v4595
      %v4597 = vpop.f32.mrb[0].mxu0
      %4598 = vmatprep.mubr.f32.mxu0 %v4416
      %4599 = vmatmul.mubr.f32.gmra.mrb[0].mxu0 %v4298
      %v4600 = vpop.f32.mrb[0].mxu0
      %v4601 = vadd.f32 0.0, %v4600
      %v4602 = vpop.f32.mrb[0].mxu0
      %4603 = vmatprep.mubr.f32.mxu0 %v4418
      %4604 = vmatmul.mubr.f32.gmra.mrb[0].mxu0 %v4299
      %v4605 = vpop.f32.mrb[0].mxu0
      %v4606 = vadd.f32 0.0, %v4605
      %v4607 = vpop.f32.mrb[0].mxu0
      %4608 = vmatprep.mubr.f32.mxu0 %v4420
      %4609 = vmatmul.mubr.f32.gmra.mrb[0].mxu0 %v4300
      %v4610 = vpop.f32.mrb[0].mxu0
      %v4611 = vadd.f32 0.0, %v4610
      %v4612 = vpop.f32.mrb[0].mxu0
      %4613 = vmatprep.mubr.f32.mxu0 %v4422
      %4614 = vmatmul.mubr.f32.gmra.mrb[0].mxu0 %v4301
      %v4615 = vpop.f32.mrb[0].mxu0
      %v4616 = vadd.f32 0.0, %v4615
      %v4617 = vpop.f32.mrb[0].mxu0
      %4618 = vmatprep.mubr.f32.mxu0 %v4424
      %4619 = vmatmul.mubr.f32.gmra.mrb[0].mxu0 %v4302
      %v4620 = vpop.f32.mrb[0].mxu0
      %v4621 = vadd.f32 0.0, %v4620
      %v4622 = vpop.f32.mrb[0].mxu0
      %4623 = vmatprep.mubr.f32.mxu0 %v4426
      %4624 = vmatmul.mubr.f32.gmra.mrb[0].mxu0 %v4303
      %v4625 = vpop.f32.mrb[0].mxu0
      %v4626 = vadd.f32 0.0, %v4625
      %v4627 = vpop.f32.mrb[0].mxu0
      %4628 = vmatprep.mubr.f32.mxu0 %v4428
      %4629 = vmatmul.mubr.f32.gmra.mrb[0].mxu0 %v4304
      %v4630 = vpop.f32.mrb[0].mxu0
      %v4631 = vadd.f32 0.0, %v4630
      %v4632 = vpop.f32.mrb[0].mxu0
      %4633 = vmatprep.mubr.f32.mxu0 %v4430
      %4634 = vmatmul.mubr.f32.gmra.mrb[0].mxu0 %v4305
      %v4635 = vpop.f32.mrb[0].mxu0
      %v4636 = vadd.f32 0.0, %v4635
      %v4637 = vpop.f32.mrb[0].mxu0
      %4638 = vmatprep.mubr.f32.mxu0 %v4432
      %4639 = vmatmul.mubr.f32.gmra.mrb[0].mxu0 %v4306
      %v4640 = vpop.f32.mrb[0].mxu0
      %v4641 = vadd.f32 0.0, %v4640
      %v4642 = vpop.f32.mrb[0].mxu0
      %4643 = vmatprep.mubr.f32.mxu0 %v4434
      %4644 = vmatmul.mubr.f32.gmra.mrb[0].mxu0 %v4307
      %v4645 = vpop.f32.mrb[0].mxu0
      %v4646 = vadd.f32 0.0, %v4645
      %v4647 = vpop.f32.mrb[0].mxu0
      %4648 = vmatprep.mubr.f32.mxu0 %v4436
      %4649 = vmatmul.mubr.f32.gmra.mrb[0].mxu0 %v4308
      %v4650 = vpop.f32.mrb[0].mxu0
      %v4651 = vadd.f32 0.0, %v4650
      %v4652 = vpop.f32.mrb[0].mxu0
      %4653 = vmatprep.mubr.f32.mxu0 %v4438
      %4654 = vmatmul.mubr.f32.gmra.mrb[0].mxu0 %v4309
      %v4655 = vpop.f32.mrb[0].mxu0
      %v4656 = vadd.f32 0.0, %v4655
      %v4657 = vpop.f32.mrb[0].mxu0
      %4658 = vmatprep.mubr.f32.mxu0 %v4440
      %4659 = vmatmul.mubr.f32.gmra.mrb[0].mxu0 %v4353
      %v4660 = vpop.f32.mrb[0].mxu0
      %v4661 = vadd.f32 0.0, %v4660
      %v4662 = vpop.f32.mrb[0].mxu0
      %4663 = vmatprep.mubr.f32.mxu0 %v4442
      %4664 = vmatmul.mubr.f32.gmra.mrb[0].mxu0 %v4354
      %v4665 = vpop.f32.mrb[0].mxu0
      %v4666 = vadd.f32 0.0, %v4665
      %v4667 = vpop.f32.mrb[0].mxu0
      %4668 = vdwg.mxu0
      %v4669 = vsel %vm428, %v4200, 0
      %v4671 = vsel %vm428, %v4202, 0
      %4673 = vmatprep.subr.mxu0 0.0
      %4674 = vmatpush1.msra.mxu0 %v4310
      %4675 = vmatprep.subr.mxu0 0.0
      %4676 = vmatpush1.msra.mxu0 %v4311
      %4677 = vmatprep.subr.mxu0 0.0
      %4678 = vmatpush1.msra.mxu0 %v4312
      %4679 = vmatprep.subr.mxu0 0.0
      %4680 = vmatpush1.msra.mxu0 %v4313
      %4681 = vmatprep.subr.mxu0 0.0
      %4682 = vmatpush1.msra.mxu0 %v4314
      %4683 = vmatprep.subr.mxu0 0.0
      %4684 = vmatpush1.msra.mxu0 %v4315
      %4685 = vmatprep.subr.mxu0 0.0
      %4686 = vmatpush1.msra.mxu0 %v4316
      %4687 = vmatprep.subr.mxu0 0.0
      %4688 = vmatpush1.msra.mxu0 %v4317
      %4689 = vmatprep.subr.mxu0 0.0
      %4690 = vmatpush1.msra.mxu0 %v4318
      %4691 = vmatprep.subr.mxu0 0.0
      %4692 = vmatpush1.msra.mxu0 %v4319
      %4693 = vmatprep.subr.mxu0 0.0
      %4694 = vmatpush1.msra.mxu0 %v4320
      %4695 = vmatprep.subr.mxu0 0.0
      %4696 = vmatpush1.msra.mxu0 %v4321
      %4697 = vmatprep.subr.mxu0 0.0
      %4698 = vmatpush1.msra.mxu0 %v4322
      %4699 = vmatprep.subr.mxu0 0.0
      %4700 = vmatpush1.msra.mxu0 %v4323
      %4701 = vmatprep.subr.mxu0 0.0
      %4702 = vmatpush1.msra.mxu0 %v4324
      %4703 = vmatprep.subr.mxu0 0.0
      %4704 = vmatpush1.msra.mxu0 %v4325
      %4705 = vmatprep.subr.mxu0 0.0
      %4706 = vmatpush1.msra.mxu0 %v4326
      %4707 = vmatprep.subr.mxu0 0.0
      %4708 = vmatpush1.msra.mxu0 %v4327
      %4709 = vmatprep.subr.mxu0 0.0
      %4710 = vmatpush1.msra.mxu0 %v4328
      %4711 = vmatprep.subr.mxu0 0.0
      %4712 = vmatpush1.msra.mxu0 %v4329
      %4713 = vmatprep.subr.mxu0 0.0
      %4714 = vmatpush1.msra.mxu0 %v4330
      %4715 = vmatprep.subr.mxu0 0.0
      %4716 = vmatpush1.msra.mxu0 %v4331
      %4717 = vmatprep.subr.mxu0 0.0
      %4718 = vmatpush1.msra.mxu0 %v4332
      %4719 = vmatprep.subr.mxu0 0.0
      %4720 = vmatpush1.msra.mxu0 %v4333
      %4721 = vmatprep.subr.mxu0 0.0
      %4722 = vmatpush1.msra.mxu0 0.0
      %4723 = vmatprep.subr.mxu0 0.0
      %4724 = vmatpush1.msra.mxu0 0.0
      %4725 = vmatprep.subr.mxu0 0.0
      %4726 = vmatpush1.msra.mxu0 0.0
      %4727 = vmatprep.subr.mxu0 0.0
      %4728 = vmatpush1.msra.mxu0 0.0
      %4729 = vmatprep.subr.mxu0 0.0
      %4730 = vmatpush1.msra.mxu0 0.0
      %4731 = vmatprep.subr.mxu0 0.0
      %4732 = vmatpush1.msra.mxu0 0.0
      %4733 = vmatprep.subr.mxu0 0.0
      %4734 = vmatpush1.msra.mxu0 0.0
      %4735 = vmatprep.subr.mxu0 0.0
      %4736 = vmatpush1.msra.mxu0 0.0
      %4737 = vmatprep.mubr.f32.mxu0 %v4669
      %4738 = vmatmul.mubr.f32.gmra.mrb[0].mxu0 %v4278
      %v4739 = vpop.f32.mrb[0].mxu0
      %v4740 = vadd.f32 %v4511, %v4739
      %v4741 = vpop.f32.mrb[0].mxu0
      %4742 = vmatprep.mubr.f32.mxu0 %v4671
      %4743 = vmatmul.mubr.f32.gmra.mrb[0].mxu0 %v4279
      %v4744 = vpop.f32.mrb[0].mxu0
      %v4745 = vadd.f32 %v4516, %v4744
      %v4746 = vpop.f32.mrb[0].mxu0
      %4747 = vmatprep.mubr.f32.mxu0 %v4380
      %4748 = vmatmul.mubr.f32.gmra.mrb[0].mxu0 %v4280
      %v4749 = vpop.f32.mrb[0].mxu0
      %v4750 = vadd.f32 %v4521, %v4749
      %v4751 = vpop.f32.mrb[0].mxu0
      %4752 = vmatprep.mubr.f32.mxu0 %v4382
      %4753 = vmatmul.mubr.f32.gmra.mrb[0].mxu0 %v4281
      %v4754 = vpop.f32.mrb[0].mxu0
      %v4755 = vadd.f32 %v4526, %v4754
      %v4756 = vpop.f32.mrb[0].mxu0
      %4757 = vmatprep.mubr.f32.mxu0 %v4384
      %4758 = vmatmul.mubr.f32.gmra.mrb[0].mxu0 %v4282
      %v4759 = vpop.f32.mrb[0].mxu0
      %v4760 = vadd.f32 %v4531, %v4759
      %v4761 = vpop.f32.mrb[0].mxu0
      %4762 = vmatprep.mubr.f32.mxu0 %v4386
      %4763 = vmatmul.mubr.f32.gmra.mrb[0].mxu0 %v4283
      %v4764 = vpop.f32.mrb[0].mxu0
      %v4765 = vadd.f32 %v4536, %v4764
      %v4766 = vpop.f32.mrb[0].mxu0
      %4767 = vmatprep.mubr.f32.mxu0 %v4388
      %4768 = vmatmul.mubr.f32.gmra.mrb[0].mxu0 %v4284
      %v4769 = vpop.f32.mrb[0].mxu0
      %v4770 = vadd.f32 %v4541, %v4769
      %v4771 = vpop.f32.mrb[0].mxu0
      %4772 = vmatprep.mubr.f32.mxu0 %v4390
      %4773 = vmatmul.mubr.f32.gmra.mrb[0].mxu0 %v4285
      %v4774 = vpop.f32.mrb[0].mxu0
      %v4775 = vadd.f32 %v4546, %v4774
      %v4776 = vpop.f32.mrb[0].mxu0
      %4777 = vmatprep.mubr.f32.mxu0 %v4392
      %4778 = vmatmul.mubr.f32.gmra.mrb[0].mxu0 %v4286
      %v4779 = vpop.f32.mrb[0].mxu0
      %v4780 = vadd.f32 %v4551, %v4779
      %v4781 = vpop.f32.mrb[0].mxu0
      %4782 = vmatprep.mubr.f32.mxu0 %v4394
      %4783 = vmatmul.mubr.f32.gmra.mrb[0].mxu0 %v4287
      %v4784 = vpop.f32.mrb[0].mxu0
      %v4785 = vadd.f32 %v4556, %v4784
      %v4786 = vpop.f32.mrb[0].mxu0
      %4787 = vmatprep.mubr.f32.mxu0 %v4396
      %4788 = vmatmul.mubr.f32.gmra.mrb[0].mxu0 %v4288
      %v4789 = vpop.f32.mrb[0].mxu0
      %v4790 = vadd.f32 %v4561, %v4789
      %v4791 = vpop.f32.mrb[0].mxu0
      %4792 = vmatprep.mubr.f32.mxu0 %v4398
      %4793 = vmatmul.mubr.f32.gmra.mrb[0].mxu0 %v4289
      %v4794 = vpop.f32.mrb[0].mxu0
      %v4795 = vadd.f32 %v4566, %v4794
      %v4796 = vpop.f32.mrb[0].mxu0
      %4797 = vmatprep.mubr.f32.mxu0 %v4400
      %4798 = vmatmul.mubr.f32.gmra.mrb[0].mxu0 %v4290
      %v4799 = vpop.f32.mrb[0].mxu0
      %v4800 = vadd.f32 %v4571, %v4799
      %v4801 = vpop.f32.mrb[0].mxu0
      %4802 = vmatprep.mubr.f32.mxu0 %v4402
      %4803 = vmatmul.mubr.f32.gmra.mrb[0].mxu0 %v4291
      %v4804 = vpop.f32.mrb[0].mxu0
      %v4805 = vadd.f32 %v4576, %v4804
      %v4806 = vpop.f32.mrb[0].mxu0
      %4807 = vmatprep.mubr.f32.mxu0 %v4404
      %4808 = vmatmul.mubr.f32.gmra.mrb[0].mxu0 %v4292
      %v4809 = vpop.f32.mrb[0].mxu0
      %v4810 = vadd.f32 %v4581, %v4809
      %v4811 = vpop.f32.mrb[0].mxu0
      %4812 = vmatprep.mubr.f32.mxu0 %v4406
      %4813 = vmatmul.mubr.f32.gmra.mrb[0].mxu0 %v4293
      %v4814 = vpop.f32.mrb[0].mxu0
      %v4815 = vadd.f32 %v4586, %v4814
      %v4816 = vpop.f32.mrb[0].mxu0
      %4817 = vmatprep.mubr.f32.mxu0 %v4408
      %4818 = vmatmul.mubr.f32.gmra.mrb[0].mxu0 %v4294
      %v4819 = vpop.f32.mrb[0].mxu0
      %v4820 = vadd.f32 %v4591, %v4819
      %v4821 = vpop.f32.mrb[0].mxu0
      %4822 = vmatprep.mubr.f32.mxu0 %v4410
      %4823 = vmatmul.mubr.f32.gmra.mrb[0].mxu0 %v4295
      %v4824 = vpop.f32.mrb[0].mxu0
      %v4825 = vadd.f32 %v4596, %v4824
      %v4826 = vpop.f32.mrb[0].mxu0
      %4827 = vmatprep.mubr.f32.mxu0 %v4412
      %4828 = vmatmul.mubr.f32.gmra.mrb[0].mxu0 %v4296
      %v4829 = vpop.f32.mrb[0].mxu0
      %v4830 = vadd.f32 %v4601, %v4829
      %v4831 = vpop.f32.mrb[0].mxu0
      %4832 = vmatprep.mubr.f32.mxu0 %v4414
      %4833 = vmatmul.mubr.f32.gmra.mrb[0].mxu0 %v4297
      %v4834 = vpop.f32.mrb[0].mxu0
      %v4835 = vadd.f32 %v4606, %v4834
      %v4836 = vpop.f32.mrb[0].mxu0
      %4837 = vmatprep.mubr.f32.mxu0 %v4416
      %4838 = vmatmul.mubr.f32.gmra.mrb[0].mxu0 %v4298
      %v4839 = vpop.f32.mrb[0].mxu0
      %v4840 = vadd.f32 %v4611, %v4839
      %v4841 = vpop.f32.mrb[0].mxu0
      %4842 = vmatprep.mubr.f32.mxu0 %v4418
      %4843 = vmatmul.mubr.f32.gmra.mrb[0].mxu0 %v4299
      %v4844 = vpop.f32.mrb[0].mxu0
      %v4845 = vadd.f32 %v4616, %v4844
      %v4846 = vpop.f32.mrb[0].mxu0
      %4847 = vmatprep.mubr.f32.mxu0 %v4420
      %4848 = vmatmul.mubr.f32.gmra.mrb[0].mxu0 %v4300
      %v4849 = vpop.f32.mrb[0].mxu0
      %v4850 = vadd.f32 %v4621, %v4849
      %v4851 = vpop.f32.mrb[0].mxu0
      %4852 = vmatprep.mubr.f32.mxu0 %v4422
      %4853 = vmatmul.mubr.f32.gmra.mrb[0].mxu0 %v4301
      %v4854 = vpop.f32.mrb[0].mxu0
      %v4855 = vadd.f32 %v4626, %v4854
      %v4856 = vpop.f32.mrb[0].mxu0
      %4857 = vmatprep.mubr.f32.mxu0 %v4424
      %4858 = vmatmul.mubr.f32.gmra.mrb[0].mxu0 %v4302
      %v4859 = vpop.f32.mrb[0].mxu0
      %v4860 = vadd.f32 %v4631, %v4859
      %v4861 = vpop.f32.mrb[0].mxu0
      %4862 = vmatprep.mubr.f32.mxu0 %v4426
      %4863 = vmatmul.mubr.f32.gmra.mrb[0].mxu0 %v4303
      %v4864 = vpop.f32.mrb[0].mxu0
      %v4865 = vadd.f32 %v4636, %v4864
      %v4866 = vpop.f32.mrb[0].mxu0
      %4867 = vmatprep.mubr.f32.mxu0 %v4428
      %4868 = vmatmul.mubr.f32.gmra.mrb[0].mxu0 %v4304
      %v4869 = vpop.f32.mrb[0].mxu0
      %v4870 = vadd.f32 %v4641, %v4869
      %v4871 = vpop.f32.mrb[0].mxu0
      %4872 = vmatprep.mubr.f32.mxu0 %v4430
      %4873 = vmatmul.mubr.f32.gmra.mrb[0].mxu0 %v4305
      %v4874 = vpop.f32.mrb[0].mxu0
      %v4875 = vadd.f32 %v4646, %v4874
      %v4876 = vpop.f32.mrb[0].mxu0
      %4877 = vmatprep.mubr.f32.mxu0 %v4432
      %4878 = vmatmul.mubr.f32.gmra.mrb[0].mxu0 %v4306
      %v4879 = vpop.f32.mrb[0].mxu0
      %v4880 = vadd.f32 %v4651, %v4879
      %v4881 = vpop.f32.mrb[0].mxu0
      %4882 = vmatprep.mubr.f32.mxu0 %v4434
      %4883 = vmatmul.mubr.f32.gmra.mrb[0].mxu0 %v4307
      %v4884 = vpop.f32.mrb[0].mxu0
      %v4885 = vadd.f32 %v4656, %v4884
      %v4886 = vpop.f32.mrb[0].mxu0
      %4887 = vmatprep.mubr.f32.mxu0 %v4436
      %4888 = vmatmul.mubr.f32.gmra.mrb[0].mxu0 %v4308
      %v4889 = vpop.f32.mrb[0].mxu0
      %v4890 = vadd.f32 %v4661, %v4889
      %v4891 = vpop.f32.mrb[0].mxu0
      %4892 = vmatprep.mubr.f32.mxu0 %v4438
      %4893 = vmatmul.mubr.f32.gmra.mrb[0].mxu0 %v4309
      %v4894 = vpop.f32.mrb[0].mxu0
      %v4895 = vadd.f32 %v4666, %v4894
      %v4896 = vpop.f32.mrb[0].mxu0
      %4897 = vdwg.mxu0
      %v4901 = vrot.slane %v3971, 1
      %v4902 = vrot.slane %v3972, 1
      %v4903 = vsel %vm909, %v4901, %v4902
      %v4904 = vrot.slane %v3973, 1
      %v4905 = vsel %vm909, %v4902, %v4904
      %4906 = vrot.lane.b32.xlu0 %v4903, 64
      %v4907 = vpop.permute.xlu0 %4906
      %4908 = vrot.lane.b32.xlu0 %v4905, 64
      %v4909 = vpop.permute.xlu0 %4908
      %v4912 = vrot.slane %v3971, 2
      %v4913 = vrot.slane %v3972, 2
      %v4914 = vsel %vm1086, %v4912, %v4913
      %v4915 = vrot.slane %v3973, 2
      %v4916 = vsel %vm1086, %v4913, %v4915
      %v4917 = vsel %vm428, %v3971, %v4907
      %v4918 = vsel %vm428, %v3972, %v4909
      %s4919 = scalar_lea.vmem %s6, 384
      %v4920 = vld [vmem:[%s4919] sm:$0xff]
      %v4921 = vld [vmem:[%s4919 + $0x8] sm:$0xff]
      %v4922 = vld [vmem:[%s4919 + $0x10] sm:$0xff]
      %v4923 = vld [vmem:[%s4919 + $0x18] sm:$0xff]
      %v4924 = vld [vmem:[%s4919 + $0x20] sm:$0xff]
      %v4925 = vld [vmem:[%s4919 + $0x28] sm:$0xff]
      %v4926 = vld [vmem:[%s4919 + $0x30] sm:$0xff]
      %v4927 = vld [vmem:[%s4919 + $0x38] sm:$0xff]
      %v4928 = vld [vmem:[%s4919 + $0x40] sm:$0xff]
      %v4929 = vld [vmem:[%s4919 + $0x48] sm:$0xff]
      %v4930 = vld [vmem:[%s4919 + $0x50] sm:$0xff]
      %v4931 = vld [vmem:[%s4919 + $0x58] sm:$0xff]
      %v4932 = vld [vmem:[%s4919 + $0x60] sm:$0xff]
      %v4933 = vld [vmem:[%s4919 + $0x68] sm:$0xff]
      %v4934 = vld [vmem:[%s4919 + $0x70] sm:$0xff]
      %v4935 = vld [vmem:[%s4919 + $0x78] sm:$0xff]
      %v4936 = vld [vmem:[%s4919 + $0x80] sm:$0xff]
      %v4937 = vld [vmem:[%s4919 + $0x88] sm:$0xff]
      %v4938 = vld [vmem:[%s4919 + $0x90] sm:$0xff]
      %v4939 = vld [vmem:[%s4919 + $0x98] sm:$0xff]
      %v4940 = vld [vmem:[%s4919 + $0xa0] sm:$0xff]
      %v4941 = vld [vmem:[%s4919 + $0xa8] sm:$0xff]
      %v4942 = vld [vmem:[%s4919 + $0xb0] sm:$0xff]
      %v4943 = vld [vmem:[%s4919 + $0xb8] sm:$0xff]
      %v4944 = vsel %vm428, %v4914, 0
      %v4946 = vsel %vm428, %v4916, 0
      %4948 = vmatprep.subr.mxu0 0.0
      %4949 = vmatpush1.msra.mxu0 %v4920
      %4950 = vmatprep.subr.mxu0 0.0
      %4951 = vmatpush1.msra.mxu0 %v4921
      %4952 = vmatprep.subr.mxu0 0.0
      %4953 = vmatpush1.msra.mxu0 %v4922
      %4954 = vmatprep.subr.mxu0 0.0
      %4955 = vmatpush1.msra.mxu0 %v4923
      %4956 = vmatprep.subr.mxu0 0.0
      %4957 = vmatpush1.msra.mxu0 %v4924
      %4958 = vmatprep.subr.mxu0 0.0
      %4959 = vmatpush1.msra.mxu0 %v4925
      %4960 = vmatprep.subr.mxu0 0.0
      %4961 = vmatpush1.msra.mxu0 %v4926
      %4962 = vmatprep.subr.mxu0 0.0
      %4963 = vmatpush1.msra.mxu0 %v4927
      %4964 = vmatprep.subr.mxu0 0.0
      %4965 = vmatpush1.msra.mxu0 %v4928
      %4966 = vmatprep.subr.mxu0 0.0
      %4967 = vmatpush1.msra.mxu0 %v4929
      %4968 = vmatprep.subr.mxu0 0.0
      %4969 = vmatpush1.msra.mxu0 %v4930
      %4970 = vmatprep.subr.mxu0 0.0
      %4971 = vmatpush1.msra.mxu0 %v4931
      %4972 = vmatprep.subr.mxu0 0.0
      %4973 = vmatpush1.msra.mxu0 %v4932
      %4974 = vmatprep.subr.mxu0 0.0
      %4975 = vmatpush1.msra.mxu0 %v4933
      %4976 = vmatprep.subr.mxu0 0.0
      %4977 = vmatpush1.msra.mxu0 %v4934
      %4978 = vmatprep.subr.mxu0 0.0
      %4979 = vmatpush1.msra.mxu0 %v4935
      %4980 = vmatprep.subr.mxu0 0.0
      %4981 = vmatpush1.msra.mxu0 %v4936
      %4982 = vmatprep.subr.mxu0 0.0
      %4983 = vmatpush1.msra.mxu0 %v4937
      %4984 = vmatprep.subr.mxu0 0.0
      %4985 = vmatpush1.msra.mxu0 %v4938
      %4986 = vmatprep.subr.mxu0 0.0
      %4987 = vmatpush1.msra.mxu0 %v4939
      %4988 = vmatprep.subr.mxu0 0.0
      %4989 = vmatpush1.msra.mxu0 %v4940
      %4990 = vmatprep.subr.mxu0 0.0
      %4991 = vmatpush1.msra.mxu0 %v4941
      %4992 = vmatprep.subr.mxu0 0.0
      %4993 = vmatpush1.msra.mxu0 %v4942
      %4994 = vmatprep.subr.mxu0 0.0
      %4995 = vmatpush1.msra.mxu0 %v4943
      %4996 = vmatprep.subr.mxu0 0.0
      %4997 = vmatpush1.msra.mxu0 0.0
      %4998 = vmatprep.subr.mxu0 0.0
      %4999 = vmatpush1.msra.mxu0 0.0
      %5000 = vmatprep.subr.mxu0 0.0
      %5001 = vmatpush1.msra.mxu0 0.0
      %5002 = vmatprep.subr.mxu0 0.0
      %5003 = vmatpush1.msra.mxu0 0.0
      %5004 = vmatprep.subr.mxu0 0.0
      %5005 = vmatpush1.msra.mxu0 0.0
      %5006 = vmatprep.subr.mxu0 0.0
      %5007 = vmatpush1.msra.mxu0 0.0
      %5008 = vmatprep.subr.mxu0 0.0
      %5009 = vmatpush1.msra.mxu0 0.0
      %5010 = vmatprep.subr.mxu0 0.0
      %5011 = vmatpush1.msra.mxu0 0.0
      %5012 = vmatprep.mubr.f32.mxu0 %v4384
      %5013 = vmatmul.mubr.f32.gmra.mrb[0].mxu0 %v4282
      %v5014 = vpop.f32.mrb[0].mxu0
      %v5015 = vadd.f32 0.0, %v5014
      %v5016 = vpop.f32.mrb[0].mxu0
      %5017 = vmatprep.mubr.f32.mxu0 %v4386
      %5018 = vmatmul.mubr.f32.gmra.mrb[0].mxu0 %v4283
      %v5019 = vpop.f32.mrb[0].mxu0
      %v5020 = vadd.f32 0.0, %v5019
      %v5021 = vpop.f32.mrb[0].mxu0
      %5022 = vmatprep.mubr.f32.mxu0 %v4388
      %5023 = vmatmul.mubr.f32.gmra.mrb[0].mxu0 %v4284
      %v5024 = vpop.f32.mrb[0].mxu0
      %v5025 = vadd.f32 0.0, %v5024
      %v5026 = vpop.f32.mrb[0].mxu0
      %5027 = vmatprep.mubr.f32.mxu0 %v4390
      %5028 = vmatmul.mubr.f32.gmra.mrb[0].mxu0 %v4285
      %v5029 = vpop.f32.mrb[0].mxu0
      %v5030 = vadd.f32 0.0, %v5029
      %v5031 = vpop.f32.mrb[0].mxu0
      %5032 = vmatprep.mubr.f32.mxu0 %v4392
      %5033 = vmatmul.mubr.f32.gmra.mrb[0].mxu0 %v4286
      %v5034 = vpop.f32.mrb[0].mxu0
      %v5035 = vadd.f32 0.0, %v5034
      %v5036 = vpop.f32.mrb[0].mxu0
      %5037 = vmatprep.mubr.f32.mxu0 %v4394
      %5038 = vmatmul.mubr.f32.gmra.mrb[0].mxu0 %v4287
      %v5039 = vpop.f32.mrb[0].mxu0
      %v5040 = vadd.f32 0.0, %v5039
      %v5041 = vpop.f32.mrb[0].mxu0
      %5042 = vmatprep.mubr.f32.mxu0 %v4396
      %5043 = vmatmul.mubr.f32.gmra.mrb[0].mxu0 %v4288
      %v5044 = vpop.f32.mrb[0].mxu0
      %v5045 = vadd.f32 0.0, %v5044
      %v5046 = vpop.f32.mrb[0].mxu0
      %5047 = vmatprep.mubr.f32.mxu0 %v4398
      %5048 = vmatmul.mubr.f32.gmra.mrb[0].mxu0 %v4289
      %v5049 = vpop.f32.mrb[0].mxu0
      %v5050 = vadd.f32 0.0, %v5049
      %v5051 = vpop.f32.mrb[0].mxu0
      %5052 = vmatprep.mubr.f32.mxu0 %v4400
      %5053 = vmatmul.mubr.f32.gmra.mrb[0].mxu0 %v4290
      %v5054 = vpop.f32.mrb[0].mxu0
      %v5055 = vadd.f32 0.0, %v5054
      %v5056 = vpop.f32.mrb[0].mxu0
      %5057 = vmatprep.mubr.f32.mxu0 %v4402
      %5058 = vmatmul.mubr.f32.gmra.mrb[0].mxu0 %v4291
      %v5059 = vpop.f32.mrb[0].mxu0
      %v5060 = vadd.f32 0.0, %v5059
      %v5061 = vpop.f32.mrb[0].mxu0
      %5062 = vmatprep.mubr.f32.mxu0 %v4404
      %5063 = vmatmul.mubr.f32.gmra.mrb[0].mxu0 %v4292
      %v5064 = vpop.f32.mrb[0].mxu0
      %v5065 = vadd.f32 0.0, %v5064
      %v5066 = vpop.f32.mrb[0].mxu0
      %5067 = vmatprep.mubr.f32.mxu0 %v4406
      %5068 = vmatmul.mubr.f32.gmra.mrb[0].mxu0 %v4293
      %v5069 = vpop.f32.mrb[0].mxu0
      %v5070 = vadd.f32 0.0, %v5069
      %v5071 = vpop.f32.mrb[0].mxu0
      %5072 = vmatprep.mubr.f32.mxu0 %v4408
      %5073 = vmatmul.mubr.f32.gmra.mrb[0].mxu0 %v4294
      %v5074 = vpop.f32.mrb[0].mxu0
      %v5075 = vadd.f32 0.0, %v5074
      %v5076 = vpop.f32.mrb[0].mxu0
      %5077 = vmatprep.mubr.f32.mxu0 %v4410
      %5078 = vmatmul.mubr.f32.gmra.mrb[0].mxu0 %v4295
      %v5079 = vpop.f32.mrb[0].mxu0
      %v5080 = vadd.f32 0.0, %v5079
      %v5081 = vpop.f32.mrb[0].mxu0
      %5082 = vmatprep.mubr.f32.mxu0 %v4412
      %5083 = vmatmul.mubr.f32.gmra.mrb[0].mxu0 %v4296
      %v5084 = vpop.f32.mrb[0].mxu0
      %v5085 = vadd.f32 0.0, %v5084
      %v5086 = vpop.f32.mrb[0].mxu0
      %5087 = vmatprep.mubr.f32.mxu0 %v4414
      %5088 = vmatmul.mubr.f32.gmra.mrb[0].mxu0 %v4297
      %v5089 = vpop.f32.mrb[0].mxu0
      %v5090 = vadd.f32 0.0, %v5089
      %v5091 = vpop.f32.mrb[0].mxu0
      %5092 = vmatprep.mubr.f32.mxu0 %v4416
      %5093 = vmatmul.mubr.f32.gmra.mrb[0].mxu0 %v4298
      %v5094 = vpop.f32.mrb[0].mxu0
      %v5095 = vadd.f32 0.0, %v5094
      %v5096 = vpop.f32.mrb[0].mxu0
      %5097 = vmatprep.mubr.f32.mxu0 %v4418
      %5098 = vmatmul.mubr.f32.gmra.mrb[0].mxu0 %v4299
      %v5099 = vpop.f32.mrb[0].mxu0
      %v5100 = vadd.f32 0.0, %v5099
      %v5101 = vpop.f32.mrb[0].mxu0
      %5102 = vmatprep.mubr.f32.mxu0 %v4420
      %5103 = vmatmul.mubr.f32.gmra.mrb[0].mxu0 %v4300
      %v5104 = vpop.f32.mrb[0].mxu0
      %v5105 = vadd.f32 0.0, %v5104
      %v5106 = vpop.f32.mrb[0].mxu0
      %5107 = vmatprep.mubr.f32.mxu0 %v4422
      %5108 = vmatmul.mubr.f32.gmra.mrb[0].mxu0 %v4301
      %v5109 = vpop.f32.mrb[0].mxu0
      %v5110 = vadd.f32 0.0, %v5109
      %v5111 = vpop.f32.mrb[0].mxu0
      %5112 = vmatprep.mubr.f32.mxu0 %v4424
      %5113 = vmatmul.mubr.f32.gmra.mrb[0].mxu0 %v4302
      %v5114 = vpop.f32.mrb[0].mxu0
      %v5115 = vadd.f32 0.0, %v5114
      %v5116 = vpop.f32.mrb[0].mxu0
      %5117 = vmatprep.mubr.f32.mxu0 %v4426
      %5118 = vmatmul.mubr.f32.gmra.mrb[0].mxu0 %v4303
      %v5119 = vpop.f32.mrb[0].mxu0
      %v5120 = vadd.f32 0.0, %v5119
      %v5121 = vpop.f32.mrb[0].mxu0
      %5122 = vmatprep.mubr.f32.mxu0 %v4428
      %5123 = vmatmul.mubr.f32.gmra.mrb[0].mxu0 %v4304
      %v5124 = vpop.f32.mrb[0].mxu0
      %v5125 = vadd.f32 0.0, %v5124
      %v5126 = vpop.f32.mrb[0].mxu0
      %5127 = vmatprep.mubr.f32.mxu0 %v4430
      %5128 = vmatmul.mubr.f32.gmra.mrb[0].mxu0 %v4305
      %v5129 = vpop.f32.mrb[0].mxu0
      %v5130 = vadd.f32 0.0, %v5129
      %v5131 = vpop.f32.mrb[0].mxu0
      %5132 = vmatprep.mubr.f32.mxu0 %v4432
      %5133 = vmatmul.mubr.f32.gmra.mrb[0].mxu0 %v4306
      %v5134 = vpop.f32.mrb[0].mxu0
      %v5135 = vadd.f32 0.0, %v5134
      %v5136 = vpop.f32.mrb[0].mxu0
      %5137 = vmatprep.mubr.f32.mxu0 %v4434
      %5138 = vmatmul.mubr.f32.gmra.mrb[0].mxu0 %v4307
      %v5139 = vpop.f32.mrb[0].mxu0
      %v5140 = vadd.f32 0.0, %v5139
      %v5141 = vpop.f32.mrb[0].mxu0
      %5142 = vmatprep.mubr.f32.mxu0 %v4436
      %5143 = vmatmul.mubr.f32.gmra.mrb[0].mxu0 %v4308
      %v5144 = vpop.f32.mrb[0].mxu0
      %v5145 = vadd.f32 0.0, %v5144
      %v5146 = vpop.f32.mrb[0].mxu0
      %5147 = vmatprep.mubr.f32.mxu0 %v4438
      %5148 = vmatmul.mubr.f32.gmra.mrb[0].mxu0 %v4309
      %v5149 = vpop.f32.mrb[0].mxu0
      %v5150 = vadd.f32 0.0, %v5149
      %v5151 = vpop.f32.mrb[0].mxu0
      %5152 = vmatprep.mubr.f32.mxu0 %v4440
      %5153 = vmatmul.mubr.f32.gmra.mrb[0].mxu0 %v4353
      %v5154 = vpop.f32.mrb[0].mxu0
      %v5155 = vadd.f32 0.0, %v5154
      %v5156 = vpop.f32.mrb[0].mxu0
      %5157 = vmatprep.mubr.f32.mxu0 %v4442
      %5158 = vmatmul.mubr.f32.gmra.mrb[0].mxu0 %v4354
      %v5159 = vpop.f32.mrb[0].mxu0
      %v5160 = vadd.f32 0.0, %v5159
      %v5161 = vpop.f32.mrb[0].mxu0
      %5162 = vmatprep.mubr.f32.mxu0 %v4944
      %5163 = vmatmul.mubr.f32.gmra.mrb[0].mxu0 %v4917
      %v5164 = vpop.f32.mrb[0].mxu0
      %v5165 = vadd.f32 0.0, %v5164
      %v5166 = vpop.f32.mrb[0].mxu0
      %5167 = vmatprep.mubr.f32.mxu0 %v4946
      %5168 = vmatmul.mubr.f32.gmra.mrb[0].mxu0 %v4918
      %v5169 = vpop.f32.mrb[0].mxu0
      %v5170 = vadd.f32 0.0, %v5169
      %v5171 = vpop.f32.mrb[0].mxu0
      %5172 = vdwg.mxu0
      %v5173 = vadd.f32 %v4740, %v5015
      %v5174 = vadd.f32 %v4745, %v5020
      %v5175 = vadd.f32 %v4750, %v5025
      %v5176 = vadd.f32 %v4755, %v5030
      %v5177 = vadd.f32 %v4760, %v5035
      %v5178 = vadd.f32 %v4765, %v5040
      %v5179 = vadd.f32 %v4770, %v5045
      %v5180 = vadd.f32 %v4775, %v5050
      %v5181 = vadd.f32 %v4780, %v5055
      %v5182 = vadd.f32 %v4785, %v5060
      %v5183 = vadd.f32 %v4790, %v5065
      %v5184 = vadd.f32 %v4795, %v5070
      %v5185 = vadd.f32 %v4800, %v5075
      %v5186 = vadd.f32 %v4805, %v5080
      %v5187 = vadd.f32 %v4810, %v5085
      %v5188 = vadd.f32 %v4815, %v5090
      %v5189 = vadd.f32 %v4820, %v5095
      %v5190 = vadd.f32 %v4825, %v5100
      %v5191 = vadd.f32 %v4830, %v5105
      %v5192 = vadd.f32 %v4835, %v5110
      %v5193 = vadd.f32 %v4840, %v5115
      %v5194 = vadd.f32 %v4845, %v5120
      %v5195 = vadd.f32 %v4850, %v5125
      %v5196 = vadd.f32 %v4855, %v5130
      %v5197 = vadd.f32 %v4860, %v5135
      %v5198 = vadd.f32 %v4865, %v5140
      %v5199 = vadd.f32 %v4870, %v5145
      %v5200 = vadd.f32 %v4875, %v5150
      %v5201 = vadd.f32 %v4880, %v5155
      %v5202 = vadd.f32 %v4885, %v5160
      %v5203 = vadd.f32 %v4890, %v5165
      %v5204 = vadd.f32 %v4895, %v5170
      %v5205 = vld [vmem:[%s7] sm:$0x1]
      %v5207 = vlaneseq
      %v5208 = vshrl.u32 %v5207, 7
      %v5209 = vsub.s32 0, %v5208
      %v5210 = vrot.slane %v5205, %v5209
      %v5212 = vadd.f32 %v5173, %v5210
      %v5213 = vadd.f32 %v5174, %v5210
      %v5214 = vadd.f32 %v5175, %v5210
      %v5215 = vadd.f32 %v5176, %v5210
      %v5216 = vadd.f32 %v5177, %v5210
      %v5217 = vadd.f32 %v5178, %v5210
      %v5218 = vadd.f32 %v5179, %v5210
      %v5219 = vadd.f32 %v5180, %v5210
      %v5220 = vadd.f32 %v5181, %v5210
      %v5221 = vadd.f32 %v5182, %v5210
      %v5222 = vadd.f32 %v5183, %v5210
      %v5223 = vadd.f32 %v5184, %v5210
      %v5224 = vadd.f32 %v5185, %v5210
      %v5225 = vadd.f32 %v5186, %v5210
      %v5226 = vadd.f32 %v5187, %v5210
      %v5227 = vadd.f32 %v5188, %v5210
      %v5228 = vadd.f32 %v5189, %v5210
      %v5229 = vadd.f32 %v5190, %v5210
      %v5230 = vadd.f32 %v5191, %v5210
      %v5231 = vadd.f32 %v5192, %v5210
      %v5232 = vadd.f32 %v5193, %v5210
      %v5233 = vadd.f32 %v5194, %v5210
      %v5234 = vadd.f32 %v5195, %v5210
      %v5235 = vadd.f32 %v5196, %v5210
      %v5236 = vadd.f32 %v5197, %v5210
      %v5237 = vadd.f32 %v5198, %v5210
      %v5238 = vadd.f32 %v5199, %v5210
      %v5239 = vadd.f32 %v5200, %v5210
      %v5240 = vadd.f32 %v5201, %v5210
      %v5241 = vadd.f32 %v5202, %v5210
      %v5242 = vadd.f32 %v5203, %v5210
      %v5243 = vadd.f32 %v5204, %v5210
      %v5244 = vmax.f32 %v5212, 0.0
      %v5245 = vmax.f32 %v5213, 0.0
      %v5246 = vmax.f32 %v5214, 0.0
      %v5247 = vmax.f32 %v5215, 0.0
      %v5248 = vmax.f32 %v5216, 0.0
      %v5249 = vmax.f32 %v5217, 0.0
      %v5250 = vmax.f32 %v5218, 0.0
      %v5251 = vmax.f32 %v5219, 0.0
      %v5252 = vmax.f32 %v5220, 0.0
      %v5253 = vmax.f32 %v5221, 0.0
      %v5254 = vmax.f32 %v5222, 0.0
      %v5255 = vmax.f32 %v5223, 0.0
      %v5256 = vmax.f32 %v5224, 0.0
      %v5257 = vmax.f32 %v5225, 0.0
      %v5258 = vmax.f32 %v5226, 0.0
      %v5259 = vmax.f32 %v5227, 0.0
      %v5260 = vmax.f32 %v5228, 0.0
      %v5261 = vmax.f32 %v5229, 0.0
      %v5262 = vmax.f32 %v5230, 0.0
      %v5263 = vmax.f32 %v5231, 0.0
      %v5264 = vmax.f32 %v5232, 0.0
      %v5265 = vmax.f32 %v5233, 0.0
      %v5266 = vmax.f32 %v5234, 0.0
      %v5267 = vmax.f32 %v5235, 0.0
      %v5268 = vmax.f32 %v5236, 0.0
      %v5269 = vmax.f32 %v5237, 0.0
      %v5270 = vmax.f32 %v5238, 0.0
      %v5271 = vmax.f32 %v5239, 0.0
      %v5272 = vmax.f32 %v5240, 0.0
      %v5273 = vmax.f32 %v5241, 0.0
      %v5274 = vmax.f32 %v5242, 0.0
      %v5275 = vmax.f32 %v5243, 0.0
      %5276 = vst.msk [vmem:[%s2498 + $0x1] sm:$0xff] %vm428, %v5244
      %5277 = vst.msk [vmem:[%s2498 + $0x9] sm:$0xff] %vm428, %v5245
      %5278 = vst.msk [vmem:[%s2498 + $0x19] sm:$0xff] %vm428, %v5246
      %5279 = vst.msk [vmem:[%s2498 + $0x21] sm:$0xff] %vm428, %v5247
      %5280 = vst.msk [vmem:[%s2498 + $0x31] sm:$0xff] %vm428, %v5248
      %5281 = vst.msk [vmem:[%s2498 + $0x39] sm:$0xff] %vm428, %v5249
      %5282 = vst.msk [vmem:[%s2498 + $0x49] sm:$0xff] %vm428, %v5250
      %5283 = vst.msk [vmem:[%s2498 + $0x51] sm:$0xff] %vm428, %v5251
      %5284 = vst.msk [vmem:[%s2498 + $0x61] sm:$0xff] %vm428, %v5252
      %5285 = vst.msk [vmem:[%s2498 + $0x69] sm:$0xff] %vm428, %v5253
      %5286 = vst.msk [vmem:[%s2498 + $0x79] sm:$0xff] %vm428, %v5254
      %5287 = vst.msk [vmem:[%s2498 + $0x81] sm:$0xff] %vm428, %v5255
      %5288 = vst.msk [vmem:[%s2498 + $0x91] sm:$0xff] %vm428, %v5256
      %5289 = vst.msk [vmem:[%s2498 + $0x99] sm:$0xff] %vm428, %v5257
      %5290 = vst.msk [vmem:[%s2498 + $0xa9] sm:$0xff] %vm428, %v5258
      %5291 = vst.msk [vmem:[%s2498 + $0xb1] sm:$0xff] %vm428, %v5259
      %5292 = vst.msk [vmem:[%s2498 + $0xc1] sm:$0xff] %vm428, %v5260
      %5293 = vst.msk [vmem:[%s2498 + $0xc9] sm:$0xff] %vm428, %v5261
      %5294 = vst.msk [vmem:[%s2498 + $0xd9] sm:$0xff] %vm428, %v5262
      %5295 = vst.msk [vmem:[%s2498 + $0xe1] sm:$0xff] %vm428, %v5263
      %5296 = vst.msk [vmem:[%s2498 + $0xf1] sm:$0xff] %vm428, %v5264
      %5297 = vst.msk [vmem:[%s2498 + $0xf9] sm:$0xff] %vm428, %v5265
      %5298 = vst.msk [vmem:[%s2498 + $0x109] sm:$0xff] %vm428, %v5266
      %5299 = vst.msk [vmem:[%s2498 + $0x111] sm:$0xff] %vm428, %v5267
      %5300 = vst.msk [vmem:[%s2498 + $0x121] sm:$0xff] %vm428, %v5268
      %5301 = vst.msk [vmem:[%s2498 + $0x129] sm:$0xff] %vm428, %v5269
      %5302 = vst.msk [vmem:[%s2498 + $0x139] sm:$0xff] %vm428, %v5270
      %5303 = vst.msk [vmem:[%s2498 + $0x141] sm:$0xff] %vm428, %v5271
      %5304 = vst.msk [vmem:[%s2498 + $0x151] sm:$0xff] %vm428, %v5272
      %5305 = vst.msk [vmem:[%s2498 + $0x159] sm:$0xff] %vm428, %v5273
      %5306 = vst.msk [vmem:[%s2498 + $0x169] sm:$0xff] %vm428, %v5274
      %5307 = vst.msk [vmem:[%s2498 + $0x171] sm:$0xff] %vm428, %v5275
      %v5308 = vld [vmem:[#allocation3] sm:$0xff]
      %v5309 = vld [vmem:[#allocation3 + $0x8] sm:$0xff]
      %v5310 = vld [vmem:[#allocation3 + $0x10] sm:$0x3]
      %v5311 = vld [vmem:[#allocation3 + $0x18] sm:$0xff]
      %v5312 = vld [vmem:[#allocation3 + $0x20] sm:$0xff]
      %v5313 = vld [vmem:[#allocation3 + $0x28] sm:$0x3]
      %v5314 = vld [vmem:[#allocation3 + $0x30] sm:$0xff]
      %v5315 = vld [vmem:[#allocation3 + $0x38] sm:$0xff]
      %v5316 = vld [vmem:[#allocation3 + $0x40] sm:$0x3]
      %v5317 = vld [vmem:[#allocation3 + $0x48] sm:$0xff]
      %v5318 = vld [vmem:[#allocation3 + $0x50] sm:$0xff]
      %v5319 = vld [vmem:[#allocation3 + $0x58] sm:$0x3]
      %v5320 = vld [vmem:[#allocation3 + $0x60] sm:$0xff]
      %v5321 = vld [vmem:[#allocation3 + $0x68] sm:$0xff]
      %v5322 = vld [vmem:[#allocation3 + $0x70] sm:$0x3]
      %v5323 = vld [vmem:[#allocation3 + $0x78] sm:$0xff]
      %v5324 = vld [vmem:[#allocation3 + $0x80] sm:$0xff]
      %v5325 = vld [vmem:[#allocation3 + $0x88] sm:$0x3]
      %v5326 = vld [vmem:[#allocation3 + $0x90] sm:$0xff]
      %v5327 = vld [vmem:[#allocation3 + $0x98] sm:$0xff]
      %v5328 = vld [vmem:[#allocation3 + $0xa0] sm:$0x3]
      %v5329 = vld [vmem:[#allocation3 + $0xa8] sm:$0xff]
      %v5330 = vld [vmem:[#allocation3 + $0xb0] sm:$0xff]
      %v5331 = vld [vmem:[#allocation3 + $0xb8] sm:$0x3]
      %v5332 = vld [vmem:[#allocation3 + $0xc0] sm:$0xff]
      %v5333 = vld [vmem:[#allocation3 + $0xc8] sm:$0xff]
      %v5334 = vld [vmem:[#allocation3 + $0xd0] sm:$0x3]
      %v5335 = vld [vmem:[#allocation3 + $0xd8] sm:$0xff]
      %v5336 = vld [vmem:[#allocation3 + $0xe0] sm:$0xff]
      %v5337 = vld [vmem:[#allocation3 + $0xe8] sm:$0x3]
      %v5338 = vld [vmem:[#allocation3 + $0xf0] sm:$0xff]
      %v5339 = vld [vmem:[#allocation3 + $0xf8] sm:$0xff]
      %v5340 = vld [vmem:[#allocation3 + $0x100] sm:$0x3]
      %v5341 = vld [vmem:[#allocation3 + $0x108] sm:$0xff]
      %v5342 = vld [vmem:[#allocation3 + $0x110] sm:$0xff]
      %v5343 = vld [vmem:[#allocation3 + $0x118] sm:$0x3]
      %v5344 = vld [vmem:[#allocation3 + $0x120] sm:$0xff]
      %v5345 = vld [vmem:[#allocation3 + $0x128] sm:$0xff]
      %v5346 = vld [vmem:[#allocation3 + $0x130] sm:$0x3]
      %v5347 = vld [vmem:[#allocation3 + $0x138] sm:$0xff]
      %v5348 = vld [vmem:[#allocation3 + $0x140] sm:$0xff]
      %v5349 = vld [vmem:[#allocation3 + $0x148] sm:$0x3]
      %v5350 = vld [vmem:[#allocation3 + $0x150] sm:$0xff]
      %v5351 = vld [vmem:[#allocation3 + $0x158] sm:$0xff]
      %v5352 = vld [vmem:[#allocation3 + $0x160] sm:$0x3]
      %v5353 = vld [vmem:[#allocation3 + $0x168] sm:$0xff]
      %v5354 = vld [vmem:[#allocation3 + $0x170] sm:$0xff]
      %v5355 = vld [vmem:[#allocation3 + $0x178] sm:$0x3]
      %v5356 = vld [vmem:[#allocation3 + $0x180] sm:$0xff]
      %v5357 = vld [vmem:[#allocation3 + $0x188] sm:$0xff]
      %v5358 = vld [vmem:[#allocation3 + $0x190] sm:$0x3]
      %v5359 = vld [vmem:[#allocation3 + $0x198] sm:$0xff]
      %v5360 = vld [vmem:[#allocation3 + $0x1a0] sm:$0xff]
      %v5361 = vld [vmem:[#allocation3 + $0x1a8] sm:$0x3]
      %v5362 = vld [vmem:[%s8] sm:$0xff]
      %v5363 = vld [vmem:[%s8 + $0x8] sm:$0x1]
      %v5364 = vlaneseq
      %v5365 = vshrl.u32 %v5364, 7
      %v5366 = vsub.s32 0, %v5365
      %v5367 = vrot.slane %v5362, %v5366
      %v5368 = vmul.f32 %v5308, %v5367
      %v5369 = vmul.f32 %v5309, %v5367
      %v5370 = vmul.f32 %v5311, %v5367
      %v5371 = vmul.f32 %v5312, %v5367
      %v5372 = vmul.f32 %v5314, %v5367
      %v5373 = vmul.f32 %v5315, %v5367
      %v5374 = vmul.f32 %v5317, %v5367
      %v5375 = vmul.f32 %v5318, %v5367
      %v5376 = vmul.f32 %v5320, %v5367
      %v5377 = vmul.f32 %v5321, %v5367
      %v5378 = vmul.f32 %v5323, %v5367
      %v5379 = vmul.f32 %v5324, %v5367
      %v5380 = vmul.f32 %v5326, %v5367
      %v5381 = vmul.f32 %v5327, %v5367
      %v5382 = vmul.f32 %v5329, %v5367
      %v5383 = vmul.f32 %v5330, %v5367
      %v5384 = vmul.f32 %v5332, %v5367
      %v5385 = vmul.f32 %v5333, %v5367
      %v5386 = vmul.f32 %v5335, %v5367
      %v5387 = vmul.f32 %v5336, %v5367
      %v5388 = vmul.f32 %v5338, %v5367
      %v5389 = vmul.f32 %v5339, %v5367
      %v5390 = vmul.f32 %v5341, %v5367
      %v5391 = vmul.f32 %v5342, %v5367
      %v5392 = vmul.f32 %v5344, %v5367
      %v5393 = vmul.f32 %v5345, %v5367
      %v5394 = vmul.f32 %v5347, %v5367
      %v5395 = vmul.f32 %v5348, %v5367
      %v5396 = vmul.f32 %v5350, %v5367
      %v5397 = vmul.f32 %v5351, %v5367
      %v5398 = vmul.f32 %v5353, %v5367
      %v5399 = vmul.f32 %v5354, %v5367
      %v5400 = vsel %vm428, %v5368, 0.0
      %5401 = vadd.xlane.f32.xlu0 %v5400
      %v5402 = vpop.xlane.xlu0 %5401
      %v5403 = vsel %vm428, %v5369, 0.0
      %5404 = vadd.xlane.f32.xlu0 %v5403
      %v5405 = vpop.xlane.xlu0 %5404
      %v5406 = vsel %vm428, %v5370, 0.0
      %5407 = vadd.xlane.f32.xlu0 %v5406
      %v5408 = vpop.xlane.xlu0 %5407
      %v5409 = vsel %vm428, %v5371, 0.0
      %5410 = vadd.xlane.f32.xlu0 %v5409
      %v5411 = vpop.xlane.xlu0 %5410
      %v5412 = vsel %vm428, %v5372, 0.0
      %5413 = vadd.xlane.f32.xlu0 %v5412
      %v5414 = vpop.xlane.xlu0 %5413
      %v5415 = vsel %vm428, %v5373, 0.0
      %5416 = vadd.xlane.f32.xlu0 %v5415
      %v5417 = vpop.xlane.xlu0 %5416
      %v5418 = vsel %vm428, %v5374, 0.0
      %5419 = vadd.xlane.f32.xlu0 %v5418
      %v5420 = vpop.xlane.xlu0 %5419
      %v5421 = vsel %vm428, %v5375, 0.0
      %5422 = vadd.xlane.f32.xlu0 %v5421
      %v5423 = vpop.xlane.xlu0 %5422
      %v5424 = vsel %vm428, %v5376, 0.0
      %5425 = vadd.xlane.f32.xlu0 %v5424
      %v5426 = vpop.xlane.xlu0 %5425
      %v5427 = vsel %vm428, %v5377, 0.0
      %5428 = vadd.xlane.f32.xlu0 %v5427
      %v5429 = vpop.xlane.xlu0 %5428
      %v5430 = vsel %vm428, %v5378, 0.0
      %5431 = vadd.xlane.f32.xlu0 %v5430
      %v5432 = vpop.xlane.xlu0 %5431
      %v5433 = vsel %vm428, %v5379, 0.0
      %5434 = vadd.xlane.f32.xlu0 %v5433
      %v5435 = vpop.xlane.xlu0 %5434
      %v5436 = vsel %vm428, %v5380, 0.0
      %5437 = vadd.xlane.f32.xlu0 %v5436
      %v5438 = vpop.xlane.xlu0 %5437
      %v5439 = vsel %vm428, %v5381, 0.0
      %5440 = vadd.xlane.f32.xlu0 %v5439
      %v5441 = vpop.xlane.xlu0 %5440
      %v5442 = vsel %vm428, %v5382, 0.0
      %5443 = vadd.xlane.f32.xlu0 %v5442
      %v5444 = vpop.xlane.xlu0 %5443
      %v5445 = vsel %vm428, %v5383, 0.0
      %5446 = vadd.xlane.f32.xlu0 %v5445
      %v5447 = vpop.xlane.xlu0 %5446
      %v5448 = vsel %vm428, %v5384, 0.0
      %5449 = vadd.xlane.f32.xlu0 %v5448
      %v5450 = vpop.xlane.xlu0 %5449
      %v5451 = vsel %vm428, %v5385, 0.0
      %5452 = vadd.xlane.f32.xlu0 %v5451
      %v5453 = vpop.xlane.xlu0 %5452
      %v5454 = vsel %vm428, %v5386, 0.0
      %5455 = vadd.xlane.f32.xlu0 %v5454
      %v5456 = vpop.xlane.xlu0 %5455
      %v5457 = vsel %vm428, %v5387, 0.0
      %5458 = vadd.xlane.f32.xlu0 %v5457
      %v5459 = vpop.xlane.xlu0 %5458
      %v5460 = vsel %vm428, %v5388, 0.0
      %5461 = vadd.xlane.f32.xlu0 %v5460
      %v5462 = vpop.xlane.xlu0 %5461
      %v5463 = vsel %vm428, %v5389, 0.0
      %5464 = vadd.xlane.f32.xlu0 %v5463
      %v5465 = vpop.xlane.xlu0 %5464
      %v5466 = vsel %vm428, %v5390, 0.0
      %5467 = vadd.xlane.f32.xlu0 %v5466
      %v5468 = vpop.xlane.xlu0 %5467
      %v5469 = vsel %vm428, %v5391, 0.0
      %5470 = vadd.xlane.f32.xlu0 %v5469
      %v5471 = vpop.xlane.xlu0 %5470
      %v5472 = vsel %vm428, %v5392, 0.0
      %5473 = vadd.xlane.f32.xlu0 %v5472
      %v5474 = vpop.xlane.xlu0 %5473
      %v5475 = vsel %vm428, %v5393, 0.0
      %5476 = vadd.xlane.f32.xlu0 %v5475
      %v5477 = vpop.xlane.xlu0 %5476
      %v5478 = vsel %vm428, %v5394, 0.0
      %5479 = vadd.xlane.f32.xlu0 %v5478
      %v5480 = vpop.xlane.xlu0 %5479
      %v5481 = vsel %vm428, %v5395, 0.0
      %5482 = vadd.xlane.f32.xlu0 %v5481
      %v5483 = vpop.xlane.xlu0 %5482
      %v5484 = vsel %vm428, %v5396, 0.0
      %5485 = vadd.xlane.f32.xlu0 %v5484
      %v5486 = vpop.xlane.xlu0 %5485
      %v5487 = vsel %vm428, %v5397, 0.0
      %5488 = vadd.xlane.f32.xlu0 %v5487
      %v5489 = vpop.xlane.xlu0 %5488
      %v5490 = vsel %vm428, %v5398, 0.0
      %5491 = vadd.xlane.f32.xlu0 %v5490
      %v5492 = vpop.xlane.xlu0 %5491
      %v5493 = vsel %vm428, %v5399, 0.0
      %5494 = vadd.xlane.f32.xlu0 %v5493
      %v5495 = vpop.xlane.xlu0 %5494
      %v5496 = vadd.f32 %v5402, 0.0
      %v5497 = vadd.f32 %v5405, 0.0
      %v5498 = vadd.f32 %v5408, 0.0
      %v5499 = vadd.f32 %v5411, 0.0
      %v5500 = vadd.f32 %v5414, 0.0
      %v5501 = vadd.f32 %v5417, 0.0
      %v5502 = vadd.f32 %v5420, 0.0
      %v5503 = vadd.f32 %v5423, 0.0
      %v5504 = vadd.f32 %v5426, 0.0
      %v5505 = vadd.f32 %v5429, 0.0
      %v5506 = vadd.f32 %v5432, 0.0
      %v5507 = vadd.f32 %v5435, 0.0
      %v5508 = vadd.f32 %v5438, 0.0
      %v5509 = vadd.f32 %v5441, 0.0
      %v5510 = vadd.f32 %v5444, 0.0
      %v5511 = vadd.f32 %v5447, 0.0
      %v5512 = vadd.f32 %v5450, 0.0
      %v5513 = vadd.f32 %v5453, 0.0
      %v5514 = vadd.f32 %v5456, 0.0
      %v5515 = vadd.f32 %v5459, 0.0
      %v5516 = vadd.f32 %v5462, 0.0
      %v5517 = vadd.f32 %v5465, 0.0
      %v5518 = vadd.f32 %v5468, 0.0
      %v5519 = vadd.f32 %v5471, 0.0
      %v5520 = vadd.f32 %v5474, 0.0
      %v5521 = vadd.f32 %v5477, 0.0
      %v5522 = vadd.f32 %v5480, 0.0
      %v5523 = vadd.f32 %v5483, 0.0
      %v5524 = vadd.f32 %v5486, 0.0
      %v5525 = vadd.f32 %v5489, 0.0
      %v5526 = vadd.f32 %v5492, 0.0
      %v5527 = vadd.f32 %v5495, 0.0
      %v5528 = vlaneseq
      %v5529 = vshrl.u32 %v5528, 7
      %v5530 = vsub.s32 1, %v5529
      %v5531 = vrot.slane %v5362, %v5530
      %v5532 = vmul.f32 %v5308, %v5531
      %v5533 = vmul.f32 %v5309, %v5531
      %v5534 = vmul.f32 %v5310, %v5531
      %v5535 = vmul.f32 %v5311, %v5531
      %v5536 = vmul.f32 %v5312, %v5531
      %v5537 = vmul.f32 %v5313, %v5531
      %v5538 = vmul.f32 %v5314, %v5531
      %v5539 = vmul.f32 %v5315, %v5531
      %v5540 = vmul.f32 %v5316, %v5531
      %v5541 = vmul.f32 %v5317, %v5531
      %v5542 = vmul.f32 %v5318, %v5531
      %v5543 = vmul.f32 %v5319, %v5531
      %v5544 = vmul.f32 %v5320, %v5531
      %v5545 = vmul.f32 %v5321, %v5531
      %v5546 = vmul.f32 %v5322, %v5531
      %v5547 = vmul.f32 %v5323, %v5531
      %v5548 = vmul.f32 %v5324, %v5531
      %v5549 = vmul.f32 %v5325, %v5531
      %v5550 = vmul.f32 %v5326, %v5531
      %v5551 = vmul.f32 %v5327, %v5531
      %v5552 = vmul.f32 %v5328, %v5531
      %v5553 = vmul.f32 %v5329, %v5531
      %v5554 = vmul.f32 %v5330, %v5531
      %v5555 = vmul.f32 %v5331, %v5531
      %v5556 = vmul.f32 %v5332, %v5531
      %v5557 = vmul.f32 %v5333, %v5531
      %v5558 = vmul.f32 %v5334, %v5531
      %v5559 = vmul.f32 %v5335, %v5531
      %v5560 = vmul.f32 %v5336, %v5531
      %v5561 = vmul.f32 %v5337, %v5531
      %v5562 = vmul.f32 %v5338, %v5531
      %v5563 = vmul.f32 %v5339, %v5531
      %v5564 = vmul.f32 %v5340, %v5531
      %v5565 = vmul.f32 %v5341, %v5531
      %v5566 = vmul.f32 %v5342, %v5531
      %v5567 = vmul.f32 %v5343, %v5531
      %v5568 = vmul.f32 %v5344, %v5531
      %v5569 = vmul.f32 %v5345, %v5531
      %v5570 = vmul.f32 %v5346, %v5531
      %v5571 = vmul.f32 %v5347, %v5531
      %v5572 = vmul.f32 %v5348, %v5531
      %v5573 = vmul.f32 %v5349, %v5531
      %v5574 = vmul.f32 %v5350, %v5531
      %v5575 = vmul.f32 %v5351, %v5531
      %v5576 = vmul.f32 %v5352, %v5531
      %v5577 = vmul.f32 %v5353, %v5531
      %v5578 = vmul.f32 %v5354, %v5531
      %v5579 = vmul.f32 %v5355, %v5531
      %vm5580 = vcmask 523265
      %v5581 = vsel %vm5580, %v5532, 0.0
      %5582 = vadd.xlane.f32.xlu0 %v5581
      %v5583 = vpop.xlane.xlu0 %5582
      %v5584 = vsel %vm428, %v5533, 0.0
      %5585 = vadd.xlane.f32.xlu0 %v5584
      %v5586 = vpop.xlane.xlu0 %5585
      %v5587 = vsel %vm437, %v5534, 0.0
      %5588 = vadd.xlane.f32.xlu0 %v5587
      %v5589 = vpop.xlane.xlu0 %5588
      %v5590 = vsel %vm5580, %v5535, 0.0
      %5591 = vadd.xlane.f32.xlu0 %v5590
      %v5592 = vpop.xlane.xlu0 %5591
      %v5593 = vsel %vm428, %v5536, 0.0
      %5594 = vadd.xlane.f32.xlu0 %v5593
      %v5595 = vpop.xlane.xlu0 %5594
      %v5596 = vsel %vm437, %v5537, 0.0
      %5597 = vadd.xlane.f32.xlu0 %v5596
      %v5598 = vpop.xlane.xlu0 %5597
      %v5599 = vsel %vm5580, %v5538, 0.0
      %5600 = vadd.xlane.f32.xlu0 %v5599
      %v5601 = vpop.xlane.xlu0 %5600
      %v5602 = vsel %vm428, %v5539, 0.0
      %5603 = vadd.xlane.f32.xlu0 %v5602
      %v5604 = vpop.xlane.xlu0 %5603
      %v5605 = vsel %vm437, %v5540, 0.0
      %5606 = vadd.xlane.f32.xlu0 %v5605
      %v5607 = vpop.xlane.xlu0 %5606
      %v5608 = vsel %vm5580, %v5541, 0.0
      %5609 = vadd.xlane.f32.xlu0 %v5608
      %v5610 = vpop.xlane.xlu0 %5609
      %v5611 = vsel %vm428, %v5542, 0.0
      %5612 = vadd.xlane.f32.xlu0 %v5611
      %v5613 = vpop.xlane.xlu0 %5612
      %v5614 = vsel %vm437, %v5543, 0.0
      %5615 = vadd.xlane.f32.xlu0 %v5614
      %v5616 = vpop.xlane.xlu0 %5615
      %v5617 = vsel %vm5580, %v5544, 0.0
      %5618 = vadd.xlane.f32.xlu0 %v5617
      %v5619 = vpop.xlane.xlu0 %5618
      %v5620 = vsel %vm428, %v5545, 0.0
      %5621 = vadd.xlane.f32.xlu0 %v5620
      %v5622 = vpop.xlane.xlu0 %5621
      %v5623 = vsel %vm437, %v5546, 0.0
      %5624 = vadd.xlane.f32.xlu0 %v5623
      %v5625 = vpop.xlane.xlu0 %5624
      %v5626 = vsel %vm5580, %v5547, 0.0
      %5627 = vadd.xlane.f32.xlu0 %v5626
      %v5628 = vpop.xlane.xlu0 %5627
      %v5629 = vsel %vm428, %v5548, 0.0
      %5630 = vadd.xlane.f32.xlu0 %v5629
      %v5631 = vpop.xlane.xlu0 %5630
      %v5632 = vsel %vm437, %v5549, 0.0
      %5633 = vadd.xlane.f32.xlu0 %v5632
      %v5634 = vpop.xlane.xlu0 %5633
      %v5635 = vsel %vm5580, %v5550, 0.0
      %5636 = vadd.xlane.f32.xlu0 %v5635
      %v5637 = vpop.xlane.xlu0 %5636
      %v5638 = vsel %vm428, %v5551, 0.0
      %5639 = vadd.xlane.f32.xlu0 %v5638
      %v5640 = vpop.xlane.xlu0 %5639
      %v5641 = vsel %vm437, %v5552, 0.0
      %5642 = vadd.xlane.f32.xlu0 %v5641
      %v5643 = vpop.xlane.xlu0 %5642
      %v5644 = vsel %vm5580, %v5553, 0.0
      %5645 = vadd.xlane.f32.xlu0 %v5644
      %v5646 = vpop.xlane.xlu0 %5645
      %v5647 = vsel %vm428, %v5554, 0.0
      %5648 = vadd.xlane.f32.xlu0 %v5647
      %v5649 = vpop.xlane.xlu0 %5648
      %v5650 = vsel %vm437, %v5555, 0.0
      %5651 = vadd.xlane.f32.xlu0 %v5650
      %v5652 = vpop.xlane.xlu0 %5651
      %v5653 = vsel %vm5580, %v5556, 0.0
      %5654 = vadd.xlane.f32.xlu0 %v5653
      %v5655 = vpop.xlane.xlu0 %5654
      %v5656 = vsel %vm428, %v5557, 0.0
      %5657 = vadd.xlane.f32.xlu0 %v5656
      %v5658 = vpop.xlane.xlu0 %5657
      %v5659 = vsel %vm437, %v5558, 0.0
      %5660 = vadd.xlane.f32.xlu0 %v5659
      %v5661 = vpop.xlane.xlu0 %5660
      %v5662 = vsel %vm5580, %v5559, 0.0
      %5663 = vadd.xlane.f32.xlu0 %v5662
      %v5664 = vpop.xlane.xlu0 %5663
      %v5665 = vsel %vm428, %v5560, 0.0
      %5666 = vadd.xlane.f32.xlu0 %v5665
      %v5667 = vpop.xlane.xlu0 %5666
      %v5668 = vsel %vm437, %v5561, 0.0
      %5669 = vadd.xlane.f32.xlu0 %v5668
      %v5670 = vpop.xlane.xlu0 %5669
      %v5671 = vsel %vm5580, %v5562, 0.0
      %5672 = vadd.xlane.f32.xlu0 %v5671
      %v5673 = vpop.xlane.xlu0 %5672
      %v5674 = vsel %vm428, %v5563, 0.0
      %5675 = vadd.xlane.f32.xlu0 %v5674
      %v5676 = vpop.xlane.xlu0 %5675
      %v5677 = vsel %vm437, %v5564, 0.0
      %5678 = vadd.xlane.f32.xlu0 %v5677
      %v5679 = vpop.xlane.xlu0 %5678
      %v5680 = vsel %vm5580, %v5565, 0.0
      %5681 = vadd.xlane.f32.xlu0 %v5680
      %v5682 = vpop.xlane.xlu0 %5681
      %v5683 = vsel %vm428, %v5566, 0.0
      %5684 = vadd.xlane.f32.xlu0 %v5683
      %v5685 = vpop.xlane.xlu0 %5684
      %v5686 = vsel %vm437, %v5567, 0.0
      %5687 = vadd.xlane.f32.xlu0 %v5686
      %v5688 = vpop.xlane.xlu0 %5687
      %v5689 = vsel %vm5580, %v5568, 0.0
      %5690 = vadd.xlane.f32.xlu0 %v5689
      %v5691 = vpop.xlane.xlu0 %5690
      %v5692 = vsel %vm428, %v5569, 0.0
      %5693 = vadd.xlane.f32.xlu0 %v5692
      %v5694 = vpop.xlane.xlu0 %5693
      %v5695 = vsel %vm437, %v5570, 0.0
      %5696 = vadd.xlane.f32.xlu0 %v5695
      %v5697 = vpop.xlane.xlu0 %5696
      %v5698 = vsel %vm5580, %v5571, 0.0
      %5699 = vadd.xlane.f32.xlu0 %v5698
      %v5700 = vpop.xlane.xlu0 %5699
      %v5701 = vsel %vm428, %v5572, 0.0
      %5702 = vadd.xlane.f32.xlu0 %v5701
      %v5703 = vpop.xlane.xlu0 %5702
      %v5704 = vsel %vm437, %v5573, 0.0
      %5705 = vadd.xlane.f32.xlu0 %v5704
      %v5706 = vpop.xlane.xlu0 %5705
      %v5707 = vsel %vm5580, %v5574, 0.0
      %5708 = vadd.xlane.f32.xlu0 %v5707
      %v5709 = vpop.xlane.xlu0 %5708
      %v5710 = vsel %vm428, %v5575, 0.0
      %5711 = vadd.xlane.f32.xlu0 %v5710
      %v5712 = vpop.xlane.xlu0 %5711
      %v5713 = vsel %vm437, %v5576, 0.0
      %5714 = vadd.xlane.f32.xlu0 %v5713
      %v5715 = vpop.xlane.xlu0 %5714
      %v5716 = vsel %vm5580, %v5577, 0.0
      %5717 = vadd.xlane.f32.xlu0 %v5716
      %v5718 = vpop.xlane.xlu0 %5717
      %v5719 = vsel %vm428, %v5578, 0.0
      %5720 = vadd.xlane.f32.xlu0 %v5719
      %v5721 = vpop.xlane.xlu0 %5720
      %v5722 = vsel %vm437, %v5579, 0.0
      %5723 = vadd.xlane.f32.xlu0 %v5722
      %v5724 = vpop.xlane.xlu0 %5723
      %v5773 = vrot.slane %v5583, 1
      %v5774 = vrot.slane %v5586, 1
      %v5775 = vsel %vm909, %v5773, %v5774
      %v5776 = vrot.slane %v5589, 1
      %v5777 = vsel %vm909, %v5774, %v5776
      %v5778 = vrot.slane %v5592, 1
      %v5779 = vrot.slane %v5595, 1
      %v5780 = vsel %vm909, %v5778, %v5779
      %v5781 = vrot.slane %v5598, 1
      %v5782 = vsel %vm909, %v5779, %v5781
      %v5783 = vrot.slane %v5601, 1
      %v5784 = vrot.slane %v5604, 1
      %v5785 = vsel %vm909, %v5783, %v5784
      %v5786 = vrot.slane %v5607, 1
      %v5787 = vsel %vm909, %v5784, %v5786
      %v5788 = vrot.slane %v5610, 1
      %v5789 = vrot.slane %v5613, 1
      %v5790 = vsel %vm909, %v5788, %v5789
      %v5791 = vrot.slane %v5616, 1
      %v5792 = vsel %vm909, %v5789, %v5791
      %v5793 = vrot.slane %v5619, 1
      %v5794 = vrot.slane %v5622, 1
      %v5795 = vsel %vm909, %v5793, %v5794
      %v5796 = vrot.slane %v5625, 1
      %v5797 = vsel %vm909, %v5794, %v5796
      %v5798 = vrot.slane %v5628, 1
      %v5799 = vrot.slane %v5631, 1
      %v5800 = vsel %vm909, %v5798, %v5799
      %v5801 = vrot.slane %v5634, 1
      %v5802 = vsel %vm909, %v5799, %v5801
      %v5803 = vrot.slane %v5637, 1
      %v5804 = vrot.slane %v5640, 1
      %v5805 = vsel %vm909, %v5803, %v5804
      %v5806 = vrot.slane %v5643, 1
      %v5807 = vsel %vm909, %v5804, %v5806
      %v5808 = vrot.slane %v5646, 1
      %v5809 = vrot.slane %v5649, 1
      %v5810 = vsel %vm909, %v5808, %v5809
      %v5811 = vrot.slane %v5652, 1
      %v5812 = vsel %vm909, %v5809, %v5811
      %v5813 = vrot.slane %v5655, 1
      %v5814 = vrot.slane %v5658, 1
      %v5815 = vsel %vm909, %v5813, %v5814
      %v5816 = vrot.slane %v5661, 1
      %v5817 = vsel %vm909, %v5814, %v5816
      %v5818 = vrot.slane %v5664, 1
      %v5819 = vrot.slane %v5667, 1
      %v5820 = vsel %vm909, %v5818, %v5819
      %v5821 = vrot.slane %v5670, 1
      %v5822 = vsel %vm909, %v5819, %v5821
      %v5823 = vrot.slane %v5673, 1
      %v5824 = vrot.slane %v5676, 1
      %v5825 = vsel %vm909, %v5823, %v5824
      %v5826 = vrot.slane %v5679, 1
      %v5827 = vsel %vm909, %v5824, %v5826
      %v5828 = vrot.slane %v5682, 1
      %v5829 = vrot.slane %v5685, 1
      %v5830 = vsel %vm909, %v5828, %v5829
      %v5831 = vrot.slane %v5688, 1
      %v5832 = vsel %vm909, %v5829, %v5831
      %v5833 = vrot.slane %v5691, 1
      %v5834 = vrot.slane %v5694, 1
      %v5835 = vsel %vm909, %v5833, %v5834
      %v5836 = vrot.slane %v5697, 1
      %v5837 = vsel %vm909, %v5834, %v5836
      %v5838 = vrot.slane %v5700, 1
      %v5839 = vrot.slane %v5703, 1
      %v5840 = vsel %vm909, %v5838, %v5839
      %v5841 = vrot.slane %v5706, 1
      %v5842 = vsel %vm909, %v5839, %v5841
      %v5843 = vrot.slane %v5709, 1
      %v5844 = vrot.slane %v5712, 1
      %v5845 = vsel %vm909, %v5843, %v5844
      %v5846 = vrot.slane %v5715, 1
      %v5847 = vsel %vm909, %v5844, %v5846
      %v5848 = vrot.slane %v5718, 1
      %v5849 = vrot.slane %v5721, 1
      %v5850 = vsel %vm909, %v5848, %v5849
      %v5851 = vrot.slane %v5724, 1
      %v5852 = vsel %vm909, %v5849, %v5851
      %v5885 = vadd.f32 %v5496, %v5775
      %v5886 = vadd.f32 %v5497, %v5777
      %v5887 = vadd.f32 %v5498, %v5780
      %v5888 = vadd.f32 %v5499, %v5782
      %v5889 = vadd.f32 %v5500, %v5785
      %v5890 = vadd.f32 %v5501, %v5787
      %v5891 = vadd.f32 %v5502, %v5790
      %v5892 = vadd.f32 %v5503, %v5792
      %v5893 = vadd.f32 %v5504, %v5795
      %v5894 = vadd.f32 %v5505, %v5797
      %v5895 = vadd.f32 %v5506, %v5800
      %v5896 = vadd.f32 %v5507, %v5802
      %v5897 = vadd.f32 %v5508, %v5805
      %v5898 = vadd.f32 %v5509, %v5807
      %v5899 = vadd.f32 %v5510, %v5810
      %v5900 = vadd.f32 %v5511, %v5812
      %v5901 = vadd.f32 %v5512, %v5815
      %v5902 = vadd.f32 %v5513, %v5817
      %v5903 = vadd.f32 %v5514, %v5820
      %v5904 = vadd.f32 %v5515, %v5822
      %v5905 = vadd.f32 %v5516, %v5825
      %v5906 = vadd.f32 %v5517, %v5827
      %v5907 = vadd.f32 %v5518, %v5830
      %v5908 = vadd.f32 %v5519, %v5832
      %v5909 = vadd.f32 %v5520, %v5835
      %v5910 = vadd.f32 %v5521, %v5837
      %v5911 = vadd.f32 %v5522, %v5840
      %v5912 = vadd.f32 %v5523, %v5842
      %v5913 = vadd.f32 %v5524, %v5845
      %v5914 = vadd.f32 %v5525, %v5847
      %v5915 = vadd.f32 %v5526, %v5850
      %v5916 = vadd.f32 %v5527, %v5852
      %v5917 = vlaneseq
      %v5918 = vshrl.u32 %v5917, 7
      %v5919 = vsub.s32 2, %v5918
      %v5920 = vrot.slane %v5362, %v5919
      %v5921 = vmul.f32 %v5308, %v5920
      %v5922 = vmul.f32 %v5309, %v5920
      %v5923 = vmul.f32 %v5310, %v5920
      %v5924 = vmul.f32 %v5311, %v5920
      %v5925 = vmul.f32 %v5312, %v5920
      %v5926 = vmul.f32 %v5313, %v5920
      %v5927 = vmul.f32 %v5314, %v5920
      %v5928 = vmul.f32 %v5315, %v5920
      %v5929 = vmul.f32 %v5316, %v5920
      %v5930 = vmul.f32 %v5317, %v5920
      %v5931 = vmul.f32 %v5318, %v5920
      %v5932 = vmul.f32 %v5319, %v5920
      %v5933 = vmul.f32 %v5320, %v5920
      %v5934 = vmul.f32 %v5321, %v5920
      %v5935 = vmul.f32 %v5322, %v5920
      %v5936 = vmul.f32 %v5323, %v5920
      %v5937 = vmul.f32 %v5324, %v5920
      %v5938 = vmul.f32 %v5325, %v5920
      %v5939 = vmul.f32 %v5326, %v5920
      %v5940 = vmul.f32 %v5327, %v5920
      %v5941 = vmul.f32 %v5328, %v5920
      %v5942 = vmul.f32 %v5329, %v5920
      %v5943 = vmul.f32 %v5330, %v5920
      %v5944 = vmul.f32 %v5331, %v5920
      %v5945 = vmul.f32 %v5332, %v5920
      %v5946 = vmul.f32 %v5333, %v5920
      %v5947 = vmul.f32 %v5334, %v5920
      %v5948 = vmul.f32 %v5335, %v5920
      %v5949 = vmul.f32 %v5336, %v5920
      %v5950 = vmul.f32 %v5337, %v5920
      %v5951 = vmul.f32 %v5338, %v5920
      %v5952 = vmul.f32 %v5339, %v5920
      %v5953 = vmul.f32 %v5340, %v5920
      %v5954 = vmul.f32 %v5341, %v5920
      %v5955 = vmul.f32 %v5342, %v5920
      %v5956 = vmul.f32 %v5343, %v5920
      %v5957 = vmul.f32 %v5344, %v5920
      %v5958 = vmul.f32 %v5345, %v5920
      %v5959 = vmul.f32 %v5346, %v5920
      %v5960 = vmul.f32 %v5347, %v5920
      %v5961 = vmul.f32 %v5348, %v5920
      %v5962 = vmul.f32 %v5349, %v5920
      %v5963 = vmul.f32 %v5350, %v5920
      %v5964 = vmul.f32 %v5351, %v5920
      %v5965 = vmul.f32 %v5352, %v5920
      %v5966 = vmul.f32 %v5353, %v5920
      %v5967 = vmul.f32 %v5354, %v5920
      %v5968 = vmul.f32 %v5355, %v5920
      %vm5969 = vcmask 523266
      %v5970 = vsel %vm5969, %v5921, 0.0
      %5971 = vadd.xlane.f32.xlu0 %v5970
      %v5972 = vpop.xlane.xlu0 %5971
      %v5973 = vsel %vm428, %v5922, 0.0
      %5974 = vadd.xlane.f32.xlu0 %v5973
      %v5975 = vpop.xlane.xlu0 %5974
      %v5976 = vsel %vm431, %v5923, 0.0
      %5977 = vadd.xlane.f32.xlu0 %v5976
      %v5978 = vpop.xlane.xlu0 %5977
      %v5979 = vsel %vm5969, %v5924, 0.0
      %5980 = vadd.xlane.f32.xlu0 %v5979
      %v5981 = vpop.xlane.xlu0 %5980
      %v5982 = vsel %vm428, %v5925, 0.0
      %5983 = vadd.xlane.f32.xlu0 %v5982
      %v5984 = vpop.xlane.xlu0 %5983
      %v5985 = vsel %vm431, %v5926, 0.0
      %5986 = vadd.xlane.f32.xlu0 %v5985
      %v5987 = vpop.xlane.xlu0 %5986
      %v5988 = vsel %vm5969, %v5927, 0.0
      %5989 = vadd.xlane.f32.xlu0 %v5988
      %v5990 = vpop.xlane.xlu0 %5989
      %v5991 = vsel %vm428, %v5928, 0.0
      %5992 = vadd.xlane.f32.xlu0 %v5991
      %v5993 = vpop.xlane.xlu0 %5992
      %v5994 = vsel %vm431, %v5929, 0.0
      %5995 = vadd.xlane.f32.xlu0 %v5994
      %v5996 = vpop.xlane.xlu0 %5995
      %v5997 = vsel %vm5969, %v5930, 0.0
      %5998 = vadd.xlane.f32.xlu0 %v5997
      %v5999 = vpop.xlane.xlu0 %5998
      %v6000 = vsel %vm428, %v5931, 0.0
      %6001 = vadd.xlane.f32.xlu0 %v6000
      %v6002 = vpop.xlane.xlu0 %6001
      %v6003 = vsel %vm431, %v5932, 0.0
      %6004 = vadd.xlane.f32.xlu0 %v6003
      %v6005 = vpop.xlane.xlu0 %6004
      %v6006 = vsel %vm5969, %v5933, 0.0
      %6007 = vadd.xlane.f32.xlu0 %v6006
      %v6008 = vpop.xlane.xlu0 %6007
      %v6009 = vsel %vm428, %v5934, 0.0
      %6010 = vadd.xlane.f32.xlu0 %v6009
      %v6011 = vpop.xlane.xlu0 %6010
      %v6012 = vsel %vm431, %v5935, 0.0
      %6013 = vadd.xlane.f32.xlu0 %v6012
      %v6014 = vpop.xlane.xlu0 %6013
      %v6015 = vsel %vm5969, %v5936, 0.0
      %6016 = vadd.xlane.f32.xlu0 %v6015
      %v6017 = vpop.xlane.xlu0 %6016
      %v6018 = vsel %vm428, %v5937, 0.0
      %6019 = vadd.xlane.f32.xlu0 %v6018
      %v6020 = vpop.xlane.xlu0 %6019
      %v6021 = vsel %vm431, %v5938, 0.0
      %6022 = vadd.xlane.f32.xlu0 %v6021
      %v6023 = vpop.xlane.xlu0 %6022
      %v6024 = vsel %vm5969, %v5939, 0.0
      %6025 = vadd.xlane.f32.xlu0 %v6024
      %v6026 = vpop.xlane.xlu0 %6025
      %v6027 = vsel %vm428, %v5940, 0.0
      %6028 = vadd.xlane.f32.xlu0 %v6027
      %v6029 = vpop.xlane.xlu0 %6028
      %v6030 = vsel %vm431, %v5941, 0.0
      %6031 = vadd.xlane.f32.xlu0 %v6030
      %v6032 = vpop.xlane.xlu0 %6031
      %v6033 = vsel %vm5969, %v5942, 0.0
      %6034 = vadd.xlane.f32.xlu0 %v6033
      %v6035 = vpop.xlane.xlu0 %6034
      %v6036 = vsel %vm428, %v5943, 0.0
      %6037 = vadd.xlane.f32.xlu0 %v6036
      %v6038 = vpop.xlane.xlu0 %6037
      %v6039 = vsel %vm431, %v5944, 0.0
      %6040 = vadd.xlane.f32.xlu0 %v6039
      %v6041 = vpop.xlane.xlu0 %6040
      %v6042 = vsel %vm5969, %v5945, 0.0
      %6043 = vadd.xlane.f32.xlu0 %v6042
      %v6044 = vpop.xlane.xlu0 %6043
      %v6045 = vsel %vm428, %v5946, 0.0
      %6046 = vadd.xlane.f32.xlu0 %v6045
      %v6047 = vpop.xlane.xlu0 %6046
      %v6048 = vsel %vm431, %v5947, 0.0
      %6049 = vadd.xlane.f32.xlu0 %v6048
      %v6050 = vpop.xlane.xlu0 %6049
      %v6051 = vsel %vm5969, %v5948, 0.0
      %6052 = vadd.xlane.f32.xlu0 %v6051
      %v6053 = vpop.xlane.xlu0 %6052
      %v6054 = vsel %vm428, %v5949, 0.0
      %6055 = vadd.xlane.f32.xlu0 %v6054
      %v6056 = vpop.xlane.xlu0 %6055
      %v6057 = vsel %vm431, %v5950, 0.0
      %6058 = vadd.xlane.f32.xlu0 %v6057
      %v6059 = vpop.xlane.xlu0 %6058
      %v6060 = vsel %vm5969, %v5951, 0.0
      %6061 = vadd.xlane.f32.xlu0 %v6060
      %v6062 = vpop.xlane.xlu0 %6061
      %v6063 = vsel %vm428, %v5952, 0.0
      %6064 = vadd.xlane.f32.xlu0 %v6063
      %v6065 = vpop.xlane.xlu0 %6064
      %v6066 = vsel %vm431, %v5953, 0.0
      %6067 = vadd.xlane.f32.xlu0 %v6066
      %v6068 = vpop.xlane.xlu0 %6067
      %v6069 = vsel %vm5969, %v5954, 0.0
      %6070 = vadd.xlane.f32.xlu0 %v6069
      %v6071 = vpop.xlane.xlu0 %6070
      %v6072 = vsel %vm428, %v5955, 0.0
      %6073 = vadd.xlane.f32.xlu0 %v6072
      %v6074 = vpop.xlane.xlu0 %6073
      %v6075 = vsel %vm431, %v5956, 0.0
      %6076 = vadd.xlane.f32.xlu0 %v6075
      %v6077 = vpop.xlane.xlu0 %6076
      %v6078 = vsel %vm5969, %v5957, 0.0
      %6079 = vadd.xlane.f32.xlu0 %v6078
      %v6080 = vpop.xlane.xlu0 %6079
      %v6081 = vsel %vm428, %v5958, 0.0
      %6082 = vadd.xlane.f32.xlu0 %v6081
      %v6083 = vpop.xlane.xlu0 %6082
      %v6084 = vsel %vm431, %v5959, 0.0
      %6085 = vadd.xlane.f32.xlu0 %v6084
      %v6086 = vpop.xlane.xlu0 %6085
      %v6087 = vsel %vm5969, %v5960, 0.0
      %6088 = vadd.xlane.f32.xlu0 %v6087
      %v6089 = vpop.xlane.xlu0 %6088
      %v6090 = vsel %vm428, %v5961, 0.0
      %6091 = vadd.xlane.f32.xlu0 %v6090
      %v6092 = vpop.xlane.xlu0 %6091
      %v6093 = vsel %vm431, %v5962, 0.0
      %6094 = vadd.xlane.f32.xlu0 %v6093
      %v6095 = vpop.xlane.xlu0 %6094
      %v6096 = vsel %vm5969, %v5963, 0.0
      %6097 = vadd.xlane.f32.xlu0 %v6096
      %v6098 = vpop.xlane.xlu0 %6097
      %v6099 = vsel %vm428, %v5964, 0.0
      %6100 = vadd.xlane.f32.xlu0 %v6099
      %v6101 = vpop.xlane.xlu0 %6100
      %v6102 = vsel %vm431, %v5965, 0.0
      %6103 = vadd.xlane.f32.xlu0 %v6102
      %v6104 = vpop.xlane.xlu0 %6103
      %v6105 = vsel %vm5969, %v5966, 0.0
      %6106 = vadd.xlane.f32.xlu0 %v6105
      %v6107 = vpop.xlane.xlu0 %6106
      %v6108 = vsel %vm428, %v5967, 0.0
      %6109 = vadd.xlane.f32.xlu0 %v6108
      %v6110 = vpop.xlane.xlu0 %6109
      %v6111 = vsel %vm431, %v5968, 0.0
      %6112 = vadd.xlane.f32.xlu0 %v6111
      %v6113 = vpop.xlane.xlu0 %6112
      %v6162 = vrot.slane %v5972, 2
      %v6163 = vrot.slane %v5975, 2
      %v6164 = vsel %vm1086, %v6162, %v6163
      %v6165 = vrot.slane %v5978, 2
      %v6166 = vsel %vm1086, %v6163, %v6165
      %v6167 = vrot.slane %v5981, 2
      %v6168 = vrot.slane %v5984, 2
      %v6169 = vsel %vm1086, %v6167, %v6168
      %v6170 = vrot.slane %v5987, 2
      %v6171 = vsel %vm1086, %v6168, %v6170
      %v6172 = vrot.slane %v5990, 2
      %v6173 = vrot.slane %v5993, 2
      %v6174 = vsel %vm1086, %v6172, %v6173
      %v6175 = vrot.slane %v5996, 2
      %v6176 = vsel %vm1086, %v6173, %v6175
      %v6177 = vrot.slane %v5999, 2
      %v6178 = vrot.slane %v6002, 2
      %v6179 = vsel %vm1086, %v6177, %v6178
      %v6180 = vrot.slane %v6005, 2
      %v6181 = vsel %vm1086, %v6178, %v6180
      %v6182 = vrot.slane %v6008, 2
      %v6183 = vrot.slane %v6011, 2
      %v6184 = vsel %vm1086, %v6182, %v6183
      %v6185 = vrot.slane %v6014, 2
      %v6186 = vsel %vm1086, %v6183, %v6185
      %v6187 = vrot.slane %v6017, 2
      %v6188 = vrot.slane %v6020, 2
      %v6189 = vsel %vm1086, %v6187, %v6188
      %v6190 = vrot.slane %v6023, 2
      %v6191 = vsel %vm1086, %v6188, %v6190
      %v6192 = vrot.slane %v6026, 2
      %v6193 = vrot.slane %v6029, 2
      %v6194 = vsel %vm1086, %v6192, %v6193
      %v6195 = vrot.slane %v6032, 2
      %v6196 = vsel %vm1086, %v6193, %v6195
      %v6197 = vrot.slane %v6035, 2
      %v6198 = vrot.slane %v6038, 2
      %v6199 = vsel %vm1086, %v6197, %v6198
      %v6200 = vrot.slane %v6041, 2
      %v6201 = vsel %vm1086, %v6198, %v6200
      %v6202 = vrot.slane %v6044, 2
      %v6203 = vrot.slane %v6047, 2
      %v6204 = vsel %vm1086, %v6202, %v6203
      %v6205 = vrot.slane %v6050, 2
      %v6206 = vsel %vm1086, %v6203, %v6205
      %v6207 = vrot.slane %v6053, 2
      %v6208 = vrot.slane %v6056, 2
      %v6209 = vsel %vm1086, %v6207, %v6208
      %v6210 = vrot.slane %v6059, 2
      %v6211 = vsel %vm1086, %v6208, %v6210
      %v6212 = vrot.slane %v6062, 2
      %v6213 = vrot.slane %v6065, 2
      %v6214 = vsel %vm1086, %v6212, %v6213
      %v6215 = vrot.slane %v6068, 2
      %v6216 = vsel %vm1086, %v6213, %v6215
      %v6217 = vrot.slane %v6071, 2
      %v6218 = vrot.slane %v6074, 2
      %v6219 = vsel %vm1086, %v6217, %v6218
      %v6220 = vrot.slane %v6077, 2
      %v6221 = vsel %vm1086, %v6218, %v6220
      %v6222 = vrot.slane %v6080, 2
      %v6223 = vrot.slane %v6083, 2
      %v6224 = vsel %vm1086, %v6222, %v6223
      %v6225 = vrot.slane %v6086, 2
      %v6226 = vsel %vm1086, %v6223, %v6225
      %v6227 = vrot.slane %v6089, 2
      %v6228 = vrot.slane %v6092, 2
      %v6229 = vsel %vm1086, %v6227, %v6228
      %v6230 = vrot.slane %v6095, 2
      %v6231 = vsel %vm1086, %v6228, %v6230
      %v6232 = vrot.slane %v6098, 2
      %v6233 = vrot.slane %v6101, 2
      %v6234 = vsel %vm1086, %v6232, %v6233
      %v6235 = vrot.slane %v6104, 2
      %v6236 = vsel %vm1086, %v6233, %v6235
      %v6237 = vrot.slane %v6107, 2
      %v6238 = vrot.slane %v6110, 2
      %v6239 = vsel %vm1086, %v6237, %v6238
      %v6240 = vrot.slane %v6113, 2
      %v6241 = vsel %vm1086, %v6238, %v6240
      %v6274 = vadd.f32 %v5885, %v6164
      %v6275 = vadd.f32 %v5886, %v6166
      %v6276 = vadd.f32 %v5887, %v6169
      %v6277 = vadd.f32 %v5888, %v6171
      %v6278 = vadd.f32 %v5889, %v6174
      %v6279 = vadd.f32 %v5890, %v6176
      %v6280 = vadd.f32 %v5891, %v6179
      %v6281 = vadd.f32 %v5892, %v6181
      %v6282 = vadd.f32 %v5893, %v6184
      %v6283 = vadd.f32 %v5894, %v6186
      %v6284 = vadd.f32 %v5895, %v6189
      %v6285 = vadd.f32 %v5896, %v6191
      %v6286 = vadd.f32 %v5897, %v6194
      %v6287 = vadd.f32 %v5898, %v6196
      %v6288 = vadd.f32 %v5899, %v6199
      %v6289 = vadd.f32 %v5900, %v6201
      %v6290 = vadd.f32 %v5901, %v6204
      %v6291 = vadd.f32 %v5902, %v6206
      %v6292 = vadd.f32 %v5903, %v6209
      %v6293 = vadd.f32 %v5904, %v6211
      %v6294 = vadd.f32 %v5905, %v6214
      %v6295 = vadd.f32 %v5906, %v6216
      %v6296 = vadd.f32 %v5907, %v6219
      %v6297 = vadd.f32 %v5908, %v6221
      %v6298 = vadd.f32 %v5909, %v6224
      %v6299 = vadd.f32 %v5910, %v6226
      %v6300 = vadd.f32 %v5911, %v6229
      %v6301 = vadd.f32 %v5912, %v6231
      %v6302 = vadd.f32 %v5913, %v6234
      %v6303 = vadd.f32 %v5914, %v6236
      %v6304 = vadd.f32 %v5915, %v6239
      %v6305 = vadd.f32 %v5916, %v6241
      %v6306 = vlaneseq
      %v6307 = vshrl.u32 %v6306, 7
      %v6308 = vsub.s32 3, %v6307
      %v6309 = vrot.slane %v5362, %v6308
      %v6310 = vmul.f32 %v5311, %v6309
      %v6311 = vmul.f32 %v5312, %v6309
      %v6312 = vmul.f32 %v5314, %v6309
      %v6313 = vmul.f32 %v5315, %v6309
      %v6314 = vmul.f32 %v5317, %v6309
      %v6315 = vmul.f32 %v5318, %v6309
      %v6316 = vmul.f32 %v5320, %v6309
      %v6317 = vmul.f32 %v5321, %v6309
      %v6318 = vmul.f32 %v5323, %v6309
      %v6319 = vmul.f32 %v5324, %v6309
      %v6320 = vmul.f32 %v5326, %v6309
      %v6321 = vmul.f32 %v5327, %v6309
      %v6322 = vmul.f32 %v5329, %v6309
      %v6323 = vmul.f32 %v5330, %v6309
      %v6324 = vmul.f32 %v5332, %v6309
      %v6325 = vmul.f32 %v5333, %v6309
      %v6326 = vmul.f32 %v5335, %v6309
      %v6327 = vmul.f32 %v5336, %v6309
      %v6328 = vmul.f32 %v5338, %v6309
      %v6329 = vmul.f32 %v5339, %v6309
      %v6330 = vmul.f32 %v5341, %v6309
      %v6331 = vmul.f32 %v5342, %v6309
      %v6332 = vmul.f32 %v5344, %v6309
      %v6333 = vmul.f32 %v5345, %v6309
      %v6334 = vmul.f32 %v5347, %v6309
      %v6335 = vmul.f32 %v5348, %v6309
      %v6336 = vmul.f32 %v5350, %v6309
      %v6337 = vmul.f32 %v5351, %v6309
      %v6338 = vmul.f32 %v5353, %v6309
      %v6339 = vmul.f32 %v5354, %v6309
      %v6340 = vmul.f32 %v5356, %v6309
      %v6341 = vmul.f32 %v5357, %v6309
      %v6342 = vsel %vm428, %v6310, 0.0
      %6343 = vadd.xlane.f32.xlu0 %v6342
      %v6344 = vpop.xlane.xlu0 %6343
      %v6345 = vsel %vm428, %v6311, 0.0
      %6346 = vadd.xlane.f32.xlu0 %v6345
      %v6347 = vpop.xlane.xlu0 %6346
      %v6348 = vsel %vm428, %v6312, 0.0
      %6349 = vadd.xlane.f32.xlu0 %v6348
      %v6350 = vpop.xlane.xlu0 %6349
      %v6351 = vsel %vm428, %v6313, 0.0
      %6352 = vadd.xlane.f32.xlu0 %v6351
      %v6353 = vpop.xlane.xlu0 %6352
      %v6354 = vsel %vm428, %v6314, 0.0
      %6355 = vadd.xlane.f32.xlu0 %v6354
      %v6356 = vpop.xlane.xlu0 %6355
      %v6357 = vsel %vm428, %v6315, 0.0
      %6358 = vadd.xlane.f32.xlu0 %v6357
      %v6359 = vpop.xlane.xlu0 %6358
      %v6360 = vsel %vm428, %v6316, 0.0
      %6361 = vadd.xlane.f32.xlu0 %v6360
      %v6362 = vpop.xlane.xlu0 %6361
      %v6363 = vsel %vm428, %v6317, 0.0
      %6364 = vadd.xlane.f32.xlu0 %v6363
      %v6365 = vpop.xlane.xlu0 %6364
      %v6366 = vsel %vm428, %v6318, 0.0
      %6367 = vadd.xlane.f32.xlu0 %v6366
      %v6368 = vpop.xlane.xlu0 %6367
      %v6369 = vsel %vm428, %v6319, 0.0
      %6370 = vadd.xlane.f32.xlu0 %v6369
      %v6371 = vpop.xlane.xlu0 %6370
      %v6372 = vsel %vm428, %v6320, 0.0
      %6373 = vadd.xlane.f32.xlu0 %v6372
      %v6374 = vpop.xlane.xlu0 %6373
      %v6375 = vsel %vm428, %v6321, 0.0
      %6376 = vadd.xlane.f32.xlu0 %v6375
      %v6377 = vpop.xlane.xlu0 %6376
      %v6378 = vsel %vm428, %v6322, 0.0
      %6379 = vadd.xlane.f32.xlu0 %v6378
      %v6380 = vpop.xlane.xlu0 %6379
      %v6381 = vsel %vm428, %v6323, 0.0
      %6382 = vadd.xlane.f32.xlu0 %v6381
      %v6383 = vpop.xlane.xlu0 %6382
      %v6384 = vsel %vm428, %v6324, 0.0
      %6385 = vadd.xlane.f32.xlu0 %v6384
      %v6386 = vpop.xlane.xlu0 %6385
      %v6387 = vsel %vm428, %v6325, 0.0
      %6388 = vadd.xlane.f32.xlu0 %v6387
      %v6389 = vpop.xlane.xlu0 %6388
      %v6390 = vsel %vm428, %v6326, 0.0
      %6391 = vadd.xlane.f32.xlu0 %v6390
      %v6392 = vpop.xlane.xlu0 %6391
      %v6393 = vsel %vm428, %v6327, 0.0
      %6394 = vadd.xlane.f32.xlu0 %v6393
      %v6395 = vpop.xlane.xlu0 %6394
      %v6396 = vsel %vm428, %v6328, 0.0
      %6397 = vadd.xlane.f32.xlu0 %v6396
      %v6398 = vpop.xlane.xlu0 %6397
      %v6399 = vsel %vm428, %v6329, 0.0
      %6400 = vadd.xlane.f32.xlu0 %v6399
      %v6401 = vpop.xlane.xlu0 %6400
      %v6402 = vsel %vm428, %v6330, 0.0
      %6403 = vadd.xlane.f32.xlu0 %v6402
      %v6404 = vpop.xlane.xlu0 %6403
      %v6405 = vsel %vm428, %v6331, 0.0
      %6406 = vadd.xlane.f32.xlu0 %v6405
      %v6407 = vpop.xlane.xlu0 %6406
      %v6408 = vsel %vm428, %v6332, 0.0
      %6409 = vadd.xlane.f32.xlu0 %v6408
      %v6410 = vpop.xlane.xlu0 %6409
      %v6411 = vsel %vm428, %v6333, 0.0
      %6412 = vadd.xlane.f32.xlu0 %v6411
      %v6413 = vpop.xlane.xlu0 %6412
      %v6414 = vsel %vm428, %v6334, 0.0
      %6415 = vadd.xlane.f32.xlu0 %v6414
      %v6416 = vpop.xlane.xlu0 %6415
      %v6417 = vsel %vm428, %v6335, 0.0
      %6418 = vadd.xlane.f32.xlu0 %v6417
      %v6419 = vpop.xlane.xlu0 %6418
      %v6420 = vsel %vm428, %v6336, 0.0
      %6421 = vadd.xlane.f32.xlu0 %v6420
      %v6422 = vpop.xlane.xlu0 %6421
      %v6423 = vsel %vm428, %v6337, 0.0
      %6424 = vadd.xlane.f32.xlu0 %v6423
      %v6425 = vpop.xlane.xlu0 %6424
      %v6426 = vsel %vm428, %v6338, 0.0
      %6427 = vadd.xlane.f32.xlu0 %v6426
      %v6428 = vpop.xlane.xlu0 %6427
      %v6429 = vsel %vm428, %v6339, 0.0
      %6430 = vadd.xlane.f32.xlu0 %v6429
      %v6431 = vpop.xlane.xlu0 %6430
      %v6432 = vsel %vm428, %v6340, 0.0
      %6433 = vadd.xlane.f32.xlu0 %v6432
      %v6434 = vpop.xlane.xlu0 %6433
      %v6435 = vsel %vm428, %v6341, 0.0
      %6436 = vadd.xlane.f32.xlu0 %v6435
      %v6437 = vpop.xlane.xlu0 %6436
      %v6438 = vadd.f32 %v6274, %v6344
      %v6439 = vadd.f32 %v6275, %v6347
      %v6440 = vadd.f32 %v6276, %v6350
      %v6441 = vadd.f32 %v6277, %v6353
      %v6442 = vadd.f32 %v6278, %v6356
      %v6443 = vadd.f32 %v6279, %v6359
      %v6444 = vadd.f32 %v6280, %v6362
      %v6445 = vadd.f32 %v6281, %v6365
      %v6446 = vadd.f32 %v6282, %v6368
      %v6447 = vadd.f32 %v6283, %v6371
      %v6448 = vadd.f32 %v6284, %v6374
      %v6449 = vadd.f32 %v6285, %v6377
      %v6450 = vadd.f32 %v6286, %v6380
      %v6451 = vadd.f32 %v6287, %v6383
      %v6452 = vadd.f32 %v6288, %v6386
      %v6453 = vadd.f32 %v6289, %v6389
      %v6454 = vadd.f32 %v6290, %v6392
      %v6455 = vadd.f32 %v6291, %v6395
      %v6456 = vadd.f32 %v6292, %v6398
      %v6457 = vadd.f32 %v6293, %v6401
      %v6458 = vadd.f32 %v6294, %v6404
      %v6459 = vadd.f32 %v6295, %v6407
      %v6460 = vadd.f32 %v6296, %v6410
      %v6461 = vadd.f32 %v6297, %v6413
      %v6462 = vadd.f32 %v6298, %v6416
      %v6463 = vadd.f32 %v6299, %v6419
      %v6464 = vadd.f32 %v6300, %v6422
      %v6465 = vadd.f32 %v6301, %v6425
      %v6466 = vadd.f32 %v6302, %v6428
      %v6467 = vadd.f32 %v6303, %v6431
      %v6468 = vadd.f32 %v6304, %v6434
      %v6469 = vadd.f32 %v6305, %v6437
      %v6470 = vlaneseq
      %v6471 = vshrl.u32 %v6470, 7
      %v6472 = vsub.s32 4, %v6471
      %v6473 = vrot.slane %v5362, %v6472
      %v6474 = vmul.f32 %v5311, %v6473
      %v6475 = vmul.f32 %v5312, %v6473
      %v6476 = vmul.f32 %v5313, %v6473
      %v6477 = vmul.f32 %v5314, %v6473
      %v6478 = vmul.f32 %v5315, %v6473
      %v6479 = vmul.f32 %v5316, %v6473
      %v6480 = vmul.f32 %v5317, %v6473
      %v6481 = vmul.f32 %v5318, %v6473
      %v6482 = vmul.f32 %v5319, %v6473
      %v6483 = vmul.f32 %v5320, %v6473
      %v6484 = vmul.f32 %v5321, %v6473
      %v6485 = vmul.f32 %v5322, %v6473
      %v6486 = vmul.f32 %v5323, %v6473
      %v6487 = vmul.f32 %v5324, %v6473
      %v6488 = vmul.f32 %v5325, %v6473
      %v6489 = vmul.f32 %v5326, %v6473
      %v6490 = vmul.f32 %v5327, %v6473
      %v6491 = vmul.f32 %v5328, %v6473
      %v6492 = vmul.f32 %v5329, %v6473
      %v6493 = vmul.f32 %v5330, %v6473
      %v6494 = vmul.f32 %v5331, %v6473
      %v6495 = vmul.f32 %v5332, %v6473
      %v6496 = vmul.f32 %v5333, %v6473
      %v6497 = vmul.f32 %v5334, %v6473
      %v6498 = vmul.f32 %v5335, %v6473
      %v6499 = vmul.f32 %v5336, %v6473
      %v6500 = vmul.f32 %v5337, %v6473
      %v6501 = vmul.f32 %v5338, %v6473
      %v6502 = vmul.f32 %v5339, %v6473
      %v6503 = vmul.f32 %v5340, %v6473
      %v6504 = vmul.f32 %v5341, %v6473
      %v6505 = vmul.f32 %v5342, %v6473
      %v6506 = vmul.f32 %v5343, %v6473
      %v6507 = vmul.f32 %v5344, %v6473
      %v6508 = vmul.f32 %v5345, %v6473
      %v6509 = vmul.f32 %v5346, %v6473
      %v6510 = vmul.f32 %v5347, %v6473
      %v6511 = vmul.f32 %v5348, %v6473
      %v6512 = vmul.f32 %v5349, %v6473
      %v6513 = vmul.f32 %v5350, %v6473
      %v6514 = vmul.f32 %v5351, %v6473
      %v6515 = vmul.f32 %v5352, %v6473
      %v6516 = vmul.f32 %v5353, %v6473
      %v6517 = vmul.f32 %v5354, %v6473
      %v6518 = vmul.f32 %v5355, %v6473
      %v6519 = vmul.f32 %v5356, %v6473
      %v6520 = vmul.f32 %v5357, %v6473
      %v6521 = vmul.f32 %v5358, %v6473
      %v6522 = vsel %vm5580, %v6474, 0.0
      %6523 = vadd.xlane.f32.xlu0 %v6522
      %v6524 = vpop.xlane.xlu0 %6523
      %v6525 = vsel %vm428, %v6475, 0.0
      %6526 = vadd.xlane.f32.xlu0 %v6525
      %v6527 = vpop.xlane.xlu0 %6526
      %v6528 = vsel %vm437, %v6476, 0.0
      %6529 = vadd.xlane.f32.xlu0 %v6528
      %v6530 = vpop.xlane.xlu0 %6529
      %v6531 = vsel %vm5580, %v6477, 0.0
      %6532 = vadd.xlane.f32.xlu0 %v6531
      %v6533 = vpop.xlane.xlu0 %6532
      %v6534 = vsel %vm428, %v6478, 0.0
      %6535 = vadd.xlane.f32.xlu0 %v6534
      %v6536 = vpop.xlane.xlu0 %6535
      %v6537 = vsel %vm437, %v6479, 0.0
      %6538 = vadd.xlane.f32.xlu0 %v6537
      %v6539 = vpop.xlane.xlu0 %6538
      %v6540 = vsel %vm5580, %v6480, 0.0
      %6541 = vadd.xlane.f32.xlu0 %v6540
      %v6542 = vpop.xlane.xlu0 %6541
      %v6543 = vsel %vm428, %v6481, 0.0
      %6544 = vadd.xlane.f32.xlu0 %v6543
      %v6545 = vpop.xlane.xlu0 %6544
      %v6546 = vsel %vm437, %v6482, 0.0
      %6547 = vadd.xlane.f32.xlu0 %v6546
      %v6548 = vpop.xlane.xlu0 %6547
      %v6549 = vsel %vm5580, %v6483, 0.0
      %6550 = vadd.xlane.f32.xlu0 %v6549
      %v6551 = vpop.xlane.xlu0 %6550
      %v6552 = vsel %vm428, %v6484, 0.0
      %6553 = vadd.xlane.f32.xlu0 %v6552
      %v6554 = vpop.xlane.xlu0 %6553
      %v6555 = vsel %vm437, %v6485, 0.0
      %6556 = vadd.xlane.f32.xlu0 %v6555
      %v6557 = vpop.xlane.xlu0 %6556
      %v6558 = vsel %vm5580, %v6486, 0.0
      %6559 = vadd.xlane.f32.xlu0 %v6558
      %v6560 = vpop.xlane.xlu0 %6559
      %v6561 = vsel %vm428, %v6487, 0.0
      %6562 = vadd.xlane.f32.xlu0 %v6561
      %v6563 = vpop.xlane.xlu0 %6562
      %v6564 = vsel %vm437, %v6488, 0.0
      %6565 = vadd.xlane.f32.xlu0 %v6564
      %v6566 = vpop.xlane.xlu0 %6565
      %v6567 = vsel %vm5580, %v6489, 0.0
      %6568 = vadd.xlane.f32.xlu0 %v6567
      %v6569 = vpop.xlane.xlu0 %6568
      %v6570 = vsel %vm428, %v6490, 0.0
      %6571 = vadd.xlane.f32.xlu0 %v6570
      %v6572 = vpop.xlane.xlu0 %6571
      %v6573 = vsel %vm437, %v6491, 0.0
      %6574 = vadd.xlane.f32.xlu0 %v6573
      %v6575 = vpop.xlane.xlu0 %6574
      %v6576 = vsel %vm5580, %v6492, 0.0
      %6577 = vadd.xlane.f32.xlu0 %v6576
      %v6578 = vpop.xlane.xlu0 %6577
      %v6579 = vsel %vm428, %v6493, 0.0
      %6580 = vadd.xlane.f32.xlu0 %v6579
      %v6581 = vpop.xlane.xlu0 %6580
      %v6582 = vsel %vm437, %v6494, 0.0
      %6583 = vadd.xlane.f32.xlu0 %v6582
      %v6584 = vpop.xlane.xlu0 %6583
      %v6585 = vsel %vm5580, %v6495, 0.0
      %6586 = vadd.xlane.f32.xlu0 %v6585
      %v6587 = vpop.xlane.xlu0 %6586
      %v6588 = vsel %vm428, %v6496, 0.0
      %6589 = vadd.xlane.f32.xlu0 %v6588
      %v6590 = vpop.xlane.xlu0 %6589
      %v6591 = vsel %vm437, %v6497, 0.0
      %6592 = vadd.xlane.f32.xlu0 %v6591
      %v6593 = vpop.xlane.xlu0 %6592
      %v6594 = vsel %vm5580, %v6498, 0.0
      %6595 = vadd.xlane.f32.xlu0 %v6594
      %v6596 = vpop.xlane.xlu0 %6595
      %v6597 = vsel %vm428, %v6499, 0.0
      %6598 = vadd.xlane.f32.xlu0 %v6597
      %v6599 = vpop.xlane.xlu0 %6598
      %v6600 = vsel %vm437, %v6500, 0.0
      %6601 = vadd.xlane.f32.xlu0 %v6600
      %v6602 = vpop.xlane.xlu0 %6601
      %v6603 = vsel %vm5580, %v6501, 0.0
      %6604 = vadd.xlane.f32.xlu0 %v6603
      %v6605 = vpop.xlane.xlu0 %6604
      %v6606 = vsel %vm428, %v6502, 0.0
      %6607 = vadd.xlane.f32.xlu0 %v6606
      %v6608 = vpop.xlane.xlu0 %6607
      %v6609 = vsel %vm437, %v6503, 0.0
      %6610 = vadd.xlane.f32.xlu0 %v6609
      %v6611 = vpop.xlane.xlu0 %6610
      %v6612 = vsel %vm5580, %v6504, 0.0
      %6613 = vadd.xlane.f32.xlu0 %v6612
      %v6614 = vpop.xlane.xlu0 %6613
      %v6615 = vsel %vm428, %v6505, 0.0
      %6616 = vadd.xlane.f32.xlu0 %v6615
      %v6617 = vpop.xlane.xlu0 %6616
      %v6618 = vsel %vm437, %v6506, 0.0
      %6619 = vadd.xlane.f32.xlu0 %v6618
      %v6620 = vpop.xlane.xlu0 %6619
      %v6621 = vsel %vm5580, %v6507, 0.0
      %6622 = vadd.xlane.f32.xlu0 %v6621
      %v6623 = vpop.xlane.xlu0 %6622
      %v6624 = vsel %vm428, %v6508, 0.0
      %6625 = vadd.xlane.f32.xlu0 %v6624
      %v6626 = vpop.xlane.xlu0 %6625
      %v6627 = vsel %vm437, %v6509, 0.0
      %6628 = vadd.xlane.f32.xlu0 %v6627
      %v6629 = vpop.xlane.xlu0 %6628
      %v6630 = vsel %vm5580, %v6510, 0.0
      %6631 = vadd.xlane.f32.xlu0 %v6630
      %v6632 = vpop.xlane.xlu0 %6631
      %v6633 = vsel %vm428, %v6511, 0.0
      %6634 = vadd.xlane.f32.xlu0 %v6633
      %v6635 = vpop.xlane.xlu0 %6634
      %v6636 = vsel %vm437, %v6512, 0.0
      %6637 = vadd.xlane.f32.xlu0 %v6636
      %v6638 = vpop.xlane.xlu0 %6637
      %v6639 = vsel %vm5580, %v6513, 0.0
      %6640 = vadd.xlane.f32.xlu0 %v6639
      %v6641 = vpop.xlane.xlu0 %6640
      %v6642 = vsel %vm428, %v6514, 0.0
      %6643 = vadd.xlane.f32.xlu0 %v6642
      %v6644 = vpop.xlane.xlu0 %6643
      %v6645 = vsel %vm437, %v6515, 0.0
      %6646 = vadd.xlane.f32.xlu0 %v6645
      %v6647 = vpop.xlane.xlu0 %6646
      %v6648 = vsel %vm5580, %v6516, 0.0
      %6649 = vadd.xlane.f32.xlu0 %v6648
      %v6650 = vpop.xlane.xlu0 %6649
      %v6651 = vsel %vm428, %v6517, 0.0
      %6652 = vadd.xlane.f32.xlu0 %v6651
      %v6653 = vpop.xlane.xlu0 %6652
      %v6654 = vsel %vm437, %v6518, 0.0
      %6655 = vadd.xlane.f32.xlu0 %v6654
      %v6656 = vpop.xlane.xlu0 %6655
      %v6657 = vsel %vm5580, %v6519, 0.0
      %6658 = vadd.xlane.f32.xlu0 %v6657
      %v6659 = vpop.xlane.xlu0 %6658
      %v6660 = vsel %vm428, %v6520, 0.0
      %6661 = vadd.xlane.f32.xlu0 %v6660
      %v6662 = vpop.xlane.xlu0 %6661
      %v6663 = vsel %vm437, %v6521, 0.0
      %6664 = vadd.xlane.f32.xlu0 %v6663
      %v6665 = vpop.xlane.xlu0 %6664
      %v6714 = vrot.slane %v6524, 1
      %v6715 = vrot.slane %v6527, 1
      %v6716 = vsel %vm909, %v6714, %v6715
      %v6717 = vrot.slane %v6530, 1
      %v6718 = vsel %vm909, %v6715, %v6717
      %v6719 = vrot.slane %v6533, 1
      %v6720 = vrot.slane %v6536, 1
      %v6721 = vsel %vm909, %v6719, %v6720
      %v6722 = vrot.slane %v6539, 1
      %v6723 = vsel %vm909, %v6720, %v6722
      %v6724 = vrot.slane %v6542, 1
      %v6725 = vrot.slane %v6545, 1
      %v6726 = vsel %vm909, %v6724, %v6725
      %v6727 = vrot.slane %v6548, 1
      %v6728 = vsel %vm909, %v6725, %v6727
      %v6729 = vrot.slane %v6551, 1
      %v6730 = vrot.slane %v6554, 1
      %v6731 = vsel %vm909, %v6729, %v6730
      %v6732 = vrot.slane %v6557, 1
      %v6733 = vsel %vm909, %v6730, %v6732
      %v6734 = vrot.slane %v6560, 1
      %v6735 = vrot.slane %v6563, 1
      %v6736 = vsel %vm909, %v6734, %v6735
      %v6737 = vrot.slane %v6566, 1
      %v6738 = vsel %vm909, %v6735, %v6737
      %v6739 = vrot.slane %v6569, 1
      %v6740 = vrot.slane %v6572, 1
      %v6741 = vsel %vm909, %v6739, %v6740
      %v6742 = vrot.slane %v6575, 1
      %v6743 = vsel %vm909, %v6740, %v6742
      %v6744 = vrot.slane %v6578, 1
      %v6745 = vrot.slane %v6581, 1
      %v6746 = vsel %vm909, %v6744, %v6745
      %v6747 = vrot.slane %v6584, 1
      %v6748 = vsel %vm909, %v6745, %v6747
      %v6749 = vrot.slane %v6587, 1
      %v6750 = vrot.slane %v6590, 1
      %v6751 = vsel %vm909, %v6749, %v6750
      %v6752 = vrot.slane %v6593, 1
      %v6753 = vsel %vm909, %v6750, %v6752
      %v6754 = vrot.slane %v6596, 1
      %v6755 = vrot.slane %v6599, 1
      %v6756 = vsel %vm909, %v6754, %v6755
      %v6757 = vrot.slane %v6602, 1
      %v6758 = vsel %vm909, %v6755, %v6757
      %v6759 = vrot.slane %v6605, 1
      %v6760 = vrot.slane %v6608, 1
      %v6761 = vsel %vm909, %v6759, %v6760
      %v6762 = vrot.slane %v6611, 1
      %v6763 = vsel %vm909, %v6760, %v6762
      %v6764 = vrot.slane %v6614, 1
      %v6765 = vrot.slane %v6617, 1
      %v6766 = vsel %vm909, %v6764, %v6765
      %v6767 = vrot.slane %v6620, 1
      %v6768 = vsel %vm909, %v6765, %v6767
      %v6769 = vrot.slane %v6623, 1
      %v6770 = vrot.slane %v6626, 1
      %v6771 = vsel %vm909, %v6769, %v6770
      %v6772 = vrot.slane %v6629, 1
      %v6773 = vsel %vm909, %v6770, %v6772
      %v6774 = vrot.slane %v6632, 1
      %v6775 = vrot.slane %v6635, 1
      %v6776 = vsel %vm909, %v6774, %v6775
      %v6777 = vrot.slane %v6638, 1
      %v6778 = vsel %vm909, %v6775, %v6777
      %v6779 = vrot.slane %v6641, 1
      %v6780 = vrot.slane %v6644, 1
      %v6781 = vsel %vm909, %v6779, %v6780
      %v6782 = vrot.slane %v6647, 1
      %v6783 = vsel %vm909, %v6780, %v6782
      %v6784 = vrot.slane %v6650, 1
      %v6785 = vrot.slane %v6653, 1
      %v6786 = vsel %vm909, %v6784, %v6785
      %v6787 = vrot.slane %v6656, 1
      %v6788 = vsel %vm909, %v6785, %v6787
      %v6789 = vrot.slane %v6659, 1
      %v6790 = vrot.slane %v6662, 1
      %v6791 = vsel %vm909, %v6789, %v6790
      %v6792 = vrot.slane %v6665, 1
      %v6793 = vsel %vm909, %v6790, %v6792
      %v6826 = vadd.f32 %v6438, %v6716
      %v6827 = vadd.f32 %v6439, %v6718
      %v6828 = vadd.f32 %v6440, %v6721
      %v6829 = vadd.f32 %v6441, %v6723
      %v6830 = vadd.f32 %v6442, %v6726
      %v6831 = vadd.f32 %v6443, %v6728
      %v6832 = vadd.f32 %v6444, %v6731
      %v6833 = vadd.f32 %v6445, %v6733
      %v6834 = vadd.f32 %v6446, %v6736
      %v6835 = vadd.f32 %v6447, %v6738
      %v6836 = vadd.f32 %v6448, %v6741
      %v6837 = vadd.f32 %v6449, %v6743
      %v6838 = vadd.f32 %v6450, %v6746
      %v6839 = vadd.f32 %v6451, %v6748
      %v6840 = vadd.f32 %v6452, %v6751
      %v6841 = vadd.f32 %v6453, %v6753
      %v6842 = vadd.f32 %v6454, %v6756
      %v6843 = vadd.f32 %v6455, %v6758
      %v6844 = vadd.f32 %v6456, %v6761
      %v6845 = vadd.f32 %v6457, %v6763
      %v6846 = vadd.f32 %v6458, %v6766
      %v6847 = vadd.f32 %v6459, %v6768
      %v6848 = vadd.f32 %v6460, %v6771
      %v6849 = vadd.f32 %v6461, %v6773
      %v6850 = vadd.f32 %v6462, %v6776
      %v6851 = vadd.f32 %v6463, %v6778
      %v6852 = vadd.f32 %v6464, %v6781
      %v6853 = vadd.f32 %v6465, %v6783
      %v6854 = vadd.f32 %v6466, %v6786
      %v6855 = vadd.f32 %v6467, %v6788
      %v6856 = vadd.f32 %v6468, %v6791
      %v6857 = vadd.f32 %v6469, %v6793
      %v6858 = vlaneseq
      %v6859 = vshrl.u32 %v6858, 7
      %v6860 = vsub.s32 5, %v6859
      %v6861 = vrot.slane %v5362, %v6860
      %v6862 = vmul.f32 %v5311, %v6861
      %v6863 = vmul.f32 %v5312, %v6861
      %v6864 = vmul.f32 %v5313, %v6861
      %v6865 = vmul.f32 %v5314, %v6861
      %v6866 = vmul.f32 %v5315, %v6861
      %v6867 = vmul.f32 %v5316, %v6861
      %v6868 = vmul.f32 %v5317, %v6861
      %v6869 = vmul.f32 %v5318, %v6861
      %v6870 = vmul.f32 %v5319, %v6861
      %v6871 = vmul.f32 %v5320, %v6861
      %v6872 = vmul.f32 %v5321, %v6861
      %v6873 = vmul.f32 %v5322, %v6861
      %v6874 = vmul.f32 %v5323, %v6861
      %v6875 = vmul.f32 %v5324, %v6861
      %v6876 = vmul.f32 %v5325, %v6861
      %v6877 = vmul.f32 %v5326, %v6861
      %v6878 = vmul.f32 %v5327, %v6861
      %v6879 = vmul.f32 %v5328, %v6861
      %v6880 = vmul.f32 %v5329, %v6861
      %v6881 = vmul.f32 %v5330, %v6861
      %v6882 = vmul.f32 %v5331, %v6861
      %v6883 = vmul.f32 %v5332, %v6861
      %v6884 = vmul.f32 %v5333, %v6861
      %v6885 = vmul.f32 %v5334, %v6861
      %v6886 = vmul.f32 %v5335, %v6861
      %v6887 = vmul.f32 %v5336, %v6861
      %v6888 = vmul.f32 %v5337, %v6861
      %v6889 = vmul.f32 %v5338, %v6861
      %v6890 = vmul.f32 %v5339, %v6861
      %v6891 = vmul.f32 %v5340, %v6861
      %v6892 = vmul.f32 %v5341, %v6861
      %v6893 = vmul.f32 %v5342, %v6861
      %v6894 = vmul.f32 %v5343, %v6861
      %v6895 = vmul.f32 %v5344, %v6861
      %v6896 = vmul.f32 %v5345, %v6861
      %v6897 = vmul.f32 %v5346, %v6861
      %v6898 = vmul.f32 %v5347, %v6861
      %v6899 = vmul.f32 %v5348, %v6861
      %v6900 = vmul.f32 %v5349, %v6861
      %v6901 = vmul.f32 %v5350, %v6861
      %v6902 = vmul.f32 %v5351, %v6861
      %v6903 = vmul.f32 %v5352, %v6861
      %v6904 = vmul.f32 %v5353, %v6861
      %v6905 = vmul.f32 %v5354, %v6861
      %v6906 = vmul.f32 %v5355, %v6861
      %v6907 = vmul.f32 %v5356, %v6861
      %v6908 = vmul.f32 %v5357, %v6861
      %v6909 = vmul.f32 %v5358, %v6861
      %v6910 = vsel %vm5969, %v6862, 0.0
      %6911 = vadd.xlane.f32.xlu0 %v6910
      %v6912 = vpop.xlane.xlu0 %6911
      %v6913 = vsel %vm428, %v6863, 0.0
      %6914 = vadd.xlane.f32.xlu0 %v6913
      %v6915 = vpop.xlane.xlu0 %6914
      %v6916 = vsel %vm431, %v6864, 0.0
      %6917 = vadd.xlane.f32.xlu0 %v6916
      %v6918 = vpop.xlane.xlu0 %6917
      %v6919 = vsel %vm5969, %v6865, 0.0
      %6920 = vadd.xlane.f32.xlu0 %v6919
      %v6921 = vpop.xlane.xlu0 %6920
      %v6922 = vsel %vm428, %v6866, 0.0
      %6923 = vadd.xlane.f32.xlu0 %v6922
      %v6924 = vpop.xlane.xlu0 %6923
      %v6925 = vsel %vm431, %v6867, 0.0
      %6926 = vadd.xlane.f32.xlu0 %v6925
      %v6927 = vpop.xlane.xlu0 %6926
      %v6928 = vsel %vm5969, %v6868, 0.0
      %6929 = vadd.xlane.f32.xlu0 %v6928
      %v6930 = vpop.xlane.xlu0 %6929
      %v6931 = vsel %vm428, %v6869, 0.0
      %6932 = vadd.xlane.f32.xlu0 %v6931
      %v6933 = vpop.xlane.xlu0 %6932
      %v6934 = vsel %vm431, %v6870, 0.0
      %6935 = vadd.xlane.f32.xlu0 %v6934
      %v6936 = vpop.xlane.xlu0 %6935
      %v6937 = vsel %vm5969, %v6871, 0.0
      %6938 = vadd.xlane.f32.xlu0 %v6937
      %v6939 = vpop.xlane.xlu0 %6938
      %v6940 = vsel %vm428, %v6872, 0.0
      %6941 = vadd.xlane.f32.xlu0 %v6940
      %v6942 = vpop.xlane.xlu0 %6941
      %v6943 = vsel %vm431, %v6873, 0.0
      %6944 = vadd.xlane.f32.xlu0 %v6943
      %v6945 = vpop.xlane.xlu0 %6944
      %v6946 = vsel %vm5969, %v6874, 0.0
      %6947 = vadd.xlane.f32.xlu0 %v6946
      %v6948 = vpop.xlane.xlu0 %6947
      %v6949 = vsel %vm428, %v6875, 0.0
      %6950 = vadd.xlane.f32.xlu0 %v6949
      %v6951 = vpop.xlane.xlu0 %6950
      %v6952 = vsel %vm431, %v6876, 0.0
      %6953 = vadd.xlane.f32.xlu0 %v6952
      %v6954 = vpop.xlane.xlu0 %6953
      %v6955 = vsel %vm5969, %v6877, 0.0
      %6956 = vadd.xlane.f32.xlu0 %v6955
      %v6957 = vpop.xlane.xlu0 %6956
      %v6958 = vsel %vm428, %v6878, 0.0
      %6959 = vadd.xlane.f32.xlu0 %v6958
      %v6960 = vpop.xlane.xlu0 %6959
      %v6961 = vsel %vm431, %v6879, 0.0
      %6962 = vadd.xlane.f32.xlu0 %v6961
      %v6963 = vpop.xlane.xlu0 %6962
      %v6964 = vsel %vm5969, %v6880, 0.0
      %6965 = vadd.xlane.f32.xlu0 %v6964
      %v6966 = vpop.xlane.xlu0 %6965
      %v6967 = vsel %vm428, %v6881, 0.0
      %6968 = vadd.xlane.f32.xlu0 %v6967
      %v6969 = vpop.xlane.xlu0 %6968
      %v6970 = vsel %vm431, %v6882, 0.0
      %6971 = vadd.xlane.f32.xlu0 %v6970
      %v6972 = vpop.xlane.xlu0 %6971
      %v6973 = vsel %vm5969, %v6883, 0.0
      %6974 = vadd.xlane.f32.xlu0 %v6973
      %v6975 = vpop.xlane.xlu0 %6974
      %v6976 = vsel %vm428, %v6884, 0.0
      %6977 = vadd.xlane.f32.xlu0 %v6976
      %v6978 = vpop.xlane.xlu0 %6977
      %v6979 = vsel %vm431, %v6885, 0.0
      %6980 = vadd.xlane.f32.xlu0 %v6979
      %v6981 = vpop.xlane.xlu0 %6980
      %v6982 = vsel %vm5969, %v6886, 0.0
      %6983 = vadd.xlane.f32.xlu0 %v6982
      %v6984 = vpop.xlane.xlu0 %6983
      %v6985 = vsel %vm428, %v6887, 0.0
      %6986 = vadd.xlane.f32.xlu0 %v6985
      %v6987 = vpop.xlane.xlu0 %6986
      %v6988 = vsel %vm431, %v6888, 0.0
      %6989 = vadd.xlane.f32.xlu0 %v6988
      %v6990 = vpop.xlane.xlu0 %6989
      %v6991 = vsel %vm5969, %v6889, 0.0
      %6992 = vadd.xlane.f32.xlu0 %v6991
      %v6993 = vpop.xlane.xlu0 %6992
      %v6994 = vsel %vm428, %v6890, 0.0
      %6995 = vadd.xlane.f32.xlu0 %v6994
      %v6996 = vpop.xlane.xlu0 %6995
      %v6997 = vsel %vm431, %v6891, 0.0
      %6998 = vadd.xlane.f32.xlu0 %v6997
      %v6999 = vpop.xlane.xlu0 %6998
      %v7000 = vsel %vm5969, %v6892, 0.0
      %7001 = vadd.xlane.f32.xlu0 %v7000
      %v7002 = vpop.xlane.xlu0 %7001
      %v7003 = vsel %vm428, %v6893, 0.0
      %7004 = vadd.xlane.f32.xlu0 %v7003
      %v7005 = vpop.xlane.xlu0 %7004
      %v7006 = vsel %vm431, %v6894, 0.0
      %7007 = vadd.xlane.f32.xlu0 %v7006
      %v7008 = vpop.xlane.xlu0 %7007
      %v7009 = vsel %vm5969, %v6895, 0.0
      %7010 = vadd.xlane.f32.xlu0 %v7009
      %v7011 = vpop.xlane.xlu0 %7010
      %v7012 = vsel %vm428, %v6896, 0.0
      %7013 = vadd.xlane.f32.xlu0 %v7012
      %v7014 = vpop.xlane.xlu0 %7013
      %v7015 = vsel %vm431, %v6897, 0.0
      %7016 = vadd.xlane.f32.xlu0 %v7015
      %v7017 = vpop.xlane.xlu0 %7016
      %v7018 = vsel %vm5969, %v6898, 0.0
      %7019 = vadd.xlane.f32.xlu0 %v7018
      %v7020 = vpop.xlane.xlu0 %7019
      %v7021 = vsel %vm428, %v6899, 0.0
      %7022 = vadd.xlane.f32.xlu0 %v7021
      %v7023 = vpop.xlane.xlu0 %7022
      %v7024 = vsel %vm431, %v6900, 0.0
      %7025 = vadd.xlane.f32.xlu0 %v7024
      %v7026 = vpop.xlane.xlu0 %7025
      %v7027 = vsel %vm5969, %v6901, 0.0
      %7028 = vadd.xlane.f32.xlu0 %v7027
      %v7029 = vpop.xlane.xlu0 %7028
      %v7030 = vsel %vm428, %v6902, 0.0
      %7031 = vadd.xlane.f32.xlu0 %v7030
      %v7032 = vpop.xlane.xlu0 %7031
      %v7033 = vsel %vm431, %v6903, 0.0
      %7034 = vadd.xlane.f32.xlu0 %v7033
      %v7035 = vpop.xlane.xlu0 %7034
      %v7036 = vsel %vm5969, %v6904, 0.0
      %7037 = vadd.xlane.f32.xlu0 %v7036
      %v7038 = vpop.xlane.xlu0 %7037
      %v7039 = vsel %vm428, %v6905, 0.0
      %7040 = vadd.xlane.f32.xlu0 %v7039
      %v7041 = vpop.xlane.xlu0 %7040
      %v7042 = vsel %vm431, %v6906, 0.0
      %7043 = vadd.xlane.f32.xlu0 %v7042
      %v7044 = vpop.xlane.xlu0 %7043
      %v7045 = vsel %vm5969, %v6907, 0.0
      %7046 = vadd.xlane.f32.xlu0 %v7045
      %v7047 = vpop.xlane.xlu0 %7046
      %v7048 = vsel %vm428, %v6908, 0.0
      %7049 = vadd.xlane.f32.xlu0 %v7048
      %v7050 = vpop.xlane.xlu0 %7049
      %v7051 = vsel %vm431, %v6909, 0.0
      %7052 = vadd.xlane.f32.xlu0 %v7051
      %v7053 = vpop.xlane.xlu0 %7052
      %v7102 = vrot.slane %v6912, 2
      %v7103 = vrot.slane %v6915, 2
      %v7104 = vsel %vm1086, %v7102, %v7103
      %v7105 = vrot.slane %v6918, 2
      %v7106 = vsel %vm1086, %v7103, %v7105
      %v7107 = vrot.slane %v6921, 2
      %v7108 = vrot.slane %v6924, 2
      %v7109 = vsel %vm1086, %v7107, %v7108
      %v7110 = vrot.slane %v6927, 2
      %v7111 = vsel %vm1086, %v7108, %v7110
      %v7112 = vrot.slane %v6930, 2
      %v7113 = vrot.slane %v6933, 2
      %v7114 = vsel %vm1086, %v7112, %v7113
      %v7115 = vrot.slane %v6936, 2
      %v7116 = vsel %vm1086, %v7113, %v7115
      %v7117 = vrot.slane %v6939, 2
      %v7118 = vrot.slane %v6942, 2
      %v7119 = vsel %vm1086, %v7117, %v7118
      %v7120 = vrot.slane %v6945, 2
      %v7121 = vsel %vm1086, %v7118, %v7120
      %v7122 = vrot.slane %v6948, 2
      %v7123 = vrot.slane %v6951, 2
      %v7124 = vsel %vm1086, %v7122, %v7123
      %v7125 = vrot.slane %v6954, 2
      %v7126 = vsel %vm1086, %v7123, %v7125
      %v7127 = vrot.slane %v6957, 2
      %v7128 = vrot.slane %v6960, 2
      %v7129 = vsel %vm1086, %v7127, %v7128
      %v7130 = vrot.slane %v6963, 2
      %v7131 = vsel %vm1086, %v7128, %v7130
      %v7132 = vrot.slane %v6966, 2
      %v7133 = vrot.slane %v6969, 2
      %v7134 = vsel %vm1086, %v7132, %v7133
      %v7135 = vrot.slane %v6972, 2
      %v7136 = vsel %vm1086, %v7133, %v7135
      %v7137 = vrot.slane %v6975, 2
      %v7138 = vrot.slane %v6978, 2
      %v7139 = vsel %vm1086, %v7137, %v7138
      %v7140 = vrot.slane %v6981, 2
      %v7141 = vsel %vm1086, %v7138, %v7140
      %v7142 = vrot.slane %v6984, 2
      %v7143 = vrot.slane %v6987, 2
      %v7144 = vsel %vm1086, %v7142, %v7143
      %v7145 = vrot.slane %v6990, 2
      %v7146 = vsel %vm1086, %v7143, %v7145
      %v7147 = vrot.slane %v6993, 2
      %v7148 = vrot.slane %v6996, 2
      %v7149 = vsel %vm1086, %v7147, %v7148
      %v7150 = vrot.slane %v6999, 2
      %v7151 = vsel %vm1086, %v7148, %v7150
      %v7152 = vrot.slane %v7002, 2
      %v7153 = vrot.slane %v7005, 2
      %v7154 = vsel %vm1086, %v7152, %v7153
      %v7155 = vrot.slane %v7008, 2
      %v7156 = vsel %vm1086, %v7153, %v7155
      %v7157 = vrot.slane %v7011, 2
      %v7158 = vrot.slane %v7014, 2
      %v7159 = vsel %vm1086, %v7157, %v7158
      %v7160 = vrot.slane %v7017, 2
      %v7161 = vsel %vm1086, %v7158, %v7160
      %v7162 = vrot.slane %v7020, 2
      %v7163 = vrot.slane %v7023, 2
      %v7164 = vsel %vm1086, %v7162, %v7163
      %v7165 = vrot.slane %v7026, 2
      %v7166 = vsel %vm1086, %v7163, %v7165
      %v7167 = vrot.slane %v7029, 2
      %v7168 = vrot.slane %v7032, 2
      %v7169 = vsel %vm1086, %v7167, %v7168
      %v7170 = vrot.slane %v7035, 2
      %v7171 = vsel %vm1086, %v7168, %v7170
      %v7172 = vrot.slane %v7038, 2
      %v7173 = vrot.slane %v7041, 2
      %v7174 = vsel %vm1086, %v7172, %v7173
      %v7175 = vrot.slane %v7044, 2
      %v7176 = vsel %vm1086, %v7173, %v7175
      %v7177 = vrot.slane %v7047, 2
      %v7178 = vrot.slane %v7050, 2
      %v7179 = vsel %vm1086, %v7177, %v7178
      %v7180 = vrot.slane %v7053, 2
      %v7181 = vsel %vm1086, %v7178, %v7180
      %v7214 = vadd.f32 %v6826, %v7104
      %v7215 = vadd.f32 %v6827, %v7106
      %v7216 = vadd.f32 %v6828, %v7109
      %v7217 = vadd.f32 %v6829, %v7111
      %v7218 = vadd.f32 %v6830, %v7114
      %v7219 = vadd.f32 %v6831, %v7116
      %v7220 = vadd.f32 %v6832, %v7119
      %v7221 = vadd.f32 %v6833, %v7121
      %v7222 = vadd.f32 %v6834, %v7124
      %v7223 = vadd.f32 %v6835, %v7126
      %v7224 = vadd.f32 %v6836, %v7129
      %v7225 = vadd.f32 %v6837, %v7131
      %v7226 = vadd.f32 %v6838, %v7134
      %v7227 = vadd.f32 %v6839, %v7136
      %v7228 = vadd.f32 %v6840, %v7139
      %v7229 = vadd.f32 %v6841, %v7141
      %v7230 = vadd.f32 %v6842, %v7144
      %v7231 = vadd.f32 %v6843, %v7146
      %v7232 = vadd.f32 %v6844, %v7149
      %v7233 = vadd.f32 %v6845, %v7151
      %v7234 = vadd.f32 %v6846, %v7154
      %v7235 = vadd.f32 %v6847, %v7156
      %v7236 = vadd.f32 %v6848, %v7159
      %v7237 = vadd.f32 %v6849, %v7161
      %v7238 = vadd.f32 %v6850, %v7164
      %v7239 = vadd.f32 %v6851, %v7166
      %v7240 = vadd.f32 %v6852, %v7169
      %v7241 = vadd.f32 %v6853, %v7171
      %v7242 = vadd.f32 %v6854, %v7174
      %v7243 = vadd.f32 %v6855, %v7176
      %v7244 = vadd.f32 %v6856, %v7179
      %v7245 = vadd.f32 %v6857, %v7181
      %v7246 = vlaneseq
      %v7247 = vshrl.u32 %v7246, 7
      %v7248 = vsub.s32 6, %v7247
      %v7249 = vrot.slane %v5362, %v7248
      %v7250 = vmul.f32 %v5314, %v7249
      %v7251 = vmul.f32 %v5315, %v7249
      %v7252 = vmul.f32 %v5317, %v7249
      %v7253 = vmul.f32 %v5318, %v7249
      %v7254 = vmul.f32 %v5320, %v7249
      %v7255 = vmul.f32 %v5321, %v7249
      %v7256 = vmul.f32 %v5323, %v7249
      %v7257 = vmul.f32 %v5324, %v7249
      %v7258 = vmul.f32 %v5326, %v7249
      %v7259 = vmul.f32 %v5327, %v7249
      %v7260 = vmul.f32 %v5329, %v7249
      %v7261 = vmul.f32 %v5330, %v7249
      %v7262 = vmul.f32 %v5332, %v7249
      %v7263 = vmul.f32 %v5333, %v7249
      %v7264 = vmul.f32 %v5335, %v7249
      %v7265 = vmul.f32 %v5336, %v7249
      %v7266 = vmul.f32 %v5338, %v7249
      %v7267 = vmul.f32 %v5339, %v7249
      %v7268 = vmul.f32 %v5341, %v7249
      %v7269 = vmul.f32 %v5342, %v7249
      %v7270 = vmul.f32 %v5344, %v7249
      %v7271 = vmul.f32 %v5345, %v7249
      %v7272 = vmul.f32 %v5347, %v7249
      %v7273 = vmul.f32 %v5348, %v7249
      %v7274 = vmul.f32 %v5350, %v7249
      %v7275 = vmul.f32 %v5351, %v7249
      %v7276 = vmul.f32 %v5353, %v7249
      %v7277 = vmul.f32 %v5354, %v7249
      %v7278 = vmul.f32 %v5356, %v7249
      %v7279 = vmul.f32 %v5357, %v7249
      %v7280 = vmul.f32 %v5359, %v7249
      %v7281 = vmul.f32 %v5360, %v7249
      %v7282 = vsel %vm428, %v7250, 0.0
      %7283 = vadd.xlane.f32.xlu0 %v7282
      %v7284 = vpop.xlane.xlu0 %7283
      %v7285 = vsel %vm428, %v7251, 0.0
      %7286 = vadd.xlane.f32.xlu0 %v7285
      %v7287 = vpop.xlane.xlu0 %7286
      %v7288 = vsel %vm428, %v7252, 0.0
      %7289 = vadd.xlane.f32.xlu0 %v7288
      %v7290 = vpop.xlane.xlu0 %7289
      %v7291 = vsel %vm428, %v7253, 0.0
      %7292 = vadd.xlane.f32.xlu0 %v7291
      %v7293 = vpop.xlane.xlu0 %7292
      %v7294 = vsel %vm428, %v7254, 0.0
      %7295 = vadd.xlane.f32.xlu0 %v7294
      %v7296 = vpop.xlane.xlu0 %7295
      %v7297 = vsel %vm428, %v7255, 0.0
      %7298 = vadd.xlane.f32.xlu0 %v7297
      %v7299 = vpop.xlane.xlu0 %7298
      %v7300 = vsel %vm428, %v7256, 0.0
      %7301 = vadd.xlane.f32.xlu0 %v7300
      %v7302 = vpop.xlane.xlu0 %7301
      %v7303 = vsel %vm428, %v7257, 0.0
      %7304 = vadd.xlane.f32.xlu0 %v7303
      %v7305 = vpop.xlane.xlu0 %7304
      %v7306 = vsel %vm428, %v7258, 0.0
      %7307 = vadd.xlane.f32.xlu0 %v7306
      %v7308 = vpop.xlane.xlu0 %7307
      %v7309 = vsel %vm428, %v7259, 0.0
      %7310 = vadd.xlane.f32.xlu0 %v7309
      %v7311 = vpop.xlane.xlu0 %7310
      %v7312 = vsel %vm428, %v7260, 0.0
      %7313 = vadd.xlane.f32.xlu0 %v7312
      %v7314 = vpop.xlane.xlu0 %7313
      %v7315 = vsel %vm428, %v7261, 0.0
      %7316 = vadd.xlane.f32.xlu0 %v7315
      %v7317 = vpop.xlane.xlu0 %7316
      %v7318 = vsel %vm428, %v7262, 0.0
      %7319 = vadd.xlane.f32.xlu0 %v7318
      %v7320 = vpop.xlane.xlu0 %7319
      %v7321 = vsel %vm428, %v7263, 0.0
      %7322 = vadd.xlane.f32.xlu0 %v7321
      %v7323 = vpop.xlane.xlu0 %7322
      %v7324 = vsel %vm428, %v7264, 0.0
      %7325 = vadd.xlane.f32.xlu0 %v7324
      %v7326 = vpop.xlane.xlu0 %7325
      %v7327 = vsel %vm428, %v7265, 0.0
      %7328 = vadd.xlane.f32.xlu0 %v7327
      %v7329 = vpop.xlane.xlu0 %7328
      %v7330 = vsel %vm428, %v7266, 0.0
      %7331 = vadd.xlane.f32.xlu0 %v7330
      %v7332 = vpop.xlane.xlu0 %7331
      %v7333 = vsel %vm428, %v7267, 0.0
      %7334 = vadd.xlane.f32.xlu0 %v7333
      %v7335 = vpop.xlane.xlu0 %7334
      %v7336 = vsel %vm428, %v7268, 0.0
      %7337 = vadd.xlane.f32.xlu0 %v7336
      %v7338 = vpop.xlane.xlu0 %7337
      %v7339 = vsel %vm428, %v7269, 0.0
      %7340 = vadd.xlane.f32.xlu0 %v7339
      %v7341 = vpop.xlane.xlu0 %7340
      %v7342 = vsel %vm428, %v7270, 0.0
      %7343 = vadd.xlane.f32.xlu0 %v7342
      %v7344 = vpop.xlane.xlu0 %7343
      %v7345 = vsel %vm428, %v7271, 0.0
      %7346 = vadd.xlane.f32.xlu0 %v7345
      %v7347 = vpop.xlane.xlu0 %7346
      %v7348 = vsel %vm428, %v7272, 0.0
      %7349 = vadd.xlane.f32.xlu0 %v7348
      %v7350 = vpop.xlane.xlu0 %7349
      %v7351 = vsel %vm428, %v7273, 0.0
      %7352 = vadd.xlane.f32.xlu0 %v7351
      %v7353 = vpop.xlane.xlu0 %7352
      %v7354 = vsel %vm428, %v7274, 0.0
      %7355 = vadd.xlane.f32.xlu0 %v7354
      %v7356 = vpop.xlane.xlu0 %7355
      %v7357 = vsel %vm428, %v7275, 0.0
      %7358 = vadd.xlane.f32.xlu0 %v7357
      %v7359 = vpop.xlane.xlu0 %7358
      %v7360 = vsel %vm428, %v7276, 0.0
      %7361 = vadd.xlane.f32.xlu0 %v7360
      %v7362 = vpop.xlane.xlu0 %7361
      %v7363 = vsel %vm428, %v7277, 0.0
      %7364 = vadd.xlane.f32.xlu0 %v7363
      %v7365 = vpop.xlane.xlu0 %7364
      %v7366 = vsel %vm428, %v7278, 0.0
      %7367 = vadd.xlane.f32.xlu0 %v7366
      %v7368 = vpop.xlane.xlu0 %7367
      %v7369 = vsel %vm428, %v7279, 0.0
      %7370 = vadd.xlane.f32.xlu0 %v7369
      %v7371 = vpop.xlane.xlu0 %7370
      %v7372 = vsel %vm428, %v7280, 0.0
      %7373 = vadd.xlane.f32.xlu0 %v7372
      %v7374 = vpop.xlane.xlu0 %7373
      %v7375 = vsel %vm428, %v7281, 0.0
      %7376 = vadd.xlane.f32.xlu0 %v7375
      %v7377 = vpop.xlane.xlu0 %7376
      %v7378 = vadd.f32 %v7214, %v7284
      %v7379 = vadd.f32 %v7215, %v7287
      %v7380 = vadd.f32 %v7216, %v7290
      %v7381 = vadd.f32 %v7217, %v7293
      %v7382 = vadd.f32 %v7218, %v7296
      %v7383 = vadd.f32 %v7219, %v7299
      %v7384 = vadd.f32 %v7220, %v7302
      %v7385 = vadd.f32 %v7221, %v7305
      %v7386 = vadd.f32 %v7222, %v7308
      %v7387 = vadd.f32 %v7223, %v7311
      %v7388 = vadd.f32 %v7224, %v7314
      %v7389 = vadd.f32 %v7225, %v7317
      %v7390 = vadd.f32 %v7226, %v7320
      %v7391 = vadd.f32 %v7227, %v7323
      %v7392 = vadd.f32 %v7228, %v7326
      %v7393 = vadd.f32 %v7229, %v7329
      %v7394 = vadd.f32 %v7230, %v7332
      %v7395 = vadd.f32 %v7231, %v7335
      %v7396 = vadd.f32 %v7232, %v7338
      %v7397 = vadd.f32 %v7233, %v7341
      %v7398 = vadd.f32 %v7234, %v7344
      %v7399 = vadd.f32 %v7235, %v7347
      %v7400 = vadd.f32 %v7236, %v7350
      %v7401 = vadd.f32 %v7237, %v7353
      %v7402 = vadd.f32 %v7238, %v7356
      %v7403 = vadd.f32 %v7239, %v7359
      %v7404 = vadd.f32 %v7240, %v7362
      %v7405 = vadd.f32 %v7241, %v7365
      %v7406 = vadd.f32 %v7242, %v7368
      %v7407 = vadd.f32 %v7243, %v7371
      %v7408 = vadd.f32 %v7244, %v7374
      %v7409 = vadd.f32 %v7245, %v7377
      %v7410 = vlaneseq
      %v7411 = vshrl.u32 %v7410, 7
      %v7412 = vsub.s32 7, %v7411
      %v7413 = vrot.slane %v5362, %v7412
      %v7414 = vmul.f32 %v5314, %v7413
      %v7415 = vmul.f32 %v5315, %v7413
      %v7416 = vmul.f32 %v5316, %v7413
      %v7417 = vmul.f32 %v5317, %v7413
      %v7418 = vmul.f32 %v5318, %v7413
      %v7419 = vmul.f32 %v5319, %v7413
      %v7420 = vmul.f32 %v5320, %v7413
      %v7421 = vmul.f32 %v5321, %v7413
      %v7422 = vmul.f32 %v5322, %v7413
      %v7423 = vmul.f32 %v5323, %v7413
      %v7424 = vmul.f32 %v5324, %v7413
      %v7425 = vmul.f32 %v5325, %v7413
      %v7426 = vmul.f32 %v5326, %v7413
      %v7427 = vmul.f32 %v5327, %v7413
      %v7428 = vmul.f32 %v5328, %v7413
      %v7429 = vmul.f32 %v5329, %v7413
      %v7430 = vmul.f32 %v5330, %v7413
      %v7431 = vmul.f32 %v5331, %v7413
      %v7432 = vmul.f32 %v5332, %v7413
      %v7433 = vmul.f32 %v5333, %v7413
      %v7434 = vmul.f32 %v5334, %v7413
      %v7435 = vmul.f32 %v5335, %v7413
      %v7436 = vmul.f32 %v5336, %v7413
      %v7437 = vmul.f32 %v5337, %v7413
      %v7438 = vmul.f32 %v5338, %v7413
      %v7439 = vmul.f32 %v5339, %v7413
      %v7440 = vmul.f32 %v5340, %v7413
      %v7441 = vmul.f32 %v5341, %v7413
      %v7442 = vmul.f32 %v5342, %v7413
      %v7443 = vmul.f32 %v5343, %v7413
      %v7444 = vmul.f32 %v5344, %v7413
      %v7445 = vmul.f32 %v5345, %v7413
      %v7446 = vmul.f32 %v5346, %v7413
      %v7447 = vmul.f32 %v5347, %v7413
      %v7448 = vmul.f32 %v5348, %v7413
      %v7449 = vmul.f32 %v5349, %v7413
      %v7450 = vmul.f32 %v5350, %v7413
      %v7451 = vmul.f32 %v5351, %v7413
      %v7452 = vmul.f32 %v5352, %v7413
      %v7453 = vmul.f32 %v5353, %v7413
      %v7454 = vmul.f32 %v5354, %v7413
      %v7455 = vmul.f32 %v5355, %v7413
      %v7456 = vmul.f32 %v5356, %v7413
      %v7457 = vmul.f32 %v5357, %v7413
      %v7458 = vmul.f32 %v5358, %v7413
      %v7459 = vmul.f32 %v5359, %v7413
      %v7460 = vmul.f32 %v5360, %v7413
      %v7461 = vmul.f32 %v5361, %v7413
      %v7462 = vsel %vm5580, %v7414, 0.0
      %7463 = vadd.xlane.f32.xlu0 %v7462
      %v7464 = vpop.xlane.xlu0 %7463
      %v7465 = vsel %vm428, %v7415, 0.0
      %7466 = vadd.xlane.f32.xlu0 %v7465
      %v7467 = vpop.xlane.xlu0 %7466
      %v7468 = vsel %vm437, %v7416, 0.0
      %7469 = vadd.xlane.f32.xlu0 %v7468
      %v7470 = vpop.xlane.xlu0 %7469
      %v7471 = vsel %vm5580, %v7417, 0.0
      %7472 = vadd.xlane.f32.xlu0 %v7471
      %v7473 = vpop.xlane.xlu0 %7472
      %v7474 = vsel %vm428, %v7418, 0.0
      %7475 = vadd.xlane.f32.xlu0 %v7474
      %v7476 = vpop.xlane.xlu0 %7475
      %v7477 = vsel %vm437, %v7419, 0.0
      %7478 = vadd.xlane.f32.xlu0 %v7477
      %v7479 = vpop.xlane.xlu0 %7478
      %v7480 = vsel %vm5580, %v7420, 0.0
      %7481 = vadd.xlane.f32.xlu0 %v7480
      %v7482 = vpop.xlane.xlu0 %7481
      %v7483 = vsel %vm428, %v7421, 0.0
      %7484 = vadd.xlane.f32.xlu0 %v7483
      %v7485 = vpop.xlane.xlu0 %7484
      %v7486 = vsel %vm437, %v7422, 0.0
      %7487 = vadd.xlane.f32.xlu0 %v7486
      %v7488 = vpop.xlane.xlu0 %7487
      %v7489 = vsel %vm5580, %v7423, 0.0
      %7490 = vadd.xlane.f32.xlu0 %v7489
      %v7491 = vpop.xlane.xlu0 %7490
      %v7492 = vsel %vm428, %v7424, 0.0
      %7493 = vadd.xlane.f32.xlu0 %v7492
      %v7494 = vpop.xlane.xlu0 %7493
      %v7495 = vsel %vm437, %v7425, 0.0
      %7496 = vadd.xlane.f32.xlu0 %v7495
      %v7497 = vpop.xlane.xlu0 %7496
      %v7498 = vsel %vm5580, %v7426, 0.0
      %7499 = vadd.xlane.f32.xlu0 %v7498
      %v7500 = vpop.xlane.xlu0 %7499
      %v7501 = vsel %vm428, %v7427, 0.0
      %7502 = vadd.xlane.f32.xlu0 %v7501
      %v7503 = vpop.xlane.xlu0 %7502
      %v7504 = vsel %vm437, %v7428, 0.0
      %7505 = vadd.xlane.f32.xlu0 %v7504
      %v7506 = vpop.xlane.xlu0 %7505
      %v7507 = vsel %vm5580, %v7429, 0.0
      %7508 = vadd.xlane.f32.xlu0 %v7507
      %v7509 = vpop.xlane.xlu0 %7508
      %v7510 = vsel %vm428, %v7430, 0.0
      %7511 = vadd.xlane.f32.xlu0 %v7510
      %v7512 = vpop.xlane.xlu0 %7511
      %v7513 = vsel %vm437, %v7431, 0.0
      %7514 = vadd.xlane.f32.xlu0 %v7513
      %v7515 = vpop.xlane.xlu0 %7514
      %v7516 = vsel %vm5580, %v7432, 0.0
      %7517 = vadd.xlane.f32.xlu0 %v7516
      %v7518 = vpop.xlane.xlu0 %7517
      %v7519 = vsel %vm428, %v7433, 0.0
      %7520 = vadd.xlane.f32.xlu0 %v7519
      %v7521 = vpop.xlane.xlu0 %7520
      %v7522 = vsel %vm437, %v7434, 0.0
      %7523 = vadd.xlane.f32.xlu0 %v7522
      %v7524 = vpop.xlane.xlu0 %7523
      %v7525 = vsel %vm5580, %v7435, 0.0
      %7526 = vadd.xlane.f32.xlu0 %v7525
      %v7527 = vpop.xlane.xlu0 %7526
      %v7528 = vsel %vm428, %v7436, 0.0
      %7529 = vadd.xlane.f32.xlu0 %v7528
      %v7530 = vpop.xlane.xlu0 %7529
      %v7531 = vsel %vm437, %v7437, 0.0
      %7532 = vadd.xlane.f32.xlu0 %v7531
      %v7533 = vpop.xlane.xlu0 %7532
      %v7534 = vsel %vm5580, %v7438, 0.0
      %7535 = vadd.xlane.f32.xlu0 %v7534
      %v7536 = vpop.xlane.xlu0 %7535
      %v7537 = vsel %vm428, %v7439, 0.0
      %7538 = vadd.xlane.f32.xlu0 %v7537
      %v7539 = vpop.xlane.xlu0 %7538
      %v7540 = vsel %vm437, %v7440, 0.0
      %7541 = vadd.xlane.f32.xlu0 %v7540
      %v7542 = vpop.xlane.xlu0 %7541
      %v7543 = vsel %vm5580, %v7441, 0.0
      %7544 = vadd.xlane.f32.xlu0 %v7543
      %v7545 = vpop.xlane.xlu0 %7544
      %v7546 = vsel %vm428, %v7442, 0.0
      %7547 = vadd.xlane.f32.xlu0 %v7546
      %v7548 = vpop.xlane.xlu0 %7547
      %v7549 = vsel %vm437, %v7443, 0.0
      %7550 = vadd.xlane.f32.xlu0 %v7549
      %v7551 = vpop.xlane.xlu0 %7550
      %v7552 = vsel %vm5580, %v7444, 0.0
      %7553 = vadd.xlane.f32.xlu0 %v7552
      %v7554 = vpop.xlane.xlu0 %7553
      %v7555 = vsel %vm428, %v7445, 0.0
      %7556 = vadd.xlane.f32.xlu0 %v7555
      %v7557 = vpop.xlane.xlu0 %7556
      %v7558 = vsel %vm437, %v7446, 0.0
      %7559 = vadd.xlane.f32.xlu0 %v7558
      %v7560 = vpop.xlane.xlu0 %7559
      %v7561 = vsel %vm5580, %v7447, 0.0
      %7562 = vadd.xlane.f32.xlu0 %v7561
      %v7563 = vpop.xlane.xlu0 %7562
      %v7564 = vsel %vm428, %v7448, 0.0
      %7565 = vadd.xlane.f32.xlu0 %v7564
      %v7566 = vpop.xlane.xlu0 %7565
      %v7567 = vsel %vm437, %v7449, 0.0
      %7568 = vadd.xlane.f32.xlu0 %v7567
      %v7569 = vpop.xlane.xlu0 %7568
      %v7570 = vsel %vm5580, %v7450, 0.0
      %7571 = vadd.xlane.f32.xlu0 %v7570
      %v7572 = vpop.xlane.xlu0 %7571
      %v7573 = vsel %vm428, %v7451, 0.0
      %7574 = vadd.xlane.f32.xlu0 %v7573
      %v7575 = vpop.xlane.xlu0 %7574
      %v7576 = vsel %vm437, %v7452, 0.0
      %7577 = vadd.xlane.f32.xlu0 %v7576
      %v7578 = vpop.xlane.xlu0 %7577
      %v7579 = vsel %vm5580, %v7453, 0.0
      %7580 = vadd.xlane.f32.xlu0 %v7579
      %v7581 = vpop.xlane.xlu0 %7580
      %v7582 = vsel %vm428, %v7454, 0.0
      %7583 = vadd.xlane.f32.xlu0 %v7582
      %v7584 = vpop.xlane.xlu0 %7583
      %v7585 = vsel %vm437, %v7455, 0.0
      %7586 = vadd.xlane.f32.xlu0 %v7585
      %v7587 = vpop.xlane.xlu0 %7586
      %v7588 = vsel %vm5580, %v7456, 0.0
      %7589 = vadd.xlane.f32.xlu0 %v7588
      %v7590 = vpop.xlane.xlu0 %7589
      %v7591 = vsel %vm428, %v7457, 0.0
      %7592 = vadd.xlane.f32.xlu0 %v7591
      %v7593 = vpop.xlane.xlu0 %7592
      %v7594 = vsel %vm437, %v7458, 0.0
      %7595 = vadd.xlane.f32.xlu0 %v7594
      %v7596 = vpop.xlane.xlu0 %7595
      %v7597 = vsel %vm5580, %v7459, 0.0
      %7598 = vadd.xlane.f32.xlu0 %v7597
      %v7599 = vpop.xlane.xlu0 %7598
      %v7600 = vsel %vm428, %v7460, 0.0
      %7601 = vadd.xlane.f32.xlu0 %v7600
      %v7602 = vpop.xlane.xlu0 %7601
      %v7603 = vsel %vm437, %v7461, 0.0
      %7604 = vadd.xlane.f32.xlu0 %v7603
      %v7605 = vpop.xlane.xlu0 %7604
      %v7654 = vrot.slane %v7464, 1
      %v7655 = vrot.slane %v7467, 1
      %v7656 = vsel %vm909, %v7654, %v7655
      %v7657 = vrot.slane %v7470, 1
      %v7658 = vsel %vm909, %v7655, %v7657
      %v7659 = vrot.slane %v7473, 1
      %v7660 = vrot.slane %v7476, 1
      %v7661 = vsel %vm909, %v7659, %v7660
      %v7662 = vrot.slane %v7479, 1
      %v7663 = vsel %vm909, %v7660, %v7662
      %v7664 = vrot.slane %v7482, 1
      %v7665 = vrot.slane %v7485, 1
      %v7666 = vsel %vm909, %v7664, %v7665
      %v7667 = vrot.slane %v7488, 1
      %v7668 = vsel %vm909, %v7665, %v7667
      %v7669 = vrot.slane %v7491, 1
      %v7670 = vrot.slane %v7494, 1
      %v7671 = vsel %vm909, %v7669, %v7670
      %v7672 = vrot.slane %v7497, 1
      %v7673 = vsel %vm909, %v7670, %v7672
      %v7674 = vrot.slane %v7500, 1
      %v7675 = vrot.slane %v7503, 1
      %v7676 = vsel %vm909, %v7674, %v7675
      %v7677 = vrot.slane %v7506, 1
      %v7678 = vsel %vm909, %v7675, %v7677
      %v7679 = vrot.slane %v7509, 1
      %v7680 = vrot.slane %v7512, 1
      %v7681 = vsel %vm909, %v7679, %v7680
      %v7682 = vrot.slane %v7515, 1
      %v7683 = vsel %vm909, %v7680, %v7682
      %v7684 = vrot.slane %v7518, 1
      %v7685 = vrot.slane %v7521, 1
      %v7686 = vsel %vm909, %v7684, %v7685
      %v7687 = vrot.slane %v7524, 1
      %v7688 = vsel %vm909, %v7685, %v7687
      %v7689 = vrot.slane %v7527, 1
      %v7690 = vrot.slane %v7530, 1
      %v7691 = vsel %vm909, %v7689, %v7690
      %v7692 = vrot.slane %v7533, 1
      %v7693 = vsel %vm909, %v7690, %v7692
      %v7694 = vrot.slane %v7536, 1
      %v7695 = vrot.slane %v7539, 1
      %v7696 = vsel %vm909, %v7694, %v7695
      %v7697 = vrot.slane %v7542, 1
      %v7698 = vsel %vm909, %v7695, %v7697
      %v7699 = vrot.slane %v7545, 1
      %v7700 = vrot.slane %v7548, 1
      %v7701 = vsel %vm909, %v7699, %v7700
      %v7702 = vrot.slane %v7551, 1
      %v7703 = vsel %vm909, %v7700, %v7702
      %v7704 = vrot.slane %v7554, 1
      %v7705 = vrot.slane %v7557, 1
      %v7706 = vsel %vm909, %v7704, %v7705
      %v7707 = vrot.slane %v7560, 1
      %v7708 = vsel %vm909, %v7705, %v7707
      %v7709 = vrot.slane %v7563, 1
      %v7710 = vrot.slane %v7566, 1
      %v7711 = vsel %vm909, %v7709, %v7710
      %v7712 = vrot.slane %v7569, 1
      %v7713 = vsel %vm909, %v7710, %v7712
      %v7714 = vrot.slane %v7572, 1
      %v7715 = vrot.slane %v7575, 1
      %v7716 = vsel %vm909, %v7714, %v7715
      %v7717 = vrot.slane %v7578, 1
      %v7718 = vsel %vm909, %v7715, %v7717
      %v7719 = vrot.slane %v7581, 1
      %v7720 = vrot.slane %v7584, 1
      %v7721 = vsel %vm909, %v7719, %v7720
      %v7722 = vrot.slane %v7587, 1
      %v7723 = vsel %vm909, %v7720, %v7722
      %v7724 = vrot.slane %v7590, 1
      %v7725 = vrot.slane %v7593, 1
      %v7726 = vsel %vm909, %v7724, %v7725
      %v7727 = vrot.slane %v7596, 1
      %v7728 = vsel %vm909, %v7725, %v7727
      %v7729 = vrot.slane %v7599, 1
      %v7730 = vrot.slane %v7602, 1
      %v7731 = vsel %vm909, %v7729, %v7730
      %v7732 = vrot.slane %v7605, 1
      %v7733 = vsel %vm909, %v7730, %v7732
      %v7766 = vadd.f32 %v7378, %v7656
      %v7767 = vadd.f32 %v7379, %v7658
      %v7768 = vadd.f32 %v7380, %v7661
      %v7769 = vadd.f32 %v7381, %v7663
      %v7770 = vadd.f32 %v7382, %v7666
      %v7771 = vadd.f32 %v7383, %v7668
      %v7772 = vadd.f32 %v7384, %v7671
      %v7773 = vadd.f32 %v7385, %v7673
      %v7774 = vadd.f32 %v7386, %v7676
      %v7775 = vadd.f32 %v7387, %v7678
      %v7776 = vadd.f32 %v7388, %v7681
      %v7777 = vadd.f32 %v7389, %v7683
      %v7778 = vadd.f32 %v7390, %v7686
      %v7779 = vadd.f32 %v7391, %v7688
      %v7780 = vadd.f32 %v7392, %v7691
      %v7781 = vadd.f32 %v7393, %v7693
      %v7782 = vadd.f32 %v7394, %v7696
      %v7783 = vadd.f32 %v7395, %v7698
      %v7784 = vadd.f32 %v7396, %v7701
      %v7785 = vadd.f32 %v7397, %v7703
      %v7786 = vadd.f32 %v7398, %v7706
      %v7787 = vadd.f32 %v7399, %v7708
      %v7788 = vadd.f32 %v7400, %v7711
      %v7789 = vadd.f32 %v7401, %v7713
      %v7790 = vadd.f32 %v7402, %v7716
      %v7791 = vadd.f32 %v7403, %v7718
      %v7792 = vadd.f32 %v7404, %v7721
      %v7793 = vadd.f32 %v7405, %v7723
      %v7794 = vadd.f32 %v7406, %v7726
      %v7795 = vadd.f32 %v7407, %v7728
      %v7796 = vadd.f32 %v7408, %v7731
      %v7797 = vadd.f32 %v7409, %v7733
      %v7798 = vlaneseq
      %v7799 = vshrl.u32 %v7798, 7
      %v7800 = vsub.s32 0, %v7799
      %v7801 = vrot.slane %v5363, %v7800
      %v7802 = vmul.f32 %v5314, %v7801
      %v7803 = vmul.f32 %v5315, %v7801
      %v7804 = vmul.f32 %v5316, %v7801
      %v7805 = vmul.f32 %v5317, %v7801
      %v7806 = vmul.f32 %v5318, %v7801
      %v7807 = vmul.f32 %v5319, %v7801
      %v7808 = vmul.f32 %v5320, %v7801
      %v7809 = vmul.f32 %v5321, %v7801
      %v7810 = vmul.f32 %v5322, %v7801
      %v7811 = vmul.f32 %v5323, %v7801
      %v7812 = vmul.f32 %v5324, %v7801
      %v7813 = vmul.f32 %v5325, %v7801
      %v7814 = vmul.f32 %v5326, %v7801
      %v7815 = vmul.f32 %v5327, %v7801
      %v7816 = vmul.f32 %v5328, %v7801
      %v7817 = vmul.f32 %v5329, %v7801
      %v7818 = vmul.f32 %v5330, %v7801
      %v7819 = vmul.f32 %v5331, %v7801
      %v7820 = vmul.f32 %v5332, %v7801
      %v7821 = vmul.f32 %v5333, %v7801
      %v7822 = vmul.f32 %v5334, %v7801
      %v7823 = vmul.f32 %v5335, %v7801
      %v7824 = vmul.f32 %v5336, %v7801
      %v7825 = vmul.f32 %v5337, %v7801
      %v7826 = vmul.f32 %v5338, %v7801
      %v7827 = vmul.f32 %v5339, %v7801
      %v7828 = vmul.f32 %v5340, %v7801
      %v7829 = vmul.f32 %v5341, %v7801
      %v7830 = vmul.f32 %v5342, %v7801
      %v7831 = vmul.f32 %v5343, %v7801
      %v7832 = vmul.f32 %v5344, %v7801
      %v7833 = vmul.f32 %v5345, %v7801
      %v7834 = vmul.f32 %v5346, %v7801
      %v7835 = vmul.f32 %v5347, %v7801
      %v7836 = vmul.f32 %v5348, %v7801
      %v7837 = vmul.f32 %v5349, %v7801
      %v7838 = vmul.f32 %v5350, %v7801
      %v7839 = vmul.f32 %v5351, %v7801
      %v7840 = vmul.f32 %v5352, %v7801
      %v7841 = vmul.f32 %v5353, %v7801
      %v7842 = vmul.f32 %v5354, %v7801
      %v7843 = vmul.f32 %v5355, %v7801
      %v7844 = vmul.f32 %v5356, %v7801
      %v7845 = vmul.f32 %v5357, %v7801
      %v7846 = vmul.f32 %v5358, %v7801
      %v7847 = vmul.f32 %v5359, %v7801
      %v7848 = vmul.f32 %v5360, %v7801
      %v7849 = vmul.f32 %v5361, %v7801
      %v7850 = vsel %vm5969, %v7802, 0.0
      %7851 = vadd.xlane.f32.xlu0 %v7850
      %v7852 = vpop.xlane.xlu0 %7851
      %v7853 = vsel %vm428, %v7803, 0.0
      %7854 = vadd.xlane.f32.xlu0 %v7853
      %v7855 = vpop.xlane.xlu0 %7854
      %v7856 = vsel %vm431, %v7804, 0.0
      %7857 = vadd.xlane.f32.xlu0 %v7856
      %v7858 = vpop.xlane.xlu0 %7857
      %v7859 = vsel %vm5969, %v7805, 0.0
      %7860 = vadd.xlane.f32.xlu0 %v7859
      %v7861 = vpop.xlane.xlu0 %7860
      %v7862 = vsel %vm428, %v7806, 0.0
      %7863 = vadd.xlane.f32.xlu0 %v7862
      %v7864 = vpop.xlane.xlu0 %7863
      %v7865 = vsel %vm431, %v7807, 0.0
      %7866 = vadd.xlane.f32.xlu0 %v7865
      %v7867 = vpop.xlane.xlu0 %7866
      %v7868 = vsel %vm5969, %v7808, 0.0
      %7869 = vadd.xlane.f32.xlu0 %v7868
      %v7870 = vpop.xlane.xlu0 %7869
      %v7871 = vsel %vm428, %v7809, 0.0
      %7872 = vadd.xlane.f32.xlu0 %v7871
      %v7873 = vpop.xlane.xlu0 %7872
      %v7874 = vsel %vm431, %v7810, 0.0
      %7875 = vadd.xlane.f32.xlu0 %v7874
      %v7876 = vpop.xlane.xlu0 %7875
      %v7877 = vsel %vm5969, %v7811, 0.0
      %7878 = vadd.xlane.f32.xlu0 %v7877
      %v7879 = vpop.xlane.xlu0 %7878
      %v7880 = vsel %vm428, %v7812, 0.0
      %7881 = vadd.xlane.f32.xlu0 %v7880
      %v7882 = vpop.xlane.xlu0 %7881
      %v7883 = vsel %vm431, %v7813, 0.0
      %7884 = vadd.xlane.f32.xlu0 %v7883
      %v7885 = vpop.xlane.xlu0 %7884
      %v7886 = vsel %vm5969, %v7814, 0.0
      %7887 = vadd.xlane.f32.xlu0 %v7886
      %v7888 = vpop.xlane.xlu0 %7887
      %v7889 = vsel %vm428, %v7815, 0.0
      %7890 = vadd.xlane.f32.xlu0 %v7889
      %v7891 = vpop.xlane.xlu0 %7890
      %v7892 = vsel %vm431, %v7816, 0.0
      %7893 = vadd.xlane.f32.xlu0 %v7892
      %v7894 = vpop.xlane.xlu0 %7893
      %v7895 = vsel %vm5969, %v7817, 0.0
      %7896 = vadd.xlane.f32.xlu0 %v7895
      %v7897 = vpop.xlane.xlu0 %7896
      %v7898 = vsel %vm428, %v7818, 0.0
      %7899 = vadd.xlane.f32.xlu0 %v7898
      %v7900 = vpop.xlane.xlu0 %7899
      %v7901 = vsel %vm431, %v7819, 0.0
      %7902 = vadd.xlane.f32.xlu0 %v7901
      %v7903 = vpop.xlane.xlu0 %7902
      %v7904 = vsel %vm5969, %v7820, 0.0
      %7905 = vadd.xlane.f32.xlu0 %v7904
      %v7906 = vpop.xlane.xlu0 %7905
      %v7907 = vsel %vm428, %v7821, 0.0
      %7908 = vadd.xlane.f32.xlu0 %v7907
      %v7909 = vpop.xlane.xlu0 %7908
      %v7910 = vsel %vm431, %v7822, 0.0
      %7911 = vadd.xlane.f32.xlu0 %v7910
      %v7912 = vpop.xlane.xlu0 %7911
      %v7913 = vsel %vm5969, %v7823, 0.0
      %7914 = vadd.xlane.f32.xlu0 %v7913
      %v7915 = vpop.xlane.xlu0 %7914
      %v7916 = vsel %vm428, %v7824, 0.0
      %7917 = vadd.xlane.f32.xlu0 %v7916
      %v7918 = vpop.xlane.xlu0 %7917
      %v7919 = vsel %vm431, %v7825, 0.0
      %7920 = vadd.xlane.f32.xlu0 %v7919
      %v7921 = vpop.xlane.xlu0 %7920
      %v7922 = vsel %vm5969, %v7826, 0.0
      %7923 = vadd.xlane.f32.xlu0 %v7922
      %v7924 = vpop.xlane.xlu0 %7923
      %v7925 = vsel %vm428, %v7827, 0.0
      %7926 = vadd.xlane.f32.xlu0 %v7925
      %v7927 = vpop.xlane.xlu0 %7926
      %v7928 = vsel %vm431, %v7828, 0.0
      %7929 = vadd.xlane.f32.xlu0 %v7928
      %v7930 = vpop.xlane.xlu0 %7929
      %v7931 = vsel %vm5969, %v7829, 0.0
      %7932 = vadd.xlane.f32.xlu0 %v7931
      %v7933 = vpop.xlane.xlu0 %7932
      %v7934 = vsel %vm428, %v7830, 0.0
      %7935 = vadd.xlane.f32.xlu0 %v7934
      %v7936 = vpop.xlane.xlu0 %7935
      %v7937 = vsel %vm431, %v7831, 0.0
      %7938 = vadd.xlane.f32.xlu0 %v7937
      %v7939 = vpop.xlane.xlu0 %7938
      %v7940 = vsel %vm5969, %v7832, 0.0
      %7941 = vadd.xlane.f32.xlu0 %v7940
      %v7942 = vpop.xlane.xlu0 %7941
      %v7943 = vsel %vm428, %v7833, 0.0
      %7944 = vadd.xlane.f32.xlu0 %v7943
      %v7945 = vpop.xlane.xlu0 %7944
      %v7946 = vsel %vm431, %v7834, 0.0
      %7947 = vadd.xlane.f32.xlu0 %v7946
      %v7948 = vpop.xlane.xlu0 %7947
      %v7949 = vsel %vm5969, %v7835, 0.0
      %7950 = vadd.xlane.f32.xlu0 %v7949
      %v7951 = vpop.xlane.xlu0 %7950
      %v7952 = vsel %vm428, %v7836, 0.0
      %7953 = vadd.xlane.f32.xlu0 %v7952
      %v7954 = vpop.xlane.xlu0 %7953
      %v7955 = vsel %vm431, %v7837, 0.0
      %7956 = vadd.xlane.f32.xlu0 %v7955
      %v7957 = vpop.xlane.xlu0 %7956
      %v7958 = vsel %vm5969, %v7838, 0.0
      %7959 = vadd.xlane.f32.xlu0 %v7958
      %v7960 = vpop.xlane.xlu0 %7959
      %v7961 = vsel %vm428, %v7839, 0.0
      %7962 = vadd.xlane.f32.xlu0 %v7961
      %v7963 = vpop.xlane.xlu0 %7962
      %v7964 = vsel %vm431, %v7840, 0.0
      %7965 = vadd.xlane.f32.xlu0 %v7964
      %v7966 = vpop.xlane.xlu0 %7965
      %v7967 = vsel %vm5969, %v7841, 0.0
      %7968 = vadd.xlane.f32.xlu0 %v7967
      %v7969 = vpop.xlane.xlu0 %7968
      %v7970 = vsel %vm428, %v7842, 0.0
      %7971 = vadd.xlane.f32.xlu0 %v7970
      %v7972 = vpop.xlane.xlu0 %7971
      %v7973 = vsel %vm431, %v7843, 0.0
      %7974 = vadd.xlane.f32.xlu0 %v7973
      %v7975 = vpop.xlane.xlu0 %7974
      %v7976 = vsel %vm5969, %v7844, 0.0
      %7977 = vadd.xlane.f32.xlu0 %v7976
      %v7978 = vpop.xlane.xlu0 %7977
      %v7979 = vsel %vm428, %v7845, 0.0
      %7980 = vadd.xlane.f32.xlu0 %v7979
      %v7981 = vpop.xlane.xlu0 %7980
      %v7982 = vsel %vm431, %v7846, 0.0
      %7983 = vadd.xlane.f32.xlu0 %v7982
      %v7984 = vpop.xlane.xlu0 %7983
      %v7985 = vsel %vm5969, %v7847, 0.0
      %7986 = vadd.xlane.f32.xlu0 %v7985
      %v7987 = vpop.xlane.xlu0 %7986
      %v7988 = vsel %vm428, %v7848, 0.0
      %7989 = vadd.xlane.f32.xlu0 %v7988
      %v7990 = vpop.xlane.xlu0 %7989
      %v7991 = vsel %vm431, %v7849, 0.0
      %7992 = vadd.xlane.f32.xlu0 %v7991
      %v7993 = vpop.xlane.xlu0 %7992
      %v8042 = vrot.slane %v7852, 2
      %v8043 = vrot.slane %v7855, 2
      %v8044 = vsel %vm1086, %v8042, %v8043
      %v8045 = vrot.slane %v7858, 2
      %v8046 = vsel %vm1086, %v8043, %v8045
      %v8047 = vrot.slane %v7861, 2
      %v8048 = vrot.slane %v7864, 2
      %v8049 = vsel %vm1086, %v8047, %v8048
      %v8050 = vrot.slane %v7867, 2
      %v8051 = vsel %vm1086, %v8048, %v8050
      %v8052 = vrot.slane %v7870, 2
      %v8053 = vrot.slane %v7873, 2
      %v8054 = vsel %vm1086, %v8052, %v8053
      %v8055 = vrot.slane %v7876, 2
      %v8056 = vsel %vm1086, %v8053, %v8055
      %v8057 = vrot.slane %v7879, 2
      %v8058 = vrot.slane %v7882, 2
      %v8059 = vsel %vm1086, %v8057, %v8058
      %v8060 = vrot.slane %v7885, 2
      %v8061 = vsel %vm1086, %v8058, %v8060
      %v8062 = vrot.slane %v7888, 2
      %v8063 = vrot.slane %v7891, 2
      %v8064 = vsel %vm1086, %v8062, %v8063
      %v8065 = vrot.slane %v7894, 2
      %v8066 = vsel %vm1086, %v8063, %v8065
      %v8067 = vrot.slane %v7897, 2
      %v8068 = vrot.slane %v7900, 2
      %v8069 = vsel %vm1086, %v8067, %v8068
      %v8070 = vrot.slane %v7903, 2
      %v8071 = vsel %vm1086, %v8068, %v8070
      %v8072 = vrot.slane %v7906, 2
      %v8073 = vrot.slane %v7909, 2
      %v8074 = vsel %vm1086, %v8072, %v8073
      %v8075 = vrot.slane %v7912, 2
      %v8076 = vsel %vm1086, %v8073, %v8075
      %v8077 = vrot.slane %v7915, 2
      %v8078 = vrot.slane %v7918, 2
      %v8079 = vsel %vm1086, %v8077, %v8078
      %v8080 = vrot.slane %v7921, 2
      %v8081 = vsel %vm1086, %v8078, %v8080
      %v8082 = vrot.slane %v7924, 2
      %v8083 = vrot.slane %v7927, 2
      %v8084 = vsel %vm1086, %v8082, %v8083
      %v8085 = vrot.slane %v7930, 2
      %v8086 = vsel %vm1086, %v8083, %v8085
      %v8087 = vrot.slane %v7933, 2
      %v8088 = vrot.slane %v7936, 2
      %v8089 = vsel %vm1086, %v8087, %v8088
      %v8090 = vrot.slane %v7939, 2
      %v8091 = vsel %vm1086, %v8088, %v8090
      %v8092 = vrot.slane %v7942, 2
      %v8093 = vrot.slane %v7945, 2
      %v8094 = vsel %vm1086, %v8092, %v8093
      %v8095 = vrot.slane %v7948, 2
      %v8096 = vsel %vm1086, %v8093, %v8095
      %v8097 = vrot.slane %v7951, 2
      %v8098 = vrot.slane %v7954, 2
      %v8099 = vsel %vm1086, %v8097, %v8098
      %v8100 = vrot.slane %v7957, 2
      %v8101 = vsel %vm1086, %v8098, %v8100
      %v8102 = vrot.slane %v7960, 2
      %v8103 = vrot.slane %v7963, 2
      %v8104 = vsel %vm1086, %v8102, %v8103
      %v8105 = vrot.slane %v7966, 2
      %v8106 = vsel %vm1086, %v8103, %v8105
      %v8107 = vrot.slane %v7969, 2
      %v8108 = vrot.slane %v7972, 2
      %v8109 = vsel %vm1086, %v8107, %v8108
      %v8110 = vrot.slane %v7975, 2
      %v8111 = vsel %vm1086, %v8108, %v8110
      %v8112 = vrot.slane %v7978, 2
      %v8113 = vrot.slane %v7981, 2
      %v8114 = vsel %vm1086, %v8112, %v8113
      %v8115 = vrot.slane %v7984, 2
      %v8116 = vsel %vm1086, %v8113, %v8115
      %v8117 = vrot.slane %v7987, 2
      %v8118 = vrot.slane %v7990, 2
      %v8119 = vsel %vm1086, %v8117, %v8118
      %v8120 = vrot.slane %v7993, 2
      %v8121 = vsel %vm1086, %v8118, %v8120
      %v8154 = vadd.f32 %v7766, %v8044
      %v8155 = vadd.f32 %v7767, %v8046
      %v8156 = vadd.f32 %v7768, %v8049
      %v8157 = vadd.f32 %v7769, %v8051
      %v8158 = vadd.f32 %v7770, %v8054
      %v8159 = vadd.f32 %v7771, %v8056
      %v8160 = vadd.f32 %v7772, %v8059
      %v8161 = vadd.f32 %v7773, %v8061
      %v8162 = vadd.f32 %v7774, %v8064
      %v8163 = vadd.f32 %v7775, %v8066
      %v8164 = vadd.f32 %v7776, %v8069
      %v8165 = vadd.f32 %v7777, %v8071
      %v8166 = vadd.f32 %v7778, %v8074
      %v8167 = vadd.f32 %v7779, %v8076
      %v8168 = vadd.f32 %v7780, %v8079
      %v8169 = vadd.f32 %v7781, %v8081
      %v8170 = vadd.f32 %v7782, %v8084
      %v8171 = vadd.f32 %v7783, %v8086
      %v8172 = vadd.f32 %v7784, %v8089
      %v8173 = vadd.f32 %v7785, %v8091
      %v8174 = vadd.f32 %v7786, %v8094
      %v8175 = vadd.f32 %v7787, %v8096
      %v8176 = vadd.f32 %v7788, %v8099
      %v8177 = vadd.f32 %v7789, %v8101
      %v8178 = vadd.f32 %v7790, %v8104
      %v8179 = vadd.f32 %v7791, %v8106
      %v8180 = vadd.f32 %v7792, %v8109
      %v8181 = vadd.f32 %v7793, %v8111
      %v8182 = vadd.f32 %v7794, %v8114
      %v8183 = vadd.f32 %v7795, %v8116
      %v8184 = vadd.f32 %v7796, %v8119
      %v8185 = vadd.f32 %v7797, %v8121
      %v8186 = vld [vmem:[#allocation5] sm:$0x1]
      %v8188 = vlaneseq
      %v8189 = vshrl.u32 %v8188, 7
      %v8190 = vsub.s32 0, %v8189
      %v8191 = vrot.slane %v8186, %v8190
      %v8193 = vadd.f32 %v8154, %v8191
      %v8194 = vadd.f32 %v8155, %v8191
      %v8195 = vadd.f32 %v8156, %v8191
      %v8196 = vadd.f32 %v8157, %v8191
      %v8197 = vadd.f32 %v8158, %v8191
      %v8198 = vadd.f32 %v8159, %v8191
      %v8199 = vadd.f32 %v8160, %v8191
      %v8200 = vadd.f32 %v8161, %v8191
      %v8201 = vadd.f32 %v8162, %v8191
      %v8202 = vadd.f32 %v8163, %v8191
      %v8203 = vadd.f32 %v8164, %v8191
      %v8204 = vadd.f32 %v8165, %v8191
      %v8205 = vadd.f32 %v8166, %v8191
      %v8206 = vadd.f32 %v8167, %v8191
      %v8207 = vadd.f32 %v8168, %v8191
      %v8208 = vadd.f32 %v8169, %v8191
      %v8209 = vadd.f32 %v8170, %v8191
      %v8210 = vadd.f32 %v8171, %v8191
      %v8211 = vadd.f32 %v8172, %v8191
      %v8212 = vadd.f32 %v8173, %v8191
      %v8213 = vadd.f32 %v8174, %v8191
      %v8214 = vadd.f32 %v8175, %v8191
      %v8215 = vadd.f32 %v8176, %v8191
      %v8216 = vadd.f32 %v8177, %v8191
      %v8217 = vadd.f32 %v8178, %v8191
      %v8218 = vadd.f32 %v8179, %v8191
      %v8219 = vadd.f32 %v8180, %v8191
      %v8220 = vadd.f32 %v8181, %v8191
      %v8221 = vadd.f32 %v8182, %v8191
      %v8222 = vadd.f32 %v8183, %v8191
      %v8223 = vadd.f32 %v8184, %v8191
      %v8224 = vadd.f32 %v8185, %v8191
      %v8225 = vld [vmem:[%s376] sm:$0xff]
      %v8226 = vld [vmem:[%s376 + $0x8] sm:$0xff]
      %v8227 = vld [vmem:[%s376 + $0x10] sm:$0xff]
      %v8228 = vld [vmem:[%s376 + $0x18] sm:$0xff]
      %v8229 = vld [vmem:[%s376 + $0x20] sm:$0xff]
      %v8230 = vld [vmem:[%s376 + $0x28] sm:$0xff]
      %v8231 = vld [vmem:[%s376 + $0x30] sm:$0xff]
      %v8232 = vld [vmem:[%s376 + $0x38] sm:$0xff]
      %v8233 = vld [vmem:[%s376 + $0x40] sm:$0xff]
      %v8234 = vld [vmem:[%s376 + $0x48] sm:$0xff]
      %v8235 = vld [vmem:[%s376 + $0x50] sm:$0xff]
      %v8236 = vld [vmem:[%s376 + $0x58] sm:$0xff]
      %v8237 = vld [vmem:[%s376 + $0x60] sm:$0xff]
      %v8238 = vld [vmem:[%s376 + $0x68] sm:$0xff]
      %v8239 = vld [vmem:[%s376 + $0x70] sm:$0xff]
      %v8240 = vld [vmem:[%s376 + $0x78] sm:$0xff]
      %v8241 = vld [vmem:[%s376 + $0x80] sm:$0xff]
      %v8242 = vld [vmem:[%s376 + $0x88] sm:$0xff]
      %v8243 = vld [vmem:[%s376 + $0x90] sm:$0xff]
      %v8244 = vld [vmem:[%s376 + $0x98] sm:$0xff]
      %v8245 = vld [vmem:[%s376 + $0xa0] sm:$0xff]
      %v8246 = vld [vmem:[%s376 + $0xa8] sm:$0xff]
      %v8247 = vld [vmem:[%s376 + $0xb0] sm:$0xff]
      %v8248 = vld [vmem:[%s376 + $0xb8] sm:$0xff]
      %v8249 = vld [vmem:[%s376 + $0xc0] sm:$0xff]
      %v8250 = vld [vmem:[%s376 + $0xc8] sm:$0xff]
      %v8251 = vld [vmem:[%s376 + $0xd0] sm:$0xff]
      %v8252 = vld [vmem:[%s376 + $0xd8] sm:$0xff]
      %v8253 = vld [vmem:[%s376 + $0xe0] sm:$0xff]
      %v8254 = vld [vmem:[%s376 + $0xe8] sm:$0xff]
      %v8255 = vld [vmem:[%s376 + $0xf0] sm:$0xff]
      %v8256 = vld [vmem:[%s376 + $0xf8] sm:$0xff]
      %v8257 = vadd.f32 %v8193, %v8225
      %v8258 = vadd.f32 %v8194, %v8226
      %v8259 = vadd.f32 %v8195, %v8227
      %v8260 = vadd.f32 %v8196, %v8228
      %v8261 = vadd.f32 %v8197, %v8229
      %v8262 = vadd.f32 %v8198, %v8230
      %v8263 = vadd.f32 %v8199, %v8231
      %v8264 = vadd.f32 %v8200, %v8232
      %v8265 = vadd.f32 %v8201, %v8233
      %v8266 = vadd.f32 %v8202, %v8234
      %v8267 = vadd.f32 %v8203, %v8235
      %v8268 = vadd.f32 %v8204, %v8236
      %v8269 = vadd.f32 %v8205, %v8237
      %v8270 = vadd.f32 %v8206, %v8238
      %v8271 = vadd.f32 %v8207, %v8239
      %v8272 = vadd.f32 %v8208, %v8240
      %v8273 = vadd.f32 %v8209, %v8241
      %v8274 = vadd.f32 %v8210, %v8242
      %v8275 = vadd.f32 %v8211, %v8243
      %v8276 = vadd.f32 %v8212, %v8244
      %v8277 = vadd.f32 %v8213, %v8245
      %v8278 = vadd.f32 %v8214, %v8246
      %v8279 = vadd.f32 %v8215, %v8247
      %v8280 = vadd.f32 %v8216, %v8248
      %v8281 = vadd.f32 %v8217, %v8249
      %v8282 = vadd.f32 %v8218, %v8250
      %v8283 = vadd.f32 %v8219, %v8251
      %v8284 = vadd.f32 %v8220, %v8252
      %v8285 = vadd.f32 %v8221, %v8253
      %v8286 = vadd.f32 %v8222, %v8254
      %v8287 = vadd.f32 %v8223, %v8255
      %v8288 = vadd.f32 %v8224, %v8256
      %v8289 = vsub.f32 0.0, %v8257
      %v8290 = vsub.f32 0.0, %v8258
      %v8291 = vsub.f32 0.0, %v8259
      %v8292 = vsub.f32 0.0, %v8260
      %v8293 = vsub.f32 0.0, %v8261
      %v8294 = vsub.f32 0.0, %v8262
      %v8295 = vsub.f32 0.0, %v8263
      %v8296 = vsub.f32 0.0, %v8264
      %v8297 = vsub.f32 0.0, %v8265
      %v8298 = vsub.f32 0.0, %v8266
      %v8299 = vsub.f32 0.0, %v8267
      %v8300 = vsub.f32 0.0, %v8268
      %v8301 = vsub.f32 0.0, %v8269
      %v8302 = vsub.f32 0.0, %v8270
      %v8303 = vsub.f32 0.0, %v8271
      %v8304 = vsub.f32 0.0, %v8272
      %v8305 = vsub.f32 0.0, %v8273
      %v8306 = vsub.f32 0.0, %v8274
      %v8307 = vsub.f32 0.0, %v8275
      %v8308 = vsub.f32 0.0, %v8276
      %v8309 = vsub.f32 0.0, %v8277
      %v8310 = vsub.f32 0.0, %v8278
      %v8311 = vsub.f32 0.0, %v8279
      %v8312 = vsub.f32 0.0, %v8280
      %v8313 = vsub.f32 0.0, %v8281
      %v8314 = vsub.f32 0.0, %v8282
      %v8315 = vsub.f32 0.0, %v8283
      %v8316 = vsub.f32 0.0, %v8284
      %v8317 = vsub.f32 0.0, %v8285
      %v8318 = vsub.f32 0.0, %v8286
      %v8319 = vsub.f32 0.0, %v8287
      %v8320 = vsub.f32 0.0, %v8288
      %v8321 = vmul.f32 %v8289, 1.442695
      %v8322 = vpow.pop %v8321
      %v8323 = vmul.f32 %v8290, 1.442695
      %v8324 = vpow.pop %v8323
      %v8325 = vmul.f32 %v8291, 1.442695
      %v8326 = vpow.pop %v8325
      %v8327 = vmul.f32 %v8292, 1.442695
      %v8328 = vpow.pop %v8327
      %v8329 = vmul.f32 %v8293, 1.442695
      %v8330 = vpow.pop %v8329
      %v8331 = vmul.f32 %v8294, 1.442695
      %v8332 = vpow.pop %v8331
      %v8333 = vmul.f32 %v8295, 1.442695
      %v8334 = vpow.pop %v8333
      %v8335 = vmul.f32 %v8296, 1.442695
      %v8336 = vpow.pop %v8335
      %v8337 = vmul.f32 %v8297, 1.442695
      %v8338 = vpow.pop %v8337
      %v8339 = vmul.f32 %v8298, 1.442695
      %v8340 = vpow.pop %v8339
      %v8341 = vmul.f32 %v8299, 1.442695
      %v8342 = vpow.pop %v8341
      %v8343 = vmul.f32 %v8300, 1.442695
      %v8344 = vpow.pop %v8343
      %v8345 = vmul.f32 %v8301, 1.442695
      %v8346 = vpow.pop %v8345
      %v8347 = vmul.f32 %v8302, 1.442695
      %v8348 = vpow.pop %v8347
      %v8349 = vmul.f32 %v8303, 1.442695
      %v8350 = vpow.pop %v8349
      %v8351 = vmul.f32 %v8304, 1.442695
      %v8352 = vpow.pop %v8351
      %v8353 = vmul.f32 %v8305, 1.442695
      %v8354 = vpow.pop %v8353
      %v8355 = vmul.f32 %v8306, 1.442695
      %v8356 = vpow.pop %v8355
      %v8357 = vmul.f32 %v8307, 1.442695
      %v8358 = vpow.pop %v8357
      %v8359 = vmul.f32 %v8308, 1.442695
      %v8360 = vpow.pop %v8359
      %v8361 = vmul.f32 %v8309, 1.442695
      %v8362 = vpow.pop %v8361
      %v8363 = vmul.f32 %v8310, 1.442695
      %v8364 = vpow.pop %v8363
      %v8365 = vmul.f32 %v8311, 1.442695
      %v8366 = vpow.pop %v8365
      %v8367 = vmul.f32 %v8312, 1.442695
      %v8368 = vpow.pop %v8367
      %v8369 = vmul.f32 %v8313, 1.442695
      %v8370 = vpow.pop %v8369
      %v8371 = vmul.f32 %v8314, 1.442695
      %v8372 = vpow.pop %v8371
      %v8373 = vmul.f32 %v8315, 1.442695
      %v8374 = vpow.pop %v8373
      %v8375 = vmul.f32 %v8316, 1.442695
      %v8376 = vpow.pop %v8375
      %v8377 = vmul.f32 %v8317, 1.442695
      %v8378 = vpow.pop %v8377
      %v8379 = vmul.f32 %v8318, 1.442695
      %v8380 = vpow.pop %v8379
      %v8381 = vmul.f32 %v8319, 1.442695
      %v8382 = vpow.pop %v8381
      %v8383 = vmul.f32 %v8320, 1.442695
      %v8384 = vpow.pop %v8383
      %v8385 = vadd.f32 %v8322, 1.0
      %v8386 = vadd.f32 %v8324, 1.0
      %v8387 = vadd.f32 %v8326, 1.0
      %v8388 = vadd.f32 %v8328, 1.0
      %v8389 = vadd.f32 %v8330, 1.0
      %v8390 = vadd.f32 %v8332, 1.0
      %v8391 = vadd.f32 %v8334, 1.0
      %v8392 = vadd.f32 %v8336, 1.0
      %v8393 = vadd.f32 %v8338, 1.0
      %v8394 = vadd.f32 %v8340, 1.0
      %v8395 = vadd.f32 %v8342, 1.0
      %v8396 = vadd.f32 %v8344, 1.0
      %v8397 = vadd.f32 %v8346, 1.0
      %v8398 = vadd.f32 %v8348, 1.0
      %v8399 = vadd.f32 %v8350, 1.0
      %v8400 = vadd.f32 %v8352, 1.0
      %v8401 = vadd.f32 %v8354, 1.0
      %v8402 = vadd.f32 %v8356, 1.0
      %v8403 = vadd.f32 %v8358, 1.0
      %v8404 = vadd.f32 %v8360, 1.0
      %v8405 = vadd.f32 %v8362, 1.0
      %v8406 = vadd.f32 %v8364, 1.0
      %v8407 = vadd.f32 %v8366, 1.0
      %v8408 = vadd.f32 %v8368, 1.0
      %v8409 = vadd.f32 %v8370, 1.0
      %v8410 = vadd.f32 %v8372, 1.0
      %v8411 = vadd.f32 %v8374, 1.0
      %v8412 = vadd.f32 %v8376, 1.0
      %v8413 = vadd.f32 %v8378, 1.0
      %v8414 = vadd.f32 %v8380, 1.0
      %v8415 = vadd.f32 %v8382, 1.0
      %v8416 = vadd.f32 %v8384, 1.0
      %v8417 = vrcp.pop %v8385
      %v8418 = vmul.f32 1.0, %v8417
      %v8419 = vrcp.pop %v8386
      %v8420 = vmul.f32 1.0, %v8419
      %v8421 = vrcp.pop %v8387
      %v8422 = vmul.f32 1.0, %v8421
      %v8423 = vrcp.pop %v8388
      %v8424 = vmul.f32 1.0, %v8423
      %v8425 = vrcp.pop %v8389
      %v8426 = vmul.f32 1.0, %v8425
      %v8427 = vrcp.pop %v8390
      %v8428 = vmul.f32 1.0, %v8427
      %v8429 = vrcp.pop %v8391
      %v8430 = vmul.f32 1.0, %v8429
      %v8431 = vrcp.pop %v8392
      %v8432 = vmul.f32 1.0, %v8431
      %v8433 = vrcp.pop %v8393
      %v8434 = vmul.f32 1.0, %v8433
      %v8435 = vrcp.pop %v8394
      %v8436 = vmul.f32 1.0, %v8435
      %v8437 = vrcp.pop %v8395
      %v8438 = vmul.f32 1.0, %v8437
      %v8439 = vrcp.pop %v8396
      %v8440 = vmul.f32 1.0, %v8439
      %v8441 = vrcp.pop %v8397
      %v8442 = vmul.f32 1.0, %v8441
      %v8443 = vrcp.pop %v8398
      %v8444 = vmul.f32 1.0, %v8443
      %v8445 = vrcp.pop %v8399
      %v8446 = vmul.f32 1.0, %v8445
      %v8447 = vrcp.pop %v8400
      %v8448 = vmul.f32 1.0, %v8447
      %v8449 = vrcp.pop %v8401
      %v8450 = vmul.f32 1.0, %v8449
      %v8451 = vrcp.pop %v8402
      %v8452 = vmul.f32 1.0, %v8451
      %v8453 = vrcp.pop %v8403
      %v8454 = vmul.f32 1.0, %v8453
      %v8455 = vrcp.pop %v8404
      %v8456 = vmul.f32 1.0, %v8455
      %v8457 = vrcp.pop %v8405
      %v8458 = vmul.f32 1.0, %v8457
      %v8459 = vrcp.pop %v8406
      %v8460 = vmul.f32 1.0, %v8459
      %v8461 = vrcp.pop %v8407
      %v8462 = vmul.f32 1.0, %v8461
      %v8463 = vrcp.pop %v8408
      %v8464 = vmul.f32 1.0, %v8463
      %v8465 = vrcp.pop %v8409
      %v8466 = vmul.f32 1.0, %v8465
      %v8467 = vrcp.pop %v8410
      %v8468 = vmul.f32 1.0, %v8467
      %v8469 = vrcp.pop %v8411
      %v8470 = vmul.f32 1.0, %v8469
      %v8471 = vrcp.pop %v8412
      %v8472 = vmul.f32 1.0, %v8471
      %v8473 = vrcp.pop %v8413
      %v8474 = vmul.f32 1.0, %v8473
      %v8475 = vrcp.pop %v8414
      %v8476 = vmul.f32 1.0, %v8475
      %v8477 = vrcp.pop %v8415
      %v8478 = vmul.f32 1.0, %v8477
      %v8479 = vrcp.pop %v8416
      %v8480 = vmul.f32 1.0, %v8479
      %vm8481 = vcmask 7168
      %8482 = vst.msk [vmem:[%s381] sm:$0xff] %vm8481, %v8418
      %8483 = vst.msk [vmem:[%s381 + $0x8] sm:$0xff] %vm8481, %v8420
      %8484 = vst.msk [vmem:[%s381 + $0x10] sm:$0xff] %vm8481, %v8422
      %8485 = vst.msk [vmem:[%s381 + $0x18] sm:$0xff] %vm8481, %v8424
      %8486 = vst.msk [vmem:[%s381 + $0x20] sm:$0xff] %vm8481, %v8426
      %8487 = vst.msk [vmem:[%s381 + $0x28] sm:$0xff] %vm8481, %v8428
      %8488 = vst.msk [vmem:[%s381 + $0x30] sm:$0xff] %vm8481, %v8430
      %8489 = vst.msk [vmem:[%s381 + $0x38] sm:$0xff] %vm8481, %v8432
      %8490 = vst.msk [vmem:[%s381 + $0x40] sm:$0xff] %vm8481, %v8434
      %8491 = vst.msk [vmem:[%s381 + $0x48] sm:$0xff] %vm8481, %v8436
      %8492 = vst.msk [vmem:[%s381 + $0x50] sm:$0xff] %vm8481, %v8438
      %8493 = vst.msk [vmem:[%s381 + $0x58] sm:$0xff] %vm8481, %v8440
      %8494 = vst.msk [vmem:[%s381 + $0x60] sm:$0xff] %vm8481, %v8442
      %8495 = vst.msk [vmem:[%s381 + $0x68] sm:$0xff] %vm8481, %v8444
      %8496 = vst.msk [vmem:[%s381 + $0x70] sm:$0xff] %vm8481, %v8446
      %8497 = vst.msk [vmem:[%s381 + $0x78] sm:$0xff] %vm8481, %v8448
      %8498 = vst.msk [vmem:[%s381 + $0x80] sm:$0xff] %vm8481, %v8450
      %8499 = vst.msk [vmem:[%s381 + $0x88] sm:$0xff] %vm8481, %v8452
      %8500 = vst.msk [vmem:[%s381 + $0x90] sm:$0xff] %vm8481, %v8454
      %8501 = vst.msk [vmem:[%s381 + $0x98] sm:$0xff] %vm8481, %v8456
      %8502 = vst.msk [vmem:[%s381 + $0xa0] sm:$0xff] %vm8481, %v8458
      %8503 = vst.msk [vmem:[%s381 + $0xa8] sm:$0xff] %vm8481, %v8460
      %8504 = vst.msk [vmem:[%s381 + $0xb0] sm:$0xff] %vm8481, %v8462
      %8505 = vst.msk [vmem:[%s381 + $0xb8] sm:$0xff] %vm8481, %v8464
      %8506 = vst.msk [vmem:[%s381 + $0xc0] sm:$0xff] %vm8481, %v8466
      %8507 = vst.msk [vmem:[%s381 + $0xc8] sm:$0xff] %vm8481, %v8468
      %8508 = vst.msk [vmem:[%s381 + $0xd0] sm:$0xff] %vm8481, %v8470
      %8509 = vst.msk [vmem:[%s381 + $0xd8] sm:$0xff] %vm8481, %v8472
      %8510 = vst.msk [vmem:[%s381 + $0xe0] sm:$0xff] %vm8481, %v8474
      %8511 = vst.msk [vmem:[%s381 + $0xe8] sm:$0xff] %vm8481, %v8476
      %8512 = vst.msk [vmem:[%s381 + $0xf0] sm:$0xff] %vm8481, %v8478
      %8513 = vst.msk [vmem:[%s381 + $0xf8] sm:$0xff] %vm8481, %v8480
      %p8514 = scmp.lt.s32.totalorder %s23, 1
      %s8515 = scalar_select %p8514, %s23, 1
      %s8516 = smul.addr %s8515, 32
      %s8517 = smul.addr %s8516, 8
      %s8518 = scalar_lea.vmem %s10, %s8517
      // Predicated region
      $region61: #{refinement_forward.1} parent=59 // pred_check
        %p8519 = pneg %p261
      $region62: #{refinement_forward.1} parent=59 // pred_check_branch
        %8521 = sbr.rel (%p8519) target = $region64
      $region63: #{refinement_forward.1} parent=59 // pred_region
        _
      $region64: #{refinement_forward.1} parent=59 // pred_fallthru
        _
    $region60: #{refinement_forward.1} parent=5 // pred_fallthru
      _
    %p8522 = scmp.le.s32.totalorder 2, %s18
    // Predicated region
    $region65: #{refinement_forward.1} parent=5 // pred_check
      %p8523 = pneg %p8522
    $region66: #{refinement_forward.1} parent=5 // pred_check_branch
      %8525 = sbr.rel (%p8523) target = $region68
    $region67: #{refinement_forward.1} parent=5 // pred_region
      %s8526 = ssub.s32 %s18, 2
      // Predicated region
      $region69: #{refinement_forward.1} parent=67 // pred_check
        %p8527 = pneg %p267
      $region70: #{refinement_forward.1} parent=67 // pred_check_branch
        %8529 = sbr.rel (%p8527) target = $region72
      $region71: #{refinement_forward.1} parent=67 // pred_region
        %p8530 = scmp.lt.s32.totalorder %s24, 1
        %s8531 = scalar_select %p8530, %s24, 1
        %s8532 = smul.addr %s8531, 32
        %s8533 = smul.addr %s8532, 8
        %s8534 = scalar_lea.vmem %s10, %s8533
      $region72: #{refinement_forward.1} parent=67 // pred_fallthru
        _
    $region68: #{refinement_forward.1} parent=5 // pred_fallthru
      _
  $region6: #{refinement_forward.1} parent=0 // loop_footer
    %s22 = sadd.s32 1, %s18
  $region7: #{refinement_forward.1} parent=0 // loop_footer_branch
    %17 = sbr.rel target = $region3
  $region8: #{refinement_forward.1} parent=0 // loop_exit
    _

</llo_original>
